<compile_context>
chip_gen: v6e
topology: v6e:2x2x1
jax: 0.10.0
libtpu: 0.0.40
codegen_flags: <defaults>
</compile_context>

<pallas_src>
import math
import functools

import jax
import jax.numpy as jnp
import numpy as np
from jax.experimental import pallas as pl
from jax.experimental.pallas import tpu as pltpu


# ---------------------------------------------------------------------------
# In-kernel building blocks (traced helpers operating on f32 jnp arrays)
# ---------------------------------------------------------------------------

def _mha_core(Q, K, V, mask, wo, bo, *, num_heads, d_k, d_pad):
    """Multi-head scaled-dot-product attention on lane-padded (S, d_pad) data.

    Head h lives in lanes [h*d_k, (h+1)*d_k).  Q and V are masked with the
    per-head lane mask so each score matmul contracts the full 128 lanes and
    P@V drops head h's output directly into its own lane range (combine_heads
    for free).  Padded lanes (>= num_heads*d_k) stay zero.
    """
    scale = 1.0 / math.sqrt(d_k)
    lane = jax.lax.broadcasted_iota(jnp.int32, (1, d_pad), 1)
    acc = jnp.zeros((Q.shape[0], d_pad), jnp.float32)
    for h in range(num_heads):
        hm = ((lane >= h * d_k) & (lane < (h + 1) * d_k)).astype(jnp.float32)
        qh = Q * hm
        # s[q, k] = sum_d Qh[q, d] * K[k, d]  (only head-h lanes contribute)
        s = jnp.einsum('qd,kd->qk', qh, K,
                       preferred_element_type=jnp.float32) * scale
        s = jnp.where(mask, s, -1e9)
        s = s - jnp.max(s, axis=-1, keepdims=True)
        e = jnp.exp(s)
        p = e / jnp.sum(e, axis=-1, keepdims=True)          # exact normalise
        acc = acc + jnp.dot(p, V * hm, preferred_element_type=jnp.float32)
    return jnp.dot(acc, wo, preferred_element_type=jnp.float32) + bo


def _add_layernorm(x, y, g, b, d_mask, d_real, eps=1e-5):
    """LayerNorm(x + y) over the real d_model lanes only (torch defaults)."""
    z = x + y
    inv_d = 1.0 / d_real
    mean = jnp.sum(z * d_mask, axis=-1, keepdims=True) * inv_d
    c = (z - mean) * d_mask                     # keep pad lanes at exactly 0
    var = jnp.sum(c * c, axis=-1, keepdims=True) * inv_d
    return c * jax.lax.rsqrt(var + eps) * g + b


def _ffn(x, w1, b1, w2, b2):
    h = jnp.dot(x, w1, preferred_element_type=jnp.float32) + b1
    h = jnp.maximum(h, 0.0)
    return jnp.dot(h, w2, preferred_element_type=jnp.float32) + b2


# ---------------------------------------------------------------------------
# The single fused kernel
# ---------------------------------------------------------------------------

def _transformer_kernel(*refs, treedef, n_param_leaves, num_layers, num_heads,
                        d_model, d_pad):
    params = jax.tree_util.tree_unflatten(treedef, refs[:n_param_leaves])
    src_x_ref, tgt_x_ref, srcv_ref, tgtv_ref = refs[n_param_leaves:-1]
    out_ref = refs[-1]

    d_k = d_model // num_heads
    lane = jax.lax.broadcasted_iota(jnp.int32, (1, d_pad), 1)
    d_mask = (lane < d_model).astype(jnp.float32)

    src_x = src_x_ref[...]                      # (Ss, d_pad)
    tgt_x = tgt_x_ref[...]                      # (St, d_pad)
    Ss = src_x.shape[0]
    St = tgt_x.shape[0]

    src_valid = srcv_ref[...] > 0.5             # (1, Ss) bool
    tgt_valid = tgtv_ref[...] > 0.5             # (1, St) bool

    # Masks generated in-kernel (key-pad + causal), matching torch broadcasts.
    enc_mask = jnp.broadcast_to(src_valid, (Ss, Ss))
    cross_mask = jnp.broadcast_to(src_valid, (St, Ss))
    rows = jax.lax.broadcasted_iota(jnp.int32, (St, St), 0)
    cols = jax.lax.broadcasted_iota(jnp.int32, (St, St), 1)
    tgt_mask = (cols <= rows) & jnp.broadcast_to(tgt_valid, (St, St))

    mha = functools.partial(_mha_core, num_heads=num_heads, d_k=d_k,
                            d_pad=d_pad)

    # ----------------------------- encoder ---------------------------------
    enc = params['enc']
    x = src_x
    for l in range(num_layers):
        qkv = (jnp.dot(x, enc['w_qkv'][l], preferred_element_type=jnp.float32)
               + enc['b_qkv'][l])
        a = mha(qkv[:, 0:d_pad], qkv[:, d_pad:2 * d_pad],
                qkv[:, 2 * d_pad:3 * d_pad], enc_mask,
                enc['wo'][l], enc['bo'][l])
        x = _add_layernorm(x, a, enc['n1_g'][l], enc['n1_b'][l], d_mask, d_model)
        f = _ffn(x, enc['w1'][l], enc['b1'][l], enc['w2'][l], enc['b2'][l])
        x = _add_layernorm(x, f, enc['n2_g'][l], enc['n2_b'][l], d_mask, d_model)
    enc_out = x

    # ----------------------------- decoder ---------------------------------
    dec = params['dec']
    y = tgt_x
    for l in range(num_layers):
        # masked self-attention (fused QKV)
        qkv = (jnp.dot(y, dec['w_qkv'][l], preferred_element_type=jnp.float32)
               + dec['b_qkv'][l])
        a = mha(qkv[:, 0:d_pad], qkv[:, d_pad:2 * d_pad],
                qkv[:, 2 * d_pad:3 * d_pad], tgt_mask,
                dec['wo'][l], dec['bo'][l])
        y = _add_layernorm(y, a, dec['n1_g'][l], dec['n1_b'][l], d_mask, d_model)

        # cross-attention (Q from decoder, fused KV from encoder output)
        q = (jnp.dot(y, dec['wq_c'][l], preferred_element_type=jnp.float32)
             + dec['bq_c'][l])
        kv = (jnp.dot(enc_out, dec['wkv_c'][l],
                      preferred_element_type=jnp.float32) + dec['bkv_c'][l])
        a = mha(q, kv[:, 0:d_pad], kv[:, d_pad:2 * d_pad], cross_mask,
                dec['wo_c'][l], dec['bo_c'][l])
        y = _add_layernorm(y, a, dec['n2_g'][l], dec['n2_b'][l], d_mask, d_model)

        f = _ffn(y, dec['w1'][l], dec['b1'][l], dec['w2'][l], dec['b2'][l])
        y = _add_layernorm(y, f, dec['n3_g'][l], dec['n3_b'][l], d_mask, d_model)

    # ---------------- final projection + Softmax(dim=0) --------------------
    logits = (jnp.dot(y, params['fc_w'][...],
                      preferred_element_type=jnp.float32) + params['fc_b'][...])
    logits = logits - jnp.max(logits, axis=0, keepdims=True)
    e = jnp.exp(logits)
    # Exact division: each vocab column must sum to exactly 1 over the
    # sequence axis (Softmax(dim=0) semantics).
    out_ref[...] = e / jnp.sum(e, axis=0, keepdims=True)


# ---------------------------------------------------------------------------
# pallas_call wrapper
# ---------------------------------------------------------------------------

def _full_block(arr):
    nd = arr.ndim
    return pl.BlockSpec(arr.shape, lambda *_: (0,) * nd)


def transformer_forward(kparams, src_x, tgt_x, src_valid, tgt_valid, *,
                        num_layers, num_heads, d_model, d_pad, v_pad):
    leaves, treedef = jax.tree_util.tree_flatten(kparams)
    St = tgt_x.shape[0]
    kernel = functools.partial(
        _transformer_kernel, treedef=treedef, n_param_leaves=len(leaves),
        num_layers=num_layers, num_heads=num_heads, d_model=d_model,
        d_pad=d_pad)
    inputs = list(leaves) + [src_x, tgt_x, src_valid, tgt_valid]
    return pl.pallas_call(
        kernel,
        out_shape=jax.ShapeDtypeStruct((St, v_pad), jnp.float32),
        grid=(1,),
        in_specs=[_full_block(a) for a in inputs],
        out_specs=pl.BlockSpec((St, v_pad), lambda *_: (0, 0)),
        compiler_params=pltpu.CompilerParams(
            dimension_semantics=("arbitrary",)),
    )(*inputs)


# ---------------------------------------------------------------------------
# Parameter construction (PyTorch-shaped "raw" params + padded kernel params)
# ---------------------------------------------------------------------------

def _pad_to(x, shape):
    out = jnp.zeros(shape, jnp.float32)
    return out.at[tuple(slice(0, s) for s in x.shape)].set(x)


def _init_linear(key, d_in, d_out, scale=0.05):
    kw, kb = jax.random.split(key)
    return (scale * jax.random.normal(kw, (d_in, d_out), jnp.float32),
            scale * jax.random.normal(kb, (d_out,), jnp.float32))


def _init_mha(key, d):
    ks = jax.random.split(key, 4)
    wq, bq = _init_linear(ks[0], d, d)
    wk, bk = _init_linear(ks[1], d, d)
    wv, bv = _init_linear(ks[2], d, d)
    wo, bo = _init_linear(ks[3], d, d)
    return dict(wq=wq, bq=bq, wk=wk, bk=bk, wv=wv, bv=bv, wo=wo, bo=bo)


def _init_enc_layer(key, d, d_ff):
    ks = jax.random.split(key, 3)
    w1, b1 = _init_linear(ks[1], d, d_ff)
    w2, b2 = _init_linear(ks[2], d_ff, d)
    return dict(self_attn=_init_mha(ks[0], d), w1=w1, b1=b1, w2=w2, b2=b2,
                n1_g=jnp.ones((d,)), n1_b=jnp.zeros((d,)),
                n2_g=jnp.ones((d,)), n2_b=jnp.zeros((d,)))


def _init_dec_layer(key, d, d_ff):
    ks = jax.random.split(key, 4)
    w1, b1 = _init_linear(ks[2], d, d_ff)
    w2, b2 = _init_linear(ks[3], d_ff, d)
    return dict(self_attn=_init_mha(ks[0], d), cross_attn=_init_mha(ks[1], d),
                w1=w1, b1=b1, w2=w2, b2=b2,
                n1_g=jnp.ones((d,)), n1_b=jnp.zeros((d,)),
                n2_g=jnp.ones((d,)), n2_b=jnp.zeros((d,)),
                n3_g=jnp.ones((d,)), n3_b=jnp.zeros((d,)))


def positional_encoding_table(max_seq, d_model):
    pos = jnp.arange(max_seq, dtype=jnp.float32)[:, None]
    div = jnp.exp(jnp.arange(0, d_model, 2, dtype=jnp.float32)
                  * (-math.log(10000.0) / d_model))
    pe = jnp.zeros((max_seq, d_model), jnp.float32)
    pe = pe.at[:, 0::2].set(jnp.sin(pos * div))
    pe = pe.at[:, 1::2].set(jnp.cos(pos * div))
    return pe


def init_params(key, src_vocab, tgt_vocab, d_model, num_layers, d_ff, max_seq):
    ks = jax.random.split(key, 3 + 2 * num_layers)
    fc_w, fc_b = _init_linear(ks[2], d_model, tgt_vocab)
    return dict(
        enc_emb=0.05 * jax.random.normal(ks[0], (src_vocab, d_model)),
        dec_emb=0.05 * jax.random.normal(ks[1], (tgt_vocab, d_model)),
        pe=positional_encoding_table(max_seq, d_model),
        enc_layers=[_init_enc_layer(ks[3 + i], d_model, d_ff)
                    for i in range(num_layers)],
        dec_layers=[_init_dec_layer(ks[3 + num_layers + i], d_model, d_ff)
                    for i in range(num_layers)],
        fc_w=fc_w, fc_b=fc_b,
    )


def build_kernel_params(raw, *, d_pad, f_pad, v_pad):
    """Pad feature dims to 128 lanes, fuse QKV / KV, stack layers on axis 0."""
    def pw(w):  return _pad_to(w, (d_pad, d_pad))
    def pb(v):  return _pad_to(v.reshape(1, -1), (1, d_pad))
    def pbf(v): return _pad_to(v.reshape(1, -1), (1, f_pad))
    def qkv_w(a): return jnp.concatenate([pw(a['wq']), pw(a['wk']), pw(a['wv'])], 1)
    def qkv_b(a): return jnp.concatenate([pb(a['bq']), pb(a['bk']), pb(a['bv'])], 1)
    def kv_w(a):  return jnp.concatenate([pw(a['wk']), pw(a['wv'])], 1)
    def kv_b(a):  return jnp.concatenate([pb(a['bk']), pb(a['bv'])], 1)

    def stack(layers, fn):
        return jnp.stack([fn(L) for L in layers])

    E, D = raw['enc_layers'], raw['dec_layers']
    enc = dict(
        w_qkv=stack(E, lambda L: qkv_w(L['self_attn'])),
        b_qkv=stack(E, lambda L: qkv_b(L['self_attn'])),
        wo=stack(E, lambda L: pw(L['self_attn']['wo'])),
        bo=stack(E, lambda L: pb(L['self_attn']['bo'])),
        w1=stack(E, lambda L: _pad_to(L['w1'], (d_pad, f_pad))),
        b1=stack(E, lambda L: pbf(L['b1'])),
        w2=stack(E, lambda L: _pad_to(L['w2'], (f_pad, d_pad))),
        b2=stack(E, lambda L: pb(L['b2'])),
        n1_g=stack(E, lambda L: pb(L['n1_g'])),
        n1_b=stack(E, lambda L: pb(L['n1_b'])),
        n2_g=stack(E, lambda L: pb(L['n2_g'])),
        n2_b=stack(E, lambda L: pb(L['n2_b'])),
    )
    dec = dict(
        w_qkv=stack(D, lambda L: qkv_w(L['self_attn'])),
        b_qkv=stack(D, lambda L: qkv_b(L['self_attn'])),
        wo=stack(D, lambda L: pw(L['self_attn']['wo'])),
        bo=stack(D, lambda L: pb(L['self_attn']['bo'])),
        wq_c=stack(D, lambda L: pw(L['cross_attn']['wq'])),
        bq_c=stack(D, lambda L: pb(L['cross_attn']['bq'])),
        wkv_c=stack(D, lambda L: kv_w(L['cross_attn'])),
        bkv_c=stack(D, lambda L: kv_b(L['cross_attn'])),
        wo_c=stack(D, lambda L: pw(L['cross_attn']['wo'])),
        bo_c=stack(D, lambda L: pb(L['cross_attn']['bo'])),
        w1=stack(D, lambda L: _pad_to(L['w1'], (d_pad, f_pad))),
        b1=stack(D, lambda L: pbf(L['b1'])),
        w2=stack(D, lambda L: _pad_to(L['w2'], (f_pad, d_pad))),
        b2=stack(D, lambda L: pb(L['b2'])),
        n1_g=stack(D, lambda L: pb(L['n1_g'])),
        n1_b=stack(D, lambda L: pb(L['n1_b'])),
        n2_g=stack(D, lambda L: pb(L['n2_g'])),
        n2_b=stack(D, lambda L: pb(L['n2_b'])),
        n3_g=stack(D, lambda L: pb(L['n3_g'])),
        n3_b=stack(D, lambda L: pb(L['n3_b'])),
    )
    return dict(enc=enc, dec=dec,
                fc_w=_pad_to(raw['fc_w'], (d_pad, v_pad)),
                fc_b=_pad_to(raw['fc_b'].reshape(1, -1), (1, v_pad)))


# ---------------------------------------------------------------------------
# Pure-JAX reference (unpadded), mirroring the PyTorch module exactly
# ---------------------------------------------------------------------------

def _ref_layernorm(x, g, b, eps=1e-5):
    mean = jnp.mean(x, axis=-1, keepdims=True)
    var = jnp.mean((x - mean) ** 2, axis=-1, keepdims=True)
    return (x - mean) / jnp.sqrt(var + eps) * g + b


def _ref_mha(p, q_in, k_in, v_in, mask, num_heads):
    Dm = q_in.shape[-1]
    d_k = Dm // num_heads
    Q = q_in @ p['wq'] + p['bq']
    K = k_in @ p['wk'] + p['bk']
    V = v_in @ p['wv'] + p['bv']

    def split(x):
        return x.reshape(x.shape[0], num_heads, d_k).transpose(1, 0, 2)

    Qh, Kh, Vh = split(Q), split(K), split(V)
    s = jnp.einsum('hqd,hkd->hqk', Qh, Kh) / math.sqrt(d_k)
    s = jnp.where(mask[None, :, :], s, -1e9)
    a = jax.nn.softmax(s, axis=-1)
    o = jnp.einsum('hqk,hkd->hqd', a, Vh)
    o = o.transpose(1, 0, 2).reshape(q_in.shape[0], Dm)
    return o @ p['wo'] + p['bo']


def reference_forward(raw, src, tgt, *, num_heads, num_layers):
    Ss, St = src.shape[0], tgt.shape[0]
    src_ok = src != 0
    tgt_ok = tgt != 0
    enc_mask = jnp.broadcast_to(src_ok[None, :], (Ss, Ss))
    cross_mask = jnp.broadcast_to(src_ok[None, :], (St, Ss))
    tgt_mask = tgt_ok[None, :] & jnp.tril(jnp.ones((St, St), bool))

    pe = raw['pe']
    x = raw['enc_emb'][src] + pe[:Ss]
    for l in range(num_layers):
        L = raw['enc_layers'][l]
        a = _ref_mha(L['self_attn'], x, x, x, enc_mask, num_heads)
        x = _ref_layernorm(x + a, L['n1_g'], L['n1_b'])
        f = jnp.maximum(x @ L['w1'] + L['b1'], 0.0) @ L['w2'] + L['b2']
        x = _ref_layernorm(x + f, L['n2_g'], L['n2_b'])
    enc_out = x

    y = raw['dec_emb'][tgt] + pe[:St]
    for l in range(num_layers):
        L = raw['dec_layers'][l]
        a = _ref_mha(L['self_attn'], y, y, y, tgt_mask, num_heads)
        y = _ref_layernorm(y + a, L['n1_g'], L['n1_b'])
        a = _ref_mha(L['cross_attn'], y, enc_out, enc_out, cross_mask, num_heads)
        y = _ref_layernorm(y + a, L['n2_g'], L['n2_b'])
        f = jnp.maximum(y @ L['w1'] + L['b1'], 0.0) @ L['w2'] + L['b2']
        y = _ref_layernorm(y + f, L['n3_g'], L['n3_b'])

    logits = y @ raw['fc_w'] + raw['fc_b']
    return jax.nn.softmax(logits, axis=0)


# ---------------------------------------------------------------------------
# main
# ---------------------------------------------------------------------------

if __name__ == "__main__":
    src_vocab = 32
    tgt_vocab = 32
    d_model = 32
    num_heads = 4
    num_layers = 2
    d_ff = 64
    max_seq_length = 16
    src_len = 8
    tgt_len = 8
    D_PAD, F_PAD, V_PAD = 128, 128, 128          # lane-dense padded sizes

    key = jax.random.PRNGKey(0)
    kp, ks, kt = jax.random.split(key, 3)
    raw = init_params(kp, src_vocab, tgt_vocab, d_model, num_layers, d_ff,
                      max_seq_length)

    # token id 0 acts as padding; include pads to exercise the masks
    src = jax.random.randint(ks, (src_len,), 0, src_vocab, dtype=jnp.int32)
    tgt = jax.random.randint(kt, (tgt_len,), 0, tgt_vocab, dtype=jnp.int32)
    src = src.at[-1].set(0)
    tgt = tgt.at[-1].set(0)

    kparams = build_kernel_params(raw, d_pad=D_PAD, f_pad=F_PAD, v_pad=V_PAD)

    # TODO(synk): embedding gather + positional-encoding add are two trivial
    # XLA ops here (data-dependent row gather); everything else is one kernel.
    pe = raw['pe']
    src_x = _pad_to(raw['enc_emb'][src] + pe[:src_len], (src_len, D_PAD))
    tgt_x = _pad_to(raw['dec_emb'][tgt] + pe[:tgt_len], (tgt_len, D_PAD))
    src_valid = (src != 0).astype(jnp.float32).reshape(1, -1)
    tgt_valid = (tgt != 0).astype(jnp.float32).reshape(1, -1)

    fwd = jax.jit(functools.partial(
        transformer_forward, num_layers=num_layers, num_heads=num_heads,
        d_model=d_model, d_pad=D_PAD, v_pad=V_PAD))
    out_padded = jax.block_until_ready(
        fwd(kparams, src_x, tgt_x, src_valid, tgt_valid))
    out = np.asarray(out_padded[:, :tgt_vocab])          # (tgt_len, tgt_vocab)

    ref = np.asarray(reference_forward(raw, src, tgt, num_heads=num_heads,
                                       num_layers=num_layers))

    assert out.shape == (tgt_len, tgt_vocab)
    assert np.all(np.isfinite(out))
    # Softmax(dim=0): each vocab column sums to 1 over the sequence axis
    assert np.allclose(out.sum(axis=0), 1.0, atol=2e-3), \
        f"col sums {out.sum(axis=0)}"
    max_err = float(np.abs(out - ref).max())
    assert np.allclose(out, ref, atol=5e-3, rtol=5e-2), f"max err {max_err}"

    print("KERNEL_OK")
</pallas_src>

<mosaic_0001>
module attributes {stable_mosaic.version = 11 : i64} {
  func.func @_transformer_kernel(%arg0: i32, %arg1: memref<2x1x128xf32, #tpu.memory_space<vmem>>, %arg2: memref<2x1x128xf32, #tpu.memory_space<vmem>>, %arg3: memref<2x1x384xf32, #tpu.memory_space<vmem>>, %arg4: memref<2x1x256xf32, #tpu.memory_space<vmem>>, %arg5: memref<2x1x128xf32, #tpu.memory_space<vmem>>, %arg6: memref<2x1x128xf32, #tpu.memory_space<vmem>>, %arg7: memref<2x1x128xf32, #tpu.memory_space<vmem>>, %arg8: memref<2x1x128xf32, #tpu.memory_space<vmem>>, %arg9: memref<2x1x128xf32, #tpu.memory_space<vmem>>, %arg10: memref<2x1x128xf32, #tpu.memory_space<vmem>>, %arg11: memref<2x1x128xf32, #tpu.memory_space<vmem>>, %arg12: memref<2x1x128xf32, #tpu.memory_space<vmem>>, %arg13: memref<2x1x128xf32, #tpu.memory_space<vmem>>, %arg14: memref<2x128x128xf32, #tpu.memory_space<vmem>>, %arg15: memref<2x128x128xf32, #tpu.memory_space<vmem>>, %arg16: memref<2x128x384xf32, #tpu.memory_space<vmem>>, %arg17: memref<2x128x256xf32, #tpu.memory_space<vmem>>, %arg18: memref<2x128x128xf32, #tpu.memory_space<vmem>>, %arg19: memref<2x128x128xf32, #tpu.memory_space<vmem>>, %arg20: memref<2x128x128xf32, #tpu.memory_space<vmem>>, %arg21: memref<2x1x128xf32, #tpu.memory_space<vmem>>, %arg22: memref<2x1x128xf32, #tpu.memory_space<vmem>>, %arg23: memref<2x1x384xf32, #tpu.memory_space<vmem>>, %arg24: memref<2x1x128xf32, #tpu.memory_space<vmem>>, %arg25: memref<2x1x128xf32, #tpu.memory_space<vmem>>, %arg26: memref<2x1x128xf32, #tpu.memory_space<vmem>>, %arg27: memref<2x1x128xf32, #tpu.memory_space<vmem>>, %arg28: memref<2x1x128xf32, #tpu.memory_space<vmem>>, %arg29: memref<2x128x128xf32, #tpu.memory_space<vmem>>, %arg30: memref<2x128x128xf32, #tpu.memory_space<vmem>>, %arg31: memref<2x128x384xf32, #tpu.memory_space<vmem>>, %arg32: memref<2x128x128xf32, #tpu.memory_space<vmem>>, %arg33: memref<1x128xf32, #tpu.memory_space<vmem>>, %arg34: memref<128x128xf32, #tpu.memory_space<vmem>>, %arg35: memref<8x128xf32, #tpu.memory_space<vmem>>, %arg36: memref<8x128xf32, #tpu.memory_space<vmem>>, %arg37: memref<1x8xf32, #tpu.memory_space<vmem>>, %arg38: memref<1x8xf32, #tpu.memory_space<vmem>>, %arg39: memref<8x128xf32, #tpu.memory_space<vmem>>) attributes {dimension_semantics = [#tpu.dimension_semantics<arbitrary>], iteration_bounds = array<i64: 1>, scalar_prefetch = 0 : i64, scratch_operands = 0 : i64, tpu.core_type = #tpu.core_type<tc>, window_params = [{pipeline_mode = #tpu.pipeline_mode<synchronous>, transform_indices = @transform_0, window_bounds = array<i64: 2, 1, 128>}, {pipeline_mode = #tpu.pipeline_mode<synchronous>, transform_indices = @transform_1, window_bounds = array<i64: 2, 1, 128>}, {pipeline_mode = #tpu.pipeline_mode<synchronous>, transform_indices = @transform_2, window_bounds = array<i64: 2, 1, 384>}, {pipeline_mode = #tpu.pipeline_mode<synchronous>, transform_indices = @transform_3, window_bounds = array<i64: 2, 1, 256>}, {pipeline_mode = #tpu.pipeline_mode<synchronous>, transform_indices = @transform_4, window_bounds = array<i64: 2, 1, 128>}, {pipeline_mode = #tpu.pipeline_mode<synchronous>, transform_indices = @transform_5, window_bounds = array<i64: 2, 1, 128>}, {pipeline_mode = #tpu.pipeline_mode<synchronous>, transform_indices = @transform_6, window_bounds = array<i64: 2, 1, 128>}, {pipeline_mode = #tpu.pipeline_mode<synchronous>, transform_indices = @transform_7, window_bounds = array<i64: 2, 1, 128>}, {pipeline_mode = #tpu.pipeline_mode<synchronous>, transform_indices = @transform_8, window_bounds = array<i64: 2, 1, 128>}, {pipeline_mode = #tpu.pipeline_mode<synchronous>, transform_indices = @transform_9, window_bounds = array<i64: 2, 1, 128>}, {pipeline_mode = #tpu.pipeline_mode<synchronous>, transform_indices = @transform_10, window_bounds = array<i64: 2, 1, 128>}, {pipeline_mode = #tpu.pipeline_mode<synchronous>, transform_indices = @transform_11, window_bounds = array<i64: 2, 1, 128>}, {pipeline_mode = #tpu.pipeline_mode<synchronous>, transform_indices = @transform_12, window_bounds = array<i64: 2, 1, 128>}, {pipeline_mode = #tpu.pipeline_mode<synchronous>, transform_indices = @transform_13, window_bounds = array<i64: 2, 128, 128>}, {pipeline_mode = #tpu.pipeline_mode<synchronous>, transform_indices = @transform_14, window_bounds = array<i64: 2, 128, 128>}, {pipeline_mode = #tpu.pipeline_mode<synchronous>, transform_indices = @transform_15, window_bounds = array<i64: 2, 128, 384>}, {pipeline_mode = #tpu.pipeline_mode<synchronous>, transform_indices = @transform_16, window_bounds = array<i64: 2, 128, 256>}, {pipeline_mode = #tpu.pipeline_mode<synchronous>, transform_indices = @transform_17, window_bounds = array<i64: 2, 128, 128>}, {pipeline_mode = #tpu.pipeline_mode<synchronous>, transform_indices = @transform_18, window_bounds = array<i64: 2, 128, 128>}, {pipeline_mode = #tpu.pipeline_mode<synchronous>, transform_indices = @transform_19, window_bounds = array<i64: 2, 128, 128>}, {pipeline_mode = #tpu.pipeline_mode<synchronous>, transform_indices = @transform_20, window_bounds = array<i64: 2, 1, 128>}, {pipeline_mode = #tpu.pipeline_mode<synchronous>, transform_indices = @transform_21, window_bounds = array<i64: 2, 1, 128>}, {pipeline_mode = #tpu.pipeline_mode<synchronous>, transform_indices = @transform_22, window_bounds = array<i64: 2, 1, 384>}, {pipeline_mode = #tpu.pipeline_mode<synchronous>, transform_indices = @transform_23, window_bounds = array<i64: 2, 1, 128>}, {pipeline_mode = #tpu.pipeline_mode<synchronous>, transform_indices = @transform_24, window_bounds = array<i64: 2, 1, 128>}, {pipeline_mode = #tpu.pipeline_mode<synchronous>, transform_indices = @transform_25, window_bounds = array<i64: 2, 1, 128>}, {pipeline_mode = #tpu.pipeline_mode<synchronous>, transform_indices = @transform_26, window_bounds = array<i64: 2, 1, 128>}, {pipeline_mode = #tpu.pipeline_mode<synchronous>, transform_indices = @transform_27, window_bounds = array<i64: 2, 1, 128>}, {pipeline_mode = #tpu.pipeline_mode<synchronous>, transform_indices = @transform_28, window_bounds = array<i64: 2, 128, 128>}, {pipeline_mode = #tpu.pipeline_mode<synchronous>, transform_indices = @transform_29, window_bounds = array<i64: 2, 128, 128>}, {pipeline_mode = #tpu.pipeline_mode<synchronous>, transform_indices = @transform_30, window_bounds = array<i64: 2, 128, 384>}, {pipeline_mode = #tpu.pipeline_mode<synchronous>, transform_indices = @transform_31, window_bounds = array<i64: 2, 128, 128>}, {pipeline_mode = #tpu.pipeline_mode<synchronous>, transform_indices = @transform_32, window_bounds = array<i64: 1, 128>}, {pipeline_mode = #tpu.pipeline_mode<synchronous>, transform_indices = @transform_33, window_bounds = array<i64: 128, 128>}, {pipeline_mode = #tpu.pipeline_mode<synchronous>, transform_indices = @transform_34, window_bounds = array<i64: 8, 128>}, {pipeline_mode = #tpu.pipeline_mode<synchronous>, transform_indices = @transform_35, window_bounds = array<i64: 8, 128>}, {pipeline_mode = #tpu.pipeline_mode<synchronous>, transform_indices = @transform_36, window_bounds = array<i64: 1, 8>}, {pipeline_mode = #tpu.pipeline_mode<synchronous>, transform_indices = @transform_37, window_bounds = array<i64: 1, 8>}, {pipeline_mode = #tpu.pipeline_mode<synchronous>, transform_indices = @transform_38, window_bounds = array<i64: 8, 128>}]} {
    %0 = tpu.iota {dimensions = array<i32: 1>} : vector<1x128xi32>
    %c32_i32 = arith.constant 32 : i32
    %1 = vector.broadcast %c32_i32 : i32 to vector<1x128xi32>
    %2 = arith.cmpi slt, %0, %1 : vector<1x128xi32>
    %3 = arith.extui %2 : vector<1x128xi1> to vector<1x128xi32>
    %4 = arith.sitofp %3 : vector<1x128xi32> to vector<1x128xf32>
    %c0 = arith.constant 0 : index
    %c0_0 = arith.constant 0 : index
    %5 = vector.load %arg35[%c0, %c0_0] : memref<8x128xf32, #tpu.memory_space<vmem>>, vector<8x128xf32>
    %c0_1 = arith.constant 0 : index
    %c0_2 = arith.constant 0 : index
    %6 = vector.load %arg36[%c0_1, %c0_2] : memref<8x128xf32, #tpu.memory_space<vmem>>, vector<8x128xf32>
    %c0_3 = arith.constant 0 : index
    %c0_4 = arith.constant 0 : index
    %7 = vector.load %arg37[%c0_3, %c0_4] : memref<1x8xf32, #tpu.memory_space<vmem>>, vector<1x8xf32>
    %cst = arith.constant 5.000000e-01 : f32
    %8 = vector.broadcast %cst : f32 to vector<1x8xf32>
    %9 = arith.cmpf ogt, %7, %8 : vector<1x8xf32>
    %c0_5 = arith.constant 0 : index
    %c0_6 = arith.constant 0 : index
    %10 = vector.load %arg38[%c0_5, %c0_6] : memref<1x8xf32, #tpu.memory_space<vmem>>, vector<1x8xf32>
    %cst_7 = arith.constant 5.000000e-01 : f32
    %11 = vector.broadcast %cst_7 : f32 to vector<1x8xf32>
    %12 = arith.cmpf ogt, %10, %11 : vector<1x8xf32>
    %13 = vector.shape_cast %9 : vector<1x8xi1> to vector<1x8xi1>
    %14 = vector.broadcast %13 : vector<1x8xi1> to vector<8x8xi1>
    %15 = vector.shape_cast %9 : vector<1x8xi1> to vector<1x8xi1>
    %16 = vector.broadcast %15 : vector<1x8xi1> to vector<8x8xi1>
    %17 = tpu.iota {dimensions = array<i32: 0>} : vector<8x8xi32>
    %18 = tpu.iota {dimensions = array<i32: 1>} : vector<8x8xi32>
    %19 = arith.cmpi sle, %18, %17 : vector<8x8xi32>
    %20 = vector.shape_cast %12 : vector<1x8xi1> to vector<1x8xi1>
    %21 = vector.broadcast %20 : vector<1x8xi1> to vector<8x8xi1>
    %22 = arith.andi %19, %21 : vector<8x8xi1>
    %c0_8 = arith.constant 0 : index
    %c0_9 = arith.constant 0 : index
    %c0_10 = arith.constant 0 : index
    %23 = vector.load %arg31[%c0_8, %c0_9, %c0_10] : memref<2x128x384xf32, #tpu.memory_space<vmem>>, vector<1x128x384xf32>
    %24 = vector.shape_cast %23 : vector<1x128x384xf32> to vector<128x384xf32>
    %cst_11 = arith.constant dense<0.000000e+00> : vector<8x384xf32>
    %25 = tpu.matmul %5, %24, %cst_11 {dimension_numbers = #tpu.dot_dimension_numbers<[1], [0], [0], [1], [0, 0, 1, 1], [], []>} : vector<8x128xf32>, vector<128x384xf32>, vector<8x384xf32> -> vector<8x384xf32>
    %c0_12 = arith.constant 0 : index
    %c0_13 = arith.constant 0 : index
    %c0_14 = arith.constant 0 : index
    %26 = vector.load %arg23[%c0_12, %c0_13, %c0_14] : memref<2x1x384xf32, #tpu.memory_space<vmem>>, vector<1x1x384xf32>
    %27 = vector.shape_cast %26 : vector<1x1x384xf32> to vector<1x384xf32>
    %28 = vector.broadcast %27 : vector<1x384xf32> to vector<8x384xf32>
    %29 = arith.addf %25, %28 : vector<8x384xf32>
    %30 = vector.extract_strided_slice %29 {offsets = [0, 0], sizes = [8, 128], strides = [1, 1]} : vector<8x384xf32> to vector<8x128xf32>
    %31 = vector.extract_strided_slice %29 {offsets = [0, 128], sizes = [8, 128], strides = [1, 1]} : vector<8x384xf32> to vector<8x128xf32>
    %32 = vector.extract_strided_slice %29 {offsets = [0, 256], sizes = [8, 128], strides = [1, 1]} : vector<8x384xf32> to vector<8x128xf32>
    %c0_15 = arith.constant 0 : index
    %c0_16 = arith.constant 0 : index
    %c0_17 = arith.constant 0 : index
    %33 = vector.load %arg32[%c0_15, %c0_16, %c0_17] : memref<2x128x128xf32, #tpu.memory_space<vmem>>, vector<1x128x128xf32>
    %34 = vector.shape_cast %33 : vector<1x128x128xf32> to vector<128x128xf32>
    %c0_18 = arith.constant 0 : index
    %c0_19 = arith.constant 0 : index
    %c0_20 = arith.constant 0 : index
    %35 = vector.load %arg24[%c0_18, %c0_19, %c0_20] : memref<2x1x128xf32, #tpu.memory_space<vmem>>, vector<1x1x128xf32>
    %36 = vector.shape_cast %35 : vector<1x1x128xf32> to vector<1x128xf32>
    %37 = tpu.iota {dimensions = array<i32: 1>} : vector<1x128xi32>
    %cst_21 = arith.constant 0.000000e+00 : f32
    %38 = vector.broadcast %cst_21 : f32 to vector<8x128xf32>
    %c0_i32 = arith.constant 0 : i32
    %39 = vector.broadcast %c0_i32 : i32 to vector<1x128xi32>
    %40 = arith.cmpi sge, %37, %39 : vector<1x128xi32>
    %c8_i32 = arith.constant 8 : i32
    %41 = vector.broadcast %c8_i32 : i32 to vector<1x128xi32>
    %42 = arith.cmpi slt, %37, %41 : vector<1x128xi32>
    %43 = arith.andi %40, %42 : vector<1x128xi1>
    %44 = arith.extui %43 : vector<1x128xi1> to vector<1x128xi32>
    %45 = arith.sitofp %44 : vector<1x128xi32> to vector<1x128xf32>
    %46 = vector.broadcast %45 : vector<1x128xf32> to vector<8x128xf32>
    %47 = arith.mulf %30, %46 : vector<8x128xf32>
    "tpu.trace_start"() <{level = 10 : i32, message = "qd,kd->qk"}> : () -> ()
    %cst_22 = arith.constant dense<0.000000e+00> : vector<8x8xf32>
    %48 = tpu.matmul %47, %31, %cst_22 {dimension_numbers = #tpu.dot_dimension_numbers<[1], [1], [0], [0], [0, 0, 1, 0], [], []>} : vector<8x128xf32>, vector<8x128xf32>, vector<8x8xf32> -> vector<8x8xf32>
    "tpu.trace_stop"() : () -> ()
    %cst_23 = arith.constant 0.353553385 : f32
    %49 = vector.broadcast %cst_23 : f32 to vector<8x8xf32>
    %50 = arith.mulf %48, %49 : vector<8x8xf32>
    %cst_24 = arith.constant -1.000000e+09 : f32
    %51 = vector.broadcast %cst_24 : f32 to vector<8x8xf32>
    %52 = arith.select %14, %50, %51 : vector<8x8xi1>, vector<8x8xf32>
    %cst_25 = arith.constant dense<0xFF800000> : vector<8xf32>
    %53 = vector.multi_reduction <maximumf>, %52, %cst_25 [1] : vector<8x8xf32> to vector<8xf32>
    %54 = vector.shape_cast %53 : vector<8xf32> to vector<8x1xf32>
    %55 = vector.broadcast %54 : vector<8x1xf32> to vector<8x8xf32>
    %56 = arith.subf %52, %55 : vector<8x8xf32>
    %57 = math.exp %56 : vector<8x8xf32>
    %cst_26 = arith.constant dense<0.000000e+00> : vector<8xf32>
    %58 = vector.multi_reduction <add>, %57, %cst_26 [1] : vector<8x8xf32> to vector<8xf32>
    %59 = vector.shape_cast %58 : vector<8xf32> to vector<8x1xf32>
    %60 = vector.broadcast %59 : vector<8x1xf32> to vector<8x8xf32>
    %61 = arith.divf %57, %60 : vector<8x8xf32>
    %62 = vector.broadcast %45 : vector<1x128xf32> to vector<8x128xf32>
    %63 = arith.mulf %32, %62 : vector<8x128xf32>
    %cst_27 = arith.constant dense<0.000000e+00> : vector<8x128xf32>
    %64 = tpu.matmul %61, %63, %cst_27 {dimension_numbers = #tpu.dot_dimension_numbers<[1], [0], [0], [1], [0, 0, 1, 1], [], []>} : vector<8x8xf32>, vector<8x128xf32>, vector<8x128xf32> -> vector<8x128xf32>
    %65 = arith.addf %38, %64 : vector<8x128xf32>
    %c8_i32_28 = arith.constant 8 : i32
    %66 = vector.broadcast %c8_i32_28 : i32 to vector<1x128xi32>
    %67 = arith.cmpi sge, %37, %66 : vector<1x128xi32>
    %c16_i32 = arith.constant 16 : i32
    %68 = vector.broadcast %c16_i32 : i32 to vector<1x128xi32>
    %69 = arith.cmpi slt, %37, %68 : vector<1x128xi32>
    %70 = arith.andi %67, %69 : vector<1x128xi1>
    %71 = arith.extui %70 : vector<1x128xi1> to vector<1x128xi32>
    %72 = arith.sitofp %71 : vector<1x128xi32> to vector<1x128xf32>
    %73 = vector.broadcast %72 : vector<1x128xf32> to vector<8x128xf32>
    %74 = arith.mulf %30, %73 : vector<8x128xf32>
    "tpu.trace_start"() <{level = 10 : i32, message = "qd,kd->qk"}> : () -> ()
    %cst_29 = arith.constant dense<0.000000e+00> : vector<8x8xf32>
    %75 = tpu.matmul %74, %31, %cst_29 {dimension_numbers = #tpu.dot_dimension_numbers<[1], [1], [0], [0], [0, 0, 1, 0], [], []>} : vector<8x128xf32>, vector<8x128xf32>, vector<8x8xf32> -> vector<8x8xf32>
    "tpu.trace_stop"() : () -> ()
    %cst_30 = arith.constant 0.353553385 : f32
    %76 = vector.broadcast %cst_30 : f32 to vector<8x8xf32>
    %77 = arith.mulf %75, %76 : vector<8x8xf32>
    %cst_31 = arith.constant -1.000000e+09 : f32
    %78 = vector.broadcast %cst_31 : f32 to vector<8x8xf32>
    %79 = arith.select %14, %77, %78 : vector<8x8xi1>, vector<8x8xf32>
    %cst_32 = arith.constant dense<0xFF800000> : vector<8xf32>
    %80 = vector.multi_reduction <maximumf>, %79, %cst_32 [1] : vector<8x8xf32> to vector<8xf32>
    %81 = vector.shape_cast %80 : vector<8xf32> to vector<8x1xf32>
    %82 = vector.broadcast %81 : vector<8x1xf32> to vector<8x8xf32>
    %83 = arith.subf %79, %82 : vector<8x8xf32>
    %84 = math.exp %83 : vector<8x8xf32>
    %cst_33 = arith.constant dense<0.000000e+00> : vector<8xf32>
    %85 = vector.multi_reduction <add>, %84, %cst_33 [1] : vector<8x8xf32> to vector<8xf32>
    %86 = vector.shape_cast %85 : vector<8xf32> to vector<8x1xf32>
    %87 = vector.broadcast %86 : vector<8x1xf32> to vector<8x8xf32>
    %88 = arith.divf %84, %87 : vector<8x8xf32>
    %89 = vector.broadcast %72 : vector<1x128xf32> to vector<8x128xf32>
    %90 = arith.mulf %32, %89 : vector<8x128xf32>
    %cst_34 = arith.constant dense<0.000000e+00> : vector<8x128xf32>
    %91 = tpu.matmul %88, %90, %cst_34 {dimension_numbers = #tpu.dot_dimension_numbers<[1], [0], [0], [1], [0, 0, 1, 1], [], []>} : vector<8x8xf32>, vector<8x128xf32>, vector<8x128xf32> -> vector<8x128xf32>
    %92 = arith.addf %65, %91 : vector<8x128xf32>
    %c16_i32_35 = arith.constant 16 : i32
    %93 = vector.broadcast %c16_i32_35 : i32 to vector<1x128xi32>
    %94 = arith.cmpi sge, %37, %93 : vector<1x128xi32>
    %c24_i32 = arith.constant 24 : i32
    %95 = vector.broadcast %c24_i32 : i32 to vector<1x128xi32>
    %96 = arith.cmpi slt, %37, %95 : vector<1x128xi32>
    %97 = arith.andi %94, %96 : vector<1x128xi1>
    %98 = arith.extui %97 : vector<1x128xi1> to vector<1x128xi32>
    %99 = arith.sitofp %98 : vector<1x128xi32> to vector<1x128xf32>
    %100 = vector.broadcast %99 : vector<1x128xf32> to vector<8x128xf32>
    %101 = arith.mulf %30, %100 : vector<8x128xf32>
    "tpu.trace_start"() <{level = 10 : i32, message = "qd,kd->qk"}> : () -> ()
    %cst_36 = arith.constant dense<0.000000e+00> : vector<8x8xf32>
    %102 = tpu.matmul %101, %31, %cst_36 {dimension_numbers = #tpu.dot_dimension_numbers<[1], [1], [0], [0], [0, 0, 1, 0], [], []>} : vector<8x128xf32>, vector<8x128xf32>, vector<8x8xf32> -> vector<8x8xf32>
    "tpu.trace_stop"() : () -> ()
    %cst_37 = arith.constant 0.353553385 : f32
    %103 = vector.broadcast %cst_37 : f32 to vector<8x8xf32>
    %104 = arith.mulf %102, %103 : vector<8x8xf32>
    %cst_38 = arith.constant -1.000000e+09 : f32
    %105 = vector.broadcast %cst_38 : f32 to vector<8x8xf32>
    %106 = arith.select %14, %104, %105 : vector<8x8xi1>, vector<8x8xf32>
    %cst_39 = arith.constant dense<0xFF800000> : vector<8xf32>
    %107 = vector.multi_reduction <maximumf>, %106, %cst_39 [1] : vector<8x8xf32> to vector<8xf32>
    %108 = vector.shape_cast %107 : vector<8xf32> to vector<8x1xf32>
    %109 = vector.broadcast %108 : vector<8x1xf32> to vector<8x8xf32>
    %110 = arith.subf %106, %109 : vector<8x8xf32>
    %111 = math.exp %110 : vector<8x8xf32>
    %cst_40 = arith.constant dense<0.000000e+00> : vector<8xf32>
    %112 = vector.multi_reduction <add>, %111, %cst_40 [1] : vector<8x8xf32> to vector<8xf32>
    %113 = vector.shape_cast %112 : vector<8xf32> to vector<8x1xf32>
    %114 = vector.broadcast %113 : vector<8x1xf32> to vector<8x8xf32>
    %115 = arith.divf %111, %114 : vector<8x8xf32>
    %116 = vector.broadcast %99 : vector<1x128xf32> to vector<8x128xf32>
    %117 = arith.mulf %32, %116 : vector<8x128xf32>
    %cst_41 = arith.constant dense<0.000000e+00> : vector<8x128xf32>
    %118 = tpu.matmul %115, %117, %cst_41 {dimension_numbers = #tpu.dot_dimension_numbers<[1], [0], [0], [1], [0, 0, 1, 1], [], []>} : vector<8x8xf32>, vector<8x128xf32>, vector<8x128xf32> -> vector<8x128xf32>
    %119 = arith.addf %92, %118 : vector<8x128xf32>
    %c24_i32_42 = arith.constant 24 : i32
    %120 = vector.broadcast %c24_i32_42 : i32 to vector<1x128xi32>
    %121 = arith.cmpi sge, %37, %120 : vector<1x128xi32>
    %c32_i32_43 = arith.constant 32 : i32
    %122 = vector.broadcast %c32_i32_43 : i32 to vector<1x128xi32>
    %123 = arith.cmpi slt, %37, %122 : vector<1x128xi32>
    %124 = arith.andi %121, %123 : vector<1x128xi1>
    %125 = arith.extui %124 : vector<1x128xi1> to vector<1x128xi32>
    %126 = arith.sitofp %125 : vector<1x128xi32> to vector<1x128xf32>
    %127 = vector.broadcast %126 : vector<1x128xf32> to vector<8x128xf32>
    %128 = arith.mulf %30, %127 : vector<8x128xf32>
    "tpu.trace_start"() <{level = 10 : i32, message = "qd,kd->qk"}> : () -> ()
    %cst_44 = arith.constant dense<0.000000e+00> : vector<8x8xf32>
    %129 = tpu.matmul %128, %31, %cst_44 {dimension_numbers = #tpu.dot_dimension_numbers<[1], [1], [0], [0], [0, 0, 1, 0], [], []>} : vector<8x128xf32>, vector<8x128xf32>, vector<8x8xf32> -> vector<8x8xf32>
    "tpu.trace_stop"() : () -> ()
    %cst_45 = arith.constant 0.353553385 : f32
    %130 = vector.broadcast %cst_45 : f32 to vector<8x8xf32>
    %131 = arith.mulf %129, %130 : vector<8x8xf32>
    %cst_46 = arith.constant -1.000000e+09 : f32
    %132 = vector.broadcast %cst_46 : f32 to vector<8x8xf32>
    %133 = arith.select %14, %131, %132 : vector<8x8xi1>, vector<8x8xf32>
    %cst_47 = arith.constant dense<0xFF800000> : vector<8xf32>
    %134 = vector.multi_reduction <maximumf>, %133, %cst_47 [1] : vector<8x8xf32> to vector<8xf32>
    %135 = vector.shape_cast %134 : vector<8xf32> to vector<8x1xf32>
    %136 = vector.broadcast %135 : vector<8x1xf32> to vector<8x8xf32>
    %137 = arith.subf %133, %136 : vector<8x8xf32>
    %138 = math.exp %137 : vector<8x8xf32>
    %cst_48 = arith.constant dense<0.000000e+00> : vector<8xf32>
    %139 = vector.multi_reduction <add>, %138, %cst_48 [1] : vector<8x8xf32> to vector<8xf32>
    %140 = vector.shape_cast %139 : vector<8xf32> to vector<8x1xf32>
    %141 = vector.broadcast %140 : vector<8x1xf32> to vector<8x8xf32>
    %142 = arith.divf %138, %141 : vector<8x8xf32>
    %143 = vector.broadcast %126 : vector<1x128xf32> to vector<8x128xf32>
    %144 = arith.mulf %32, %143 : vector<8x128xf32>
    %cst_49 = arith.constant dense<0.000000e+00> : vector<8x128xf32>
    %145 = tpu.matmul %142, %144, %cst_49 {dimension_numbers = #tpu.dot_dimension_numbers<[1], [0], [0], [1], [0, 0, 1, 1], [], []>} : vector<8x8xf32>, vector<8x128xf32>, vector<8x128xf32> -> vector<8x128xf32>
    %146 = arith.addf %119, %145 : vector<8x128xf32>
    %cst_50 = arith.constant dense<0.000000e+00> : vector<8x128xf32>
    %147 = tpu.matmul %146, %34, %cst_50 {dimension_numbers = #tpu.dot_dimension_numbers<[1], [0], [0], [1], [0, 0, 1, 1], [], []>} : vector<8x128xf32>, vector<128x128xf32>, vector<8x128xf32> -> vector<8x128xf32>
    %148 = vector.broadcast %36 : vector<1x128xf32> to vector<8x128xf32>
    %149 = arith.addf %147, %148 : vector<8x128xf32>
    %c0_51 = arith.constant 0 : index
    %c0_52 = arith.constant 0 : index
    %c0_53 = arith.constant 0 : index
    %150 = vector.load %arg26[%c0_51, %c0_52, %c0_53] : memref<2x1x128xf32, #tpu.memory_space<vmem>>, vector<1x1x128xf32>
    %151 = vector.shape_cast %150 : vector<1x1x128xf32> to vector<1x128xf32>
    %c0_54 = arith.constant 0 : index
    %c0_55 = arith.constant 0 : index
    %c0_56 = arith.constant 0 : index
    %152 = vector.load %arg25[%c0_54, %c0_55, %c0_56] : memref<2x1x128xf32, #tpu.memory_space<vmem>>, vector<1x1x128xf32>
    %153 = vector.shape_cast %152 : vector<1x1x128xf32> to vector<1x128xf32>
    %154 = arith.addf %5, %149 : vector<8x128xf32>
    %155 = vector.broadcast %4 : vector<1x128xf32> to vector<8x128xf32>
    %156 = arith.mulf %154, %155 : vector<8x128xf32>
    %cst_57 = arith.constant dense<0.000000e+00> : vector<8xf32>
    %157 = vector.multi_reduction <add>, %156, %cst_57 [1] : vector<8x128xf32> to vector<8xf32>
    %158 = vector.shape_cast %157 : vector<8xf32> to vector<8x1xf32>
    %cst_58 = arith.constant 3.125000e-02 : f32
    %159 = vector.broadcast %cst_58 : f32 to vector<8x1xf32>
    %160 = arith.mulf %158, %159 : vector<8x1xf32>
    %161 = vector.broadcast %160 : vector<8x1xf32> to vector<8x128xf32>
    %162 = arith.subf %154, %161 : vector<8x128xf32>
    %163 = vector.broadcast %4 : vector<1x128xf32> to vector<8x128xf32>
    %164 = arith.mulf %162, %163 : vector<8x128xf32>
    %165 = arith.mulf %164, %164 : vector<8x128xf32>
    %cst_59 = arith.constant dense<0.000000e+00> : vector<8xf32>
    %166 = vector.multi_reduction <add>, %165, %cst_59 [1] : vector<8x128xf32> to vector<8xf32>
    %167 = vector.shape_cast %166 : vector<8xf32> to vector<8x1xf32>
    %cst_60 = arith.constant 3.125000e-02 : f32
    %168 = vector.broadcast %cst_60 : f32 to vector<8x1xf32>
    %169 = arith.mulf %167, %168 : vector<8x1xf32>
    %cst_61 = arith.constant 9.99999974E-6 : f32
    %170 = vector.broadcast %cst_61 : f32 to vector<8x1xf32>
    %171 = arith.addf %169, %170 : vector<8x1xf32>
    %172 = math.rsqrt %171 : vector<8x1xf32>
    %173 = vector.broadcast %172 : vector<8x1xf32> to vector<8x128xf32>
    %174 = arith.mulf %164, %173 : vector<8x128xf32>
    %175 = vector.broadcast %151 : vector<1x128xf32> to vector<8x128xf32>
    %176 = arith.mulf %174, %175 : vector<8x128xf32>
    %177 = vector.broadcast %153 : vector<1x128xf32> to vector<8x128xf32>
    %178 = arith.addf %176, %177 : vector<8x128xf32>
    %c0_62 = arith.constant 0 : index
    %c0_63 = arith.constant 0 : index
    %c0_64 = arith.constant 0 : index
    %179 = vector.load %arg29[%c0_62, %c0_63, %c0_64] : memref<2x128x128xf32, #tpu.memory_space<vmem>>, vector<1x128x128xf32>
    %180 = vector.shape_cast %179 : vector<1x128x128xf32> to vector<128x128xf32>
    %c0_65 = arith.constant 0 : index
    %c0_66 = arith.constant 0 : index
    %c0_67 = arith.constant 0 : index
    %181 = vector.load %arg21[%c0_65, %c0_66, %c0_67] : memref<2x1x128xf32, #tpu.memory_space<vmem>>, vector<1x1x128xf32>
    %182 = vector.shape_cast %181 : vector<1x1x128xf32> to vector<1x128xf32>
    %c0_68 = arith.constant 0 : index
    %c0_69 = arith.constant 0 : index
    %c0_70 = arith.constant 0 : index
    %183 = vector.load %arg30[%c0_68, %c0_69, %c0_70] : memref<2x128x128xf32, #tpu.memory_space<vmem>>, vector<1x128x128xf32>
    %184 = vector.shape_cast %183 : vector<1x128x128xf32> to vector<128x128xf32>
    %c0_71 = arith.constant 0 : index
    %c0_72 = arith.constant 0 : index
    %c0_73 = arith.constant 0 : index
    %185 = vector.load %arg22[%c0_71, %c0_72, %c0_73] : memref<2x1x128xf32, #tpu.memory_space<vmem>>, vector<1x1x128xf32>
    %186 = vector.shape_cast %185 : vector<1x1x128xf32> to vector<1x128xf32>
    %cst_74 = arith.constant dense<0.000000e+00> : vector<8x128xf32>
    %187 = tpu.matmul %178, %180, %cst_74 {dimension_numbers = #tpu.dot_dimension_numbers<[1], [0], [0], [1], [0, 0, 1, 1], [], []>} : vector<8x128xf32>, vector<128x128xf32>, vector<8x128xf32> -> vector<8x128xf32>
    %188 = vector.broadcast %182 : vector<1x128xf32> to vector<8x128xf32>
    %189 = arith.addf %187, %188 : vector<8x128xf32>
    %cst_75 = arith.constant 0.000000e+00 : f32
    %190 = vector.broadcast %cst_75 : f32 to vector<8x128xf32>
    %191 = arith.maximumf %189, %190 : vector<8x128xf32>
    %cst_76 = arith.constant dense<0.000000e+00> : vector<8x128xf32>
    %192 = tpu.matmul %191, %184, %cst_76 {dimension_numbers = #tpu.dot_dimension_numbers<[1], [0], [0], [1], [0, 0, 1, 1], [], []>} : vector<8x128xf32>, vector<128x128xf32>, vector<8x128xf32> -> vector<8x128xf32>
    %193 = vector.broadcast %186 : vector<1x128xf32> to vector<8x128xf32>
    %194 = arith.addf %192, %193 : vector<8x128xf32>
    %c0_77 = arith.constant 0 : index
    %c0_78 = arith.constant 0 : index
    %c0_79 = arith.constant 0 : index
    %195 = vector.load %arg28[%c0_77, %c0_78, %c0_79] : memref<2x1x128xf32, #tpu.memory_space<vmem>>, vector<1x1x128xf32>
    %196 = vector.shape_cast %195 : vector<1x1x128xf32> to vector<1x128xf32>
    %c0_80 = arith.constant 0 : index
    %c0_81 = arith.constant 0 : index
    %c0_82 = arith.constant 0 : index
    %197 = vector.load %arg27[%c0_80, %c0_81, %c0_82] : memref<2x1x128xf32, #tpu.memory_space<vmem>>, vector<1x1x128xf32>
    %198 = vector.shape_cast %197 : vector<1x1x128xf32> to vector<1x128xf32>
    %199 = arith.addf %178, %194 : vector<8x128xf32>
    %200 = vector.broadcast %4 : vector<1x128xf32> to vector<8x128xf32>
    %201 = arith.mulf %199, %200 : vector<8x128xf32>
    %cst_83 = arith.constant dense<0.000000e+00> : vector<8xf32>
    %202 = vector.multi_reduction <add>, %201, %cst_83 [1] : vector<8x128xf32> to vector<8xf32>
    %203 = vector.shape_cast %202 : vector<8xf32> to vector<8x1xf32>
    %cst_84 = arith.constant 3.125000e-02 : f32
    %204 = vector.broadcast %cst_84 : f32 to vector<8x1xf32>
    %205 = arith.mulf %203, %204 : vector<8x1xf32>
    %206 = vector.broadcast %205 : vector<8x1xf32> to vector<8x128xf32>
    %207 = arith.subf %199, %206 : vector<8x128xf32>
    %208 = vector.broadcast %4 : vector<1x128xf32> to vector<8x128xf32>
    %209 = arith.mulf %207, %208 : vector<8x128xf32>
    %210 = arith.mulf %209, %209 : vector<8x128xf32>
    %cst_85 = arith.constant dense<0.000000e+00> : vector<8xf32>
    %211 = vector.multi_reduction <add>, %210, %cst_85 [1] : vector<8x128xf32> to vector<8xf32>
    %212 = vector.shape_cast %211 : vector<8xf32> to vector<8x1xf32>
    %cst_86 = arith.constant 3.125000e-02 : f32
    %213 = vector.broadcast %cst_86 : f32 to vector<8x1xf32>
    %214 = arith.mulf %212, %213 : vector<8x1xf32>
    %cst_87 = arith.constant 9.99999974E-6 : f32
    %215 = vector.broadcast %cst_87 : f32 to vector<8x1xf32>
    %216 = arith.addf %214, %215 : vector<8x1xf32>
    %217 = math.rsqrt %216 : vector<8x1xf32>
    %218 = vector.broadcast %217 : vector<8x1xf32> to vector<8x128xf32>
    %219 = arith.mulf %209, %218 : vector<8x128xf32>
    %220 = vector.broadcast %196 : vector<1x128xf32> to vector<8x128xf32>
    %221 = arith.mulf %219, %220 : vector<8x128xf32>
    %222 = vector.broadcast %198 : vector<1x128xf32> to vector<8x128xf32>
    %223 = arith.addf %221, %222 : vector<8x128xf32>
    %c1 = arith.constant 1 : index
    %c0_88 = arith.constant 0 : index
    %c0_89 = arith.constant 0 : index
    %224 = vector.load %arg31[%c1, %c0_88, %c0_89] : memref<2x128x384xf32, #tpu.memory_space<vmem>>, vector<1x128x384xf32>
    %225 = vector.shape_cast %224 : vector<1x128x384xf32> to vector<128x384xf32>
    %cst_90 = arith.constant dense<0.000000e+00> : vector<8x384xf32>
    %226 = tpu.matmul %223, %225, %cst_90 {dimension_numbers = #tpu.dot_dimension_numbers<[1], [0], [0], [1], [0, 0, 1, 1], [], []>} : vector<8x128xf32>, vector<128x384xf32>, vector<8x384xf32> -> vector<8x384xf32>
    %c1_91 = arith.constant 1 : index
    %c0_92 = arith.constant 0 : index
    %c0_93 = arith.constant 0 : index
    %227 = vector.load %arg23[%c1_91, %c0_92, %c0_93] : memref<2x1x384xf32, #tpu.memory_space<vmem>>, vector<1x1x384xf32>
    %228 = vector.shape_cast %227 : vector<1x1x384xf32> to vector<1x384xf32>
    %229 = vector.broadcast %228 : vector<1x384xf32> to vector<8x384xf32>
    %230 = arith.addf %226, %229 : vector<8x384xf32>
    %231 = vector.extract_strided_slice %230 {offsets = [0, 0], sizes = [8, 128], strides = [1, 1]} : vector<8x384xf32> to vector<8x128xf32>
    %232 = vector.extract_strided_slice %230 {offsets = [0, 128], sizes = [8, 128], strides = [1, 1]} : vector<8x384xf32> to vector<8x128xf32>
    %233 = vector.extract_strided_slice %230 {offsets = [0, 256], sizes = [8, 128], strides = [1, 1]} : vector<8x384xf32> to vector<8x128xf32>
    %c1_94 = arith.constant 1 : index
    %c0_95 = arith.constant 0 : index
    %c0_96 = arith.constant 0 : index
    %234 = vector.load %arg32[%c1_94, %c0_95, %c0_96] : memref<2x128x128xf32, #tpu.memory_space<vmem>>, vector<1x128x128xf32>
    %235 = vector.shape_cast %234 : vector<1x128x128xf32> to vector<128x128xf32>
    %c1_97 = arith.constant 1 : index
    %c0_98 = arith.constant 0 : index
    %c0_99 = arith.constant 0 : index
    %236 = vector.load %arg24[%c1_97, %c0_98, %c0_99] : memref<2x1x128xf32, #tpu.memory_space<vmem>>, vector<1x1x128xf32>
    %237 = vector.shape_cast %236 : vector<1x1x128xf32> to vector<1x128xf32>
    %238 = tpu.iota {dimensions = array<i32: 1>} : vector<1x128xi32>
    %cst_100 = arith.constant 0.000000e+00 : f32
    %239 = vector.broadcast %cst_100 : f32 to vector<8x128xf32>
    %c0_i32_101 = arith.constant 0 : i32
    %240 = vector.broadcast %c0_i32_101 : i32 to vector<1x128xi32>
    %241 = arith.cmpi sge, %238, %240 : vector<1x128xi32>
    %c8_i32_102 = arith.constant 8 : i32
    %242 = vector.broadcast %c8_i32_102 : i32 to vector<1x128xi32>
    %243 = arith.cmpi slt, %238, %242 : vector<1x128xi32>
    %244 = arith.andi %241, %243 : vector<1x128xi1>
    %245 = arith.extui %244 : vector<1x128xi1> to vector<1x128xi32>
    %246 = arith.sitofp %245 : vector<1x128xi32> to vector<1x128xf32>
    %247 = vector.broadcast %246 : vector<1x128xf32> to vector<8x128xf32>
    %248 = arith.mulf %231, %247 : vector<8x128xf32>
    "tpu.trace_start"() <{level = 10 : i32, message = "qd,kd->qk"}> : () -> ()
    %cst_103 = arith.constant dense<0.000000e+00> : vector<8x8xf32>
    %249 = tpu.matmul %248, %232, %cst_103 {dimension_numbers = #tpu.dot_dimension_numbers<[1], [1], [0], [0], [0, 0, 1, 0], [], []>} : vector<8x128xf32>, vector<8x128xf32>, vector<8x8xf32> -> vector<8x8xf32>
    "tpu.trace_stop"() : () -> ()
    %cst_104 = arith.constant 0.353553385 : f32
    %250 = vector.broadcast %cst_104 : f32 to vector<8x8xf32>
    %251 = arith.mulf %249, %250 : vector<8x8xf32>
    %cst_105 = arith.constant -1.000000e+09 : f32
    %252 = vector.broadcast %cst_105 : f32 to vector<8x8xf32>
    %253 = arith.select %14, %251, %252 : vector<8x8xi1>, vector<8x8xf32>
    %cst_106 = arith.constant dense<0xFF800000> : vector<8xf32>
    %254 = vector.multi_reduction <maximumf>, %253, %cst_106 [1] : vector<8x8xf32> to vector<8xf32>
    %255 = vector.shape_cast %254 : vector<8xf32> to vector<8x1xf32>
    %256 = vector.broadcast %255 : vector<8x1xf32> to vector<8x8xf32>
    %257 = arith.subf %253, %256 : vector<8x8xf32>
    %258 = math.exp %257 : vector<8x8xf32>
    %cst_107 = arith.constant dense<0.000000e+00> : vector<8xf32>
    %259 = vector.multi_reduction <add>, %258, %cst_107 [1] : vector<8x8xf32> to vector<8xf32>
    %260 = vector.shape_cast %259 : vector<8xf32> to vector<8x1xf32>
    %261 = vector.broadcast %260 : vector<8x1xf32> to vector<8x8xf32>
    %262 = arith.divf %258, %261 : vector<8x8xf32>
    %263 = vector.broadcast %246 : vector<1x128xf32> to vector<8x128xf32>
    %264 = arith.mulf %233, %263 : vector<8x128xf32>
    %cst_108 = arith.constant dense<0.000000e+00> : vector<8x128xf32>
    %265 = tpu.matmul %262, %264, %cst_108 {dimension_numbers = #tpu.dot_dimension_numbers<[1], [0], [0], [1], [0, 0, 1, 1], [], []>} : vector<8x8xf32>, vector<8x128xf32>, vector<8x128xf32> -> vector<8x128xf32>
    %266 = arith.addf %239, %265 : vector<8x128xf32>
    %c8_i32_109 = arith.constant 8 : i32
    %267 = vector.broadcast %c8_i32_109 : i32 to vector<1x128xi32>
    %268 = arith.cmpi sge, %238, %267 : vector<1x128xi32>
    %c16_i32_110 = arith.constant 16 : i32
    %269 = vector.broadcast %c16_i32_110 : i32 to vector<1x128xi32>
    %270 = arith.cmpi slt, %238, %269 : vector<1x128xi32>
    %271 = arith.andi %268, %270 : vector<1x128xi1>
    %272 = arith.extui %271 : vector<1x128xi1> to vector<1x128xi32>
    %273 = arith.sitofp %272 : vector<1x128xi32> to vector<1x128xf32>
    %274 = vector.broadcast %273 : vector<1x128xf32> to vector<8x128xf32>
    %275 = arith.mulf %231, %274 : vector<8x128xf32>
    "tpu.trace_start"() <{level = 10 : i32, message = "qd,kd->qk"}> : () -> ()
    %cst_111 = arith.constant dense<0.000000e+00> : vector<8x8xf32>
    %276 = tpu.matmul %275, %232, %cst_111 {dimension_numbers = #tpu.dot_dimension_numbers<[1], [1], [0], [0], [0, 0, 1, 0], [], []>} : vector<8x128xf32>, vector<8x128xf32>, vector<8x8xf32> -> vector<8x8xf32>
    "tpu.trace_stop"() : () -> ()
    %cst_112 = arith.constant 0.353553385 : f32
    %277 = vector.broadcast %cst_112 : f32 to vector<8x8xf32>
    %278 = arith.mulf %276, %277 : vector<8x8xf32>
    %cst_113 = arith.constant -1.000000e+09 : f32
    %279 = vector.broadcast %cst_113 : f32 to vector<8x8xf32>
    %280 = arith.select %14, %278, %279 : vector<8x8xi1>, vector<8x8xf32>
    %cst_114 = arith.constant dense<0xFF800000> : vector<8xf32>
    %281 = vector.multi_reduction <maximumf>, %280, %cst_114 [1] : vector<8x8xf32> to vector<8xf32>
    %282 = vector.shape_cast %281 : vector<8xf32> to vector<8x1xf32>
    %283 = vector.broadcast %282 : vector<8x1xf32> to vector<8x8xf32>
    %284 = arith.subf %280, %283 : vector<8x8xf32>
    %285 = math.exp %284 : vector<8x8xf32>
    %cst_115 = arith.constant dense<0.000000e+00> : vector<8xf32>
    %286 = vector.multi_reduction <add>, %285, %cst_115 [1] : vector<8x8xf32> to vector<8xf32>
    %287 = vector.shape_cast %286 : vector<8xf32> to vector<8x1xf32>
    %288 = vector.broadcast %287 : vector<8x1xf32> to vector<8x8xf32>
    %289 = arith.divf %285, %288 : vector<8x8xf32>
    %290 = vector.broadcast %273 : vector<1x128xf32> to vector<8x128xf32>
    %291 = arith.mulf %233, %290 : vector<8x128xf32>
    %cst_116 = arith.constant dense<0.000000e+00> : vector<8x128xf32>
    %292 = tpu.matmul %289, %291, %cst_116 {dimension_numbers = #tpu.dot_dimension_numbers<[1], [0], [0], [1], [0, 0, 1, 1], [], []>} : vector<8x8xf32>, vector<8x128xf32>, vector<8x128xf32> -> vector<8x128xf32>
    %293 = arith.addf %266, %292 : vector<8x128xf32>
    %c16_i32_117 = arith.constant 16 : i32
    %294 = vector.broadcast %c16_i32_117 : i32 to vector<1x128xi32>
    %295 = arith.cmpi sge, %238, %294 : vector<1x128xi32>
    %c24_i32_118 = arith.constant 24 : i32
    %296 = vector.broadcast %c24_i32_118 : i32 to vector<1x128xi32>
    %297 = arith.cmpi slt, %238, %296 : vector<1x128xi32>
    %298 = arith.andi %295, %297 : vector<1x128xi1>
    %299 = arith.extui %298 : vector<1x128xi1> to vector<1x128xi32>
    %300 = arith.sitofp %299 : vector<1x128xi32> to vector<1x128xf32>
    %301 = vector.broadcast %300 : vector<1x128xf32> to vector<8x128xf32>
    %302 = arith.mulf %231, %301 : vector<8x128xf32>
    "tpu.trace_start"() <{level = 10 : i32, message = "qd,kd->qk"}> : () -> ()
    %cst_119 = arith.constant dense<0.000000e+00> : vector<8x8xf32>
    %303 = tpu.matmul %302, %232, %cst_119 {dimension_numbers = #tpu.dot_dimension_numbers<[1], [1], [0], [0], [0, 0, 1, 0], [], []>} : vector<8x128xf32>, vector<8x128xf32>, vector<8x8xf32> -> vector<8x8xf32>
    "tpu.trace_stop"() : () -> ()
    %cst_120 = arith.constant 0.353553385 : f32
    %304 = vector.broadcast %cst_120 : f32 to vector<8x8xf32>
    %305 = arith.mulf %303, %304 : vector<8x8xf32>
    %cst_121 = arith.constant -1.000000e+09 : f32
    %306 = vector.broadcast %cst_121 : f32 to vector<8x8xf32>
    %307 = arith.select %14, %305, %306 : vector<8x8xi1>, vector<8x8xf32>
    %cst_122 = arith.constant dense<0xFF800000> : vector<8xf32>
    %308 = vector.multi_reduction <maximumf>, %307, %cst_122 [1] : vector<8x8xf32> to vector<8xf32>
    %309 = vector.shape_cast %308 : vector<8xf32> to vector<8x1xf32>
    %310 = vector.broadcast %309 : vector<8x1xf32> to vector<8x8xf32>
    %311 = arith.subf %307, %310 : vector<8x8xf32>
    %312 = math.exp %311 : vector<8x8xf32>
    %cst_123 = arith.constant dense<0.000000e+00> : vector<8xf32>
    %313 = vector.multi_reduction <add>, %312, %cst_123 [1] : vector<8x8xf32> to vector<8xf32>
    %314 = vector.shape_cast %313 : vector<8xf32> to vector<8x1xf32>
    %315 = vector.broadcast %314 : vector<8x1xf32> to vector<8x8xf32>
    %316 = arith.divf %312, %315 : vector<8x8xf32>
    %317 = vector.broadcast %300 : vector<1x128xf32> to vector<8x128xf32>
    %318 = arith.mulf %233, %317 : vector<8x128xf32>
    %cst_124 = arith.constant dense<0.000000e+00> : vector<8x128xf32>
    %319 = tpu.matmul %316, %318, %cst_124 {dimension_numbers = #tpu.dot_dimension_numbers<[1], [0], [0], [1], [0, 0, 1, 1], [], []>} : vector<8x8xf32>, vector<8x128xf32>, vector<8x128xf32> -> vector<8x128xf32>
    %320 = arith.addf %293, %319 : vector<8x128xf32>
    %c24_i32_125 = arith.constant 24 : i32
    %321 = vector.broadcast %c24_i32_125 : i32 to vector<1x128xi32>
    %322 = arith.cmpi sge, %238, %321 : vector<1x128xi32>
    %c32_i32_126 = arith.constant 32 : i32
    %323 = vector.broadcast %c32_i32_126 : i32 to vector<1x128xi32>
    %324 = arith.cmpi slt, %238, %323 : vector<1x128xi32>
    %325 = arith.andi %322, %324 : vector<1x128xi1>
    %326 = arith.extui %325 : vector<1x128xi1> to vector<1x128xi32>
    %327 = arith.sitofp %326 : vector<1x128xi32> to vector<1x128xf32>
    %328 = vector.broadcast %327 : vector<1x128xf32> to vector<8x128xf32>
    %329 = arith.mulf %231, %328 : vector<8x128xf32>
    "tpu.trace_start"() <{level = 10 : i32, message = "qd,kd->qk"}> : () -> ()
    %cst_127 = arith.constant dense<0.000000e+00> : vector<8x8xf32>
    %330 = tpu.matmul %329, %232, %cst_127 {dimension_numbers = #tpu.dot_dimension_numbers<[1], [1], [0], [0], [0, 0, 1, 0], [], []>} : vector<8x128xf32>, vector<8x128xf32>, vector<8x8xf32> -> vector<8x8xf32>
    "tpu.trace_stop"() : () -> ()
    %cst_128 = arith.constant 0.353553385 : f32
    %331 = vector.broadcast %cst_128 : f32 to vector<8x8xf32>
    %332 = arith.mulf %330, %331 : vector<8x8xf32>
    %cst_129 = arith.constant -1.000000e+09 : f32
    %333 = vector.broadcast %cst_129 : f32 to vector<8x8xf32>
    %334 = arith.select %14, %332, %333 : vector<8x8xi1>, vector<8x8xf32>
    %cst_130 = arith.constant dense<0xFF800000> : vector<8xf32>
    %335 = vector.multi_reduction <maximumf>, %334, %cst_130 [1] : vector<8x8xf32> to vector<8xf32>
    %336 = vector.shape_cast %335 : vector<8xf32> to vector<8x1xf32>
    %337 = vector.broadcast %336 : vector<8x1xf32> to vector<8x8xf32>
    %338 = arith.subf %334, %337 : vector<8x8xf32>
    %339 = math.exp %338 : vector<8x8xf32>
    %cst_131 = arith.constant dense<0.000000e+00> : vector<8xf32>
    %340 = vector.multi_reduction <add>, %339, %cst_131 [1] : vector<8x8xf32> to vector<8xf32>
    %341 = vector.shape_cast %340 : vector<8xf32> to vector<8x1xf32>
    %342 = vector.broadcast %341 : vector<8x1xf32> to vector<8x8xf32>
    %343 = arith.divf %339, %342 : vector<8x8xf32>
    %344 = vector.broadcast %327 : vector<1x128xf32> to vector<8x128xf32>
    %345 = arith.mulf %233, %344 : vector<8x128xf32>
    %cst_132 = arith.constant dense<0.000000e+00> : vector<8x128xf32>
    %346 = tpu.matmul %343, %345, %cst_132 {dimension_numbers = #tpu.dot_dimension_numbers<[1], [0], [0], [1], [0, 0, 1, 1], [], []>} : vector<8x8xf32>, vector<8x128xf32>, vector<8x128xf32> -> vector<8x128xf32>
    %347 = arith.addf %320, %346 : vector<8x128xf32>
    %cst_133 = arith.constant dense<0.000000e+00> : vector<8x128xf32>
    %348 = tpu.matmul %347, %235, %cst_133 {dimension_numbers = #tpu.dot_dimension_numbers<[1], [0], [0], [1], [0, 0, 1, 1], [], []>} : vector<8x128xf32>, vector<128x128xf32>, vector<8x128xf32> -> vector<8x128xf32>
    %349 = vector.broadcast %237 : vector<1x128xf32> to vector<8x128xf32>
    %350 = arith.addf %348, %349 : vector<8x128xf32>
    %c1_134 = arith.constant 1 : index
    %c0_135 = arith.constant 0 : index
    %c0_136 = arith.constant 0 : index
    %351 = vector.load %arg26[%c1_134, %c0_135, %c0_136] : memref<2x1x128xf32, #tpu.memory_space<vmem>>, vector<1x1x128xf32>
    %352 = vector.shape_cast %351 : vector<1x1x128xf32> to vector<1x128xf32>
    %c1_137 = arith.constant 1 : index
    %c0_138 = arith.constant 0 : index
    %c0_139 = arith.constant 0 : index
    %353 = vector.load %arg25[%c1_137, %c0_138, %c0_139] : memref<2x1x128xf32, #tpu.memory_space<vmem>>, vector<1x1x128xf32>
    %354 = vector.shape_cast %353 : vector<1x1x128xf32> to vector<1x128xf32>
    %355 = arith.addf %223, %350 : vector<8x128xf32>
    %356 = vector.broadcast %4 : vector<1x128xf32> to vector<8x128xf32>
    %357 = arith.mulf %355, %356 : vector<8x128xf32>
    %cst_140 = arith.constant dense<0.000000e+00> : vector<8xf32>
    %358 = vector.multi_reduction <add>, %357, %cst_140 [1] : vector<8x128xf32> to vector<8xf32>
    %359 = vector.shape_cast %358 : vector<8xf32> to vector<8x1xf32>
    %cst_141 = arith.constant 3.125000e-02 : f32
    %360 = vector.broadcast %cst_141 : f32 to vector<8x1xf32>
    %361 = arith.mulf %359, %360 : vector<8x1xf32>
    %362 = vector.broadcast %361 : vector<8x1xf32> to vector<8x128xf32>
    %363 = arith.subf %355, %362 : vector<8x128xf32>
    %364 = vector.broadcast %4 : vector<1x128xf32> to vector<8x128xf32>
    %365 = arith.mulf %363, %364 : vector<8x128xf32>
    %366 = arith.mulf %365, %365 : vector<8x128xf32>
    %cst_142 = arith.constant dense<0.000000e+00> : vector<8xf32>
    %367 = vector.multi_reduction <add>, %366, %cst_142 [1] : vector<8x128xf32> to vector<8xf32>
    %368 = vector.shape_cast %367 : vector<8xf32> to vector<8x1xf32>
    %cst_143 = arith.constant 3.125000e-02 : f32
    %369 = vector.broadcast %cst_143 : f32 to vector<8x1xf32>
    %370 = arith.mulf %368, %369 : vector<8x1xf32>
    %cst_144 = arith.constant 9.99999974E-6 : f32
    %371 = vector.broadcast %cst_144 : f32 to vector<8x1xf32>
    %372 = arith.addf %370, %371 : vector<8x1xf32>
    %373 = math.rsqrt %372 : vector<8x1xf32>
    %374 = vector.broadcast %373 : vector<8x1xf32> to vector<8x128xf32>
    %375 = arith.mulf %365, %374 : vector<8x128xf32>
    %376 = vector.broadcast %352 : vector<1x128xf32> to vector<8x128xf32>
    %377 = arith.mulf %375, %376 : vector<8x128xf32>
    %378 = vector.broadcast %354 : vector<1x128xf32> to vector<8x128xf32>
    %379 = arith.addf %377, %378 : vector<8x128xf32>
    %c1_145 = arith.constant 1 : index
    %c0_146 = arith.constant 0 : index
    %c0_147 = arith.constant 0 : index
    %380 = vector.load %arg29[%c1_145, %c0_146, %c0_147] : memref<2x128x128xf32, #tpu.memory_space<vmem>>, vector<1x128x128xf32>
    %381 = vector.shape_cast %380 : vector<1x128x128xf32> to vector<128x128xf32>
    %c1_148 = arith.constant 1 : index
    %c0_149 = arith.constant 0 : index
    %c0_150 = arith.constant 0 : index
    %382 = vector.load %arg21[%c1_148, %c0_149, %c0_150] : memref<2x1x128xf32, #tpu.memory_space<vmem>>, vector<1x1x128xf32>
    %383 = vector.shape_cast %382 : vector<1x1x128xf32> to vector<1x128xf32>
    %c1_151 = arith.constant 1 : index
    %c0_152 = arith.constant 0 : index
    %c0_153 = arith.constant 0 : index
    %384 = vector.load %arg30[%c1_151, %c0_152, %c0_153] : memref<2x128x128xf32, #tpu.memory_space<vmem>>, vector<1x128x128xf32>
    %385 = vector.shape_cast %384 : vector<1x128x128xf32> to vector<128x128xf32>
    %c1_154 = arith.constant 1 : index
    %c0_155 = arith.constant 0 : index
    %c0_156 = arith.constant 0 : index
    %386 = vector.load %arg22[%c1_154, %c0_155, %c0_156] : memref<2x1x128xf32, #tpu.memory_space<vmem>>, vector<1x1x128xf32>
    %387 = vector.shape_cast %386 : vector<1x1x128xf32> to vector<1x128xf32>
    %cst_157 = arith.constant dense<0.000000e+00> : vector<8x128xf32>
    %388 = tpu.matmul %379, %381, %cst_157 {dimension_numbers = #tpu.dot_dimension_numbers<[1], [0], [0], [1], [0, 0, 1, 1], [], []>} : vector<8x128xf32>, vector<128x128xf32>, vector<8x128xf32> -> vector<8x128xf32>
    %389 = vector.broadcast %383 : vector<1x128xf32> to vector<8x128xf32>
    %390 = arith.addf %388, %389 : vector<8x128xf32>
    %cst_158 = arith.constant 0.000000e+00 : f32
    %391 = vector.broadcast %cst_158 : f32 to vector<8x128xf32>
    %392 = arith.maximumf %390, %391 : vector<8x128xf32>
    %cst_159 = arith.constant dense<0.000000e+00> : vector<8x128xf32>
    %393 = tpu.matmul %392, %385, %cst_159 {dimension_numbers = #tpu.dot_dimension_numbers<[1], [0], [0], [1], [0, 0, 1, 1], [], []>} : vector<8x128xf32>, vector<128x128xf32>, vector<8x128xf32> -> vector<8x128xf32>
    %394 = vector.broadcast %387 : vector<1x128xf32> to vector<8x128xf32>
    %395 = arith.addf %393, %394 : vector<8x128xf32>
    %c1_160 = arith.constant 1 : index
    %c0_161 = arith.constant 0 : index
    %c0_162 = arith.constant 0 : index
    %396 = vector.load %arg28[%c1_160, %c0_161, %c0_162] : memref<2x1x128xf32, #tpu.memory_space<vmem>>, vector<1x1x128xf32>
    %397 = vector.shape_cast %396 : vector<1x1x128xf32> to vector<1x128xf32>
    %c1_163 = arith.constant 1 : index
    %c0_164 = arith.constant 0 : index
    %c0_165 = arith.constant 0 : index
    %398 = vector.load %arg27[%c1_163, %c0_164, %c0_165] : memref<2x1x128xf32, #tpu.memory_space<vmem>>, vector<1x1x128xf32>
    %399 = vector.shape_cast %398 : vector<1x1x128xf32> to vector<1x128xf32>
    %400 = arith.addf %379, %395 : vector<8x128xf32>
    %401 = vector.broadcast %4 : vector<1x128xf32> to vector<8x128xf32>
    %402 = arith.mulf %400, %401 : vector<8x128xf32>
    %cst_166 = arith.constant dense<0.000000e+00> : vector<8xf32>
    %403 = vector.multi_reduction <add>, %402, %cst_166 [1] : vector<8x128xf32> to vector<8xf32>
    %404 = vector.shape_cast %403 : vector<8xf32> to vector<8x1xf32>
    %cst_167 = arith.constant 3.125000e-02 : f32
    %405 = vector.broadcast %cst_167 : f32 to vector<8x1xf32>
    %406 = arith.mulf %404, %405 : vector<8x1xf32>
    %407 = vector.broadcast %406 : vector<8x1xf32> to vector<8x128xf32>
    %408 = arith.subf %400, %407 : vector<8x128xf32>
    %409 = vector.broadcast %4 : vector<1x128xf32> to vector<8x128xf32>
    %410 = arith.mulf %408, %409 : vector<8x128xf32>
    %411 = arith.mulf %410, %410 : vector<8x128xf32>
    %cst_168 = arith.constant dense<0.000000e+00> : vector<8xf32>
    %412 = vector.multi_reduction <add>, %411, %cst_168 [1] : vector<8x128xf32> to vector<8xf32>
    %413 = vector.shape_cast %412 : vector<8xf32> to vector<8x1xf32>
    %cst_169 = arith.constant 3.125000e-02 : f32
    %414 = vector.broadcast %cst_169 : f32 to vector<8x1xf32>
    %415 = arith.mulf %413, %414 : vector<8x1xf32>
    %cst_170 = arith.constant 9.99999974E-6 : f32
    %416 = vector.broadcast %cst_170 : f32 to vector<8x1xf32>
    %417 = arith.addf %415, %416 : vector<8x1xf32>
    %418 = math.rsqrt %417 : vector<8x1xf32>
    %419 = vector.broadcast %418 : vector<8x1xf32> to vector<8x128xf32>
    %420 = arith.mulf %410, %419 : vector<8x128xf32>
    %421 = vector.broadcast %397 : vector<1x128xf32> to vector<8x128xf32>
    %422 = arith.mulf %420, %421 : vector<8x128xf32>
    %423 = vector.broadcast %399 : vector<1x128xf32> to vector<8x128xf32>
    %424 = arith.addf %422, %423 : vector<8x128xf32>
    %c0_171 = arith.constant 0 : index
    %c0_172 = arith.constant 0 : index
    %c0_173 = arith.constant 0 : index
    %425 = vector.load %arg16[%c0_171, %c0_172, %c0_173] : memref<2x128x384xf32, #tpu.memory_space<vmem>>, vector<1x128x384xf32>
    %426 = vector.shape_cast %425 : vector<1x128x384xf32> to vector<128x384xf32>
    %cst_174 = arith.constant dense<0.000000e+00> : vector<8x384xf32>
    %427 = tpu.matmul %6, %426, %cst_174 {dimension_numbers = #tpu.dot_dimension_numbers<[1], [0], [0], [1], [0, 0, 1, 1], [], []>} : vector<8x128xf32>, vector<128x384xf32>, vector<8x384xf32> -> vector<8x384xf32>
    %c0_175 = arith.constant 0 : index
    %c0_176 = arith.constant 0 : index
    %c0_177 = arith.constant 0 : index
    %428 = vector.load %arg3[%c0_175, %c0_176, %c0_177] : memref<2x1x384xf32, #tpu.memory_space<vmem>>, vector<1x1x384xf32>
    %429 = vector.shape_cast %428 : vector<1x1x384xf32> to vector<1x384xf32>
    %430 = vector.broadcast %429 : vector<1x384xf32> to vector<8x384xf32>
    %431 = arith.addf %427, %430 : vector<8x384xf32>
    %432 = vector.extract_strided_slice %431 {offsets = [0, 0], sizes = [8, 128], strides = [1, 1]} : vector<8x384xf32> to vector<8x128xf32>
    %433 = vector.extract_strided_slice %431 {offsets = [0, 128], sizes = [8, 128], strides = [1, 1]} : vector<8x384xf32> to vector<8x128xf32>
    %434 = vector.extract_strided_slice %431 {offsets = [0, 256], sizes = [8, 128], strides = [1, 1]} : vector<8x384xf32> to vector<8x128xf32>
    %c0_178 = arith.constant 0 : index
    %c0_179 = arith.constant 0 : index
    %c0_180 = arith.constant 0 : index
    %435 = vector.load %arg18[%c0_178, %c0_179, %c0_180] : memref<2x128x128xf32, #tpu.memory_space<vmem>>, vector<1x128x128xf32>
    %436 = vector.shape_cast %435 : vector<1x128x128xf32> to vector<128x128xf32>
    %c0_181 = arith.constant 0 : index
    %c0_182 = arith.constant 0 : index
    %c0_183 = arith.constant 0 : index
    %437 = vector.load %arg5[%c0_181, %c0_182, %c0_183] : memref<2x1x128xf32, #tpu.memory_space<vmem>>, vector<1x1x128xf32>
    %438 = vector.shape_cast %437 : vector<1x1x128xf32> to vector<1x128xf32>
    %439 = tpu.iota {dimensions = array<i32: 1>} : vector<1x128xi32>
    %cst_184 = arith.constant 0.000000e+00 : f32
    %440 = vector.broadcast %cst_184 : f32 to vector<8x128xf32>
    %c0_i32_185 = arith.constant 0 : i32
    %441 = vector.broadcast %c0_i32_185 : i32 to vector<1x128xi32>
    %442 = arith.cmpi sge, %439, %441 : vector<1x128xi32>
    %c8_i32_186 = arith.constant 8 : i32
    %443 = vector.broadcast %c8_i32_186 : i32 to vector<1x128xi32>
    %444 = arith.cmpi slt, %439, %443 : vector<1x128xi32>
    %445 = arith.andi %442, %444 : vector<1x128xi1>
    %446 = arith.extui %445 : vector<1x128xi1> to vector<1x128xi32>
    %447 = arith.sitofp %446 : vector<1x128xi32> to vector<1x128xf32>
    %448 = vector.broadcast %447 : vector<1x128xf32> to vector<8x128xf32>
    %449 = arith.mulf %432, %448 : vector<8x128xf32>
    "tpu.trace_start"() <{level = 10 : i32, message = "qd,kd->qk"}> : () -> ()
    %cst_187 = arith.constant dense<0.000000e+00> : vector<8x8xf32>
    %450 = tpu.matmul %449, %433, %cst_187 {dimension_numbers = #tpu.dot_dimension_numbers<[1], [1], [0], [0], [0, 0, 1, 0], [], []>} : vector<8x128xf32>, vector<8x128xf32>, vector<8x8xf32> -> vector<8x8xf32>
    "tpu.trace_stop"() : () -> ()
    %cst_188 = arith.constant 0.353553385 : f32
    %451 = vector.broadcast %cst_188 : f32 to vector<8x8xf32>
    %452 = arith.mulf %450, %451 : vector<8x8xf32>
    %cst_189 = arith.constant -1.000000e+09 : f32
    %453 = vector.broadcast %cst_189 : f32 to vector<8x8xf32>
    %454 = arith.select %22, %452, %453 : vector<8x8xi1>, vector<8x8xf32>
    %cst_190 = arith.constant dense<0xFF800000> : vector<8xf32>
    %455 = vector.multi_reduction <maximumf>, %454, %cst_190 [1] : vector<8x8xf32> to vector<8xf32>
    %456 = vector.shape_cast %455 : vector<8xf32> to vector<8x1xf32>
    %457 = vector.broadcast %456 : vector<8x1xf32> to vector<8x8xf32>
    %458 = arith.subf %454, %457 : vector<8x8xf32>
    %459 = math.exp %458 : vector<8x8xf32>
    %cst_191 = arith.constant dense<0.000000e+00> : vector<8xf32>
    %460 = vector.multi_reduction <add>, %459, %cst_191 [1] : vector<8x8xf32> to vector<8xf32>
    %461 = vector.shape_cast %460 : vector<8xf32> to vector<8x1xf32>
    %462 = vector.broadcast %461 : vector<8x1xf32> to vector<8x8xf32>
    %463 = arith.divf %459, %462 : vector<8x8xf32>
    %464 = vector.broadcast %447 : vector<1x128xf32> to vector<8x128xf32>
    %465 = arith.mulf %434, %464 : vector<8x128xf32>
    %cst_192 = arith.constant dense<0.000000e+00> : vector<8x128xf32>
    %466 = tpu.matmul %463, %465, %cst_192 {dimension_numbers = #tpu.dot_dimension_numbers<[1], [0], [0], [1], [0, 0, 1, 1], [], []>} : vector<8x8xf32>, vector<8x128xf32>, vector<8x128xf32> -> vector<8x128xf32>
    %467 = arith.addf %440, %466 : vector<8x128xf32>
    %c8_i32_193 = arith.constant 8 : i32
    %468 = vector.broadcast %c8_i32_193 : i32 to vector<1x128xi32>
    %469 = arith.cmpi sge, %439, %468 : vector<1x128xi32>
    %c16_i32_194 = arith.constant 16 : i32
    %470 = vector.broadcast %c16_i32_194 : i32 to vector<1x128xi32>
    %471 = arith.cmpi slt, %439, %470 : vector<1x128xi32>
    %472 = arith.andi %469, %471 : vector<1x128xi1>
    %473 = arith.extui %472 : vector<1x128xi1> to vector<1x128xi32>
    %474 = arith.sitofp %473 : vector<1x128xi32> to vector<1x128xf32>
    %475 = vector.broadcast %474 : vector<1x128xf32> to vector<8x128xf32>
    %476 = arith.mulf %432, %475 : vector<8x128xf32>
    "tpu.trace_start"() <{level = 10 : i32, message = "qd,kd->qk"}> : () -> ()
    %cst_195 = arith.constant dense<0.000000e+00> : vector<8x8xf32>
    %477 = tpu.matmul %476, %433, %cst_195 {dimension_numbers = #tpu.dot_dimension_numbers<[1], [1], [0], [0], [0, 0, 1, 0], [], []>} : vector<8x128xf32>, vector<8x128xf32>, vector<8x8xf32> -> vector<8x8xf32>
    "tpu.trace_stop"() : () -> ()
    %cst_196 = arith.constant 0.353553385 : f32
    %478 = vector.broadcast %cst_196 : f32 to vector<8x8xf32>
    %479 = arith.mulf %477, %478 : vector<8x8xf32>
    %cst_197 = arith.constant -1.000000e+09 : f32
    %480 = vector.broadcast %cst_197 : f32 to vector<8x8xf32>
    %481 = arith.select %22, %479, %480 : vector<8x8xi1>, vector<8x8xf32>
    %cst_198 = arith.constant dense<0xFF800000> : vector<8xf32>
    %482 = vector.multi_reduction <maximumf>, %481, %cst_198 [1] : vector<8x8xf32> to vector<8xf32>
    %483 = vector.shape_cast %482 : vector<8xf32> to vector<8x1xf32>
    %484 = vector.broadcast %483 : vector<8x1xf32> to vector<8x8xf32>
    %485 = arith.subf %481, %484 : vector<8x8xf32>
    %486 = math.exp %485 : vector<8x8xf32>
    %cst_199 = arith.constant dense<0.000000e+00> : vector<8xf32>
    %487 = vector.multi_reduction <add>, %486, %cst_199 [1] : vector<8x8xf32> to vector<8xf32>
    %488 = vector.shape_cast %487 : vector<8xf32> to vector<8x1xf32>
    %489 = vector.broadcast %488 : vector<8x1xf32> to vector<8x8xf32>
    %490 = arith.divf %486, %489 : vector<8x8xf32>
    %491 = vector.broadcast %474 : vector<1x128xf32> to vector<8x128xf32>
    %492 = arith.mulf %434, %491 : vector<8x128xf32>
    %cst_200 = arith.constant dense<0.000000e+00> : vector<8x128xf32>
    %493 = tpu.matmul %490, %492, %cst_200 {dimension_numbers = #tpu.dot_dimension_numbers<[1], [0], [0], [1], [0, 0, 1, 1], [], []>} : vector<8x8xf32>, vector<8x128xf32>, vector<8x128xf32> -> vector<8x128xf32>
    %494 = arith.addf %467, %493 : vector<8x128xf32>
    %c16_i32_201 = arith.constant 16 : i32
    %495 = vector.broadcast %c16_i32_201 : i32 to vector<1x128xi32>
    %496 = arith.cmpi sge, %439, %495 : vector<1x128xi32>
    %c24_i32_202 = arith.constant 24 : i32
    %497 = vector.broadcast %c24_i32_202 : i32 to vector<1x128xi32>
    %498 = arith.cmpi slt, %439, %497 : vector<1x128xi32>
    %499 = arith.andi %496, %498 : vector<1x128xi1>
    %500 = arith.extui %499 : vector<1x128xi1> to vector<1x128xi32>
    %501 = arith.sitofp %500 : vector<1x128xi32> to vector<1x128xf32>
    %502 = vector.broadcast %501 : vector<1x128xf32> to vector<8x128xf32>
    %503 = arith.mulf %432, %502 : vector<8x128xf32>
    "tpu.trace_start"() <{level = 10 : i32, message = "qd,kd->qk"}> : () -> ()
    %cst_203 = arith.constant dense<0.000000e+00> : vector<8x8xf32>
    %504 = tpu.matmul %503, %433, %cst_203 {dimension_numbers = #tpu.dot_dimension_numbers<[1], [1], [0], [0], [0, 0, 1, 0], [], []>} : vector<8x128xf32>, vector<8x128xf32>, vector<8x8xf32> -> vector<8x8xf32>
    "tpu.trace_stop"() : () -> ()
    %cst_204 = arith.constant 0.353553385 : f32
    %505 = vector.broadcast %cst_204 : f32 to vector<8x8xf32>
    %506 = arith.mulf %504, %505 : vector<8x8xf32>
    %cst_205 = arith.constant -1.000000e+09 : f32
    %507 = vector.broadcast %cst_205 : f32 to vector<8x8xf32>
    %508 = arith.select %22, %506, %507 : vector<8x8xi1>, vector<8x8xf32>
    %cst_206 = arith.constant dense<0xFF800000> : vector<8xf32>
    %509 = vector.multi_reduction <maximumf>, %508, %cst_206 [1] : vector<8x8xf32> to vector<8xf32>
    %510 = vector.shape_cast %509 : vector<8xf32> to vector<8x1xf32>
    %511 = vector.broadcast %510 : vector<8x1xf32> to vector<8x8xf32>
    %512 = arith.subf %508, %511 : vector<8x8xf32>
    %513 = math.exp %512 : vector<8x8xf32>
    %cst_207 = arith.constant dense<0.000000e+00> : vector<8xf32>
    %514 = vector.multi_reduction <add>, %513, %cst_207 [1] : vector<8x8xf32> to vector<8xf32>
    %515 = vector.shape_cast %514 : vector<8xf32> to vector<8x1xf32>
    %516 = vector.broadcast %515 : vector<8x1xf32> to vector<8x8xf32>
    %517 = arith.divf %513, %516 : vector<8x8xf32>
    %518 = vector.broadcast %501 : vector<1x128xf32> to vector<8x128xf32>
    %519 = arith.mulf %434, %518 : vector<8x128xf32>
    %cst_208 = arith.constant dense<0.000000e+00> : vector<8x128xf32>
    %520 = tpu.matmul %517, %519, %cst_208 {dimension_numbers = #tpu.dot_dimension_numbers<[1], [0], [0], [1], [0, 0, 1, 1], [], []>} : vector<8x8xf32>, vector<8x128xf32>, vector<8x128xf32> -> vector<8x128xf32>
    %521 = arith.addf %494, %520 : vector<8x128xf32>
    %c24_i32_209 = arith.constant 24 : i32
    %522 = vector.broadcast %c24_i32_209 : i32 to vector<1x128xi32>
    %523 = arith.cmpi sge, %439, %522 : vector<1x128xi32>
    %c32_i32_210 = arith.constant 32 : i32
    %524 = vector.broadcast %c32_i32_210 : i32 to vector<1x128xi32>
    %525 = arith.cmpi slt, %439, %524 : vector<1x128xi32>
    %526 = arith.andi %523, %525 : vector<1x128xi1>
    %527 = arith.extui %526 : vector<1x128xi1> to vector<1x128xi32>
    %528 = arith.sitofp %527 : vector<1x128xi32> to vector<1x128xf32>
    %529 = vector.broadcast %528 : vector<1x128xf32> to vector<8x128xf32>
    %530 = arith.mulf %432, %529 : vector<8x128xf32>
    "tpu.trace_start"() <{level = 10 : i32, message = "qd,kd->qk"}> : () -> ()
    %cst_211 = arith.constant dense<0.000000e+00> : vector<8x8xf32>
    %531 = tpu.matmul %530, %433, %cst_211 {dimension_numbers = #tpu.dot_dimension_numbers<[1], [1], [0], [0], [0, 0, 1, 0], [], []>} : vector<8x128xf32>, vector<8x128xf32>, vector<8x8xf32> -> vector<8x8xf32>
    "tpu.trace_stop"() : () -> ()
    %cst_212 = arith.constant 0.353553385 : f32
    %532 = vector.broadcast %cst_212 : f32 to vector<8x8xf32>
    %533 = arith.mulf %531, %532 : vector<8x8xf32>
    %cst_213 = arith.constant -1.000000e+09 : f32
    %534 = vector.broadcast %cst_213 : f32 to vector<8x8xf32>
    %535 = arith.select %22, %533, %534 : vector<8x8xi1>, vector<8x8xf32>
    %cst_214 = arith.constant dense<0xFF800000> : vector<8xf32>
    %536 = vector.multi_reduction <maximumf>, %535, %cst_214 [1] : vector<8x8xf32> to vector<8xf32>
    %537 = vector.shape_cast %536 : vector<8xf32> to vector<8x1xf32>
    %538 = vector.broadcast %537 : vector<8x1xf32> to vector<8x8xf32>
    %539 = arith.subf %535, %538 : vector<8x8xf32>
    %540 = math.exp %539 : vector<8x8xf32>
    %cst_215 = arith.constant dense<0.000000e+00> : vector<8xf32>
    %541 = vector.multi_reduction <add>, %540, %cst_215 [1] : vector<8x8xf32> to vector<8xf32>
    %542 = vector.shape_cast %541 : vector<8xf32> to vector<8x1xf32>
    %543 = vector.broadcast %542 : vector<8x1xf32> to vector<8x8xf32>
    %544 = arith.divf %540, %543 : vector<8x8xf32>
    %545 = vector.broadcast %528 : vector<1x128xf32> to vector<8x128xf32>
    %546 = arith.mulf %434, %545 : vector<8x128xf32>
    %cst_216 = arith.constant dense<0.000000e+00> : vector<8x128xf32>
    %547 = tpu.matmul %544, %546, %cst_216 {dimension_numbers = #tpu.dot_dimension_numbers<[1], [0], [0], [1], [0, 0, 1, 1], [], []>} : vector<8x8xf32>, vector<8x128xf32>, vector<8x128xf32> -> vector<8x128xf32>
    %548 = arith.addf %521, %547 : vector<8x128xf32>
    %cst_217 = arith.constant dense<0.000000e+00> : vector<8x128xf32>
    %549 = tpu.matmul %548, %436, %cst_217 {dimension_numbers = #tpu.dot_dimension_numbers<[1], [0], [0], [1], [0, 0, 1, 1], [], []>} : vector<8x128xf32>, vector<128x128xf32>, vector<8x128xf32> -> vector<8x128xf32>
    %550 = vector.broadcast %438 : vector<1x128xf32> to vector<8x128xf32>
    %551 = arith.addf %549, %550 : vector<8x128xf32>
    %c0_218 = arith.constant 0 : index
    %c0_219 = arith.constant 0 : index
    %c0_220 = arith.constant 0 : index
    %552 = vector.load %arg9[%c0_218, %c0_219, %c0_220] : memref<2x1x128xf32, #tpu.memory_space<vmem>>, vector<1x1x128xf32>
    %553 = vector.shape_cast %552 : vector<1x1x128xf32> to vector<1x128xf32>
    %c0_221 = arith.constant 0 : index
    %c0_222 = arith.constant 0 : index
    %c0_223 = arith.constant 0 : index
    %554 = vector.load %arg8[%c0_221, %c0_222, %c0_223] : memref<2x1x128xf32, #tpu.memory_space<vmem>>, vector<1x1x128xf32>
    %555 = vector.shape_cast %554 : vector<1x1x128xf32> to vector<1x128xf32>
    %556 = arith.addf %6, %551 : vector<8x128xf32>
    %557 = vector.broadcast %4 : vector<1x128xf32> to vector<8x128xf32>
    %558 = arith.mulf %556, %557 : vector<8x128xf32>
    %cst_224 = arith.constant dense<0.000000e+00> : vector<8xf32>
    %559 = vector.multi_reduction <add>, %558, %cst_224 [1] : vector<8x128xf32> to vector<8xf32>
    %560 = vector.shape_cast %559 : vector<8xf32> to vector<8x1xf32>
    %cst_225 = arith.constant 3.125000e-02 : f32
    %561 = vector.broadcast %cst_225 : f32 to vector<8x1xf32>
    %562 = arith.mulf %560, %561 : vector<8x1xf32>
    %563 = vector.broadcast %562 : vector<8x1xf32> to vector<8x128xf32>
    %564 = arith.subf %556, %563 : vector<8x128xf32>
    %565 = vector.broadcast %4 : vector<1x128xf32> to vector<8x128xf32>
    %566 = arith.mulf %564, %565 : vector<8x128xf32>
    %567 = arith.mulf %566, %566 : vector<8x128xf32>
    %cst_226 = arith.constant dense<0.000000e+00> : vector<8xf32>
    %568 = vector.multi_reduction <add>, %567, %cst_226 [1] : vector<8x128xf32> to vector<8xf32>
    %569 = vector.shape_cast %568 : vector<8xf32> to vector<8x1xf32>
    %cst_227 = arith.constant 3.125000e-02 : f32
    %570 = vector.broadcast %cst_227 : f32 to vector<8x1xf32>
    %571 = arith.mulf %569, %570 : vector<8x1xf32>
    %cst_228 = arith.constant 9.99999974E-6 : f32
    %572 = vector.broadcast %cst_228 : f32 to vector<8x1xf32>
    %573 = arith.addf %571, %572 : vector<8x1xf32>
    %574 = math.rsqrt %573 : vector<8x1xf32>
    %575 = vector.broadcast %574 : vector<8x1xf32> to vector<8x128xf32>
    %576 = arith.mulf %566, %575 : vector<8x128xf32>
    %577 = vector.broadcast %553 : vector<1x128xf32> to vector<8x128xf32>
    %578 = arith.mulf %576, %577 : vector<8x128xf32>
    %579 = vector.broadcast %555 : vector<1x128xf32> to vector<8x128xf32>
    %580 = arith.addf %578, %579 : vector<8x128xf32>
    %c0_229 = arith.constant 0 : index
    %c0_230 = arith.constant 0 : index
    %c0_231 = arith.constant 0 : index
    %581 = vector.load %arg20[%c0_229, %c0_230, %c0_231] : memref<2x128x128xf32, #tpu.memory_space<vmem>>, vector<1x128x128xf32>
    %582 = vector.shape_cast %581 : vector<1x128x128xf32> to vector<128x128xf32>
    %cst_232 = arith.constant dense<0.000000e+00> : vector<8x128xf32>
    %583 = tpu.matmul %580, %582, %cst_232 {dimension_numbers = #tpu.dot_dimension_numbers<[1], [0], [0], [1], [0, 0, 1, 1], [], []>} : vector<8x128xf32>, vector<128x128xf32>, vector<8x128xf32> -> vector<8x128xf32>
    %c0_233 = arith.constant 0 : index
    %c0_234 = arith.constant 0 : index
    %c0_235 = arith.constant 0 : index
    %584 = vector.load %arg7[%c0_233, %c0_234, %c0_235] : memref<2x1x128xf32, #tpu.memory_space<vmem>>, vector<1x1x128xf32>
    %585 = vector.shape_cast %584 : vector<1x1x128xf32> to vector<1x128xf32>
    %586 = vector.broadcast %585 : vector<1x128xf32> to vector<8x128xf32>
    %587 = arith.addf %583, %586 : vector<8x128xf32>
    %c0_236 = arith.constant 0 : index
    %c0_237 = arith.constant 0 : index
    %c0_238 = arith.constant 0 : index
    %588 = vector.load %arg17[%c0_236, %c0_237, %c0_238] : memref<2x128x256xf32, #tpu.memory_space<vmem>>, vector<1x128x256xf32>
    %589 = vector.shape_cast %588 : vector<1x128x256xf32> to vector<128x256xf32>
    %cst_239 = arith.constant dense<0.000000e+00> : vector<8x256xf32>
    %590 = tpu.matmul %424, %589, %cst_239 {dimension_numbers = #tpu.dot_dimension_numbers<[1], [0], [0], [1], [0, 0, 1, 1], [], []>} : vector<8x128xf32>, vector<128x256xf32>, vector<8x256xf32> -> vector<8x256xf32>
    %c0_240 = arith.constant 0 : index
    %c0_241 = arith.constant 0 : index
    %c0_242 = arith.constant 0 : index
    %591 = vector.load %arg4[%c0_240, %c0_241, %c0_242] : memref<2x1x256xf32, #tpu.memory_space<vmem>>, vector<1x1x256xf32>
    %592 = vector.shape_cast %591 : vector<1x1x256xf32> to vector<1x256xf32>
    %593 = vector.broadcast %592 : vector<1x256xf32> to vector<8x256xf32>
    %594 = arith.addf %590, %593 : vector<8x256xf32>
    %595 = vector.extract_strided_slice %594 {offsets = [0, 0], sizes = [8, 128], strides = [1, 1]} : vector<8x256xf32> to vector<8x128xf32>
    %596 = vector.extract_strided_slice %594 {offsets = [0, 128], sizes = [8, 128], strides = [1, 1]} : vector<8x256xf32> to vector<8x128xf32>
    %c0_243 = arith.constant 0 : index
    %c0_244 = arith.constant 0 : index
    %c0_245 = arith.constant 0 : index
    %597 = vector.load %arg19[%c0_243, %c0_244, %c0_245] : memref<2x128x128xf32, #tpu.memory_space<vmem>>, vector<1x128x128xf32>
    %598 = vector.shape_cast %597 : vector<1x128x128xf32> to vector<128x128xf32>
    %c0_246 = arith.constant 0 : index
    %c0_247 = arith.constant 0 : index
    %c0_248 = arith.constant 0 : index
    %599 = vector.load %arg6[%c0_246, %c0_247, %c0_248] : memref<2x1x128xf32, #tpu.memory_space<vmem>>, vector<1x1x128xf32>
    %600 = vector.shape_cast %599 : vector<1x1x128xf32> to vector<1x128xf32>
    %601 = tpu.iota {dimensions = array<i32: 1>} : vector<1x128xi32>
    %cst_249 = arith.constant 0.000000e+00 : f32
    %602 = vector.broadcast %cst_249 : f32 to vector<8x128xf32>
    %c0_i32_250 = arith.constant 0 : i32
    %603 = vector.broadcast %c0_i32_250 : i32 to vector<1x128xi32>
    %604 = arith.cmpi sge, %601, %603 : vector<1x128xi32>
    %c8_i32_251 = arith.constant 8 : i32
    %605 = vector.broadcast %c8_i32_251 : i32 to vector<1x128xi32>
    %606 = arith.cmpi slt, %601, %605 : vector<1x128xi32>
    %607 = arith.andi %604, %606 : vector<1x128xi1>
    %608 = arith.extui %607 : vector<1x128xi1> to vector<1x128xi32>
    %609 = arith.sitofp %608 : vector<1x128xi32> to vector<1x128xf32>
    %610 = vector.broadcast %609 : vector<1x128xf32> to vector<8x128xf32>
    %611 = arith.mulf %587, %610 : vector<8x128xf32>
    "tpu.trace_start"() <{level = 10 : i32, message = "qd,kd->qk"}> : () -> ()
    %cst_252 = arith.constant dense<0.000000e+00> : vector<8x8xf32>
    %612 = tpu.matmul %611, %595, %cst_252 {dimension_numbers = #tpu.dot_dimension_numbers<[1], [1], [0], [0], [0, 0, 1, 0], [], []>} : vector<8x128xf32>, vector<8x128xf32>, vector<8x8xf32> -> vector<8x8xf32>
    "tpu.trace_stop"() : () -> ()
    %cst_253 = arith.constant 0.353553385 : f32
    %613 = vector.broadcast %cst_253 : f32 to vector<8x8xf32>
    %614 = arith.mulf %612, %613 : vector<8x8xf32>
    %cst_254 = arith.constant -1.000000e+09 : f32
    %615 = vector.broadcast %cst_254 : f32 to vector<8x8xf32>
    %616 = arith.select %16, %614, %615 : vector<8x8xi1>, vector<8x8xf32>
    %cst_255 = arith.constant dense<0xFF800000> : vector<8xf32>
    %617 = vector.multi_reduction <maximumf>, %616, %cst_255 [1] : vector<8x8xf32> to vector<8xf32>
    %618 = vector.shape_cast %617 : vector<8xf32> to vector<8x1xf32>
    %619 = vector.broadcast %618 : vector<8x1xf32> to vector<8x8xf32>
    %620 = arith.subf %616, %619 : vector<8x8xf32>
    %621 = math.exp %620 : vector<8x8xf32>
    %cst_256 = arith.constant dense<0.000000e+00> : vector<8xf32>
    %622 = vector.multi_reduction <add>, %621, %cst_256 [1] : vector<8x8xf32> to vector<8xf32>
    %623 = vector.shape_cast %622 : vector<8xf32> to vector<8x1xf32>
    %624 = vector.broadcast %623 : vector<8x1xf32> to vector<8x8xf32>
    %625 = arith.divf %621, %624 : vector<8x8xf32>
    %626 = vector.broadcast %609 : vector<1x128xf32> to vector<8x128xf32>
    %627 = arith.mulf %596, %626 : vector<8x128xf32>
    %cst_257 = arith.constant dense<0.000000e+00> : vector<8x128xf32>
    %628 = tpu.matmul %625, %627, %cst_257 {dimension_numbers = #tpu.dot_dimension_numbers<[1], [0], [0], [1], [0, 0, 1, 1], [], []>} : vector<8x8xf32>, vector<8x128xf32>, vector<8x128xf32> -> vector<8x128xf32>
    %629 = arith.addf %602, %628 : vector<8x128xf32>
    %c8_i32_258 = arith.constant 8 : i32
    %630 = vector.broadcast %c8_i32_258 : i32 to vector<1x128xi32>
    %631 = arith.cmpi sge, %601, %630 : vector<1x128xi32>
    %c16_i32_259 = arith.constant 16 : i32
    %632 = vector.broadcast %c16_i32_259 : i32 to vector<1x128xi32>
    %633 = arith.cmpi slt, %601, %632 : vector<1x128xi32>
    %634 = arith.andi %631, %633 : vector<1x128xi1>
    %635 = arith.extui %634 : vector<1x128xi1> to vector<1x128xi32>
    %636 = arith.sitofp %635 : vector<1x128xi32> to vector<1x128xf32>
    %637 = vector.broadcast %636 : vector<1x128xf32> to vector<8x128xf32>
    %638 = arith.mulf %587, %637 : vector<8x128xf32>
    "tpu.trace_start"() <{level = 10 : i32, message = "qd,kd->qk"}> : () -> ()
    %cst_260 = arith.constant dense<0.000000e+00> : vector<8x8xf32>
    %639 = tpu.matmul %638, %595, %cst_260 {dimension_numbers = #tpu.dot_dimension_numbers<[1], [1], [0], [0], [0, 0, 1, 0], [], []>} : vector<8x128xf32>, vector<8x128xf32>, vector<8x8xf32> -> vector<8x8xf32>
    "tpu.trace_stop"() : () -> ()
    %cst_261 = arith.constant 0.353553385 : f32
    %640 = vector.broadcast %cst_261 : f32 to vector<8x8xf32>
    %641 = arith.mulf %639, %640 : vector<8x8xf32>
    %cst_262 = arith.constant -1.000000e+09 : f32
    %642 = vector.broadcast %cst_262 : f32 to vector<8x8xf32>
    %643 = arith.select %16, %641, %642 : vector<8x8xi1>, vector<8x8xf32>
    %cst_263 = arith.constant dense<0xFF800000> : vector<8xf32>
    %644 = vector.multi_reduction <maximumf>, %643, %cst_263 [1] : vector<8x8xf32> to vector<8xf32>
    %645 = vector.shape_cast %644 : vector<8xf32> to vector<8x1xf32>
    %646 = vector.broadcast %645 : vector<8x1xf32> to vector<8x8xf32>
    %647 = arith.subf %643, %646 : vector<8x8xf32>
    %648 = math.exp %647 : vector<8x8xf32>
    %cst_264 = arith.constant dense<0.000000e+00> : vector<8xf32>
    %649 = vector.multi_reduction <add>, %648, %cst_264 [1] : vector<8x8xf32> to vector<8xf32>
    %650 = vector.shape_cast %649 : vector<8xf32> to vector<8x1xf32>
    %651 = vector.broadcast %650 : vector<8x1xf32> to vector<8x8xf32>
    %652 = arith.divf %648, %651 : vector<8x8xf32>
    %653 = vector.broadcast %636 : vector<1x128xf32> to vector<8x128xf32>
    %654 = arith.mulf %596, %653 : vector<8x128xf32>
    %cst_265 = arith.constant dense<0.000000e+00> : vector<8x128xf32>
    %655 = tpu.matmul %652, %654, %cst_265 {dimension_numbers = #tpu.dot_dimension_numbers<[1], [0], [0], [1], [0, 0, 1, 1], [], []>} : vector<8x8xf32>, vector<8x128xf32>, vector<8x128xf32> -> vector<8x128xf32>
    %656 = arith.addf %629, %655 : vector<8x128xf32>
    %c16_i32_266 = arith.constant 16 : i32
    %657 = vector.broadcast %c16_i32_266 : i32 to vector<1x128xi32>
    %658 = arith.cmpi sge, %601, %657 : vector<1x128xi32>
    %c24_i32_267 = arith.constant 24 : i32
    %659 = vector.broadcast %c24_i32_267 : i32 to vector<1x128xi32>
    %660 = arith.cmpi slt, %601, %659 : vector<1x128xi32>
    %661 = arith.andi %658, %660 : vector<1x128xi1>
    %662 = arith.extui %661 : vector<1x128xi1> to vector<1x128xi32>
    %663 = arith.sitofp %662 : vector<1x128xi32> to vector<1x128xf32>
    %664 = vector.broadcast %663 : vector<1x128xf32> to vector<8x128xf32>
    %665 = arith.mulf %587, %664 : vector<8x128xf32>
    "tpu.trace_start"() <{level = 10 : i32, message = "qd,kd->qk"}> : () -> ()
    %cst_268 = arith.constant dense<0.000000e+00> : vector<8x8xf32>
    %666 = tpu.matmul %665, %595, %cst_268 {dimension_numbers = #tpu.dot_dimension_numbers<[1], [1], [0], [0], [0, 0, 1, 0], [], []>} : vector<8x128xf32>, vector<8x128xf32>, vector<8x8xf32> -> vector<8x8xf32>
    "tpu.trace_stop"() : () -> ()
    %cst_269 = arith.constant 0.353553385 : f32
    %667 = vector.broadcast %cst_269 : f32 to vector<8x8xf32>
    %668 = arith.mulf %666, %667 : vector<8x8xf32>
    %cst_270 = arith.constant -1.000000e+09 : f32
    %669 = vector.broadcast %cst_270 : f32 to vector<8x8xf32>
    %670 = arith.select %16, %668, %669 : vector<8x8xi1>, vector<8x8xf32>
    %cst_271 = arith.constant dense<0xFF800000> : vector<8xf32>
    %671 = vector.multi_reduction <maximumf>, %670, %cst_271 [1] : vector<8x8xf32> to vector<8xf32>
    %672 = vector.shape_cast %671 : vector<8xf32> to vector<8x1xf32>
    %673 = vector.broadcast %672 : vector<8x1xf32> to vector<8x8xf32>
    %674 = arith.subf %670, %673 : vector<8x8xf32>
    %675 = math.exp %674 : vector<8x8xf32>
    %cst_272 = arith.constant dense<0.000000e+00> : vector<8xf32>
    %676 = vector.multi_reduction <add>, %675, %cst_272 [1] : vector<8x8xf32> to vector<8xf32>
    %677 = vector.shape_cast %676 : vector<8xf32> to vector<8x1xf32>
    %678 = vector.broadcast %677 : vector<8x1xf32> to vector<8x8xf32>
    %679 = arith.divf %675, %678 : vector<8x8xf32>
    %680 = vector.broadcast %663 : vector<1x128xf32> to vector<8x128xf32>
    %681 = arith.mulf %596, %680 : vector<8x128xf32>
    %cst_273 = arith.constant dense<0.000000e+00> : vector<8x128xf32>
    %682 = tpu.matmul %679, %681, %cst_273 {dimension_numbers = #tpu.dot_dimension_numbers<[1], [0], [0], [1], [0, 0, 1, 1], [], []>} : vector<8x8xf32>, vector<8x128xf32>, vector<8x128xf32> -> vector<8x128xf32>
    %683 = arith.addf %656, %682 : vector<8x128xf32>
    %c24_i32_274 = arith.constant 24 : i32
    %684 = vector.broadcast %c24_i32_274 : i32 to vector<1x128xi32>
    %685 = arith.cmpi sge, %601, %684 : vector<1x128xi32>
    %c32_i32_275 = arith.constant 32 : i32
    %686 = vector.broadcast %c32_i32_275 : i32 to vector<1x128xi32>
    %687 = arith.cmpi slt, %601, %686 : vector<1x128xi32>
    %688 = arith.andi %685, %687 : vector<1x128xi1>
    %689 = arith.extui %688 : vector<1x128xi1> to vector<1x128xi32>
    %690 = arith.sitofp %689 : vector<1x128xi32> to vector<1x128xf32>
    %691 = vector.broadcast %690 : vector<1x128xf32> to vector<8x128xf32>
    %692 = arith.mulf %587, %691 : vector<8x128xf32>
    "tpu.trace_start"() <{level = 10 : i32, message = "qd,kd->qk"}> : () -> ()
    %cst_276 = arith.constant dense<0.000000e+00> : vector<8x8xf32>
    %693 = tpu.matmul %692, %595, %cst_276 {dimension_numbers = #tpu.dot_dimension_numbers<[1], [1], [0], [0], [0, 0, 1, 0], [], []>} : vector<8x128xf32>, vector<8x128xf32>, vector<8x8xf32> -> vector<8x8xf32>
    "tpu.trace_stop"() : () -> ()
    %cst_277 = arith.constant 0.353553385 : f32
    %694 = vector.broadcast %cst_277 : f32 to vector<8x8xf32>
    %695 = arith.mulf %693, %694 : vector<8x8xf32>
    %cst_278 = arith.constant -1.000000e+09 : f32
    %696 = vector.broadcast %cst_278 : f32 to vector<8x8xf32>
    %697 = arith.select %16, %695, %696 : vector<8x8xi1>, vector<8x8xf32>
    %cst_279 = arith.constant dense<0xFF800000> : vector<8xf32>
    %698 = vector.multi_reduction <maximumf>, %697, %cst_279 [1] : vector<8x8xf32> to vector<8xf32>
    %699 = vector.shape_cast %698 : vector<8xf32> to vector<8x1xf32>
    %700 = vector.broadcast %699 : vector<8x1xf32> to vector<8x8xf32>
    %701 = arith.subf %697, %700 : vector<8x8xf32>
    %702 = math.exp %701 : vector<8x8xf32>
    %cst_280 = arith.constant dense<0.000000e+00> : vector<8xf32>
    %703 = vector.multi_reduction <add>, %702, %cst_280 [1] : vector<8x8xf32> to vector<8xf32>
    %704 = vector.shape_cast %703 : vector<8xf32> to vector<8x1xf32>
    %705 = vector.broadcast %704 : vector<8x1xf32> to vector<8x8xf32>
    %706 = arith.divf %702, %705 : vector<8x8xf32>
    %707 = vector.broadcast %690 : vector<1x128xf32> to vector<8x128xf32>
    %708 = arith.mulf %596, %707 : vector<8x128xf32>
    %cst_281 = arith.constant dense<0.000000e+00> : vector<8x128xf32>
    %709 = tpu.matmul %706, %708, %cst_281 {dimension_numbers = #tpu.dot_dimension_numbers<[1], [0], [0], [1], [0, 0, 1, 1], [], []>} : vector<8x8xf32>, vector<8x128xf32>, vector<8x128xf32> -> vector<8x128xf32>
    %710 = arith.addf %683, %709 : vector<8x128xf32>
    %cst_282 = arith.constant dense<0.000000e+00> : vector<8x128xf32>
    %711 = tpu.matmul %710, %598, %cst_282 {dimension_numbers = #tpu.dot_dimension_numbers<[1], [0], [0], [1], [0, 0, 1, 1], [], []>} : vector<8x128xf32>, vector<128x128xf32>, vector<8x128xf32> -> vector<8x128xf32>
    %712 = vector.broadcast %600 : vector<1x128xf32> to vector<8x128xf32>
    %713 = arith.addf %711, %712 : vector<8x128xf32>
    %c0_283 = arith.constant 0 : index
    %c0_284 = arith.constant 0 : index
    %c0_285 = arith.constant 0 : index
    %714 = vector.load %arg11[%c0_283, %c0_284, %c0_285] : memref<2x1x128xf32, #tpu.memory_space<vmem>>, vector<1x1x128xf32>
    %715 = vector.shape_cast %714 : vector<1x1x128xf32> to vector<1x128xf32>
    %c0_286 = arith.constant 0 : index
    %c0_287 = arith.constant 0 : index
    %c0_288 = arith.constant 0 : index
    %716 = vector.load %arg10[%c0_286, %c0_287, %c0_288] : memref<2x1x128xf32, #tpu.memory_space<vmem>>, vector<1x1x128xf32>
    %717 = vector.shape_cast %716 : vector<1x1x128xf32> to vector<1x128xf32>
    %718 = arith.addf %580, %713 : vector<8x128xf32>
    %719 = vector.broadcast %4 : vector<1x128xf32> to vector<8x128xf32>
    %720 = arith.mulf %718, %719 : vector<8x128xf32>
    %cst_289 = arith.constant dense<0.000000e+00> : vector<8xf32>
    %721 = vector.multi_reduction <add>, %720, %cst_289 [1] : vector<8x128xf32> to vector<8xf32>
    %722 = vector.shape_cast %721 : vector<8xf32> to vector<8x1xf32>
    %cst_290 = arith.constant 3.125000e-02 : f32
    %723 = vector.broadcast %cst_290 : f32 to vector<8x1xf32>
    %724 = arith.mulf %722, %723 : vector<8x1xf32>
    %725 = vector.broadcast %724 : vector<8x1xf32> to vector<8x128xf32>
    %726 = arith.subf %718, %725 : vector<8x128xf32>
    %727 = vector.broadcast %4 : vector<1x128xf32> to vector<8x128xf32>
    %728 = arith.mulf %726, %727 : vector<8x128xf32>
    %729 = arith.mulf %728, %728 : vector<8x128xf32>
    %cst_291 = arith.constant dense<0.000000e+00> : vector<8xf32>
    %730 = vector.multi_reduction <add>, %729, %cst_291 [1] : vector<8x128xf32> to vector<8xf32>
    %731 = vector.shape_cast %730 : vector<8xf32> to vector<8x1xf32>
    %cst_292 = arith.constant 3.125000e-02 : f32
    %732 = vector.broadcast %cst_292 : f32 to vector<8x1xf32>
    %733 = arith.mulf %731, %732 : vector<8x1xf32>
    %cst_293 = arith.constant 9.99999974E-6 : f32
    %734 = vector.broadcast %cst_293 : f32 to vector<8x1xf32>
    %735 = arith.addf %733, %734 : vector<8x1xf32>
    %736 = math.rsqrt %735 : vector<8x1xf32>
    %737 = vector.broadcast %736 : vector<8x1xf32> to vector<8x128xf32>
    %738 = arith.mulf %728, %737 : vector<8x128xf32>
    %739 = vector.broadcast %715 : vector<1x128xf32> to vector<8x128xf32>
    %740 = arith.mulf %738, %739 : vector<8x128xf32>
    %741 = vector.broadcast %717 : vector<1x128xf32> to vector<8x128xf32>
    %742 = arith.addf %740, %741 : vector<8x128xf32>
    %c0_294 = arith.constant 0 : index
    %c0_295 = arith.constant 0 : index
    %c0_296 = arith.constant 0 : index
    %743 = vector.load %arg14[%c0_294, %c0_295, %c0_296] : memref<2x128x128xf32, #tpu.memory_space<vmem>>, vector<1x128x128xf32>
    %744 = vector.shape_cast %743 : vector<1x128x128xf32> to vector<128x128xf32>
    %c0_297 = arith.constant 0 : index
    %c0_298 = arith.constant 0 : index
    %c0_299 = arith.constant 0 : index
    %745 = vector.load %arg1[%c0_297, %c0_298, %c0_299] : memref<2x1x128xf32, #tpu.memory_space<vmem>>, vector<1x1x128xf32>
    %746 = vector.shape_cast %745 : vector<1x1x128xf32> to vector<1x128xf32>
    %c0_300 = arith.constant 0 : index
    %c0_301 = arith.constant 0 : index
    %c0_302 = arith.constant 0 : index
    %747 = vector.load %arg15[%c0_300, %c0_301, %c0_302] : memref<2x128x128xf32, #tpu.memory_space<vmem>>, vector<1x128x128xf32>
    %748 = vector.shape_cast %747 : vector<1x128x128xf32> to vector<128x128xf32>
    %c0_303 = arith.constant 0 : index
    %c0_304 = arith.constant 0 : index
    %c0_305 = arith.constant 0 : index
    %749 = vector.load %arg2[%c0_303, %c0_304, %c0_305] : memref<2x1x128xf32, #tpu.memory_space<vmem>>, vector<1x1x128xf32>
    %750 = vector.shape_cast %749 : vector<1x1x128xf32> to vector<1x128xf32>
    %cst_306 = arith.constant dense<0.000000e+00> : vector<8x128xf32>
    %751 = tpu.matmul %742, %744, %cst_306 {dimension_numbers = #tpu.dot_dimension_numbers<[1], [0], [0], [1], [0, 0, 1, 1], [], []>} : vector<8x128xf32>, vector<128x128xf32>, vector<8x128xf32> -> vector<8x128xf32>
    %752 = vector.broadcast %746 : vector<1x128xf32> to vector<8x128xf32>
    %753 = arith.addf %751, %752 : vector<8x128xf32>
    %cst_307 = arith.constant 0.000000e+00 : f32
    %754 = vector.broadcast %cst_307 : f32 to vector<8x128xf32>
    %755 = arith.maximumf %753, %754 : vector<8x128xf32>
    %cst_308 = arith.constant dense<0.000000e+00> : vector<8x128xf32>
    %756 = tpu.matmul %755, %748, %cst_308 {dimension_numbers = #tpu.dot_dimension_numbers<[1], [0], [0], [1], [0, 0, 1, 1], [], []>} : vector<8x128xf32>, vector<128x128xf32>, vector<8x128xf32> -> vector<8x128xf32>
    %757 = vector.broadcast %750 : vector<1x128xf32> to vector<8x128xf32>
    %758 = arith.addf %756, %757 : vector<8x128xf32>
    %c0_309 = arith.constant 0 : index
    %c0_310 = arith.constant 0 : index
    %c0_311 = arith.constant 0 : index
    %759 = vector.load %arg13[%c0_309, %c0_310, %c0_311] : memref<2x1x128xf32, #tpu.memory_space<vmem>>, vector<1x1x128xf32>
    %760 = vector.shape_cast %759 : vector<1x1x128xf32> to vector<1x128xf32>
    %c0_312 = arith.constant 0 : index
    %c0_313 = arith.constant 0 : index
    %c0_314 = arith.constant 0 : index
    %761 = vector.load %arg12[%c0_312, %c0_313, %c0_314] : memref<2x1x128xf32, #tpu.memory_space<vmem>>, vector<1x1x128xf32>
    %762 = vector.shape_cast %761 : vector<1x1x128xf32> to vector<1x128xf32>
    %763 = arith.addf %742, %758 : vector<8x128xf32>
    %764 = vector.broadcast %4 : vector<1x128xf32> to vector<8x128xf32>
    %765 = arith.mulf %763, %764 : vector<8x128xf32>
    %cst_315 = arith.constant dense<0.000000e+00> : vector<8xf32>
    %766 = vector.multi_reduction <add>, %765, %cst_315 [1] : vector<8x128xf32> to vector<8xf32>
    %767 = vector.shape_cast %766 : vector<8xf32> to vector<8x1xf32>
    %cst_316 = arith.constant 3.125000e-02 : f32
    %768 = vector.broadcast %cst_316 : f32 to vector<8x1xf32>
    %769 = arith.mulf %767, %768 : vector<8x1xf32>
    %770 = vector.broadcast %769 : vector<8x1xf32> to vector<8x128xf32>
    %771 = arith.subf %763, %770 : vector<8x128xf32>
    %772 = vector.broadcast %4 : vector<1x128xf32> to vector<8x128xf32>
    %773 = arith.mulf %771, %772 : vector<8x128xf32>
    %774 = arith.mulf %773, %773 : vector<8x128xf32>
    %cst_317 = arith.constant dense<0.000000e+00> : vector<8xf32>
    %775 = vector.multi_reduction <add>, %774, %cst_317 [1] : vector<8x128xf32> to vector<8xf32>
    %776 = vector.shape_cast %775 : vector<8xf32> to vector<8x1xf32>
    %cst_318 = arith.constant 3.125000e-02 : f32
    %777 = vector.broadcast %cst_318 : f32 to vector<8x1xf32>
    %778 = arith.mulf %776, %777 : vector<8x1xf32>
    %cst_319 = arith.constant 9.99999974E-6 : f32
    %779 = vector.broadcast %cst_319 : f32 to vector<8x1xf32>
    %780 = arith.addf %778, %779 : vector<8x1xf32>
    %781 = math.rsqrt %780 : vector<8x1xf32>
    %782 = vector.broadcast %781 : vector<8x1xf32> to vector<8x128xf32>
    %783 = arith.mulf %773, %782 : vector<8x128xf32>
    %784 = vector.broadcast %760 : vector<1x128xf32> to vector<8x128xf32>
    %785 = arith.mulf %783, %784 : vector<8x128xf32>
    %786 = vector.broadcast %762 : vector<1x128xf32> to vector<8x128xf32>
    %787 = arith.addf %785, %786 : vector<8x128xf32>
    %c1_320 = arith.constant 1 : index
    %c0_321 = arith.constant 0 : index
    %c0_322 = arith.constant 0 : index
    %788 = vector.load %arg16[%c1_320, %c0_321, %c0_322] : memref<2x128x384xf32, #tpu.memory_space<vmem>>, vector<1x128x384xf32>
    %789 = vector.shape_cast %788 : vector<1x128x384xf32> to vector<128x384xf32>
    %cst_323 = arith.constant dense<0.000000e+00> : vector<8x384xf32>
    %790 = tpu.matmul %787, %789, %cst_323 {dimension_numbers = #tpu.dot_dimension_numbers<[1], [0], [0], [1], [0, 0, 1, 1], [], []>} : vector<8x128xf32>, vector<128x384xf32>, vector<8x384xf32> -> vector<8x384xf32>
    %c1_324 = arith.constant 1 : index
    %c0_325 = arith.constant 0 : index
    %c0_326 = arith.constant 0 : index
    %791 = vector.load %arg3[%c1_324, %c0_325, %c0_326] : memref<2x1x384xf32, #tpu.memory_space<vmem>>, vector<1x1x384xf32>
    %792 = vector.shape_cast %791 : vector<1x1x384xf32> to vector<1x384xf32>
    %793 = vector.broadcast %792 : vector<1x384xf32> to vector<8x384xf32>
    %794 = arith.addf %790, %793 : vector<8x384xf32>
    %795 = vector.extract_strided_slice %794 {offsets = [0, 0], sizes = [8, 128], strides = [1, 1]} : vector<8x384xf32> to vector<8x128xf32>
    %796 = vector.extract_strided_slice %794 {offsets = [0, 128], sizes = [8, 128], strides = [1, 1]} : vector<8x384xf32> to vector<8x128xf32>
    %797 = vector.extract_strided_slice %794 {offsets = [0, 256], sizes = [8, 128], strides = [1, 1]} : vector<8x384xf32> to vector<8x128xf32>
    %c1_327 = arith.constant 1 : index
    %c0_328 = arith.constant 0 : index
    %c0_329 = arith.constant 0 : index
    %798 = vector.load %arg18[%c1_327, %c0_328, %c0_329] : memref<2x128x128xf32, #tpu.memory_space<vmem>>, vector<1x128x128xf32>
    %799 = vector.shape_cast %798 : vector<1x128x128xf32> to vector<128x128xf32>
    %c1_330 = arith.constant 1 : index
    %c0_331 = arith.constant 0 : index
    %c0_332 = arith.constant 0 : index
    %800 = vector.load %arg5[%c1_330, %c0_331, %c0_332] : memref<2x1x128xf32, #tpu.memory_space<vmem>>, vector<1x1x128xf32>
    %801 = vector.shape_cast %800 : vector<1x1x128xf32> to vector<1x128xf32>
    %802 = tpu.iota {dimensions = array<i32: 1>} : vector<1x128xi32>
    %cst_333 = arith.constant 0.000000e+00 : f32
    %803 = vector.broadcast %cst_333 : f32 to vector<8x128xf32>
    %c0_i32_334 = arith.constant 0 : i32
    %804 = vector.broadcast %c0_i32_334 : i32 to vector<1x128xi32>
    %805 = arith.cmpi sge, %802, %804 : vector<1x128xi32>
    %c8_i32_335 = arith.constant 8 : i32
    %806 = vector.broadcast %c8_i32_335 : i32 to vector<1x128xi32>
    %807 = arith.cmpi slt, %802, %806 : vector<1x128xi32>
    %808 = arith.andi %805, %807 : vector<1x128xi1>
    %809 = arith.extui %808 : vector<1x128xi1> to vector<1x128xi32>
    %810 = arith.sitofp %809 : vector<1x128xi32> to vector<1x128xf32>
    %811 = vector.broadcast %810 : vector<1x128xf32> to vector<8x128xf32>
    %812 = arith.mulf %795, %811 : vector<8x128xf32>
    "tpu.trace_start"() <{level = 10 : i32, message = "qd,kd->qk"}> : () -> ()
    %cst_336 = arith.constant dense<0.000000e+00> : vector<8x8xf32>
    %813 = tpu.matmul %812, %796, %cst_336 {dimension_numbers = #tpu.dot_dimension_numbers<[1], [1], [0], [0], [0, 0, 1, 0], [], []>} : vector<8x128xf32>, vector<8x128xf32>, vector<8x8xf32> -> vector<8x8xf32>
    "tpu.trace_stop"() : () -> ()
    %cst_337 = arith.constant 0.353553385 : f32
    %814 = vector.broadcast %cst_337 : f32 to vector<8x8xf32>
    %815 = arith.mulf %813, %814 : vector<8x8xf32>
    %cst_338 = arith.constant -1.000000e+09 : f32
    %816 = vector.broadcast %cst_338 : f32 to vector<8x8xf32>
    %817 = arith.select %22, %815, %816 : vector<8x8xi1>, vector<8x8xf32>
    %cst_339 = arith.constant dense<0xFF800000> : vector<8xf32>
    %818 = vector.multi_reduction <maximumf>, %817, %cst_339 [1] : vector<8x8xf32> to vector<8xf32>
    %819 = vector.shape_cast %818 : vector<8xf32> to vector<8x1xf32>
    %820 = vector.broadcast %819 : vector<8x1xf32> to vector<8x8xf32>
    %821 = arith.subf %817, %820 : vector<8x8xf32>
    %822 = math.exp %821 : vector<8x8xf32>
    %cst_340 = arith.constant dense<0.000000e+00> : vector<8xf32>
    %823 = vector.multi_reduction <add>, %822, %cst_340 [1] : vector<8x8xf32> to vector<8xf32>
    %824 = vector.shape_cast %823 : vector<8xf32> to vector<8x1xf32>
    %825 = vector.broadcast %824 : vector<8x1xf32> to vector<8x8xf32>
    %826 = arith.divf %822, %825 : vector<8x8xf32>
    %827 = vector.broadcast %810 : vector<1x128xf32> to vector<8x128xf32>
    %828 = arith.mulf %797, %827 : vector<8x128xf32>
    %cst_341 = arith.constant dense<0.000000e+00> : vector<8x128xf32>
    %829 = tpu.matmul %826, %828, %cst_341 {dimension_numbers = #tpu.dot_dimension_numbers<[1], [0], [0], [1], [0, 0, 1, 1], [], []>} : vector<8x8xf32>, vector<8x128xf32>, vector<8x128xf32> -> vector<8x128xf32>
    %830 = arith.addf %803, %829 : vector<8x128xf32>
    %c8_i32_342 = arith.constant 8 : i32
    %831 = vector.broadcast %c8_i32_342 : i32 to vector<1x128xi32>
    %832 = arith.cmpi sge, %802, %831 : vector<1x128xi32>
    %c16_i32_343 = arith.constant 16 : i32
    %833 = vector.broadcast %c16_i32_343 : i32 to vector<1x128xi32>
    %834 = arith.cmpi slt, %802, %833 : vector<1x128xi32>
    %835 = arith.andi %832, %834 : vector<1x128xi1>
    %836 = arith.extui %835 : vector<1x128xi1> to vector<1x128xi32>
    %837 = arith.sitofp %836 : vector<1x128xi32> to vector<1x128xf32>
    %838 = vector.broadcast %837 : vector<1x128xf32> to vector<8x128xf32>
    %839 = arith.mulf %795, %838 : vector<8x128xf32>
    "tpu.trace_start"() <{level = 10 : i32, message = "qd,kd->qk"}> : () -> ()
    %cst_344 = arith.constant dense<0.000000e+00> : vector<8x8xf32>
    %840 = tpu.matmul %839, %796, %cst_344 {dimension_numbers = #tpu.dot_dimension_numbers<[1], [1], [0], [0], [0, 0, 1, 0], [], []>} : vector<8x128xf32>, vector<8x128xf32>, vector<8x8xf32> -> vector<8x8xf32>
    "tpu.trace_stop"() : () -> ()
    %cst_345 = arith.constant 0.353553385 : f32
    %841 = vector.broadcast %cst_345 : f32 to vector<8x8xf32>
    %842 = arith.mulf %840, %841 : vector<8x8xf32>
    %cst_346 = arith.constant -1.000000e+09 : f32
    %843 = vector.broadcast %cst_346 : f32 to vector<8x8xf32>
    %844 = arith.select %22, %842, %843 : vector<8x8xi1>, vector<8x8xf32>
    %cst_347 = arith.constant dense<0xFF800000> : vector<8xf32>
    %845 = vector.multi_reduction <maximumf>, %844, %cst_347 [1] : vector<8x8xf32> to vector<8xf32>
    %846 = vector.shape_cast %845 : vector<8xf32> to vector<8x1xf32>
    %847 = vector.broadcast %846 : vector<8x1xf32> to vector<8x8xf32>
    %848 = arith.subf %844, %847 : vector<8x8xf32>
    %849 = math.exp %848 : vector<8x8xf32>
    %cst_348 = arith.constant dense<0.000000e+00> : vector<8xf32>
    %850 = vector.multi_reduction <add>, %849, %cst_348 [1] : vector<8x8xf32> to vector<8xf32>
    %851 = vector.shape_cast %850 : vector<8xf32> to vector<8x1xf32>
    %852 = vector.broadcast %851 : vector<8x1xf32> to vector<8x8xf32>
    %853 = arith.divf %849, %852 : vector<8x8xf32>
    %854 = vector.broadcast %837 : vector<1x128xf32> to vector<8x128xf32>
    %855 = arith.mulf %797, %854 : vector<8x128xf32>
    %cst_349 = arith.constant dense<0.000000e+00> : vector<8x128xf32>
    %856 = tpu.matmul %853, %855, %cst_349 {dimension_numbers = #tpu.dot_dimension_numbers<[1], [0], [0], [1], [0, 0, 1, 1], [], []>} : vector<8x8xf32>, vector<8x128xf32>, vector<8x128xf32> -> vector<8x128xf32>
    %857 = arith.addf %830, %856 : vector<8x128xf32>
    %c16_i32_350 = arith.constant 16 : i32
    %858 = vector.broadcast %c16_i32_350 : i32 to vector<1x128xi32>
    %859 = arith.cmpi sge, %802, %858 : vector<1x128xi32>
    %c24_i32_351 = arith.constant 24 : i32
    %860 = vector.broadcast %c24_i32_351 : i32 to vector<1x128xi32>
    %861 = arith.cmpi slt, %802, %860 : vector<1x128xi32>
    %862 = arith.andi %859, %861 : vector<1x128xi1>
    %863 = arith.extui %862 : vector<1x128xi1> to vector<1x128xi32>
    %864 = arith.sitofp %863 : vector<1x128xi32> to vector<1x128xf32>
    %865 = vector.broadcast %864 : vector<1x128xf32> to vector<8x128xf32>
    %866 = arith.mulf %795, %865 : vector<8x128xf32>
    "tpu.trace_start"() <{level = 10 : i32, message = "qd,kd->qk"}> : () -> ()
    %cst_352 = arith.constant dense<0.000000e+00> : vector<8x8xf32>
    %867 = tpu.matmul %866, %796, %cst_352 {dimension_numbers = #tpu.dot_dimension_numbers<[1], [1], [0], [0], [0, 0, 1, 0], [], []>} : vector<8x128xf32>, vector<8x128xf32>, vector<8x8xf32> -> vector<8x8xf32>
    "tpu.trace_stop"() : () -> ()
    %cst_353 = arith.constant 0.353553385 : f32
    %868 = vector.broadcast %cst_353 : f32 to vector<8x8xf32>
    %869 = arith.mulf %867, %868 : vector<8x8xf32>
    %cst_354 = arith.constant -1.000000e+09 : f32
    %870 = vector.broadcast %cst_354 : f32 to vector<8x8xf32>
    %871 = arith.select %22, %869, %870 : vector<8x8xi1>, vector<8x8xf32>
    %cst_355 = arith.constant dense<0xFF800000> : vector<8xf32>
    %872 = vector.multi_reduction <maximumf>, %871, %cst_355 [1] : vector<8x8xf32> to vector<8xf32>
    %873 = vector.shape_cast %872 : vector<8xf32> to vector<8x1xf32>
    %874 = vector.broadcast %873 : vector<8x1xf32> to vector<8x8xf32>
    %875 = arith.subf %871, %874 : vector<8x8xf32>
    %876 = math.exp %875 : vector<8x8xf32>
    %cst_356 = arith.constant dense<0.000000e+00> : vector<8xf32>
    %877 = vector.multi_reduction <add>, %876, %cst_356 [1] : vector<8x8xf32> to vector<8xf32>
    %878 = vector.shape_cast %877 : vector<8xf32> to vector<8x1xf32>
    %879 = vector.broadcast %878 : vector<8x1xf32> to vector<8x8xf32>
    %880 = arith.divf %876, %879 : vector<8x8xf32>
    %881 = vector.broadcast %864 : vector<1x128xf32> to vector<8x128xf32>
    %882 = arith.mulf %797, %881 : vector<8x128xf32>
    %cst_357 = arith.constant dense<0.000000e+00> : vector<8x128xf32>
    %883 = tpu.matmul %880, %882, %cst_357 {dimension_numbers = #tpu.dot_dimension_numbers<[1], [0], [0], [1], [0, 0, 1, 1], [], []>} : vector<8x8xf32>, vector<8x128xf32>, vector<8x128xf32> -> vector<8x128xf32>
    %884 = arith.addf %857, %883 : vector<8x128xf32>
    %c24_i32_358 = arith.constant 24 : i32
    %885 = vector.broadcast %c24_i32_358 : i32 to vector<1x128xi32>
    %886 = arith.cmpi sge, %802, %885 : vector<1x128xi32>
    %c32_i32_359 = arith.constant 32 : i32
    %887 = vector.broadcast %c32_i32_359 : i32 to vector<1x128xi32>
    %888 = arith.cmpi slt, %802, %887 : vector<1x128xi32>
    %889 = arith.andi %886, %888 : vector<1x128xi1>
    %890 = arith.extui %889 : vector<1x128xi1> to vector<1x128xi32>
    %891 = arith.sitofp %890 : vector<1x128xi32> to vector<1x128xf32>
    %892 = vector.broadcast %891 : vector<1x128xf32> to vector<8x128xf32>
    %893 = arith.mulf %795, %892 : vector<8x128xf32>
    "tpu.trace_start"() <{level = 10 : i32, message = "qd,kd->qk"}> : () -> ()
    %cst_360 = arith.constant dense<0.000000e+00> : vector<8x8xf32>
    %894 = tpu.matmul %893, %796, %cst_360 {dimension_numbers = #tpu.dot_dimension_numbers<[1], [1], [0], [0], [0, 0, 1, 0], [], []>} : vector<8x128xf32>, vector<8x128xf32>, vector<8x8xf32> -> vector<8x8xf32>
    "tpu.trace_stop"() : () -> ()
    %cst_361 = arith.constant 0.353553385 : f32
    %895 = vector.broadcast %cst_361 : f32 to vector<8x8xf32>
    %896 = arith.mulf %894, %895 : vector<8x8xf32>
    %cst_362 = arith.constant -1.000000e+09 : f32
    %897 = vector.broadcast %cst_362 : f32 to vector<8x8xf32>
    %898 = arith.select %22, %896, %897 : vector<8x8xi1>, vector<8x8xf32>
    %cst_363 = arith.constant dense<0xFF800000> : vector<8xf32>
    %899 = vector.multi_reduction <maximumf>, %898, %cst_363 [1] : vector<8x8xf32> to vector<8xf32>
    %900 = vector.shape_cast %899 : vector<8xf32> to vector<8x1xf32>
    %901 = vector.broadcast %900 : vector<8x1xf32> to vector<8x8xf32>
    %902 = arith.subf %898, %901 : vector<8x8xf32>
    %903 = math.exp %902 : vector<8x8xf32>
    %cst_364 = arith.constant dense<0.000000e+00> : vector<8xf32>
    %904 = vector.multi_reduction <add>, %903, %cst_364 [1] : vector<8x8xf32> to vector<8xf32>
    %905 = vector.shape_cast %904 : vector<8xf32> to vector<8x1xf32>
    %906 = vector.broadcast %905 : vector<8x1xf32> to vector<8x8xf32>
    %907 = arith.divf %903, %906 : vector<8x8xf32>
    %908 = vector.broadcast %891 : vector<1x128xf32> to vector<8x128xf32>
    %909 = arith.mulf %797, %908 : vector<8x128xf32>
    %cst_365 = arith.constant dense<0.000000e+00> : vector<8x128xf32>
    %910 = tpu.matmul %907, %909, %cst_365 {dimension_numbers = #tpu.dot_dimension_numbers<[1], [0], [0], [1], [0, 0, 1, 1], [], []>} : vector<8x8xf32>, vector<8x128xf32>, vector<8x128xf32> -> vector<8x128xf32>
    %911 = arith.addf %884, %910 : vector<8x128xf32>
    %cst_366 = arith.constant dense<0.000000e+00> : vector<8x128xf32>
    %912 = tpu.matmul %911, %799, %cst_366 {dimension_numbers = #tpu.dot_dimension_numbers<[1], [0], [0], [1], [0, 0, 1, 1], [], []>} : vector<8x128xf32>, vector<128x128xf32>, vector<8x128xf32> -> vector<8x128xf32>
    %913 = vector.broadcast %801 : vector<1x128xf32> to vector<8x128xf32>
    %914 = arith.addf %912, %913 : vector<8x128xf32>
    %c1_367 = arith.constant 1 : index
    %c0_368 = arith.constant 0 : index
    %c0_369 = arith.constant 0 : index
    %915 = vector.load %arg9[%c1_367, %c0_368, %c0_369] : memref<2x1x128xf32, #tpu.memory_space<vmem>>, vector<1x1x128xf32>
    %916 = vector.shape_cast %915 : vector<1x1x128xf32> to vector<1x128xf32>
    %c1_370 = arith.constant 1 : index
    %c0_371 = arith.constant 0 : index
    %c0_372 = arith.constant 0 : index
    %917 = vector.load %arg8[%c1_370, %c0_371, %c0_372] : memref<2x1x128xf32, #tpu.memory_space<vmem>>, vector<1x1x128xf32>
    %918 = vector.shape_cast %917 : vector<1x1x128xf32> to vector<1x128xf32>
    %919 = arith.addf %787, %914 : vector<8x128xf32>
    %920 = vector.broadcast %4 : vector<1x128xf32> to vector<8x128xf32>
    %921 = arith.mulf %919, %920 : vector<8x128xf32>
    %cst_373 = arith.constant dense<0.000000e+00> : vector<8xf32>
    %922 = vector.multi_reduction <add>, %921, %cst_373 [1] : vector<8x128xf32> to vector<8xf32>
    %923 = vector.shape_cast %922 : vector<8xf32> to vector<8x1xf32>
    %cst_374 = arith.constant 3.125000e-02 : f32
    %924 = vector.broadcast %cst_374 : f32 to vector<8x1xf32>
    %925 = arith.mulf %923, %924 : vector<8x1xf32>
    %926 = vector.broadcast %925 : vector<8x1xf32> to vector<8x128xf32>
    %927 = arith.subf %919, %926 : vector<8x128xf32>
    %928 = vector.broadcast %4 : vector<1x128xf32> to vector<8x128xf32>
    %929 = arith.mulf %927, %928 : vector<8x128xf32>
    %930 = arith.mulf %929, %929 : vector<8x128xf32>
    %cst_375 = arith.constant dense<0.000000e+00> : vector<8xf32>
    %931 = vector.multi_reduction <add>, %930, %cst_375 [1] : vector<8x128xf32> to vector<8xf32>
    %932 = vector.shape_cast %931 : vector<8xf32> to vector<8x1xf32>
    %cst_376 = arith.constant 3.125000e-02 : f32
    %933 = vector.broadcast %cst_376 : f32 to vector<8x1xf32>
    %934 = arith.mulf %932, %933 : vector<8x1xf32>
    %cst_377 = arith.constant 9.99999974E-6 : f32
    %935 = vector.broadcast %cst_377 : f32 to vector<8x1xf32>
    %936 = arith.addf %934, %935 : vector<8x1xf32>
    %937 = math.rsqrt %936 : vector<8x1xf32>
    %938 = vector.broadcast %937 : vector<8x1xf32> to vector<8x128xf32>
    %939 = arith.mulf %929, %938 : vector<8x128xf32>
    %940 = vector.broadcast %916 : vector<1x128xf32> to vector<8x128xf32>
    %941 = arith.mulf %939, %940 : vector<8x128xf32>
    %942 = vector.broadcast %918 : vector<1x128xf32> to vector<8x128xf32>
    %943 = arith.addf %941, %942 : vector<8x128xf32>
    %c1_378 = arith.constant 1 : index
    %c0_379 = arith.constant 0 : index
    %c0_380 = arith.constant 0 : index
    %944 = vector.load %arg20[%c1_378, %c0_379, %c0_380] : memref<2x128x128xf32, #tpu.memory_space<vmem>>, vector<1x128x128xf32>
    %945 = vector.shape_cast %944 : vector<1x128x128xf32> to vector<128x128xf32>
    %cst_381 = arith.constant dense<0.000000e+00> : vector<8x128xf32>
    %946 = tpu.matmul %943, %945, %cst_381 {dimension_numbers = #tpu.dot_dimension_numbers<[1], [0], [0], [1], [0, 0, 1, 1], [], []>} : vector<8x128xf32>, vector<128x128xf32>, vector<8x128xf32> -> vector<8x128xf32>
    %c1_382 = arith.constant 1 : index
    %c0_383 = arith.constant 0 : index
    %c0_384 = arith.constant 0 : index
    %947 = vector.load %arg7[%c1_382, %c0_383, %c0_384] : memref<2x1x128xf32, #tpu.memory_space<vmem>>, vector<1x1x128xf32>
    %948 = vector.shape_cast %947 : vector<1x1x128xf32> to vector<1x128xf32>
    %949 = vector.broadcast %948 : vector<1x128xf32> to vector<8x128xf32>
    %950 = arith.addf %946, %949 : vector<8x128xf32>
    %c1_385 = arith.constant 1 : index
    %c0_386 = arith.constant 0 : index
    %c0_387 = arith.constant 0 : index
    %951 = vector.load %arg17[%c1_385, %c0_386, %c0_387] : memref<2x128x256xf32, #tpu.memory_space<vmem>>, vector<1x128x256xf32>
    %952 = vector.shape_cast %951 : vector<1x128x256xf32> to vector<128x256xf32>
    %cst_388 = arith.constant dense<0.000000e+00> : vector<8x256xf32>
    %953 = tpu.matmul %424, %952, %cst_388 {dimension_numbers = #tpu.dot_dimension_numbers<[1], [0], [0], [1], [0, 0, 1, 1], [], []>} : vector<8x128xf32>, vector<128x256xf32>, vector<8x256xf32> -> vector<8x256xf32>
    %c1_389 = arith.constant 1 : index
    %c0_390 = arith.constant 0 : index
    %c0_391 = arith.constant 0 : index
    %954 = vector.load %arg4[%c1_389, %c0_390, %c0_391] : memref<2x1x256xf32, #tpu.memory_space<vmem>>, vector<1x1x256xf32>
    %955 = vector.shape_cast %954 : vector<1x1x256xf32> to vector<1x256xf32>
    %956 = vector.broadcast %955 : vector<1x256xf32> to vector<8x256xf32>
    %957 = arith.addf %953, %956 : vector<8x256xf32>
    %958 = vector.extract_strided_slice %957 {offsets = [0, 0], sizes = [8, 128], strides = [1, 1]} : vector<8x256xf32> to vector<8x128xf32>
    %959 = vector.extract_strided_slice %957 {offsets = [0, 128], sizes = [8, 128], strides = [1, 1]} : vector<8x256xf32> to vector<8x128xf32>
    %c1_392 = arith.constant 1 : index
    %c0_393 = arith.constant 0 : index
    %c0_394 = arith.constant 0 : index
    %960 = vector.load %arg19[%c1_392, %c0_393, %c0_394] : memref<2x128x128xf32, #tpu.memory_space<vmem>>, vector<1x128x128xf32>
    %961 = vector.shape_cast %960 : vector<1x128x128xf32> to vector<128x128xf32>
    %c1_395 = arith.constant 1 : index
    %c0_396 = arith.constant 0 : index
    %c0_397 = arith.constant 0 : index
    %962 = vector.load %arg6[%c1_395, %c0_396, %c0_397] : memref<2x1x128xf32, #tpu.memory_space<vmem>>, vector<1x1x128xf32>
    %963 = vector.shape_cast %962 : vector<1x1x128xf32> to vector<1x128xf32>
    %964 = tpu.iota {dimensions = array<i32: 1>} : vector<1x128xi32>
    %cst_398 = arith.constant 0.000000e+00 : f32
    %965 = vector.broadcast %cst_398 : f32 to vector<8x128xf32>
    %c0_i32_399 = arith.constant 0 : i32
    %966 = vector.broadcast %c0_i32_399 : i32 to vector<1x128xi32>
    %967 = arith.cmpi sge, %964, %966 : vector<1x128xi32>
    %c8_i32_400 = arith.constant 8 : i32
    %968 = vector.broadcast %c8_i32_400 : i32 to vector<1x128xi32>
    %969 = arith.cmpi slt, %964, %968 : vector<1x128xi32>
    %970 = arith.andi %967, %969 : vector<1x128xi1>
    %971 = arith.extui %970 : vector<1x128xi1> to vector<1x128xi32>
    %972 = arith.sitofp %971 : vector<1x128xi32> to vector<1x128xf32>
    %973 = vector.broadcast %972 : vector<1x128xf32> to vector<8x128xf32>
    %974 = arith.mulf %950, %973 : vector<8x128xf32>
    "tpu.trace_start"() <{level = 10 : i32, message = "qd,kd->qk"}> : () -> ()
    %cst_401 = arith.constant dense<0.000000e+00> : vector<8x8xf32>
    %975 = tpu.matmul %974, %958, %cst_401 {dimension_numbers = #tpu.dot_dimension_numbers<[1], [1], [0], [0], [0, 0, 1, 0], [], []>} : vector<8x128xf32>, vector<8x128xf32>, vector<8x8xf32> -> vector<8x8xf32>
    "tpu.trace_stop"() : () -> ()
    %cst_402 = arith.constant 0.353553385 : f32
    %976 = vector.broadcast %cst_402 : f32 to vector<8x8xf32>
    %977 = arith.mulf %975, %976 : vector<8x8xf32>
    %cst_403 = arith.constant -1.000000e+09 : f32
    %978 = vector.broadcast %cst_403 : f32 to vector<8x8xf32>
    %979 = arith.select %16, %977, %978 : vector<8x8xi1>, vector<8x8xf32>
    %cst_404 = arith.constant dense<0xFF800000> : vector<8xf32>
    %980 = vector.multi_reduction <maximumf>, %979, %cst_404 [1] : vector<8x8xf32> to vector<8xf32>
    %981 = vector.shape_cast %980 : vector<8xf32> to vector<8x1xf32>
    %982 = vector.broadcast %981 : vector<8x1xf32> to vector<8x8xf32>
    %983 = arith.subf %979, %982 : vector<8x8xf32>
    %984 = math.exp %983 : vector<8x8xf32>
    %cst_405 = arith.constant dense<0.000000e+00> : vector<8xf32>
    %985 = vector.multi_reduction <add>, %984, %cst_405 [1] : vector<8x8xf32> to vector<8xf32>
    %986 = vector.shape_cast %985 : vector<8xf32> to vector<8x1xf32>
    %987 = vector.broadcast %986 : vector<8x1xf32> to vector<8x8xf32>
    %988 = arith.divf %984, %987 : vector<8x8xf32>
    %989 = vector.broadcast %972 : vector<1x128xf32> to vector<8x128xf32>
    %990 = arith.mulf %959, %989 : vector<8x128xf32>
    %cst_406 = arith.constant dense<0.000000e+00> : vector<8x128xf32>
    %991 = tpu.matmul %988, %990, %cst_406 {dimension_numbers = #tpu.dot_dimension_numbers<[1], [0], [0], [1], [0, 0, 1, 1], [], []>} : vector<8x8xf32>, vector<8x128xf32>, vector<8x128xf32> -> vector<8x128xf32>
    %992 = arith.addf %965, %991 : vector<8x128xf32>
    %c8_i32_407 = arith.constant 8 : i32
    %993 = vector.broadcast %c8_i32_407 : i32 to vector<1x128xi32>
    %994 = arith.cmpi sge, %964, %993 : vector<1x128xi32>
    %c16_i32_408 = arith.constant 16 : i32
    %995 = vector.broadcast %c16_i32_408 : i32 to vector<1x128xi32>
    %996 = arith.cmpi slt, %964, %995 : vector<1x128xi32>
    %997 = arith.andi %994, %996 : vector<1x128xi1>
    %998 = arith.extui %997 : vector<1x128xi1> to vector<1x128xi32>
    %999 = arith.sitofp %998 : vector<1x128xi32> to vector<1x128xf32>
    %1000 = vector.broadcast %999 : vector<1x128xf32> to vector<8x128xf32>
    %1001 = arith.mulf %950, %1000 : vector<8x128xf32>
    "tpu.trace_start"() <{level = 10 : i32, message = "qd,kd->qk"}> : () -> ()
    %cst_409 = arith.constant dense<0.000000e+00> : vector<8x8xf32>
    %1002 = tpu.matmul %1001, %958, %cst_409 {dimension_numbers = #tpu.dot_dimension_numbers<[1], [1], [0], [0], [0, 0, 1, 0], [], []>} : vector<8x128xf32>, vector<8x128xf32>, vector<8x8xf32> -> vector<8x8xf32>
    "tpu.trace_stop"() : () -> ()
    %cst_410 = arith.constant 0.353553385 : f32
    %1003 = vector.broadcast %cst_410 : f32 to vector<8x8xf32>
    %1004 = arith.mulf %1002, %1003 : vector<8x8xf32>
    %cst_411 = arith.constant -1.000000e+09 : f32
    %1005 = vector.broadcast %cst_411 : f32 to vector<8x8xf32>
    %1006 = arith.select %16, %1004, %1005 : vector<8x8xi1>, vector<8x8xf32>
    %cst_412 = arith.constant dense<0xFF800000> : vector<8xf32>
    %1007 = vector.multi_reduction <maximumf>, %1006, %cst_412 [1] : vector<8x8xf32> to vector<8xf32>
    %1008 = vector.shape_cast %1007 : vector<8xf32> to vector<8x1xf32>
    %1009 = vector.broadcast %1008 : vector<8x1xf32> to vector<8x8xf32>
    %1010 = arith.subf %1006, %1009 : vector<8x8xf32>
    %1011 = math.exp %1010 : vector<8x8xf32>
    %cst_413 = arith.constant dense<0.000000e+00> : vector<8xf32>
    %1012 = vector.multi_reduction <add>, %1011, %cst_413 [1] : vector<8x8xf32> to vector<8xf32>
    %1013 = vector.shape_cast %1012 : vector<8xf32> to vector<8x1xf32>
    %1014 = vector.broadcast %1013 : vector<8x1xf32> to vector<8x8xf32>
    %1015 = arith.divf %1011, %1014 : vector<8x8xf32>
    %1016 = vector.broadcast %999 : vector<1x128xf32> to vector<8x128xf32>
    %1017 = arith.mulf %959, %1016 : vector<8x128xf32>
    %cst_414 = arith.constant dense<0.000000e+00> : vector<8x128xf32>
    %1018 = tpu.matmul %1015, %1017, %cst_414 {dimension_numbers = #tpu.dot_dimension_numbers<[1], [0], [0], [1], [0, 0, 1, 1], [], []>} : vector<8x8xf32>, vector<8x128xf32>, vector<8x128xf32> -> vector<8x128xf32>
    %1019 = arith.addf %992, %1018 : vector<8x128xf32>
    %c16_i32_415 = arith.constant 16 : i32
    %1020 = vector.broadcast %c16_i32_415 : i32 to vector<1x128xi32>
    %1021 = arith.cmpi sge, %964, %1020 : vector<1x128xi32>
    %c24_i32_416 = arith.constant 24 : i32
    %1022 = vector.broadcast %c24_i32_416 : i32 to vector<1x128xi32>
    %1023 = arith.cmpi slt, %964, %1022 : vector<1x128xi32>
    %1024 = arith.andi %1021, %1023 : vector<1x128xi1>
    %1025 = arith.extui %1024 : vector<1x128xi1> to vector<1x128xi32>
    %1026 = arith.sitofp %1025 : vector<1x128xi32> to vector<1x128xf32>
    %1027 = vector.broadcast %1026 : vector<1x128xf32> to vector<8x128xf32>
    %1028 = arith.mulf %950, %1027 : vector<8x128xf32>
    "tpu.trace_start"() <{level = 10 : i32, message = "qd,kd->qk"}> : () -> ()
    %cst_417 = arith.constant dense<0.000000e+00> : vector<8x8xf32>
    %1029 = tpu.matmul %1028, %958, %cst_417 {dimension_numbers = #tpu.dot_dimension_numbers<[1], [1], [0], [0], [0, 0, 1, 0], [], []>} : vector<8x128xf32>, vector<8x128xf32>, vector<8x8xf32> -> vector<8x8xf32>
    "tpu.trace_stop"() : () -> ()
    %cst_418 = arith.constant 0.353553385 : f32
    %1030 = vector.broadcast %cst_418 : f32 to vector<8x8xf32>
    %1031 = arith.mulf %1029, %1030 : vector<8x8xf32>
    %cst_419 = arith.constant -1.000000e+09 : f32
    %1032 = vector.broadcast %cst_419 : f32 to vector<8x8xf32>
    %1033 = arith.select %16, %1031, %1032 : vector<8x8xi1>, vector<8x8xf32>
    %cst_420 = arith.constant dense<0xFF800000> : vector<8xf32>
    %1034 = vector.multi_reduction <maximumf>, %1033, %cst_420 [1] : vector<8x8xf32> to vector<8xf32>
    %1035 = vector.shape_cast %1034 : vector<8xf32> to vector<8x1xf32>
    %1036 = vector.broadcast %1035 : vector<8x1xf32> to vector<8x8xf32>
    %1037 = arith.subf %1033, %1036 : vector<8x8xf32>
    %1038 = math.exp %1037 : vector<8x8xf32>
    %cst_421 = arith.constant dense<0.000000e+00> : vector<8xf32>
    %1039 = vector.multi_reduction <add>, %1038, %cst_421 [1] : vector<8x8xf32> to vector<8xf32>
    %1040 = vector.shape_cast %1039 : vector<8xf32> to vector<8x1xf32>
    %1041 = vector.broadcast %1040 : vector<8x1xf32> to vector<8x8xf32>
    %1042 = arith.divf %1038, %1041 : vector<8x8xf32>
    %1043 = vector.broadcast %1026 : vector<1x128xf32> to vector<8x128xf32>
    %1044 = arith.mulf %959, %1043 : vector<8x128xf32>
    %cst_422 = arith.constant dense<0.000000e+00> : vector<8x128xf32>
    %1045 = tpu.matmul %1042, %1044, %cst_422 {dimension_numbers = #tpu.dot_dimension_numbers<[1], [0], [0], [1], [0, 0, 1, 1], [], []>} : vector<8x8xf32>, vector<8x128xf32>, vector<8x128xf32> -> vector<8x128xf32>
    %1046 = arith.addf %1019, %1045 : vector<8x128xf32>
    %c24_i32_423 = arith.constant 24 : i32
    %1047 = vector.broadcast %c24_i32_423 : i32 to vector<1x128xi32>
    %1048 = arith.cmpi sge, %964, %1047 : vector<1x128xi32>
    %c32_i32_424 = arith.constant 32 : i32
    %1049 = vector.broadcast %c32_i32_424 : i32 to vector<1x128xi32>
    %1050 = arith.cmpi slt, %964, %1049 : vector<1x128xi32>
    %1051 = arith.andi %1048, %1050 : vector<1x128xi1>
    %1052 = arith.extui %1051 : vector<1x128xi1> to vector<1x128xi32>
    %1053 = arith.sitofp %1052 : vector<1x128xi32> to vector<1x128xf32>
    %1054 = vector.broadcast %1053 : vector<1x128xf32> to vector<8x128xf32>
    %1055 = arith.mulf %950, %1054 : vector<8x128xf32>
    "tpu.trace_start"() <{level = 10 : i32, message = "qd,kd->qk"}> : () -> ()
    %cst_425 = arith.constant dense<0.000000e+00> : vector<8x8xf32>
    %1056 = tpu.matmul %1055, %958, %cst_425 {dimension_numbers = #tpu.dot_dimension_numbers<[1], [1], [0], [0], [0, 0, 1, 0], [], []>} : vector<8x128xf32>, vector<8x128xf32>, vector<8x8xf32> -> vector<8x8xf32>
    "tpu.trace_stop"() : () -> ()
    %cst_426 = arith.constant 0.353553385 : f32
    %1057 = vector.broadcast %cst_426 : f32 to vector<8x8xf32>
    %1058 = arith.mulf %1056, %1057 : vector<8x8xf32>
    %cst_427 = arith.constant -1.000000e+09 : f32
    %1059 = vector.broadcast %cst_427 : f32 to vector<8x8xf32>
    %1060 = arith.select %16, %1058, %1059 : vector<8x8xi1>, vector<8x8xf32>
    %cst_428 = arith.constant dense<0xFF800000> : vector<8xf32>
    %1061 = vector.multi_reduction <maximumf>, %1060, %cst_428 [1] : vector<8x8xf32> to vector<8xf32>
    %1062 = vector.shape_cast %1061 : vector<8xf32> to vector<8x1xf32>
    %1063 = vector.broadcast %1062 : vector<8x1xf32> to vector<8x8xf32>
    %1064 = arith.subf %1060, %1063 : vector<8x8xf32>
    %1065 = math.exp %1064 : vector<8x8xf32>
    %cst_429 = arith.constant dense<0.000000e+00> : vector<8xf32>
    %1066 = vector.multi_reduction <add>, %1065, %cst_429 [1] : vector<8x8xf32> to vector<8xf32>
    %1067 = vector.shape_cast %1066 : vector<8xf32> to vector<8x1xf32>
    %1068 = vector.broadcast %1067 : vector<8x1xf32> to vector<8x8xf32>
    %1069 = arith.divf %1065, %1068 : vector<8x8xf32>
    %1070 = vector.broadcast %1053 : vector<1x128xf32> to vector<8x128xf32>
    %1071 = arith.mulf %959, %1070 : vector<8x128xf32>
    %cst_430 = arith.constant dense<0.000000e+00> : vector<8x128xf32>
    %1072 = tpu.matmul %1069, %1071, %cst_430 {dimension_numbers = #tpu.dot_dimension_numbers<[1], [0], [0], [1], [0, 0, 1, 1], [], []>} : vector<8x8xf32>, vector<8x128xf32>, vector<8x128xf32> -> vector<8x128xf32>
    %1073 = arith.addf %1046, %1072 : vector<8x128xf32>
    %cst_431 = arith.constant dense<0.000000e+00> : vector<8x128xf32>
    %1074 = tpu.matmul %1073, %961, %cst_431 {dimension_numbers = #tpu.dot_dimension_numbers<[1], [0], [0], [1], [0, 0, 1, 1], [], []>} : vector<8x128xf32>, vector<128x128xf32>, vector<8x128xf32> -> vector<8x128xf32>
    %1075 = vector.broadcast %963 : vector<1x128xf32> to vector<8x128xf32>
    %1076 = arith.addf %1074, %1075 : vector<8x128xf32>
    %c1_432 = arith.constant 1 : index
    %c0_433 = arith.constant 0 : index
    %c0_434 = arith.constant 0 : index
    %1077 = vector.load %arg11[%c1_432, %c0_433, %c0_434] : memref<2x1x128xf32, #tpu.memory_space<vmem>>, vector<1x1x128xf32>
    %1078 = vector.shape_cast %1077 : vector<1x1x128xf32> to vector<1x128xf32>
    %c1_435 = arith.constant 1 : index
    %c0_436 = arith.constant 0 : index
    %c0_437 = arith.constant 0 : index
    %1079 = vector.load %arg10[%c1_435, %c0_436, %c0_437] : memref<2x1x128xf32, #tpu.memory_space<vmem>>, vector<1x1x128xf32>
    %1080 = vector.shape_cast %1079 : vector<1x1x128xf32> to vector<1x128xf32>
    %1081 = arith.addf %943, %1076 : vector<8x128xf32>
    %1082 = vector.broadcast %4 : vector<1x128xf32> to vector<8x128xf32>
    %1083 = arith.mulf %1081, %1082 : vector<8x128xf32>
    %cst_438 = arith.constant dense<0.000000e+00> : vector<8xf32>
    %1084 = vector.multi_reduction <add>, %1083, %cst_438 [1] : vector<8x128xf32> to vector<8xf32>
    %1085 = vector.shape_cast %1084 : vector<8xf32> to vector<8x1xf32>
    %cst_439 = arith.constant 3.125000e-02 : f32
    %1086 = vector.broadcast %cst_439 : f32 to vector<8x1xf32>
    %1087 = arith.mulf %1085, %1086 : vector<8x1xf32>
    %1088 = vector.broadcast %1087 : vector<8x1xf32> to vector<8x128xf32>
    %1089 = arith.subf %1081, %1088 : vector<8x128xf32>
    %1090 = vector.broadcast %4 : vector<1x128xf32> to vector<8x128xf32>
    %1091 = arith.mulf %1089, %1090 : vector<8x128xf32>
    %1092 = arith.mulf %1091, %1091 : vector<8x128xf32>
    %cst_440 = arith.constant dense<0.000000e+00> : vector<8xf32>
    %1093 = vector.multi_reduction <add>, %1092, %cst_440 [1] : vector<8x128xf32> to vector<8xf32>
    %1094 = vector.shape_cast %1093 : vector<8xf32> to vector<8x1xf32>
    %cst_441 = arith.constant 3.125000e-02 : f32
    %1095 = vector.broadcast %cst_441 : f32 to vector<8x1xf32>
    %1096 = arith.mulf %1094, %1095 : vector<8x1xf32>
    %cst_442 = arith.constant 9.99999974E-6 : f32
    %1097 = vector.broadcast %cst_442 : f32 to vector<8x1xf32>
    %1098 = arith.addf %1096, %1097 : vector<8x1xf32>
    %1099 = math.rsqrt %1098 : vector<8x1xf32>
    %1100 = vector.broadcast %1099 : vector<8x1xf32> to vector<8x128xf32>
    %1101 = arith.mulf %1091, %1100 : vector<8x128xf32>
    %1102 = vector.broadcast %1078 : vector<1x128xf32> to vector<8x128xf32>
    %1103 = arith.mulf %1101, %1102 : vector<8x128xf32>
    %1104 = vector.broadcast %1080 : vector<1x128xf32> to vector<8x128xf32>
    %1105 = arith.addf %1103, %1104 : vector<8x128xf32>
    %c1_443 = arith.constant 1 : index
    %c0_444 = arith.constant 0 : index
    %c0_445 = arith.constant 0 : index
    %1106 = vector.load %arg14[%c1_443, %c0_444, %c0_445] : memref<2x128x128xf32, #tpu.memory_space<vmem>>, vector<1x128x128xf32>
    %1107 = vector.shape_cast %1106 : vector<1x128x128xf32> to vector<128x128xf32>
    %c1_446 = arith.constant 1 : index
    %c0_447 = arith.constant 0 : index
    %c0_448 = arith.constant 0 : index
    %1108 = vector.load %arg1[%c1_446, %c0_447, %c0_448] : memref<2x1x128xf32, #tpu.memory_space<vmem>>, vector<1x1x128xf32>
    %1109 = vector.shape_cast %1108 : vector<1x1x128xf32> to vector<1x128xf32>
    %c1_449 = arith.constant 1 : index
    %c0_450 = arith.constant 0 : index
    %c0_451 = arith.constant 0 : index
    %1110 = vector.load %arg15[%c1_449, %c0_450, %c0_451] : memref<2x128x128xf32, #tpu.memory_space<vmem>>, vector<1x128x128xf32>
    %1111 = vector.shape_cast %1110 : vector<1x128x128xf32> to vector<128x128xf32>
    %c1_452 = arith.constant 1 : index
    %c0_453 = arith.constant 0 : index
    %c0_454 = arith.constant 0 : index
    %1112 = vector.load %arg2[%c1_452, %c0_453, %c0_454] : memref<2x1x128xf32, #tpu.memory_space<vmem>>, vector<1x1x128xf32>
    %1113 = vector.shape_cast %1112 : vector<1x1x128xf32> to vector<1x128xf32>
    %cst_455 = arith.constant dense<0.000000e+00> : vector<8x128xf32>
    %1114 = tpu.matmul %1105, %1107, %cst_455 {dimension_numbers = #tpu.dot_dimension_numbers<[1], [0], [0], [1], [0, 0, 1, 1], [], []>} : vector<8x128xf32>, vector<128x128xf32>, vector<8x128xf32> -> vector<8x128xf32>
    %1115 = vector.broadcast %1109 : vector<1x128xf32> to vector<8x128xf32>
    %1116 = arith.addf %1114, %1115 : vector<8x128xf32>
    %cst_456 = arith.constant 0.000000e+00 : f32
    %1117 = vector.broadcast %cst_456 : f32 to vector<8x128xf32>
    %1118 = arith.maximumf %1116, %1117 : vector<8x128xf32>
    %cst_457 = arith.constant dense<0.000000e+00> : vector<8x128xf32>
    %1119 = tpu.matmul %1118, %1111, %cst_457 {dimension_numbers = #tpu.dot_dimension_numbers<[1], [0], [0], [1], [0, 0, 1, 1], [], []>} : vector<8x128xf32>, vector<128x128xf32>, vector<8x128xf32> -> vector<8x128xf32>
    %1120 = vector.broadcast %1113 : vector<1x128xf32> to vector<8x128xf32>
    %1121 = arith.addf %1119, %1120 : vector<8x128xf32>
    %c1_458 = arith.constant 1 : index
    %c0_459 = arith.constant 0 : index
    %c0_460 = arith.constant 0 : index
    %1122 = vector.load %arg13[%c1_458, %c0_459, %c0_460] : memref<2x1x128xf32, #tpu.memory_space<vmem>>, vector<1x1x128xf32>
    %1123 = vector.shape_cast %1122 : vector<1x1x128xf32> to vector<1x128xf32>
    %c1_461 = arith.constant 1 : index
    %c0_462 = arith.constant 0 : index
    %c0_463 = arith.constant 0 : index
    %1124 = vector.load %arg12[%c1_461, %c0_462, %c0_463] : memref<2x1x128xf32, #tpu.memory_space<vmem>>, vector<1x1x128xf32>
    %1125 = vector.shape_cast %1124 : vector<1x1x128xf32> to vector<1x128xf32>
    %1126 = arith.addf %1105, %1121 : vector<8x128xf32>
    %1127 = vector.broadcast %4 : vector<1x128xf32> to vector<8x128xf32>
    %1128 = arith.mulf %1126, %1127 : vector<8x128xf32>
    %cst_464 = arith.constant dense<0.000000e+00> : vector<8xf32>
    %1129 = vector.multi_reduction <add>, %1128, %cst_464 [1] : vector<8x128xf32> to vector<8xf32>
    %1130 = vector.shape_cast %1129 : vector<8xf32> to vector<8x1xf32>
    %cst_465 = arith.constant 3.125000e-02 : f32
    %1131 = vector.broadcast %cst_465 : f32 to vector<8x1xf32>
    %1132 = arith.mulf %1130, %1131 : vector<8x1xf32>
    %1133 = vector.broadcast %1132 : vector<8x1xf32> to vector<8x128xf32>
    %1134 = arith.subf %1126, %1133 : vector<8x128xf32>
    %1135 = vector.broadcast %4 : vector<1x128xf32> to vector<8x128xf32>
    %1136 = arith.mulf %1134, %1135 : vector<8x128xf32>
    %1137 = arith.mulf %1136, %1136 : vector<8x128xf32>
    %cst_466 = arith.constant dense<0.000000e+00> : vector<8xf32>
    %1138 = vector.multi_reduction <add>, %1137, %cst_466 [1] : vector<8x128xf32> to vector<8xf32>
    %1139 = vector.shape_cast %1138 : vector<8xf32> to vector<8x1xf32>
    %cst_467 = arith.constant 3.125000e-02 : f32
    %1140 = vector.broadcast %cst_467 : f32 to vector<8x1xf32>
    %1141 = arith.mulf %1139, %1140 : vector<8x1xf32>
    %cst_468 = arith.constant 9.99999974E-6 : f32
    %1142 = vector.broadcast %cst_468 : f32 to vector<8x1xf32>
    %1143 = arith.addf %1141, %1142 : vector<8x1xf32>
    %1144 = math.rsqrt %1143 : vector<8x1xf32>
    %1145 = vector.broadcast %1144 : vector<8x1xf32> to vector<8x128xf32>
    %1146 = arith.mulf %1136, %1145 : vector<8x128xf32>
    %1147 = vector.broadcast %1123 : vector<1x128xf32> to vector<8x128xf32>
    %1148 = arith.mulf %1146, %1147 : vector<8x128xf32>
    %1149 = vector.broadcast %1125 : vector<1x128xf32> to vector<8x128xf32>
    %1150 = arith.addf %1148, %1149 : vector<8x128xf32>
    %c0_469 = arith.constant 0 : index
    %c0_470 = arith.constant 0 : index
    %1151 = vector.load %arg34[%c0_469, %c0_470] : memref<128x128xf32, #tpu.memory_space<vmem>>, vector<128x128xf32>
    %cst_471 = arith.constant dense<0.000000e+00> : vector<8x128xf32>
    %1152 = tpu.matmul %1150, %1151, %cst_471 {dimension_numbers = #tpu.dot_dimension_numbers<[1], [0], [0], [1], [0, 0, 1, 1], [], []>} : vector<8x128xf32>, vector<128x128xf32>, vector<8x128xf32> -> vector<8x128xf32>
    %c0_472 = arith.constant 0 : index
    %c0_473 = arith.constant 0 : index
    %1153 = vector.load %arg33[%c0_472, %c0_473] : memref<1x128xf32, #tpu.memory_space<vmem>>, vector<1x128xf32>
    %1154 = vector.broadcast %1153 : vector<1x128xf32> to vector<8x128xf32>
    %1155 = arith.addf %1152, %1154 : vector<8x128xf32>
    %cst_474 = arith.constant dense<0xFF800000> : vector<128xf32>
    %1156 = vector.multi_reduction <maximumf>, %1155, %cst_474 [0] : vector<8x128xf32> to vector<128xf32>
    %1157 = vector.shape_cast %1156 : vector<128xf32> to vector<1x128xf32>
    %1158 = vector.broadcast %1157 : vector<1x128xf32> to vector<8x128xf32>
    %1159 = arith.subf %1155, %1158 : vector<8x128xf32>
    %1160 = math.exp %1159 : vector<8x128xf32>
    %cst_475 = arith.constant dense<0.000000e+00> : vector<128xf32>
    %1161 = vector.multi_reduction <add>, %1160, %cst_475 [0] : vector<8x128xf32> to vector<128xf32>
    %1162 = vector.shape_cast %1161 : vector<128xf32> to vector<1x128xf32>
    %1163 = vector.broadcast %1162 : vector<1x128xf32> to vector<8x128xf32>
    %1164 = arith.divf %1160, %1163 : vector<8x128xf32>
    %c0_476 = arith.constant 0 : index
    %c0_477 = arith.constant 0 : index
    %1165 = vector.load %arg39[%c0_476, %c0_477] : memref<8x128xf32, #tpu.memory_space<vmem>>, vector<8x128xf32>
    tpu.vector_store %arg39[%c0_476, %c0_477], %1164 {strides = array<i32>} : memref<8x128xf32, #tpu.memory_space<vmem>>, vector<8x128xf32>,
    return
  }
  func.func @transform_0(%arg0: i32) -> (i32, i32, i32) {
    %c0_i32 = arith.constant 0 : i32
    %c0_i32_0 = arith.constant 0 : i32
    %c0_i32_1 = arith.constant 0 : i32
    %c0_i32_2 = arith.constant 0 : i32
    return %c0_i32, %c0_i32_0, %c0_i32_1 : i32, i32, i32
  }
  func.func @transform_1(%arg0: i32) -> (i32, i32, i32) {
    %c0_i32 = arith.constant 0 : i32
    %c0_i32_0 = arith.constant 0 : i32
    %c0_i32_1 = arith.constant 0 : i32
    %c0_i32_2 = arith.constant 0 : i32
    return %c0_i32, %c0_i32_0, %c0_i32_1 : i32, i32, i32
  }
  func.func @transform_2(%arg0: i32) -> (i32, i32, i32) {
    %c0_i32 = arith.constant 0 : i32
    %c0_i32_0 = arith.constant 0 : i32
    %c0_i32_1 = arith.constant 0 : i32
    %c0_i32_2 = arith.constant 0 : i32
    return %c0_i32, %c0_i32_0, %c0_i32_1 : i32, i32, i32
  }
  func.func @transform_3(%arg0: i32) -> (i32, i32, i32) {
    %c0_i32 = arith.constant 0 : i32
    %c0_i32_0 = arith.constant 0 : i32
    %c0_i32_1 = arith.constant 0 : i32
    %c0_i32_2 = arith.constant 0 : i32
    return %c0_i32, %c0_i32_0, %c0_i32_1 : i32, i32, i32
  }
  func.func @transform_4(%arg0: i32) -> (i32, i32, i32) {
    %c0_i32 = arith.constant 0 : i32
    %c0_i32_0 = arith.constant 0 : i32
    %c0_i32_1 = arith.constant 0 : i32
    %c0_i32_2 = arith.constant 0 : i32
    return %c0_i32, %c0_i32_0, %c0_i32_1 : i32, i32, i32
  }
  func.func @transform_5(%arg0: i32) -> (i32, i32, i32) {
    %c0_i32 = arith.constant 0 : i32
    %c0_i32_0 = arith.constant 0 : i32
    %c0_i32_1 = arith.constant 0 : i32
    %c0_i32_2 = arith.constant 0 : i32
    return %c0_i32, %c0_i32_0, %c0_i32_1 : i32, i32, i32
  }
  func.func @transform_6(%arg0: i32) -> (i32, i32, i32) {
    %c0_i32 = arith.constant 0 : i32
    %c0_i32_0 = arith.constant 0 : i32
    %c0_i32_1 = arith.constant 0 : i32
    %c0_i32_2 = arith.constant 0 : i32
    return %c0_i32, %c0_i32_0, %c0_i32_1 : i32, i32, i32
  }
  func.func @transform_7(%arg0: i32) -> (i32, i32, i32) {
    %c0_i32 = arith.constant 0 : i32
    %c0_i32_0 = arith.constant 0 : i32
    %c0_i32_1 = arith.constant 0 : i32
    %c0_i32_2 = arith.constant 0 : i32
    return %c0_i32, %c0_i32_0, %c0_i32_1 : i32, i32, i32
  }
  func.func @transform_8(%arg0: i32) -> (i32, i32, i32) {
    %c0_i32 = arith.constant 0 : i32
    %c0_i32_0 = arith.constant 0 : i32
    %c0_i32_1 = arith.constant 0 : i32
    %c0_i32_2 = arith.constant 0 : i32
    return %c0_i32, %c0_i32_0, %c0_i32_1 : i32, i32, i32
  }
  func.func @transform_9(%arg0: i32) -> (i32, i32, i32) {
    %c0_i32 = arith.constant 0 : i32
    %c0_i32_0 = arith.constant 0 : i32
    %c0_i32_1 = arith.constant 0 : i32
    %c0_i32_2 = arith.constant 0 : i32
    return %c0_i32, %c0_i32_0, %c0_i32_1 : i32, i32, i32
  }
  func.func @transform_10(%arg0: i32) -> (i32, i32, i32) {
    %c0_i32 = arith.constant 0 : i32
    %c0_i32_0 = arith.constant 0 : i32
    %c0_i32_1 = arith.constant 0 : i32
    %c0_i32_2 = arith.constant 0 : i32
    return %c0_i32, %c0_i32_0, %c0_i32_1 : i32, i32, i32
  }
  func.func @transform_11(%arg0: i32) -> (i32, i32, i32) {
    %c0_i32 = arith.constant 0 : i32
    %c0_i32_0 = arith.constant 0 : i32
    %c0_i32_1 = arith.constant 0 : i32
    %c0_i32_2 = arith.constant 0 : i32
    return %c0_i32, %c0_i32_0, %c0_i32_1 : i32, i32, i32
  }
  func.func @transform_12(%arg0: i32) -> (i32, i32, i32) {
    %c0_i32 = arith.constant 0 : i32
    %c0_i32_0 = arith.constant 0 : i32
    %c0_i32_1 = arith.constant 0 : i32
    %c0_i32_2 = arith.constant 0 : i32
    return %c0_i32, %c0_i32_0, %c0_i32_1 : i32, i32, i32
  }
  func.func @transform_13(%arg0: i32) -> (i32, i32, i32) {
    %c0_i32 = arith.constant 0 : i32
    %c0_i32_0 = arith.constant 0 : i32
    %c0_i32_1 = arith.constant 0 : i32
    %c0_i32_2 = arith.constant 0 : i32
    return %c0_i32, %c0_i32_0, %c0_i32_1 : i32, i32, i32
  }
  func.func @transform_14(%arg0: i32) -> (i32, i32, i32) {
    %c0_i32 = arith.constant 0 : i32
    %c0_i32_0 = arith.constant 0 : i32
    %c0_i32_1 = arith.constant 0 : i32
    %c0_i32_2 = arith.constant 0 : i32
    return %c0_i32, %c0_i32_0, %c0_i32_1 : i32, i32, i32
  }
  func.func @transform_15(%arg0: i32) -> (i32, i32, i32) {
    %c0_i32 = arith.constant 0 : i32
    %c0_i32_0 = arith.constant 0 : i32
    %c0_i32_1 = arith.constant 0 : i32
    %c0_i32_2 = arith.constant 0 : i32
    return %c0_i32, %c0_i32_0, %c0_i32_1 : i32, i32, i32
  }
  func.func @transform_16(%arg0: i32) -> (i32, i32, i32) {
    %c0_i32 = arith.constant 0 : i32
    %c0_i32_0 = arith.constant 0 : i32
    %c0_i32_1 = arith.constant 0 : i32
    %c0_i32_2 = arith.constant 0 : i32
    return %c0_i32, %c0_i32_0, %c0_i32_1 : i32, i32, i32
  }
  func.func @transform_17(%arg0: i32) -> (i32, i32, i32) {
    %c0_i32 = arith.constant 0 : i32
    %c0_i32_0 = arith.constant 0 : i32
    %c0_i32_1 = arith.constant 0 : i32
    %c0_i32_2 = arith.constant 0 : i32
    return %c0_i32, %c0_i32_0, %c0_i32_1 : i32, i32, i32
  }
  func.func @transform_18(%arg0: i32) -> (i32, i32, i32) {
    %c0_i32 = arith.constant 0 : i32
    %c0_i32_0 = arith.constant 0 : i32
    %c0_i32_1 = arith.constant 0 : i32
    %c0_i32_2 = arith.constant 0 : i32
    return %c0_i32, %c0_i32_0, %c0_i32_1 : i32, i32, i32
  }
  func.func @transform_19(%arg0: i32) -> (i32, i32, i32) {
    %c0_i32 = arith.constant 0 : i32
    %c0_i32_0 = arith.constant 0 : i32
    %c0_i32_1 = arith.constant 0 : i32
    %c0_i32_2 = arith.constant 0 : i32
    return %c0_i32, %c0_i32_0, %c0_i32_1 : i32, i32, i32
  }
  func.func @transform_20(%arg0: i32) -> (i32, i32, i32) {
    %c0_i32 = arith.constant 0 : i32
    %c0_i32_0 = arith.constant 0 : i32
    %c0_i32_1 = arith.constant 0 : i32
    %c0_i32_2 = arith.constant 0 : i32
    return %c0_i32, %c0_i32_0, %c0_i32_1 : i32, i32, i32
  }
  func.func @transform_21(%arg0: i32) -> (i32, i32, i32) {
    %c0_i32 = arith.constant 0 : i32
    %c0_i32_0 = arith.constant 0 : i32
    %c0_i32_1 = arith.constant 0 : i32
    %c0_i32_2 = arith.constant 0 : i32
    return %c0_i32, %c0_i32_0, %c0_i32_1 : i32, i32, i32
  }
  func.func @transform_22(%arg0: i32) -> (i32, i32, i32) {
    %c0_i32 = arith.constant 0 : i32
    %c0_i32_0 = arith.constant 0 : i32
    %c0_i32_1 = arith.constant 0 : i32
    %c0_i32_2 = arith.constant 0 : i32
    return %c0_i32, %c0_i32_0, %c0_i32_1 : i32, i32, i32
  }
  func.func @transform_23(%arg0: i32) -> (i32, i32, i32) {
    %c0_i32 = arith.constant 0 : i32
    %c0_i32_0 = arith.constant 0 : i32
    %c0_i32_1 = arith.constant 0 : i32
    %c0_i32_2 = arith.constant 0 : i32
    return %c0_i32, %c0_i32_0, %c0_i32_1 : i32, i32, i32
  }
  func.func @transform_24(%arg0: i32) -> (i32, i32, i32) {
    %c0_i32 = arith.constant 0 : i32
    %c0_i32_0 = arith.constant 0 : i32
    %c0_i32_1 = arith.constant 0 : i32
    %c0_i32_2 = arith.constant 0 : i32
    return %c0_i32, %c0_i32_0, %c0_i32_1 : i32, i32, i32
  }
  func.func @transform_25(%arg0: i32) -> (i32, i32, i32) {
    %c0_i32 = arith.constant 0 : i32
    %c0_i32_0 = arith.constant 0 : i32
    %c0_i32_1 = arith.constant 0 : i32
    %c0_i32_2 = arith.constant 0 : i32
    return %c0_i32, %c0_i32_0, %c0_i32_1 : i32, i32, i32
  }
  func.func @transform_26(%arg0: i32) -> (i32, i32, i32) {
    %c0_i32 = arith.constant 0 : i32
    %c0_i32_0 = arith.constant 0 : i32
    %c0_i32_1 = arith.constant 0 : i32
    %c0_i32_2 = arith.constant 0 : i32
    return %c0_i32, %c0_i32_0, %c0_i32_1 : i32, i32, i32
  }
  func.func @transform_27(%arg0: i32) -> (i32, i32, i32) {
    %c0_i32 = arith.constant 0 : i32
    %c0_i32_0 = arith.constant 0 : i32
    %c0_i32_1 = arith.constant 0 : i32
    %c0_i32_2 = arith.constant 0 : i32
    return %c0_i32, %c0_i32_0, %c0_i32_1 : i32, i32, i32
  }
  func.func @transform_28(%arg0: i32) -> (i32, i32, i32) {
    %c0_i32 = arith.constant 0 : i32
    %c0_i32_0 = arith.constant 0 : i32
    %c0_i32_1 = arith.constant 0 : i32
    %c0_i32_2 = arith.constant 0 : i32
    return %c0_i32, %c0_i32_0, %c0_i32_1 : i32, i32, i32
  }
  func.func @transform_29(%arg0: i32) -> (i32, i32, i32) {
    %c0_i32 = arith.constant 0 : i32
    %c0_i32_0 = arith.constant 0 : i32
    %c0_i32_1 = arith.constant 0 : i32
    %c0_i32_2 = arith.constant 0 : i32
    return %c0_i32, %c0_i32_0, %c0_i32_1 : i32, i32, i32
  }
  func.func @transform_30(%arg0: i32) -> (i32, i32, i32) {
    %c0_i32 = arith.constant 0 : i32
    %c0_i32_0 = arith.constant 0 : i32
    %c0_i32_1 = arith.constant 0 : i32
    %c0_i32_2 = arith.constant 0 : i32
    return %c0_i32, %c0_i32_0, %c0_i32_1 : i32, i32, i32
  }
  func.func @transform_31(%arg0: i32) -> (i32, i32, i32) {
    %c0_i32 = arith.constant 0 : i32
    %c0_i32_0 = arith.constant 0 : i32
    %c0_i32_1 = arith.constant 0 : i32
    %c0_i32_2 = arith.constant 0 : i32
    return %c0_i32, %c0_i32_0, %c0_i32_1 : i32, i32, i32
  }
  func.func @transform_32(%arg0: i32) -> (i32, i32) {
    %c0_i32 = arith.constant 0 : i32
    %c0_i32_0 = arith.constant 0 : i32
    %c0_i32_1 = arith.constant 0 : i32
    return %c0_i32, %c0_i32_0 : i32, i32
  }
  func.func @transform_33(%arg0: i32) -> (i32, i32) {
    %c0_i32 = arith.constant 0 : i32
    %c0_i32_0 = arith.constant 0 : i32
    %c0_i32_1 = arith.constant 0 : i32
    return %c0_i32, %c0_i32_0 : i32, i32
  }
  func.func @transform_34(%arg0: i32) -> (i32, i32) {
    %c0_i32 = arith.constant 0 : i32
    %c0_i32_0 = arith.constant 0 : i32
    %c0_i32_1 = arith.constant 0 : i32
    return %c0_i32, %c0_i32_0 : i32, i32
  }
  func.func @transform_35(%arg0: i32) -> (i32, i32) {
    %c0_i32 = arith.constant 0 : i32
    %c0_i32_0 = arith.constant 0 : i32
    %c0_i32_1 = arith.constant 0 : i32
    return %c0_i32, %c0_i32_0 : i32, i32
  }
  func.func @transform_36(%arg0: i32) -> (i32, i32) {
    %c0_i32 = arith.constant 0 : i32
    %c0_i32_0 = arith.constant 0 : i32
    %c0_i32_1 = arith.constant 0 : i32
    return %c0_i32, %c0_i32_0 : i32, i32
  }
  func.func @transform_37(%arg0: i32) -> (i32, i32) {
    %c0_i32 = arith.constant 0 : i32
    %c0_i32_0 = arith.constant 0 : i32
    %c0_i32_1 = arith.constant 0 : i32
    return %c0_i32, %c0_i32_0 : i32, i32
  }
  func.func @transform_38(%arg0: i32) -> (i32, i32) {
    %c0_i32 = arith.constant 0 : i32
    %c0_i32_0 = arith.constant 0 : i32
    %c0_i32_1 = arith.constant 0 : i32
    return %c0_i32, %c0_i32_0 : i32, i32
  }
}

</mosaic_0001>

<llo_original>
// kernel: transformer_forward.1
$region0: #{transformer_forward.1}
  #allocation0 [shape = 'u32[]', space=smem, size = 0x4, offset = 0x4, fixed_abs, tag = 'smem constant byte address 0x4 - core index']
  #allocation1 [shape = 'u32[144,128]{1,0:T(1,128)}', space=vmem, size = 0x12000, scoped, tag = 'internal scratch']
  %s0 = inlined_call_operand.smem [shape: u32[39], index: -1, kind: input, shape index: {}]
  %s1 = sld [smem:[%s0]]
  %s2 = scalar_lea.smem %s0, 1
  %s3 = sld [smem:[%s2]]
  %s4 = scalar_lea.smem %s0, 2
  %s5 = sld [smem:[%s4]]
  %s6 = scalar_lea.smem %s0, 3
  %s7 = sld [smem:[%s6]]
  %s8 = scalar_lea.smem %s0, 4
  %s9 = sld [smem:[%s8]]
  %s10 = scalar_lea.smem %s0, 5
  %s11 = sld [smem:[%s10]]
  %s12 = scalar_lea.smem %s0, 6
  %s13 = sld [smem:[%s12]]
  %s14 = scalar_lea.smem %s0, 7
  %s15 = sld [smem:[%s14]]
  %s16 = scalar_lea.smem %s0, 8
  %s17 = sld [smem:[%s16]]
  %s18 = scalar_lea.smem %s0, 9
  %s19 = sld [smem:[%s18]]
  %s20 = scalar_lea.smem %s0, 10
  %s21 = sld [smem:[%s20]]
  %s22 = scalar_lea.smem %s0, 11
  %s23 = sld [smem:[%s22]]
  %s24 = scalar_lea.smem %s0, 12
  %s25 = sld [smem:[%s24]]
  %s26 = scalar_lea.smem %s0, 13
  %s27 = sld [smem:[%s26]]
  %s28 = scalar_lea.smem %s0, 14
  %s29 = sld [smem:[%s28]]
  %s30 = scalar_lea.smem %s0, 15
  %s31 = sld [smem:[%s30]]
  %s32 = scalar_lea.smem %s0, 16
  %s33 = sld [smem:[%s32]]
  %s34 = scalar_lea.smem %s0, 17
  %s35 = sld [smem:[%s34]]
  %s36 = scalar_lea.smem %s0, 18
  %s37 = sld [smem:[%s36]]
  %s38 = scalar_lea.smem %s0, 19
  %s39 = sld [smem:[%s38]]
  %s40 = scalar_lea.smem %s0, 20
  %s41 = sld [smem:[%s40]]
  %s42 = scalar_lea.smem %s0, 21
  %s43 = sld [smem:[%s42]]
  %s44 = scalar_lea.smem %s0, 22
  %s45 = sld [smem:[%s44]]
  %s46 = scalar_lea.smem %s0, 23
  %s47 = sld [smem:[%s46]]
  %s48 = scalar_lea.smem %s0, 24
  %s49 = sld [smem:[%s48]]
  %s50 = scalar_lea.smem %s0, 25
  %s51 = sld [smem:[%s50]]
  %s52 = scalar_lea.smem %s0, 26
  %s53 = sld [smem:[%s52]]
  %s54 = scalar_lea.smem %s0, 27
  %s55 = sld [smem:[%s54]]
  %s56 = scalar_lea.smem %s0, 28
  %s57 = sld [smem:[%s56]]
  %s58 = scalar_lea.smem %s0, 29
  %s59 = sld [smem:[%s58]]
  %s60 = scalar_lea.smem %s0, 30
  %s61 = sld [smem:[%s60]]
  %s62 = scalar_lea.smem %s0, 31
  %s63 = sld [smem:[%s62]]
  %s64 = scalar_lea.smem %s0, 32
  %s65 = sld [smem:[%s64]]
  %s66 = scalar_lea.smem %s0, 33
  %s67 = sld [smem:[%s66]]
  %s68 = scalar_lea.smem %s0, 34
  %s69 = sld [smem:[%s68]]
  %s70 = scalar_lea.smem %s0, 35
  %s71 = sld [smem:[%s70]]
  %s72 = scalar_lea.smem %s0, 36
  %s73 = sld [smem:[%s72]]
  %s74 = scalar_lea.smem %s0, 37
  %s75 = sld [smem:[%s74]]
  %s76 = scalar_lea.smem %s0, 38
  %s77 = sld [smem:[%s76]]
  %s78 = sld [smem:[#allocation0]]
  $region262: #{transformer_forward.1} parent=0
    _
  %s80 = ssub.s32 1, %s78
  %s81 = scalar_select 0, %s80, %s78
  $region1: #{transformer_forward.1} parent=0
    #allocation2 [shape = 'u8[1024]{0}', space=vmem, size = 0x400, scoped, tag = 'input window, operand 0, single buffered']
    #allocation3 [shape = 's32[1]{0}', space=sflag, size = 0x4, scoped, tag = 'scoped memory for transformer_forward.1']
    #allocation4 [shape = 's32[1]{0}', space=sflag, size = 0x4, scoped, tag = 'scoped memory for transformer_forward.1']
    #allocation5 [shape = 'u8[1024]{0}', space=vmem, size = 0x400, scoped, tag = 'input window, operand 1, single buffered']
    #allocation6 [shape = 's32[1]{0}', space=sflag, size = 0x4, scoped, tag = 'scoped memory for transformer_forward.1']
    #allocation7 [shape = 'u8[3072]{0}', space=vmem, size = 0xc00, scoped, tag = 'input window, operand 2, single buffered']
    #allocation8 [shape = 'u8[2048]{0}', space=vmem, size = 0x800, scoped, tag = 'input window, operand 3, single buffered']
    #allocation9 [shape = 's32[1]{0}', space=sflag, size = 0x4, scoped, tag = 'scoped memory for transformer_forward.1']
    #allocation10 [shape = 'u8[1024]{0}', space=vmem, size = 0x400, scoped, tag = 'input window, operand 4, single buffered']
    #allocation11 [shape = 'u8[1024]{0}', space=vmem, size = 0x400, scoped, tag = 'input window, operand 5, single buffered']
    #allocation12 [shape = 's32[1]{0}', space=sflag, size = 0x4, scoped, tag = 'scoped memory for transformer_forward.1']
    #allocation13 [shape = 'u8[1024]{0}', space=vmem, size = 0x400, scoped, tag = 'input window, operand 6, single buffered']
    #allocation14 [shape = 'u8[1024]{0}', space=vmem, size = 0x400, scoped, tag = 'input window, operand 7, single buffered']
    #allocation15 [shape = 's32[1]{0}', space=sflag, size = 0x4, scoped, tag = 'scoped memory for transformer_forward.1']
    #allocation16 [shape = 'u8[1024]{0}', space=vmem, size = 0x400, scoped, tag = 'input window, operand 8, single buffered']
    #allocation17 [shape = 'u8[1024]{0}', space=vmem, size = 0x400, scoped, tag = 'input window, operand 9, single buffered']
    #allocation18 [shape = 's32[1]{0}', space=sflag, size = 0x4, scoped, tag = 'scoped memory for transformer_forward.1']
    #allocation19 [shape = 'u8[1024]{0}', space=vmem, size = 0x400, scoped, tag = 'input window, operand 10, single buffered']
    #allocation20 [shape = 'u8[1024]{0}', space=vmem, size = 0x400, scoped, tag = 'input window, operand 11, single buffered']
    #allocation21 [shape = 's32[1]{0}', space=sflag, size = 0x4, scoped, tag = 'scoped memory for transformer_forward.1']
    #allocation22 [shape = 'u8[1024]{0}', space=vmem, size = 0x400, scoped, tag = 'input window, operand 12, single buffered']
    #allocation23 [shape = 'u8[131072]{0}', space=vmem, size = 0x20000, scoped, tag = 'input window, operand 13, single buffered']
    #allocation24 [shape = 's32[1]{0}', space=sflag, size = 0x4, scoped, tag = 'scoped memory for transformer_forward.1']
    #allocation25 [shape = 'u8[131072]{0}', space=vmem, size = 0x20000, scoped, tag = 'input window, operand 14, single buffered']
    #allocation26 [shape = 'u8[393216]{0}', space=vmem, size = 0x60000, scoped, tag = 'input window, operand 15, single buffered']
    #allocation27 [shape = 's32[1]{0}', space=sflag, size = 0x4, scoped, tag = 'scoped memory for transformer_forward.1']
    #allocation28 [shape = 'u8[262144]{0}', space=vmem, size = 0x40000, scoped, tag = 'input window, operand 16, single buffered']
    #allocation29 [shape = 'u8[131072]{0}', space=vmem, size = 0x20000, scoped, tag = 'input window, operand 17, single buffered']
    #allocation30 [shape = 's32[1]{0}', space=sflag, size = 0x4, scoped, tag = 'scoped memory for transformer_forward.1']
    #allocation31 [shape = 'u8[131072]{0}', space=vmem, size = 0x20000, scoped, tag = 'input window, operand 18, single buffered']
    #allocation32 [shape = 'u8[131072]{0}', space=vmem, size = 0x20000, scoped, tag = 'input window, operand 19, single buffered']
    #allocation33 [shape = 's32[1]{0}', space=sflag, size = 0x4, scoped, tag = 'scoped memory for transformer_forward.1']
    #allocation34 [shape = 'u8[131072]{0}', space=vmem, size = 0x20000, scoped, tag = 'input window, operand 28, single buffered']
    #allocation35 [shape = 'u8[131072]{0}', space=vmem, size = 0x20000, scoped, tag = 'input window, operand 29, single buffered']
    #allocation36 [shape = 's32[1]{0}', space=sflag, size = 0x4, scoped, tag = 'scoped memory for transformer_forward.1']
    #allocation37 [shape = 'u8[393216]{0}', space=vmem, size = 0x60000, scoped, tag = 'input window, operand 30, single buffered']
    #allocation38 [shape = 'u8[131072]{0}', space=vmem, size = 0x20000, scoped, tag = 'input window, operand 31, single buffered']
    #allocation39 [shape = 's32[1]{0}', space=sflag, size = 0x4, scoped, tag = 'scoped memory for transformer_forward.1']
    #allocation40 [shape = 'u8[65536]{0}', space=vmem, size = 0x10000, scoped, tag = 'input window, operand 33, single buffered']
    #allocation41 [shape = 'u8[4096]{0}', space=vmem, size = 0x1000, scoped, tag = 'output window, operand 0, single buffered']
    %82 = vsyncpa [#allocation3], 0
    %83 = vsyncpa [#allocation6], 0
    %84 = vsyncpa [#allocation9], 0
    %85 = vsyncpa [#allocation12], 0
    %86 = vsyncpa [#allocation15], 0
    %87 = vsyncpa [#allocation18], 0
    %88 = vsyncpa [#allocation21], 0
    %89 = vsyncpa [#allocation24], 0
    %90 = vsyncpa [#allocation27], 0
    %91 = vsyncpa [#allocation30], 0
    %92 = vsyncpa [#allocation33], 0
    %93 = vsyncpa [#allocation36], 0
    %94 = vsyncpa [#allocation39], 0
    %95 = vsyncpa [#allocation4], 0
    // Predicated region
    $region2: #{transformer_forward.1} parent=1 // pred_check
      _
    $region3: #{transformer_forward.1} parent=1 // pred_check_branch
      %97 = sbr.rel (0) target = $region5
    $region4: #{transformer_forward.1} parent=1 // pred_region
      %s99 = ssub.s32 32, 32
      %100 = vsyncadd [#allocation3], %s99
      %s101 = sshll.u32 [#allocation2], 4
      %s102 = int_to_ptr.vmem [resolvable:$true] %s101
      %107 = dma.hbm_to_vmem [thread:$0]  %s1, 32, %s102, [#allocation3], 16, 16, 1
    $region5: #{transformer_forward.1} parent=1 // pred_fallthru
      _
    // Predicated region
    $region6: #{transformer_forward.1} parent=1 // pred_check
      _
    $region7: #{transformer_forward.1} parent=1 // pred_check_branch
      %109 = sbr.rel (0) target = $region9
    $region8: #{transformer_forward.1} parent=1 // pred_region
      %s111 = ssub.s32 32, 32
      %112 = vsyncadd [#allocation6], %s111
      %s113 = sshll.u32 [#allocation5], 4
      %s114 = int_to_ptr.vmem [resolvable:$true] %s113
      %119 = dma.hbm_to_vmem [thread:$0]  %s3, 32, %s114, [#allocation6], 16, 16, 1
    $region9: #{transformer_forward.1} parent=1 // pred_fallthru
      _
    // Predicated region
    $region10: #{transformer_forward.1} parent=1 // pred_check
      _
    $region11: #{transformer_forward.1} parent=1 // pred_check_branch
      %121 = sbr.rel (0) target = $region13
    $region12: #{transformer_forward.1} parent=1 // pred_region
      %s123 = ssub.s32 96, 96
      %124 = vsyncadd [#allocation6], %s123
      %s125 = sshll.u32 [#allocation7], 4
      %s126 = int_to_ptr.vmem [resolvable:$true] %s125
      %131 = dma.hbm_to_vmem [thread:$0]  %s5, 96, %s126, [#allocation6], 48, 48, 3
    $region13: #{transformer_forward.1} parent=1 // pred_fallthru
      _
    // Predicated region
    $region14: #{transformer_forward.1} parent=1 // pred_check
      _
    $region15: #{transformer_forward.1} parent=1 // pred_check_branch
      %133 = sbr.rel (0) target = $region17
    $region16: #{transformer_forward.1} parent=1 // pred_region
      %s135 = ssub.s32 64, 64
      %136 = vsyncadd [#allocation9], %s135
      %s137 = sshll.u32 [#allocation8], 4
      %s138 = int_to_ptr.vmem [resolvable:$true] %s137
      %143 = dma.hbm_to_vmem [thread:$0]  %s7, 64, %s138, [#allocation9], 32, 32, 2
    $region17: #{transformer_forward.1} parent=1 // pred_fallthru
      _
    // Predicated region
    $region18: #{transformer_forward.1} parent=1 // pred_check
      _
    $region19: #{transformer_forward.1} parent=1 // pred_check_branch
      %145 = sbr.rel (0) target = $region21
    $region20: #{transformer_forward.1} parent=1 // pred_region
      %s147 = ssub.s32 32, 32
      %148 = vsyncadd [#allocation9], %s147
      %s149 = sshll.u32 [#allocation10], 4
      %s150 = int_to_ptr.vmem [resolvable:$true] %s149
      %155 = dma.hbm_to_vmem [thread:$0]  %s9, 32, %s150, [#allocation9], 16, 16, 1
    $region21: #{transformer_forward.1} parent=1 // pred_fallthru
      _
    // Predicated region
    $region22: #{transformer_forward.1} parent=1 // pred_check
      _
    $region23: #{transformer_forward.1} parent=1 // pred_check_branch
      %157 = sbr.rel (0) target = $region25
    $region24: #{transformer_forward.1} parent=1 // pred_region
      %s159 = ssub.s32 32, 32
      %160 = vsyncadd [#allocation12], %s159
      %s161 = sshll.u32 [#allocation11], 4
      %s162 = int_to_ptr.vmem [resolvable:$true] %s161
      %167 = dma.hbm_to_vmem [thread:$0]  %s11, 32, %s162, [#allocation12], 16, 16, 1
    $region25: #{transformer_forward.1} parent=1 // pred_fallthru
      _
    // Predicated region
    $region26: #{transformer_forward.1} parent=1 // pred_check
      _
    $region27: #{transformer_forward.1} parent=1 // pred_check_branch
      %169 = sbr.rel (0) target = $region29
    $region28: #{transformer_forward.1} parent=1 // pred_region
      %s171 = ssub.s32 32, 32
      %172 = vsyncadd [#allocation12], %s171
      %s173 = sshll.u32 [#allocation13], 4
      %s174 = int_to_ptr.vmem [resolvable:$true] %s173
      %179 = dma.hbm_to_vmem [thread:$0]  %s13, 32, %s174, [#allocation12], 16, 16, 1
    $region29: #{transformer_forward.1} parent=1 // pred_fallthru
      _
    // Predicated region
    $region30: #{transformer_forward.1} parent=1 // pred_check
      _
    $region31: #{transformer_forward.1} parent=1 // pred_check_branch
      %181 = sbr.rel (0) target = $region33
    $region32: #{transformer_forward.1} parent=1 // pred_region
      %s183 = ssub.s32 32, 32
      %184 = vsyncadd [#allocation15], %s183
      %s185 = sshll.u32 [#allocation14], 4
      %s186 = int_to_ptr.vmem [resolvable:$true] %s185
      %191 = dma.hbm_to_vmem [thread:$0]  %s15, 32, %s186, [#allocation15], 16, 16, 1
    $region33: #{transformer_forward.1} parent=1 // pred_fallthru
      _
    // Predicated region
    $region34: #{transformer_forward.1} parent=1 // pred_check
      _
    $region35: #{transformer_forward.1} parent=1 // pred_check_branch
      %193 = sbr.rel (0) target = $region37
    $region36: #{transformer_forward.1} parent=1 // pred_region
      %s195 = ssub.s32 32, 32
      %196 = vsyncadd [#allocation15], %s195
      %s197 = sshll.u32 [#allocation16], 4
      %s198 = int_to_ptr.vmem [resolvable:$true] %s197
      %203 = dma.hbm_to_vmem [thread:$0]  %s17, 32, %s198, [#allocation15], 16, 16, 1
    $region37: #{transformer_forward.1} parent=1 // pred_fallthru
      _
    // Predicated region
    $region38: #{transformer_forward.1} parent=1 // pred_check
      _
    $region39: #{transformer_forward.1} parent=1 // pred_check_branch
      %205 = sbr.rel (0) target = $region41
    $region40: #{transformer_forward.1} parent=1 // pred_region
      %s207 = ssub.s32 32, 32
      %208 = vsyncadd [#allocation18], %s207
      %s209 = sshll.u32 [#allocation17], 4
      %s210 = int_to_ptr.vmem [resolvable:$true] %s209
      %215 = dma.hbm_to_vmem [thread:$0]  %s19, 32, %s210, [#allocation18], 16, 16, 1
    $region41: #{transformer_forward.1} parent=1 // pred_fallthru
      _
    // Predicated region
    $region42: #{transformer_forward.1} parent=1 // pred_check
      _
    $region43: #{transformer_forward.1} parent=1 // pred_check_branch
      %217 = sbr.rel (0) target = $region45
    $region44: #{transformer_forward.1} parent=1 // pred_region
      %s219 = ssub.s32 32, 32
      %220 = vsyncadd [#allocation18], %s219
      %s221 = sshll.u32 [#allocation19], 4
      %s222 = int_to_ptr.vmem [resolvable:$true] %s221
      %227 = dma.hbm_to_vmem [thread:$0]  %s21, 32, %s222, [#allocation18], 16, 16, 1
    $region45: #{transformer_forward.1} parent=1 // pred_fallthru
      _
    // Predicated region
    $region46: #{transformer_forward.1} parent=1 // pred_check
      _
    $region47: #{transformer_forward.1} parent=1 // pred_check_branch
      %229 = sbr.rel (0) target = $region49
    $region48: #{transformer_forward.1} parent=1 // pred_region
      %s231 = ssub.s32 32, 32
      %232 = vsyncadd [#allocation21], %s231
      %s233 = sshll.u32 [#allocation20], 4
      %s234 = int_to_ptr.vmem [resolvable:$true] %s233
      %239 = dma.hbm_to_vmem [thread:$0]  %s23, 32, %s234, [#allocation21], 16, 16, 1
    $region49: #{transformer_forward.1} parent=1 // pred_fallthru
      _
    // Predicated region
    $region50: #{transformer_forward.1} parent=1 // pred_check
      _
    $region51: #{transformer_forward.1} parent=1 // pred_check_branch
      %241 = sbr.rel (0) target = $region53
    $region52: #{transformer_forward.1} parent=1 // pred_region
      %s243 = ssub.s32 32, 32
      %244 = vsyncadd [#allocation21], %s243
      %s245 = sshll.u32 [#allocation22], 4
      %s246 = int_to_ptr.vmem [resolvable:$true] %s245
      %251 = dma.hbm_to_vmem [thread:$0]  %s25, 32, %s246, [#allocation21], 16, 16, 1
    $region53: #{transformer_forward.1} parent=1 // pred_fallthru
      _
    // Predicated region
    $region54: #{transformer_forward.1} parent=1 // pred_check
      _
    $region55: #{transformer_forward.1} parent=1 // pred_check_branch
      %253 = sbr.rel (0) target = $region57
    $region56: #{transformer_forward.1} parent=1 // pred_region
      %s255 = ssub.s32 4096, 4096
      %256 = vsyncadd [#allocation24], %s255
      %s257 = sshll.u32 [#allocation23], 4
      %s258 = int_to_ptr.vmem [resolvable:$true] %s257
      %263 = dma.hbm_to_vmem [thread:$0]  %s27, 4096, %s258, [#allocation24], 128, 128, 8
    $region57: #{transformer_forward.1} parent=1 // pred_fallthru
      _
    // Predicated region
    $region58: #{transformer_forward.1} parent=1 // pred_check
      _
    $region59: #{transformer_forward.1} parent=1 // pred_check_branch
      %265 = sbr.rel (0) target = $region61
    $region60: #{transformer_forward.1} parent=1 // pred_region
      %s267 = ssub.s32 4096, 4096
      %268 = vsyncadd [#allocation24], %s267
      %s269 = sshll.u32 [#allocation25], 4
      %s270 = int_to_ptr.vmem [resolvable:$true] %s269
      %275 = dma.hbm_to_vmem [thread:$0]  %s29, 4096, %s270, [#allocation24], 128, 128, 8
    $region61: #{transformer_forward.1} parent=1 // pred_fallthru
      _
    // Predicated region
    $region62: #{transformer_forward.1} parent=1 // pred_check
      _
    $region63: #{transformer_forward.1} parent=1 // pred_check_branch
      %277 = sbr.rel (0) target = $region65
    $region64: #{transformer_forward.1} parent=1 // pred_region
      %s279 = ssub.s32 12288, 12288
      %280 = vsyncadd [#allocation27], %s279
      %s281 = sshll.u32 [#allocation26], 4
      %s282 = int_to_ptr.vmem [resolvable:$true] %s281
      %287 = dma.hbm_to_vmem [thread:$0]  %s31, 12288, %s282, [#allocation27], 384, 384, 24
    $region65: #{transformer_forward.1} parent=1 // pred_fallthru
      _
    // Predicated region
    $region66: #{transformer_forward.1} parent=1 // pred_check
      _
    $region67: #{transformer_forward.1} parent=1 // pred_check_branch
      %289 = sbr.rel (0) target = $region69
    $region68: #{transformer_forward.1} parent=1 // pred_region
      %s291 = ssub.s32 8192, 8192
      %292 = vsyncadd [#allocation27], %s291
      %s293 = sshll.u32 [#allocation28], 4
      %s294 = int_to_ptr.vmem [resolvable:$true] %s293
      %299 = dma.hbm_to_vmem [thread:$0]  %s33, 8192, %s294, [#allocation27], 256, 256, 16
    $region69: #{transformer_forward.1} parent=1 // pred_fallthru
      _
    // Predicated region
    $region70: #{transformer_forward.1} parent=1 // pred_check
      _
    $region71: #{transformer_forward.1} parent=1 // pred_check_branch
      %301 = sbr.rel (0) target = $region73
    $region72: #{transformer_forward.1} parent=1 // pred_region
      %s303 = ssub.s32 4096, 4096
      %304 = vsyncadd [#allocation30], %s303
      %s305 = sshll.u32 [#allocation29], 4
      %s306 = int_to_ptr.vmem [resolvable:$true] %s305
      %311 = dma.hbm_to_vmem [thread:$0]  %s35, 4096, %s306, [#allocation30], 128, 128, 8
    $region73: #{transformer_forward.1} parent=1 // pred_fallthru
      _
    // Predicated region
    $region74: #{transformer_forward.1} parent=1 // pred_check
      _
    $region75: #{transformer_forward.1} parent=1 // pred_check_branch
      %313 = sbr.rel (0) target = $region77
    $region76: #{transformer_forward.1} parent=1 // pred_region
      %s315 = ssub.s32 4096, 4096
      %316 = vsyncadd [#allocation30], %s315
      %s317 = sshll.u32 [#allocation31], 4
      %s318 = int_to_ptr.vmem [resolvable:$true] %s317
      %323 = dma.hbm_to_vmem [thread:$0]  %s37, 4096, %s318, [#allocation30], 128, 128, 8
    $region77: #{transformer_forward.1} parent=1 // pred_fallthru
      _
    // Predicated region
    $region78: #{transformer_forward.1} parent=1 // pred_check
      _
    $region79: #{transformer_forward.1} parent=1 // pred_check_branch
      %325 = sbr.rel (0) target = $region81
    $region80: #{transformer_forward.1} parent=1 // pred_region
      %s327 = ssub.s32 4096, 4096
      %328 = vsyncadd [#allocation33], %s327
      %s329 = sshll.u32 [#allocation32], 4
      %s330 = int_to_ptr.vmem [resolvable:$true] %s329
      %335 = dma.hbm_to_vmem [thread:$0]  %s39, 4096, %s330, [#allocation33], 128, 128, 8
    $region81: #{transformer_forward.1} parent=1 // pred_fallthru
      _
    // Predicated region
    $region82: #{transformer_forward.1} parent=1 // pred_check
      _
    $region83: #{transformer_forward.1} parent=1 // pred_check_branch
      %337 = sbr.rel (0) target = $region85
    $region84: #{transformer_forward.1} parent=1 // pred_region
      _
    $region85: #{transformer_forward.1} parent=1 // pred_fallthru
      _
    // Predicated region
    $region86: #{transformer_forward.1} parent=1 // pred_check
      _
    $region87: #{transformer_forward.1} parent=1 // pred_check_branch
      %339 = sbr.rel (0) target = $region89
    $region88: #{transformer_forward.1} parent=1 // pred_region
      _
    $region89: #{transformer_forward.1} parent=1 // pred_fallthru
      _
    // Predicated region
    $region90: #{transformer_forward.1} parent=1 // pred_check
      _
    $region91: #{transformer_forward.1} parent=1 // pred_check_branch
      %341 = sbr.rel (0) target = $region93
    $region92: #{transformer_forward.1} parent=1 // pred_region
      _
    $region93: #{transformer_forward.1} parent=1 // pred_fallthru
      _
    // Predicated region
    $region94: #{transformer_forward.1} parent=1 // pred_check
      _
    $region95: #{transformer_forward.1} parent=1 // pred_check_branch
      %343 = sbr.rel (0) target = $region97
    $region96: #{transformer_forward.1} parent=1 // pred_region
      _
    $region97: #{transformer_forward.1} parent=1 // pred_fallthru
      _
    // Predicated region
    $region98: #{transformer_forward.1} parent=1 // pred_check
      _
    $region99: #{transformer_forward.1} parent=1 // pred_check_branch
      %345 = sbr.rel (0) target = $region101
    $region100: #{transformer_forward.1} parent=1 // pred_region
      _
    $region101: #{transformer_forward.1} parent=1 // pred_fallthru
      _
    // Predicated region
    $region102: #{transformer_forward.1} parent=1 // pred_check
      _
    $region103: #{transformer_forward.1} parent=1 // pred_check_branch
      %347 = sbr.rel (0) target = $region105
    $region104: #{transformer_forward.1} parent=1 // pred_region
      _
    $region105: #{transformer_forward.1} parent=1 // pred_fallthru
      _
    // Predicated region
    $region106: #{transformer_forward.1} parent=1 // pred_check
      _
    $region107: #{transformer_forward.1} parent=1 // pred_check_branch
      %349 = sbr.rel (0) target = $region109
    $region108: #{transformer_forward.1} parent=1 // pred_region
      _
    $region109: #{transformer_forward.1} parent=1 // pred_fallthru
      _
    // Predicated region
    $region110: #{transformer_forward.1} parent=1 // pred_check
      _
    $region111: #{transformer_forward.1} parent=1 // pred_check_branch
      %351 = sbr.rel (0) target = $region113
    $region112: #{transformer_forward.1} parent=1 // pred_region
      _
    $region113: #{transformer_forward.1} parent=1 // pred_fallthru
      _
    // Predicated region
    $region114: #{transformer_forward.1} parent=1 // pred_check
      _
    $region115: #{transformer_forward.1} parent=1 // pred_check_branch
      %353 = sbr.rel (0) target = $region117
    $region116: #{transformer_forward.1} parent=1 // pred_region
      %s355 = ssub.s32 4096, 4096
      %356 = vsyncadd [#allocation33], %s355
      %s357 = sshll.u32 [#allocation34], 4
      %s358 = int_to_ptr.vmem [resolvable:$true] %s357
      %363 = dma.hbm_to_vmem [thread:$0]  %s57, 4096, %s358, [#allocation33], 128, 128, 8
    $region117: #{transformer_forward.1} parent=1 // pred_fallthru
      _
    // Predicated region
    $region118: #{transformer_forward.1} parent=1 // pred_check
      _
    $region119: #{transformer_forward.1} parent=1 // pred_check_branch
      %365 = sbr.rel (0) target = $region121
    $region120: #{transformer_forward.1} parent=1 // pred_region
      %s367 = ssub.s32 4096, 4096
      %368 = vsyncadd [#allocation36], %s367
      %s369 = sshll.u32 [#allocation35], 4
      %s370 = int_to_ptr.vmem [resolvable:$true] %s369
      %375 = dma.hbm_to_vmem [thread:$0]  %s59, 4096, %s370, [#allocation36], 128, 128, 8
    $region121: #{transformer_forward.1} parent=1 // pred_fallthru
      _
    // Predicated region
    $region122: #{transformer_forward.1} parent=1 // pred_check
      _
    $region123: #{transformer_forward.1} parent=1 // pred_check_branch
      %377 = sbr.rel (0) target = $region125
    $region124: #{transformer_forward.1} parent=1 // pred_region
      %s379 = ssub.s32 12288, 12288
      %380 = vsyncadd [#allocation36], %s379
      %s381 = sshll.u32 [#allocation37], 4
      %s382 = int_to_ptr.vmem [resolvable:$true] %s381
      %387 = dma.hbm_to_vmem [thread:$0]  %s61, 12288, %s382, [#allocation36], 384, 384, 24
    $region125: #{transformer_forward.1} parent=1 // pred_fallthru
      _
    // Predicated region
    $region126: #{transformer_forward.1} parent=1 // pred_check
      _
    $region127: #{transformer_forward.1} parent=1 // pred_check_branch
      %389 = sbr.rel (0) target = $region129
    $region128: #{transformer_forward.1} parent=1 // pred_region
      %s391 = ssub.s32 4096, 4096
      %392 = vsyncadd [#allocation39], %s391
      %s393 = sshll.u32 [#allocation38], 4
      %s394 = int_to_ptr.vmem [resolvable:$true] %s393
      %399 = dma.hbm_to_vmem [thread:$0]  %s63, 4096, %s394, [#allocation39], 128, 128, 8
    $region129: #{transformer_forward.1} parent=1 // pred_fallthru
      _
    // Predicated region
    $region130: #{transformer_forward.1} parent=1 // pred_check
      _
    $region131: #{transformer_forward.1} parent=1 // pred_check_branch
      %401 = sbr.rel (0) target = $region133
    $region132: #{transformer_forward.1} parent=1 // pred_region
      _
    $region133: #{transformer_forward.1} parent=1 // pred_fallthru
      _
    // Predicated region
    $region134: #{transformer_forward.1} parent=1 // pred_check
      _
    $region135: #{transformer_forward.1} parent=1 // pred_check_branch
      %403 = sbr.rel (0) target = $region137
    $region136: #{transformer_forward.1} parent=1 // pred_region
      %s405 = ssub.s32 2048, 2048
      %406 = vsyncadd [#allocation39], %s405
      %s407 = sshll.u32 [#allocation40], 4
      %s408 = int_to_ptr.vmem [resolvable:$true] %s407
      %413 = dma.hbm_to_vmem [thread:$0]  %s67, 2048, %s408, [#allocation39], 128, 128, 8
    $region137: #{transformer_forward.1} parent=1 // pred_fallthru
      _
    // Predicated region
    $region138: #{transformer_forward.1} parent=1 // pred_check
      _
    $region139: #{transformer_forward.1} parent=1 // pred_check_branch
      %415 = sbr.rel (0) target = $region141
    $region140: #{transformer_forward.1} parent=1 // pred_region
      _
    $region141: #{transformer_forward.1} parent=1 // pred_fallthru
      _
    // Predicated region
    $region142: #{transformer_forward.1} parent=1 // pred_check
      _
    $region143: #{transformer_forward.1} parent=1 // pred_check_branch
      %417 = sbr.rel (0) target = $region145
    $region144: #{transformer_forward.1} parent=1 // pred_region
      _
    $region145: #{transformer_forward.1} parent=1 // pred_fallthru
      _
    // Predicated region
    $region146: #{transformer_forward.1} parent=1 // pred_check
      _
    $region147: #{transformer_forward.1} parent=1 // pred_check_branch
      %419 = sbr.rel (0) target = $region149
    $region148: #{transformer_forward.1} parent=1 // pred_region
      _
    $region149: #{transformer_forward.1} parent=1 // pred_fallthru
      _
    // Predicated region
    $region150: #{transformer_forward.1} parent=1 // pred_check
      _
    $region151: #{transformer_forward.1} parent=1 // pred_check_branch
      %421 = sbr.rel (0) target = $region153
    $region152: #{transformer_forward.1} parent=1 // pred_region
      _
    $region153: #{transformer_forward.1} parent=1 // pred_fallthru
      _
    // Predicated region
    $region154: #{transformer_forward.1} parent=1 // pred_check
      _
    $region155: #{transformer_forward.1} parent=1 // pred_check_branch
      %423 = sbr.rel (0) target = $region157
    $region156: #{transformer_forward.1} parent=1 // pred_region
      %424 = dma.done [#allocation3], 32
    $region157: #{transformer_forward.1} parent=1 // pred_fallthru
      _
    // Predicated region
    $region158: #{transformer_forward.1} parent=1 // pred_check
      _
    $region159: #{transformer_forward.1} parent=1 // pred_check_branch
      %426 = sbr.rel (0) target = $region161
    $region160: #{transformer_forward.1} parent=1 // pred_region
      %427 = dma.done [#allocation6], 32
    $region161: #{transformer_forward.1} parent=1 // pred_fallthru
      _
    // Predicated region
    $region162: #{transformer_forward.1} parent=1 // pred_check
      _
    $region163: #{transformer_forward.1} parent=1 // pred_check_branch
      %429 = sbr.rel (0) target = $region165
    $region164: #{transformer_forward.1} parent=1 // pred_region
      %430 = dma.done [#allocation6], 96
    $region165: #{transformer_forward.1} parent=1 // pred_fallthru
      _
    // Predicated region
    $region166: #{transformer_forward.1} parent=1 // pred_check
      _
    $region167: #{transformer_forward.1} parent=1 // pred_check_branch
      %432 = sbr.rel (0) target = $region169
    $region168: #{transformer_forward.1} parent=1 // pred_region
      %433 = dma.done [#allocation9], 64
    $region169: #{transformer_forward.1} parent=1 // pred_fallthru
      _
    // Predicated region
    $region170: #{transformer_forward.1} parent=1 // pred_check
      _
    $region171: #{transformer_forward.1} parent=1 // pred_check_branch
      %435 = sbr.rel (0) target = $region173
    $region172: #{transformer_forward.1} parent=1 // pred_region
      %436 = dma.done [#allocation9], 32
    $region173: #{transformer_forward.1} parent=1 // pred_fallthru
      _
    // Predicated region
    $region174: #{transformer_forward.1} parent=1 // pred_check
      _
    $region175: #{transformer_forward.1} parent=1 // pred_check_branch
      %438 = sbr.rel (0) target = $region177
    $region176: #{transformer_forward.1} parent=1 // pred_region
      %439 = dma.done [#allocation12], 32
    $region177: #{transformer_forward.1} parent=1 // pred_fallthru
      _
    // Predicated region
    $region178: #{transformer_forward.1} parent=1 // pred_check
      _
    $region179: #{transformer_forward.1} parent=1 // pred_check_branch
      %441 = sbr.rel (0) target = $region181
    $region180: #{transformer_forward.1} parent=1 // pred_region
      %442 = dma.done [#allocation12], 32
    $region181: #{transformer_forward.1} parent=1 // pred_fallthru
      _
    // Predicated region
    $region182: #{transformer_forward.1} parent=1 // pred_check
      _
    $region183: #{transformer_forward.1} parent=1 // pred_check_branch
      %444 = sbr.rel (0) target = $region185
    $region184: #{transformer_forward.1} parent=1 // pred_region
      %445 = dma.done [#allocation15], 32
    $region185: #{transformer_forward.1} parent=1 // pred_fallthru
      _
    // Predicated region
    $region186: #{transformer_forward.1} parent=1 // pred_check
      _
    $region187: #{transformer_forward.1} parent=1 // pred_check_branch
      %447 = sbr.rel (0) target = $region189
    $region188: #{transformer_forward.1} parent=1 // pred_region
      %448 = dma.done [#allocation15], 32
    $region189: #{transformer_forward.1} parent=1 // pred_fallthru
      _
    // Predicated region
    $region190: #{transformer_forward.1} parent=1 // pred_check
      _
    $region191: #{transformer_forward.1} parent=1 // pred_check_branch
      %450 = sbr.rel (0) target = $region193
    $region192: #{transformer_forward.1} parent=1 // pred_region
      %451 = dma.done [#allocation18], 32
    $region193: #{transformer_forward.1} parent=1 // pred_fallthru
      _
    // Predicated region
    $region194: #{transformer_forward.1} parent=1 // pred_check
      _
    $region195: #{transformer_forward.1} parent=1 // pred_check_branch
      %453 = sbr.rel (0) target = $region197
    $region196: #{transformer_forward.1} parent=1 // pred_region
      %454 = dma.done [#allocation18], 32
    $region197: #{transformer_forward.1} parent=1 // pred_fallthru
      _
    // Predicated region
    $region198: #{transformer_forward.1} parent=1 // pred_check
      _
    $region199: #{transformer_forward.1} parent=1 // pred_check_branch
      %456 = sbr.rel (0) target = $region201
    $region200: #{transformer_forward.1} parent=1 // pred_region
      %457 = dma.done [#allocation21], 32
    $region201: #{transformer_forward.1} parent=1 // pred_fallthru
      _
    // Predicated region
    $region202: #{transformer_forward.1} parent=1 // pred_check
      _
    $region203: #{transformer_forward.1} parent=1 // pred_check_branch
      %459 = sbr.rel (0) target = $region205
    $region204: #{transformer_forward.1} parent=1 // pred_region
      %460 = dma.done [#allocation21], 32
    $region205: #{transformer_forward.1} parent=1 // pred_fallthru
      _
    // Predicated region
    $region206: #{transformer_forward.1} parent=1 // pred_check
      _
    $region207: #{transformer_forward.1} parent=1 // pred_check_branch
      %462 = sbr.rel (0) target = $region209
    $region208: #{transformer_forward.1} parent=1 // pred_region
      %463 = dma.done [#allocation24], 4096
    $region209: #{transformer_forward.1} parent=1 // pred_fallthru
      _
    // Predicated region
    $region210: #{transformer_forward.1} parent=1 // pred_check
      _
    $region211: #{transformer_forward.1} parent=1 // pred_check_branch
      %465 = sbr.rel (0) target = $region213
    $region212: #{transformer_forward.1} parent=1 // pred_region
      %466 = dma.done [#allocation24], 4096
    $region213: #{transformer_forward.1} parent=1 // pred_fallthru
      _
    // Predicated region
    $region214: #{transformer_forward.1} parent=1 // pred_check
      _
    $region215: #{transformer_forward.1} parent=1 // pred_check_branch
      %468 = sbr.rel (0) target = $region217
    $region216: #{transformer_forward.1} parent=1 // pred_region
      %469 = dma.done [#allocation27], 12288
    $region217: #{transformer_forward.1} parent=1 // pred_fallthru
      _
    // Predicated region
    $region218: #{transformer_forward.1} parent=1 // pred_check
      _
    $region219: #{transformer_forward.1} parent=1 // pred_check_branch
      %471 = sbr.rel (0) target = $region221
    $region220: #{transformer_forward.1} parent=1 // pred_region
      %472 = dma.done [#allocation27], 8192
    $region221: #{transformer_forward.1} parent=1 // pred_fallthru
      _
    // Predicated region
    $region222: #{transformer_forward.1} parent=1 // pred_check
      _
    $region223: #{transformer_forward.1} parent=1 // pred_check_branch
      %474 = sbr.rel (0) target = $region225
    $region224: #{transformer_forward.1} parent=1 // pred_region
      %475 = dma.done [#allocation30], 4096
    $region225: #{transformer_forward.1} parent=1 // pred_fallthru
      _
    // Predicated region
    $region226: #{transformer_forward.1} parent=1 // pred_check
      _
    $region227: #{transformer_forward.1} parent=1 // pred_check_branch
      %477 = sbr.rel (0) target = $region229
    $region228: #{transformer_forward.1} parent=1 // pred_region
      %478 = dma.done [#allocation30], 4096
    $region229: #{transformer_forward.1} parent=1 // pred_fallthru
      _
    // Predicated region
    $region230: #{transformer_forward.1} parent=1 // pred_check
      _
    $region231: #{transformer_forward.1} parent=1 // pred_check_branch
      %480 = sbr.rel (0) target = $region233
    $region232: #{transformer_forward.1} parent=1 // pred_region
      %481 = dma.done [#allocation33], 4096
    $region233: #{transformer_forward.1} parent=1 // pred_fallthru
      _
    // Predicated region
    $region234: #{transformer_forward.1} parent=1 // pred_check
      _
    $region235: #{transformer_forward.1} parent=1 // pred_check_branch
      %483 = sbr.rel (0) target = $region237
    $region236: #{transformer_forward.1} parent=1 // pred_region
      %484 = dma.done [#allocation33], 4096
    $region237: #{transformer_forward.1} parent=1 // pred_fallthru
      _
    // Predicated region
    $region238: #{transformer_forward.1} parent=1 // pred_check
      _
    $region239: #{transformer_forward.1} parent=1 // pred_check_branch
      %486 = sbr.rel (0) target = $region241
    $region240: #{transformer_forward.1} parent=1 // pred_region
      %487 = dma.done [#allocation36], 4096
    $region241: #{transformer_forward.1} parent=1 // pred_fallthru
      _
    // Predicated region
    $region242: #{transformer_forward.1} parent=1 // pred_check
      _
    $region243: #{transformer_forward.1} parent=1 // pred_check_branch
      %489 = sbr.rel (0) target = $region245
    $region244: #{transformer_forward.1} parent=1 // pred_region
      %490 = dma.done [#allocation36], 12288
    $region245: #{transformer_forward.1} parent=1 // pred_fallthru
      _
    // Predicated region
    $region246: #{transformer_forward.1} parent=1 // pred_check
      _
    $region247: #{transformer_forward.1} parent=1 // pred_check_branch
      %492 = sbr.rel (0) target = $region249
    $region248: #{transformer_forward.1} parent=1 // pred_region
      %493 = dma.done [#allocation39], 4096
    $region249: #{transformer_forward.1} parent=1 // pred_fallthru
      _
    // Predicated region
    $region250: #{transformer_forward.1} parent=1 // pred_check
      _
    $region251: #{transformer_forward.1} parent=1 // pred_check_branch
      %495 = sbr.rel (0) target = $region253
    $region252: #{transformer_forward.1} parent=1 // pred_region
      %496 = dma.done [#allocation39], 2048
    $region253: #{transformer_forward.1} parent=1 // pred_fallthru
      _
    %v497 = vlaneseq
    %v498 = vand.u32 %v497, 127
    %vm499 = vcmp.lt.s32.totalorder %v498, 32
    %v500 = vsel %vm499, 1, 0
    %v501 = vcvt.s32.f32 %v500
    %v502 = vld [vmem:[%s69] sm:$0xff]
    %v503 = vld [vmem:[%s71] sm:$0xff]
    %v504 = vld [vmem:[%s73] sm:$0x1]
    %vm505 = vcmp.gt.f32.partialorder %v504, 0.5
    %v506 = vld [vmem:[%s75] sm:$0x1]
    %vm507 = vcmp.gt.f32.partialorder %v506, 0.5
    %v508 = vsel %vm505, 1, 0
    %v509 = vlaneseq
    %v510 = vshrl.u32 %v509, 7
    %v511 = vsub.s32 0, %v510
    %v512 = vrot.slane %v508, %v511
    %vm513 = vcmp.eq.s32.totalorder %v512, 1
    %v514 = vlaneseq
    %v515 = vshrl.u32 %v514, 7
    %vm516 = vcmp.le.s32.totalorder %v498, %v515
    %v517 = vsel %vm507, 1, 0
    %v518 = vlaneseq
    %v519 = vshrl.u32 %v518, 7
    %v520 = vsub.s32 0, %v519
    %v521 = vrot.slane %v517, %v520
    %vm522 = vcmp.eq.s32.totalorder %v521, 1
    %vm523 = vmand %vm516, %vm522
    %v524 = vld [vmem:[#allocation37] sm:$0xff]
    %v525 = vld [vmem:[#allocation37 + $0x8] sm:$0xff]
    %v526 = vld [vmem:[#allocation37 + $0x10] sm:$0xff]
    %v527 = vld [vmem:[#allocation37 + $0x18] sm:$0xff]
    %v528 = vld [vmem:[#allocation37 + $0x20] sm:$0xff]
    %v529 = vld [vmem:[#allocation37 + $0x28] sm:$0xff]
    %v530 = vld [vmem:[#allocation37 + $0x30] sm:$0xff]
    %v531 = vld [vmem:[#allocation37 + $0x38] sm:$0xff]
    %v532 = vld [vmem:[#allocation37 + $0x40] sm:$0xff]
    %v533 = vld [vmem:[#allocation37 + $0x48] sm:$0xff]
    %v534 = vld [vmem:[#allocation37 + $0x50] sm:$0xff]
    %v535 = vld [vmem:[#allocation37 + $0x58] sm:$0xff]
    %v536 = vld [vmem:[#allocation37 + $0x60] sm:$0xff]
    %v537 = vld [vmem:[#allocation37 + $0x68] sm:$0xff]
    %v538 = vld [vmem:[#allocation37 + $0x70] sm:$0xff]
    %v539 = vld [vmem:[#allocation37 + $0x78] sm:$0xff]
    %v540 = vld [vmem:[#allocation37 + $0x80] sm:$0xff]
    %v541 = vld [vmem:[#allocation37 + $0x88] sm:$0xff]
    %v542 = vld [vmem:[#allocation37 + $0x90] sm:$0xff]
    %v543 = vld [vmem:[#allocation37 + $0x98] sm:$0xff]
    %v544 = vld [vmem:[#allocation37 + $0xa0] sm:$0xff]
    %v545 = vld [vmem:[#allocation37 + $0xa8] sm:$0xff]
    %v546 = vld [vmem:[#allocation37 + $0xb0] sm:$0xff]
    %v547 = vld [vmem:[#allocation37 + $0xb8] sm:$0xff]
    %v548 = vld [vmem:[#allocation37 + $0xc0] sm:$0xff]
    %v549 = vld [vmem:[#allocation37 + $0xc8] sm:$0xff]
    %v550 = vld [vmem:[#allocation37 + $0xd0] sm:$0xff]
    %v551 = vld [vmem:[#allocation37 + $0xd8] sm:$0xff]
    %v552 = vld [vmem:[#allocation37 + $0xe0] sm:$0xff]
    %v553 = vld [vmem:[#allocation37 + $0xe8] sm:$0xff]
    %v554 = vld [vmem:[#allocation37 + $0xf0] sm:$0xff]
    %v555 = vld [vmem:[#allocation37 + $0xf8] sm:$0xff]
    %v556 = vld [vmem:[#allocation37 + $0x100] sm:$0xff]
    %v557 = vld [vmem:[#allocation37 + $0x108] sm:$0xff]
    %v558 = vld [vmem:[#allocation37 + $0x110] sm:$0xff]
    %v559 = vld [vmem:[#allocation37 + $0x118] sm:$0xff]
    %v560 = vld [vmem:[#allocation37 + $0x120] sm:$0xff]
    %v561 = vld [vmem:[#allocation37 + $0x128] sm:$0xff]
    %v562 = vld [vmem:[#allocation37 + $0x130] sm:$0xff]
    %v563 = vld [vmem:[#allocation37 + $0x138] sm:$0xff]
    %v564 = vld [vmem:[#allocation37 + $0x140] sm:$0xff]
    %v565 = vld [vmem:[#allocation37 + $0x148] sm:$0xff]
    %v566 = vld [vmem:[#allocation37 + $0x150] sm:$0xff]
    %v567 = vld [vmem:[#allocation37 + $0x158] sm:$0xff]
    %v568 = vld [vmem:[#allocation37 + $0x160] sm:$0xff]
    %v569 = vld [vmem:[#allocation37 + $0x168] sm:$0xff]
    %v570 = vld [vmem:[#allocation37 + $0x170] sm:$0xff]
    %v571 = vld [vmem:[#allocation37 + $0x178] sm:$0xff]
    %v572 = vld [vmem:[%s45] sm:$0x7]
    %v574 = vlaneseq
    %v575 = vshrl.u32 %v574, 7
    %v576 = vsub.s32 0, %v575
    %v577 = vrot.slane %v572, %v576
    %v578 = vlaneseq
    %v579 = vshrl.u32 %v578, 7
    %v580 = vsub.s32 1, %v579
    %v581 = vrot.slane %v572, %v580
    %v582 = vlaneseq
    %v583 = vshrl.u32 %v582, 7
    %v584 = vsub.s32 2, %v583
    %v585 = vrot.slane %v572, %v584
    %589 = vmatprep.subr.mxu0 %v570
    %590 = vmatpush1.msra.mxu0 %v569
    %591 = vmatprep.subr.mxu0 %v567
    %592 = vmatpush1.msra.mxu0 %v566
    %593 = vmatprep.subr.mxu0 %v564
    %594 = vmatpush1.msra.mxu0 %v563
    %595 = vmatprep.subr.mxu0 %v561
    %596 = vmatpush1.msra.mxu0 %v560
    %597 = vmatprep.subr.mxu0 %v558
    %598 = vmatpush1.msra.mxu0 %v557
    %599 = vmatprep.subr.mxu0 %v555
    %600 = vmatpush1.msra.mxu0 %v554
    %601 = vmatprep.subr.mxu0 %v552
    %602 = vmatpush1.msra.mxu0 %v551
    %603 = vmatprep.subr.mxu0 %v549
    %604 = vmatpush1.msra.mxu0 %v548
    %605 = vmatprep.subr.mxu0 %v546
    %606 = vmatpush1.msra.mxu0 %v545
    %607 = vmatprep.subr.mxu0 %v543
    %608 = vmatpush1.msra.mxu0 %v542
    %609 = vmatprep.subr.mxu0 %v540
    %610 = vmatpush1.msra.mxu0 %v539
    %611 = vmatprep.subr.mxu0 %v537
    %612 = vmatpush1.msra.mxu0 %v536
    %613 = vmatprep.subr.mxu0 %v534
    %614 = vmatpush1.msra.mxu0 %v533
    %615 = vmatprep.subr.mxu0 %v531
    %616 = vmatpush1.msra.mxu0 %v530
    %617 = vmatprep.subr.mxu0 %v528
    %618 = vmatpush1.msra.mxu0 %v527
    %619 = vmatprep.subr.mxu0 %v525
    %620 = vmatpush1.msra.mxu0 %v524
    %621 = vmatprep.subr.mxu0 0.0
    %622 = vmatpush2.msra.mxu0 0.0
    %623 = vmatprep.subr.mxu0 0.0
    %624 = vmatpush2.msra.mxu0 0.0
    %625 = vmatprep.subr.mxu0 0.0
    %626 = vmatpush2.msra.mxu0 0.0
    %627 = vmatprep.subr.mxu0 0.0
    %628 = vmatpush2.msra.mxu0 0.0
    %629 = vmatprep.subr.mxu0 0.0
    %630 = vmatpush2.msra.mxu0 0.0
    %631 = vmatprep.subr.mxu0 0.0
    %632 = vmatpush2.msra.mxu0 0.0
    %633 = vmatprep.subr.mxu0 0.0
    %634 = vmatpush2.msra.mxu0 0.0
    %635 = vmatprep.subr.mxu0 0.0
    %636 = vmatpush2.msra.mxu0 0.0
    %637 = vmatprep.subr.mxu0 0.0
    %638 = vmatpush2.msra.mxu0 0.0
    %639 = vmatprep.subr.mxu0 0.0
    %640 = vmatpush2.msra.mxu0 0.0
    %641 = vmatprep.subr.mxu0 0.0
    %642 = vmatpush2.msra.mxu0 0.0
    %643 = vmatprep.subr.mxu0 0.0
    %644 = vmatpush2.msra.mxu0 0.0
    %645 = vmatprep.subr.mxu0 0.0
    %646 = vmatpush2.msra.mxu0 0.0
    %647 = vmatprep.subr.mxu0 0.0
    %648 = vmatpush2.msra.mxu0 0.0
    %649 = vmatprep.subr.mxu0 0.0
    %650 = vmatpush2.msra.mxu0 0.0
    %651 = vmatprep.subr.mxu0 0.0
    %652 = vmatpush2.msra.mxu0 0.0
    %653 = vmatprep.mubr.f32.mxu0 0.0
    %654 = vmatmul.mubr.f32.gmra.mxu0 %v502
    %v655 = vpop.f32.mrf.mxu0
    %v656 = vadd.f32 %v577, %v655
    %v657 = vpop.f32.mrf.mxu0
    %v658 = vadd.f32 %v581, %v657
    %659 = vdwg.mxu0
    %660 = vmatprep.subr.mxu0 0.0
    %661 = vmatpush1.msra.mxu0 %v571
    %662 = vmatprep.subr.mxu0 0.0
    %663 = vmatpush1.msra.mxu0 %v568
    %664 = vmatprep.subr.mxu0 0.0
    %665 = vmatpush1.msra.mxu0 %v565
    %666 = vmatprep.subr.mxu0 0.0
    %667 = vmatpush1.msra.mxu0 %v562
    %668 = vmatprep.subr.mxu0 0.0
    %669 = vmatpush1.msra.mxu0 %v559
    %670 = vmatprep.subr.mxu0 0.0
    %671 = vmatpush1.msra.mxu0 %v556
    %672 = vmatprep.subr.mxu0 0.0
    %673 = vmatpush1.msra.mxu0 %v553
    %674 = vmatprep.subr.mxu0 0.0
    %675 = vmatpush1.msra.mxu0 %v550
    %676 = vmatprep.subr.mxu0 0.0
    %677 = vmatpush1.msra.mxu0 %v547
    %678 = vmatprep.subr.mxu0 0.0
    %679 = vmatpush1.msra.mxu0 %v544
    %680 = vmatprep.subr.mxu0 0.0
    %681 = vmatpush1.msra.mxu0 %v541
    %682 = vmatprep.subr.mxu0 0.0
    %683 = vmatpush1.msra.mxu0 %v538
    %684 = vmatprep.subr.mxu0 0.0
    %685 = vmatpush1.msra.mxu0 %v535
    %686 = vmatprep.subr.mxu0 0.0
    %687 = vmatpush1.msra.mxu0 %v532
    %688 = vmatprep.subr.mxu0 0.0
    %689 = vmatpush1.msra.mxu0 %v529
    %690 = vmatprep.subr.mxu0 0.0
    %691 = vmatpush1.msra.mxu0 %v526
    %692 = vmatprep.subr.mxu0 0.0
    %693 = vmatpush2.msra.mxu0 0.0
    %694 = vmatprep.subr.mxu0 0.0
    %695 = vmatpush2.msra.mxu0 0.0
    %696 = vmatprep.subr.mxu0 0.0
    %697 = vmatpush2.msra.mxu0 0.0
    %698 = vmatprep.subr.mxu0 0.0
    %699 = vmatpush2.msra.mxu0 0.0
    %700 = vmatprep.subr.mxu0 0.0
    %701 = vmatpush2.msra.mxu0 0.0
    %702 = vmatprep.subr.mxu0 0.0
    %703 = vmatpush2.msra.mxu0 0.0
    %704 = vmatprep.subr.mxu0 0.0
    %705 = vmatpush2.msra.mxu0 0.0
    %706 = vmatprep.subr.mxu0 0.0
    %707 = vmatpush2.msra.mxu0 0.0
    %708 = vmatprep.subr.mxu0 0.0
    %709 = vmatpush2.msra.mxu0 0.0
    %710 = vmatprep.subr.mxu0 0.0
    %711 = vmatpush2.msra.mxu0 0.0
    %712 = vmatprep.subr.mxu0 0.0
    %713 = vmatpush2.msra.mxu0 0.0
    %714 = vmatprep.subr.mxu0 0.0
    %715 = vmatpush2.msra.mxu0 0.0
    %716 = vmatprep.subr.mxu0 0.0
    %717 = vmatpush2.msra.mxu0 0.0
    %718 = vmatprep.subr.mxu0 0.0
    %719 = vmatpush2.msra.mxu0 0.0
    %720 = vmatprep.subr.mxu0 0.0
    %721 = vmatpush2.msra.mxu0 0.0
    %722 = vmatprep.subr.mxu0 0.0
    %723 = vmatpush2.msra.mxu0 0.0
    %724 = vmatprep.mubr.f32.mxu0 0.0
    %725 = vmatmul.mubr.f32.gmra.mxu0 %v502
    %v726 = vpop.f32.mrf.mxu0
    %v727 = vadd.f32 %v585, %v726
    %v728 = vpop.f32.mrf.mxu0
    %729 = vdwg.mxu0
    %v730 = vld [vmem:[#allocation38] sm:$0xff]
    %v731 = vld [vmem:[#allocation38 + $0x8] sm:$0xff]
    %v732 = vld [vmem:[#allocation38 + $0x10] sm:$0xff]
    %v733 = vld [vmem:[#allocation38 + $0x18] sm:$0xff]
    %v734 = vld [vmem:[#allocation38 + $0x20] sm:$0xff]
    %v735 = vld [vmem:[#allocation38 + $0x28] sm:$0xff]
    %v736 = vld [vmem:[#allocation38 + $0x30] sm:$0xff]
    %v737 = vld [vmem:[#allocation38 + $0x38] sm:$0xff]
    %v738 = vld [vmem:[#allocation38 + $0x40] sm:$0xff]
    %v739 = vld [vmem:[#allocation38 + $0x48] sm:$0xff]
    %v740 = vld [vmem:[#allocation38 + $0x50] sm:$0xff]
    %v741 = vld [vmem:[#allocation38 + $0x58] sm:$0xff]
    %v742 = vld [vmem:[#allocation38 + $0x60] sm:$0xff]
    %v743 = vld [vmem:[#allocation38 + $0x68] sm:$0xff]
    %v744 = vld [vmem:[#allocation38 + $0x70] sm:$0xff]
    %v745 = vld [vmem:[#allocation38 + $0x78] sm:$0xff]
    %v746 = vld [vmem:[%s47] sm:$0x1]
    %vm747 = vcmp.ge.s32.totalorder %v498, 0
    %vm748 = vcmp.lt.s32.totalorder %v498, 8
    %vm749 = vmand %vm747, %vm748
    %v750 = vsel %vm749, 1, 0
    %v751 = vcvt.s32.f32 %v750
    %v752 = vmul.f32 %v656, %v751
    %753 = vmatprep.subr.mxu0 0.0
    %754 = vmatpush1.xpose.msra.mxu0 0.0
    %755 = vmatprep.subr.mxu0 0.0
    %756 = vmatpush1.xpose.msra.mxu0 0.0
    %757 = vmatprep.subr.mxu0 0.0
    %758 = vmatpush1.xpose.msra.mxu0 0.0
    %759 = vmatprep.subr.mxu0 0.0
    %760 = vmatpush1.xpose.msra.mxu0 0.0
    %761 = vmatprep.subr.mxu0 0.0
    %762 = vmatpush1.xpose.msra.mxu0 0.0
    %763 = vmatprep.subr.mxu0 0.0
    %764 = vmatpush1.xpose.msra.mxu0 0.0
    %765 = vmatprep.subr.mxu0 0.0
    %766 = vmatpush1.xpose.msra.mxu0 0.0
    %767 = vmatprep.subr.mxu0 0.0
    %768 = vmatpush1.xpose.msra.mxu0 0.0
    %769 = vmatprep.subr.mxu0 0.0
    %770 = vmatpush1.xpose.msra.mxu0 0.0
    %771 = vmatprep.subr.mxu0 0.0
    %772 = vmatpush1.xpose.msra.mxu0 0.0
    %773 = vmatprep.subr.mxu0 0.0
    %774 = vmatpush1.xpose.msra.mxu0 0.0
    %775 = vmatprep.subr.mxu0 0.0
    %776 = vmatpush1.xpose.msra.mxu0 0.0
    %777 = vmatprep.subr.mxu0 0.0
    %778 = vmatpush1.xpose.msra.mxu0 0.0
    %779 = vmatprep.subr.mxu0 0.0
    %780 = vmatpush1.xpose.msra.mxu0 0.0
    %781 = vmatprep.subr.mxu0 0.0
    %782 = vmatpush1.xpose.msra.mxu0 0.0
    %783 = vmatprep.subr.mxu0 0.0
    %784 = vmatpush1.xpose.msra.mxu0 %v658
    %785 = vmatprep.subr.mxu0 0.0
    %786 = vmatpush2.xpose.msra.mxu0 0.0
    %787 = vmatprep.subr.mxu0 0.0
    %788 = vmatpush2.xpose.msra.mxu0 0.0
    %789 = vmatprep.subr.mxu0 0.0
    %790 = vmatpush2.xpose.msra.mxu0 0.0
    %791 = vmatprep.subr.mxu0 0.0
    %792 = vmatpush2.xpose.msra.mxu0 0.0
    %793 = vmatprep.subr.mxu0 0.0
    %794 = vmatpush2.xpose.msra.mxu0 0.0
    %795 = vmatprep.subr.mxu0 0.0
    %796 = vmatpush2.xpose.msra.mxu0 0.0
    %797 = vmatprep.subr.mxu0 0.0
    %798 = vmatpush2.xpose.msra.mxu0 0.0
    %799 = vmatprep.subr.mxu0 0.0
    %800 = vmatpush2.xpose.msra.mxu0 0.0
    %801 = vmatprep.subr.mxu0 0.0
    %802 = vmatpush2.xpose.msra.mxu0 0.0
    %803 = vmatprep.subr.mxu0 0.0
    %804 = vmatpush2.xpose.msra.mxu0 0.0
    %805 = vmatprep.subr.mxu0 0.0
    %806 = vmatpush2.xpose.msra.mxu0 0.0
    %807 = vmatprep.subr.mxu0 0.0
    %808 = vmatpush2.xpose.msra.mxu0 0.0
    %809 = vmatprep.subr.mxu0 0.0
    %810 = vmatpush2.xpose.msra.mxu0 0.0
    %811 = vmatprep.subr.mxu0 0.0
    %812 = vmatpush2.xpose.msra.mxu0 0.0
    %813 = vmatprep.subr.mxu0 0.0
    %814 = vmatpush2.xpose.msra.mxu0 0.0
    %815 = vmatprep.subr.mxu0 0.0
    %816 = vmatpush2.xpose.msra.mxu0 0.0
    %817 = vmatprep.mubr.f32.mxu0 0.0
    %818 = vmatmul.mubr.f32.gmra.mxu0 %v752
    %v819 = vpop.f32.mrf.mxu0
    %v820 = vadd.f32 0.0, %v819
    %v821 = vpop.f32.mrf.mxu0
    %822 = vdwg.mxu0
    %v823 = vmul.f32 %v820, 0.35355338
    %v824 = vsel %vm513, %v823, -1e+09
    %vm825 = vcmask 64512
    %v826 = vsel %vm825, %v824, -inf
    %827 = vmax.xlane.f32.xlu0 %v826
    %v828 = vpop.xlane.xlu0 %827
    %v829 = vsub.f32 %v824, %v828
    %v830 = vmul.f32 %v829, 1.442695
    %v831 = vpow.pop %v830
    %v832 = vsel %vm825, %v831, 0.0
    %833 = vadd.xlane.f32.xlu0 %v832
    %v834 = vpop.xlane.xlu0 %833
    %v835 = vrcp.pop %v834
    %v836 = vmul.f32 %v831, %v835
    %v837 = vmul.f32 %v727, %v751
    %vm838 = vcmp.ge.s32.totalorder %v498, 8
    %vm839 = vcmp.lt.s32.totalorder %v498, 16
    %vm840 = vmand %vm838, %vm839
    %v841 = vsel %vm840, 1, 0
    %v842 = vcvt.s32.f32 %v841
    %v843 = vmul.f32 %v656, %v842
    %844 = vmatprep.subr.mxu0 0.0
    %845 = vmatpush1.xpose.msra.mxu0 0.0
    %846 = vmatprep.subr.mxu0 0.0
    %847 = vmatpush1.xpose.msra.mxu0 0.0
    %848 = vmatprep.subr.mxu0 0.0
    %849 = vmatpush1.xpose.msra.mxu0 0.0
    %850 = vmatprep.subr.mxu0 0.0
    %851 = vmatpush1.xpose.msra.mxu0 0.0
    %852 = vmatprep.subr.mxu0 0.0
    %853 = vmatpush1.xpose.msra.mxu0 0.0
    %854 = vmatprep.subr.mxu0 0.0
    %855 = vmatpush1.xpose.msra.mxu0 0.0
    %856 = vmatprep.subr.mxu0 0.0
    %857 = vmatpush1.xpose.msra.mxu0 0.0
    %858 = vmatprep.subr.mxu0 0.0
    %859 = vmatpush1.xpose.msra.mxu0 0.0
    %860 = vmatprep.subr.mxu0 0.0
    %861 = vmatpush1.xpose.msra.mxu0 0.0
    %862 = vmatprep.subr.mxu0 0.0
    %863 = vmatpush1.xpose.msra.mxu0 0.0
    %864 = vmatprep.subr.mxu0 0.0
    %865 = vmatpush1.xpose.msra.mxu0 0.0
    %866 = vmatprep.subr.mxu0 0.0
    %867 = vmatpush1.xpose.msra.mxu0 0.0
    %868 = vmatprep.subr.mxu0 0.0
    %869 = vmatpush1.xpose.msra.mxu0 0.0
    %870 = vmatprep.subr.mxu0 0.0
    %871 = vmatpush1.xpose.msra.mxu0 0.0
    %872 = vmatprep.subr.mxu0 0.0
    %873 = vmatpush1.xpose.msra.mxu0 0.0
    %874 = vmatprep.subr.mxu0 0.0
    %875 = vmatpush1.xpose.msra.mxu0 %v658
    %876 = vmatprep.subr.mxu0 0.0
    %877 = vmatpush2.xpose.msra.mxu0 0.0
    %878 = vmatprep.subr.mxu0 0.0
    %879 = vmatpush2.xpose.msra.mxu0 0.0
    %880 = vmatprep.subr.mxu0 0.0
    %881 = vmatpush2.xpose.msra.mxu0 0.0
    %882 = vmatprep.subr.mxu0 0.0
    %883 = vmatpush2.xpose.msra.mxu0 0.0
    %884 = vmatprep.subr.mxu0 0.0
    %885 = vmatpush2.xpose.msra.mxu0 0.0
    %886 = vmatprep.subr.mxu0 0.0
    %887 = vmatpush2.xpose.msra.mxu0 0.0
    %888 = vmatprep.subr.mxu0 0.0
    %889 = vmatpush2.xpose.msra.mxu0 0.0
    %890 = vmatprep.subr.mxu0 0.0
    %891 = vmatpush2.xpose.msra.mxu0 0.0
    %892 = vmatprep.subr.mxu0 0.0
    %893 = vmatpush2.xpose.msra.mxu0 0.0
    %894 = vmatprep.subr.mxu0 0.0
    %895 = vmatpush2.xpose.msra.mxu0 0.0
    %896 = vmatprep.subr.mxu0 0.0
    %897 = vmatpush2.xpose.msra.mxu0 0.0
    %898 = vmatprep.subr.mxu0 0.0
    %899 = vmatpush2.xpose.msra.mxu0 0.0
    %900 = vmatprep.subr.mxu0 0.0
    %901 = vmatpush2.xpose.msra.mxu0 0.0
    %902 = vmatprep.subr.mxu0 0.0
    %903 = vmatpush2.xpose.msra.mxu0 0.0
    %904 = vmatprep.subr.mxu0 0.0
    %905 = vmatpush2.xpose.msra.mxu0 0.0
    %906 = vmatprep.subr.mxu0 0.0
    %907 = vmatpush2.xpose.msra.mxu0 0.0
    %908 = vmatprep.mubr.f32.mxu0 0.0
    %909 = vmatmul.mubr.f32.gmra.mxu0 %v843
    %v910 = vpop.f32.mrf.mxu0
    %v911 = vadd.f32 0.0, %v910
    %v912 = vpop.f32.mrf.mxu0
    %913 = vdwg.mxu0
    %v914 = vmul.f32 %v911, 0.35355338
    %v915 = vsel %vm513, %v914, -1e+09
    %v916 = vsel %vm825, %v915, -inf
    %917 = vmax.xlane.f32.xlu0 %v916
    %v918 = vpop.xlane.xlu0 %917
    %v919 = vsub.f32 %v915, %v918
    %v920 = vmul.f32 %v919, 1.442695
    %v921 = vpow.pop %v920
    %v922 = vsel %vm825, %v921, 0.0
    %923 = vadd.xlane.f32.xlu0 %v922
    %v924 = vpop.xlane.xlu0 %923
    %v925 = vrcp.pop %v924
    %v926 = vmul.f32 %v921, %v925
    %v927 = vmul.f32 %v727, %v842
    %v929 = vsel %vm825, %v926, 0
    %931 = vmatprep.subr.mxu0 0.0
    %932 = vmatpush1.msra.mxu0 0.0
    %933 = vmatprep.subr.mxu0 0.0
    %934 = vmatpush1.msra.mxu0 0.0
    %935 = vmatprep.subr.mxu0 0.0
    %936 = vmatpush1.msra.mxu0 0.0
    %937 = vmatprep.subr.mxu0 0.0
    %938 = vmatpush1.msra.mxu0 0.0
    %939 = vmatprep.subr.mxu0 0.0
    %940 = vmatpush1.msra.mxu0 0.0
    %941 = vmatprep.subr.mxu0 0.0
    %942 = vmatpush1.msra.mxu0 0.0
    %943 = vmatprep.subr.mxu0 0.0
    %944 = vmatpush1.msra.mxu0 0.0
    %945 = vmatprep.subr.mxu0 0.0
    %946 = vmatpush1.msra.mxu0 0.0
    %947 = vmatprep.subr.mxu0 0.0
    %948 = vmatpush1.msra.mxu0 0.0
    %949 = vmatprep.subr.mxu0 0.0
    %950 = vmatpush1.msra.mxu0 0.0
    %951 = vmatprep.subr.mxu0 0.0
    %952 = vmatpush1.msra.mxu0 0.0
    %953 = vmatprep.subr.mxu0 0.0
    %954 = vmatpush1.msra.mxu0 0.0
    %955 = vmatprep.subr.mxu0 0.0
    %956 = vmatpush1.msra.mxu0 0.0
    %957 = vmatprep.subr.mxu0 0.0
    %958 = vmatpush1.msra.mxu0 0.0
    %959 = vmatprep.subr.mxu0 0.0
    %960 = vmatpush1.msra.mxu0 0.0
    %961 = vmatprep.subr.mxu0 0.0
    %962 = vmatpush1.msra.mxu0 %v927
    %963 = vmatprep.subr.mxu0 0.0
    %964 = vmatpush2.msra.mxu0 0.0
    %965 = vmatprep.subr.mxu0 0.0
    %966 = vmatpush2.msra.mxu0 0.0
    %967 = vmatprep.subr.mxu0 0.0
    %968 = vmatpush2.msra.mxu0 0.0
    %969 = vmatprep.subr.mxu0 0.0
    %970 = vmatpush2.msra.mxu0 0.0
    %971 = vmatprep.subr.mxu0 0.0
    %972 = vmatpush2.msra.mxu0 0.0
    %973 = vmatprep.subr.mxu0 0.0
    %974 = vmatpush2.msra.mxu0 0.0
    %975 = vmatprep.subr.mxu0 0.0
    %976 = vmatpush2.msra.mxu0 0.0
    %977 = vmatprep.subr.mxu0 0.0
    %978 = vmatpush2.msra.mxu0 0.0
    %979 = vmatprep.subr.mxu0 0.0
    %980 = vmatpush2.msra.mxu0 0.0
    %981 = vmatprep.subr.mxu0 0.0
    %982 = vmatpush2.msra.mxu0 0.0
    %983 = vmatprep.subr.mxu0 0.0
    %984 = vmatpush2.msra.mxu0 0.0
    %985 = vmatprep.subr.mxu0 0.0
    %986 = vmatpush2.msra.mxu0 0.0
    %987 = vmatprep.subr.mxu0 0.0
    %988 = vmatpush2.msra.mxu0 0.0
    %989 = vmatprep.subr.mxu0 0.0
    %990 = vmatpush2.msra.mxu0 0.0
    %991 = vmatprep.subr.mxu0 0.0
    %992 = vmatpush2.msra.mxu0 0.0
    %993 = vmatprep.subr.mxu0 0.0
    %994 = vmatpush2.msra.mxu0 0.0
    %995 = vmatprep.mubr.f32.mxu0 0.0
    %996 = vmatmul.mubr.f32.gmra.mxu0 %v929
    %v997 = vpop.f32.mrf.mxu0
    %v998 = vadd.f32 0.0, %v997
    %v999 = vpop.f32.mrf.mxu0
    %1000 = vdwg.mxu0
    %v1002 = vsel %vm825, %v836, 0
    %1004 = vmatprep.subr.mxu0 0.0
    %1005 = vmatpush1.msra.mxu0 0.0
    %1006 = vmatprep.subr.mxu0 0.0
    %1007 = vmatpush1.msra.mxu0 0.0
    %1008 = vmatprep.subr.mxu0 0.0
    %1009 = vmatpush1.msra.mxu0 0.0
    %1010 = vmatprep.subr.mxu0 0.0
    %1011 = vmatpush1.msra.mxu0 0.0
    %1012 = vmatprep.subr.mxu0 0.0
    %1013 = vmatpush1.msra.mxu0 0.0
    %1014 = vmatprep.subr.mxu0 0.0
    %1015 = vmatpush1.msra.mxu0 0.0
    %1016 = vmatprep.subr.mxu0 0.0
    %1017 = vmatpush1.msra.mxu0 0.0
    %1018 = vmatprep.subr.mxu0 0.0
    %1019 = vmatpush1.msra.mxu0 0.0
    %1020 = vmatprep.subr.mxu0 0.0
    %1021 = vmatpush1.msra.mxu0 0.0
    %1022 = vmatprep.subr.mxu0 0.0
    %1023 = vmatpush1.msra.mxu0 0.0
    %1024 = vmatprep.subr.mxu0 0.0
    %1025 = vmatpush1.msra.mxu0 0.0
    %1026 = vmatprep.subr.mxu0 0.0
    %1027 = vmatpush1.msra.mxu0 0.0
    %1028 = vmatprep.subr.mxu0 0.0
    %1029 = vmatpush1.msra.mxu0 0.0
    %1030 = vmatprep.subr.mxu0 0.0
    %1031 = vmatpush1.msra.mxu0 0.0
    %1032 = vmatprep.subr.mxu0 0.0
    %1033 = vmatpush1.msra.mxu0 0.0
    %1034 = vmatprep.subr.mxu0 0.0
    %1035 = vmatpush1.msra.mxu0 %v837
    %1036 = vmatprep.subr.mxu0 0.0
    %1037 = vmatpush2.msra.mxu0 0.0
    %1038 = vmatprep.subr.mxu0 0.0
    %1039 = vmatpush2.msra.mxu0 0.0
    %1040 = vmatprep.subr.mxu0 0.0
    %1041 = vmatpush2.msra.mxu0 0.0
    %1042 = vmatprep.subr.mxu0 0.0
    %1043 = vmatpush2.msra.mxu0 0.0
    %1044 = vmatprep.subr.mxu0 0.0
    %1045 = vmatpush2.msra.mxu0 0.0
    %1046 = vmatprep.subr.mxu0 0.0
    %1047 = vmatpush2.msra.mxu0 0.0
    %1048 = vmatprep.subr.mxu0 0.0
    %1049 = vmatpush2.msra.mxu0 0.0
    %1050 = vmatprep.subr.mxu0 0.0
    %1051 = vmatpush2.msra.mxu0 0.0
    %1052 = vmatprep.subr.mxu0 0.0
    %1053 = vmatpush2.msra.mxu0 0.0
    %1054 = vmatprep.subr.mxu0 0.0
    %1055 = vmatpush2.msra.mxu0 0.0
    %1056 = vmatprep.subr.mxu0 0.0
    %1057 = vmatpush2.msra.mxu0 0.0
    %1058 = vmatprep.subr.mxu0 0.0
    %1059 = vmatpush2.msra.mxu0 0.0
    %1060 = vmatprep.subr.mxu0 0.0
    %1061 = vmatpush2.msra.mxu0 0.0
    %1062 = vmatprep.subr.mxu0 0.0
    %1063 = vmatpush2.msra.mxu0 0.0
    %1064 = vmatprep.subr.mxu0 0.0
    %1065 = vmatpush2.msra.mxu0 0.0
    %1066 = vmatprep.subr.mxu0 0.0
    %1067 = vmatpush2.msra.mxu0 0.0
    %1068 = vmatprep.mubr.f32.mxu0 0.0
    %1069 = vmatmul.mubr.f32.gmra.mxu0 %v1002
    %v1070 = vpop.f32.mrf.mxu0
    %v1071 = vadd.f32 %v998, %v1070
    %v1072 = vpop.f32.mrf.mxu0
    %1073 = vdwg.mxu0
    %vm1074 = vcmp.ge.s32.totalorder %v498, 16
    %vm1075 = vcmp.lt.s32.totalorder %v498, 24
    %vm1076 = vmand %vm1074, %vm1075
    %v1077 = vsel %vm1076, 1, 0
    %v1078 = vcvt.s32.f32 %v1077
    %v1079 = vmul.f32 %v656, %v1078
    %1080 = vmatprep.subr.mxu0 0.0
    %1081 = vmatpush1.xpose.msra.mxu0 0.0
    %1082 = vmatprep.subr.mxu0 0.0
    %1083 = vmatpush1.xpose.msra.mxu0 0.0
    %1084 = vmatprep.subr.mxu0 0.0
    %1085 = vmatpush1.xpose.msra.mxu0 0.0
    %1086 = vmatprep.subr.mxu0 0.0
    %1087 = vmatpush1.xpose.msra.mxu0 0.0
    %1088 = vmatprep.subr.mxu0 0.0
    %1089 = vmatpush1.xpose.msra.mxu0 0.0
    %1090 = vmatprep.subr.mxu0 0.0
    %1091 = vmatpush1.xpose.msra.mxu0 0.0
    %1092 = vmatprep.subr.mxu0 0.0
    %1093 = vmatpush1.xpose.msra.mxu0 0.0
    %1094 = vmatprep.subr.mxu0 0.0
    %1095 = vmatpush1.xpose.msra.mxu0 0.0
    %1096 = vmatprep.subr.mxu0 0.0
    %1097 = vmatpush1.xpose.msra.mxu0 0.0
    %1098 = vmatprep.subr.mxu0 0.0
    %1099 = vmatpush1.xpose.msra.mxu0 0.0
    %1100 = vmatprep.subr.mxu0 0.0
    %1101 = vmatpush1.xpose.msra.mxu0 0.0
    %1102 = vmatprep.subr.mxu0 0.0
    %1103 = vmatpush1.xpose.msra.mxu0 0.0
    %1104 = vmatprep.subr.mxu0 0.0
    %1105 = vmatpush1.xpose.msra.mxu0 0.0
    %1106 = vmatprep.subr.mxu0 0.0
    %1107 = vmatpush1.xpose.msra.mxu0 0.0
    %1108 = vmatprep.subr.mxu0 0.0
    %1109 = vmatpush1.xpose.msra.mxu0 0.0
    %1110 = vmatprep.subr.mxu0 0.0
    %1111 = vmatpush1.xpose.msra.mxu0 %v658
    %1112 = vmatprep.subr.mxu0 0.0
    %1113 = vmatpush2.xpose.msra.mxu0 0.0
    %1114 = vmatprep.subr.mxu0 0.0
    %1115 = vmatpush2.xpose.msra.mxu0 0.0
    %1116 = vmatprep.subr.mxu0 0.0
    %1117 = vmatpush2.xpose.msra.mxu0 0.0
    %1118 = vmatprep.subr.mxu0 0.0
    %1119 = vmatpush2.xpose.msra.mxu0 0.0
    %1120 = vmatprep.subr.mxu0 0.0
    %1121 = vmatpush2.xpose.msra.mxu0 0.0
    %1122 = vmatprep.subr.mxu0 0.0
    %1123 = vmatpush2.xpose.msra.mxu0 0.0
    %1124 = vmatprep.subr.mxu0 0.0
    %1125 = vmatpush2.xpose.msra.mxu0 0.0
    %1126 = vmatprep.subr.mxu0 0.0
    %1127 = vmatpush2.xpose.msra.mxu0 0.0
    %1128 = vmatprep.subr.mxu0 0.0
    %1129 = vmatpush2.xpose.msra.mxu0 0.0
    %1130 = vmatprep.subr.mxu0 0.0
    %1131 = vmatpush2.xpose.msra.mxu0 0.0
    %1132 = vmatprep.subr.mxu0 0.0
    %1133 = vmatpush2.xpose.msra.mxu0 0.0
    %1134 = vmatprep.subr.mxu0 0.0
    %1135 = vmatpush2.xpose.msra.mxu0 0.0
    %1136 = vmatprep.subr.mxu0 0.0
    %1137 = vmatpush2.xpose.msra.mxu0 0.0
    %1138 = vmatprep.subr.mxu0 0.0
    %1139 = vmatpush2.xpose.msra.mxu0 0.0
    %1140 = vmatprep.subr.mxu0 0.0
    %1141 = vmatpush2.xpose.msra.mxu0 0.0
    %1142 = vmatprep.subr.mxu0 0.0
    %1143 = vmatpush2.xpose.msra.mxu0 0.0
    %1144 = vmatprep.mubr.f32.mxu0 0.0
    %1145 = vmatmul.mubr.f32.gmra.mxu0 %v1079
    %v1146 = vpop.f32.mrf.mxu0
    %v1147 = vadd.f32 0.0, %v1146
    %v1148 = vpop.f32.mrf.mxu0
    %1149 = vdwg.mxu0
    %v1150 = vmul.f32 %v1147, 0.35355338
    %v1151 = vsel %vm513, %v1150, -1e+09
    %v1152 = vsel %vm825, %v1151, -inf
    %1153 = vmax.xlane.f32.xlu0 %v1152
    %v1154 = vpop.xlane.xlu0 %1153
    %v1155 = vsub.f32 %v1151, %v1154
    %v1156 = vmul.f32 %v1155, 1.442695
    %v1157 = vpow.pop %v1156
    %v1158 = vsel %vm825, %v1157, 0.0
    %1159 = vadd.xlane.f32.xlu0 %v1158
    %v1160 = vpop.xlane.xlu0 %1159
    %v1161 = vrcp.pop %v1160
    %v1162 = vmul.f32 %v1157, %v1161
    %v1163 = vmul.f32 %v727, %v1078
    %v1165 = vsel %vm825, %v1162, 0
    %1167 = vmatprep.subr.mxu0 0.0
    %1168 = vmatpush1.msra.mxu0 0.0
    %1169 = vmatprep.subr.mxu0 0.0
    %1170 = vmatpush1.msra.mxu0 0.0
    %1171 = vmatprep.subr.mxu0 0.0
    %1172 = vmatpush1.msra.mxu0 0.0
    %1173 = vmatprep.subr.mxu0 0.0
    %1174 = vmatpush1.msra.mxu0 0.0
    %1175 = vmatprep.subr.mxu0 0.0
    %1176 = vmatpush1.msra.mxu0 0.0
    %1177 = vmatprep.subr.mxu0 0.0
    %1178 = vmatpush1.msra.mxu0 0.0
    %1179 = vmatprep.subr.mxu0 0.0
    %1180 = vmatpush1.msra.mxu0 0.0
    %1181 = vmatprep.subr.mxu0 0.0
    %1182 = vmatpush1.msra.mxu0 0.0
    %1183 = vmatprep.subr.mxu0 0.0
    %1184 = vmatpush1.msra.mxu0 0.0
    %1185 = vmatprep.subr.mxu0 0.0
    %1186 = vmatpush1.msra.mxu0 0.0
    %1187 = vmatprep.subr.mxu0 0.0
    %1188 = vmatpush1.msra.mxu0 0.0
    %1189 = vmatprep.subr.mxu0 0.0
    %1190 = vmatpush1.msra.mxu0 0.0
    %1191 = vmatprep.subr.mxu0 0.0
    %1192 = vmatpush1.msra.mxu0 0.0
    %1193 = vmatprep.subr.mxu0 0.0
    %1194 = vmatpush1.msra.mxu0 0.0
    %1195 = vmatprep.subr.mxu0 0.0
    %1196 = vmatpush1.msra.mxu0 0.0
    %1197 = vmatprep.subr.mxu0 0.0
    %1198 = vmatpush1.msra.mxu0 %v1163
    %1199 = vmatprep.subr.mxu0 0.0
    %1200 = vmatpush2.msra.mxu0 0.0
    %1201 = vmatprep.subr.mxu0 0.0
    %1202 = vmatpush2.msra.mxu0 0.0
    %1203 = vmatprep.subr.mxu0 0.0
    %1204 = vmatpush2.msra.mxu0 0.0
    %1205 = vmatprep.subr.mxu0 0.0
    %1206 = vmatpush2.msra.mxu0 0.0
    %1207 = vmatprep.subr.mxu0 0.0
    %1208 = vmatpush2.msra.mxu0 0.0
    %1209 = vmatprep.subr.mxu0 0.0
    %1210 = vmatpush2.msra.mxu0 0.0
    %1211 = vmatprep.subr.mxu0 0.0
    %1212 = vmatpush2.msra.mxu0 0.0
    %1213 = vmatprep.subr.mxu0 0.0
    %1214 = vmatpush2.msra.mxu0 0.0
    %1215 = vmatprep.subr.mxu0 0.0
    %1216 = vmatpush2.msra.mxu0 0.0
    %1217 = vmatprep.subr.mxu0 0.0
    %1218 = vmatpush2.msra.mxu0 0.0
    %1219 = vmatprep.subr.mxu0 0.0
    %1220 = vmatpush2.msra.mxu0 0.0
    %1221 = vmatprep.subr.mxu0 0.0
    %1222 = vmatpush2.msra.mxu0 0.0
    %1223 = vmatprep.subr.mxu0 0.0
    %1224 = vmatpush2.msra.mxu0 0.0
    %1225 = vmatprep.subr.mxu0 0.0
    %1226 = vmatpush2.msra.mxu0 0.0
    %1227 = vmatprep.subr.mxu0 0.0
    %1228 = vmatpush2.msra.mxu0 0.0
    %1229 = vmatprep.subr.mxu0 0.0
    %1230 = vmatpush2.msra.mxu0 0.0
    %1231 = vmatprep.mubr.f32.mxu0 0.0
    %1232 = vmatmul.mubr.f32.gmra.mxu0 %v1165
    %v1233 = vpop.f32.mrf.mxu0
    %v1234 = vadd.f32 0.0, %v1233
    %v1235 = vpop.f32.mrf.mxu0
    %1236 = vdwg.mxu0
    %v1237 = vadd.f32 %v1071, %v1234
    %vm1238 = vcmp.ge.s32.totalorder %v498, 24
    %vm1239 = vmand %vm1238, %vm499
    %v1240 = vsel %vm1239, 1, 0
    %v1241 = vcvt.s32.f32 %v1240
    %v1242 = vmul.f32 %v656, %v1241
    %1243 = vmatprep.subr.mxu0 0.0
    %1244 = vmatpush1.xpose.msra.mxu0 0.0
    %1245 = vmatprep.subr.mxu0 0.0
    %1246 = vmatpush1.xpose.msra.mxu0 0.0
    %1247 = vmatprep.subr.mxu0 0.0
    %1248 = vmatpush1.xpose.msra.mxu0 0.0
    %1249 = vmatprep.subr.mxu0 0.0
    %1250 = vmatpush1.xpose.msra.mxu0 0.0
    %1251 = vmatprep.subr.mxu0 0.0
    %1252 = vmatpush1.xpose.msra.mxu0 0.0
    %1253 = vmatprep.subr.mxu0 0.0
    %1254 = vmatpush1.xpose.msra.mxu0 0.0
    %1255 = vmatprep.subr.mxu0 0.0
    %1256 = vmatpush1.xpose.msra.mxu0 0.0
    %1257 = vmatprep.subr.mxu0 0.0
    %1258 = vmatpush1.xpose.msra.mxu0 0.0
    %1259 = vmatprep.subr.mxu0 0.0
    %1260 = vmatpush1.xpose.msra.mxu0 0.0
    %1261 = vmatprep.subr.mxu0 0.0
    %1262 = vmatpush1.xpose.msra.mxu0 0.0
    %1263 = vmatprep.subr.mxu0 0.0
    %1264 = vmatpush1.xpose.msra.mxu0 0.0
    %1265 = vmatprep.subr.mxu0 0.0
    %1266 = vmatpush1.xpose.msra.mxu0 0.0
    %1267 = vmatprep.subr.mxu0 0.0
    %1268 = vmatpush1.xpose.msra.mxu0 0.0
    %1269 = vmatprep.subr.mxu0 0.0
    %1270 = vmatpush1.xpose.msra.mxu0 0.0
    %1271 = vmatprep.subr.mxu0 0.0
    %1272 = vmatpush1.xpose.msra.mxu0 0.0
    %1273 = vmatprep.subr.mxu0 0.0
    %1274 = vmatpush1.xpose.msra.mxu0 %v658
    %1275 = vmatprep.subr.mxu0 0.0
    %1276 = vmatpush2.xpose.msra.mxu0 0.0
    %1277 = vmatprep.subr.mxu0 0.0
    %1278 = vmatpush2.xpose.msra.mxu0 0.0
    %1279 = vmatprep.subr.mxu0 0.0
    %1280 = vmatpush2.xpose.msra.mxu0 0.0
    %1281 = vmatprep.subr.mxu0 0.0
    %1282 = vmatpush2.xpose.msra.mxu0 0.0
    %1283 = vmatprep.subr.mxu0 0.0
    %1284 = vmatpush2.xpose.msra.mxu0 0.0
    %1285 = vmatprep.subr.mxu0 0.0
    %1286 = vmatpush2.xpose.msra.mxu0 0.0
    %1287 = vmatprep.subr.mxu0 0.0
    %1288 = vmatpush2.xpose.msra.mxu0 0.0
    %1289 = vmatprep.subr.mxu0 0.0
    %1290 = vmatpush2.xpose.msra.mxu0 0.0
    %1291 = vmatprep.subr.mxu0 0.0
    %1292 = vmatpush2.xpose.msra.mxu0 0.0
    %1293 = vmatprep.subr.mxu0 0.0
    %1294 = vmatpush2.xpose.msra.mxu0 0.0
    %1295 = vmatprep.subr.mxu0 0.0
    %1296 = vmatpush2.xpose.msra.mxu0 0.0
    %1297 = vmatprep.subr.mxu0 0.0
    %1298 = vmatpush2.xpose.msra.mxu0 0.0
    %1299 = vmatprep.subr.mxu0 0.0
    %1300 = vmatpush2.xpose.msra.mxu0 0.0
    %1301 = vmatprep.subr.mxu0 0.0
    %1302 = vmatpush2.xpose.msra.mxu0 0.0
    %1303 = vmatprep.subr.mxu0 0.0
    %1304 = vmatpush2.xpose.msra.mxu0 0.0
    %1305 = vmatprep.subr.mxu0 0.0
    %1306 = vmatpush2.xpose.msra.mxu0 0.0
    %1307 = vmatprep.mubr.f32.mxu0 0.0
    %1308 = vmatmul.mubr.f32.gmra.mxu0 %v1242
    %v1309 = vpop.f32.mrf.mxu0
    %v1310 = vadd.f32 0.0, %v1309
    %v1311 = vpop.f32.mrf.mxu0
    %1312 = vdwg.mxu0
    %v1313 = vmul.f32 %v1310, 0.35355338
    %v1314 = vsel %vm513, %v1313, -1e+09
    %v1315 = vsel %vm825, %v1314, -inf
    %1316 = vmax.xlane.f32.xlu0 %v1315
    %v1317 = vpop.xlane.xlu0 %1316
    %v1318 = vsub.f32 %v1314, %v1317
    %v1319 = vmul.f32 %v1318, 1.442695
    %v1320 = vpow.pop %v1319
    %v1321 = vsel %vm825, %v1320, 0.0
    %1322 = vadd.xlane.f32.xlu0 %v1321
    %v1323 = vpop.xlane.xlu0 %1322
    %v1324 = vrcp.pop %v1323
    %v1325 = vmul.f32 %v1320, %v1324
    %v1326 = vmul.f32 %v727, %v1241
    %v1328 = vsel %vm825, %v1325, 0
    %1330 = vmatprep.subr.mxu0 0.0
    %1331 = vmatpush1.msra.mxu0 0.0
    %1332 = vmatprep.subr.mxu0 0.0
    %1333 = vmatpush1.msra.mxu0 0.0
    %1334 = vmatprep.subr.mxu0 0.0
    %1335 = vmatpush1.msra.mxu0 0.0
    %1336 = vmatprep.subr.mxu0 0.0
    %1337 = vmatpush1.msra.mxu0 0.0
    %1338 = vmatprep.subr.mxu0 0.0
    %1339 = vmatpush1.msra.mxu0 0.0
    %1340 = vmatprep.subr.mxu0 0.0
    %1341 = vmatpush1.msra.mxu0 0.0
    %1342 = vmatprep.subr.mxu0 0.0
    %1343 = vmatpush1.msra.mxu0 0.0
    %1344 = vmatprep.subr.mxu0 0.0
    %1345 = vmatpush1.msra.mxu0 0.0
    %1346 = vmatprep.subr.mxu0 0.0
    %1347 = vmatpush1.msra.mxu0 0.0
    %1348 = vmatprep.subr.mxu0 0.0
    %1349 = vmatpush1.msra.mxu0 0.0
    %1350 = vmatprep.subr.mxu0 0.0
    %1351 = vmatpush1.msra.mxu0 0.0
    %1352 = vmatprep.subr.mxu0 0.0
    %1353 = vmatpush1.msra.mxu0 0.0
    %1354 = vmatprep.subr.mxu0 0.0
    %1355 = vmatpush1.msra.mxu0 0.0
    %1356 = vmatprep.subr.mxu0 0.0
    %1357 = vmatpush1.msra.mxu0 0.0
    %1358 = vmatprep.subr.mxu0 0.0
    %1359 = vmatpush1.msra.mxu0 0.0
    %1360 = vmatprep.subr.mxu0 0.0
    %1361 = vmatpush1.msra.mxu0 %v1326
    %1362 = vmatprep.subr.mxu0 0.0
    %1363 = vmatpush2.msra.mxu0 0.0
    %1364 = vmatprep.subr.mxu0 0.0
    %1365 = vmatpush2.msra.mxu0 0.0
    %1366 = vmatprep.subr.mxu0 0.0
    %1367 = vmatpush2.msra.mxu0 0.0
    %1368 = vmatprep.subr.mxu0 0.0
    %1369 = vmatpush2.msra.mxu0 0.0
    %1370 = vmatprep.subr.mxu0 0.0
    %1371 = vmatpush2.msra.mxu0 0.0
    %1372 = vmatprep.subr.mxu0 0.0
    %1373 = vmatpush2.msra.mxu0 0.0
    %1374 = vmatprep.subr.mxu0 0.0
    %1375 = vmatpush2.msra.mxu0 0.0
    %1376 = vmatprep.subr.mxu0 0.0
    %1377 = vmatpush2.msra.mxu0 0.0
    %1378 = vmatprep.subr.mxu0 0.0
    %1379 = vmatpush2.msra.mxu0 0.0
    %1380 = vmatprep.subr.mxu0 0.0
    %1381 = vmatpush2.msra.mxu0 0.0
    %1382 = vmatprep.subr.mxu0 0.0
    %1383 = vmatpush2.msra.mxu0 0.0
    %1384 = vmatprep.subr.mxu0 0.0
    %1385 = vmatpush2.msra.mxu0 0.0
    %1386 = vmatprep.subr.mxu0 0.0
    %1387 = vmatpush2.msra.mxu0 0.0
    %1388 = vmatprep.subr.mxu0 0.0
    %1389 = vmatpush2.msra.mxu0 0.0
    %1390 = vmatprep.subr.mxu0 0.0
    %1391 = vmatpush2.msra.mxu0 0.0
    %1392 = vmatprep.subr.mxu0 0.0
    %1393 = vmatpush2.msra.mxu0 0.0
    %1394 = vmatprep.mubr.f32.mxu0 0.0
    %1395 = vmatmul.mubr.f32.gmra.mxu0 %v1328
    %v1396 = vpop.f32.mrf.mxu0
    %v1397 = vadd.f32 0.0, %v1396
    %v1398 = vpop.f32.mrf.mxu0
    %1399 = vdwg.mxu0
    %v1400 = vadd.f32 %v1237, %v1397
    %v1402 = vlaneseq
    %v1403 = vshrl.u32 %v1402, 7
    %v1404 = vsub.s32 0, %v1403
    %v1405 = vrot.slane %v746, %v1404
    %1407 = vmatprep.subr.mxu0 0.0
    %1408 = vmatpush1.msra.mxu0 %v745
    %1409 = vmatprep.subr.mxu0 0.0
    %1410 = vmatpush1.msra.mxu0 %v744
    %1411 = vmatprep.subr.mxu0 0.0
    %1412 = vmatpush1.msra.mxu0 %v743
    %1413 = vmatprep.subr.mxu0 0.0
    %1414 = vmatpush1.msra.mxu0 %v742
    %1415 = vmatprep.subr.mxu0 0.0
    %1416 = vmatpush1.msra.mxu0 %v741
    %1417 = vmatprep.subr.mxu0 0.0
    %1418 = vmatpush1.msra.mxu0 %v740
    %1419 = vmatprep.subr.mxu0 0.0
    %1420 = vmatpush1.msra.mxu0 %v739
    %1421 = vmatprep.subr.mxu0 0.0
    %1422 = vmatpush1.msra.mxu0 %v738
    %1423 = vmatprep.subr.mxu0 0.0
    %1424 = vmatpush1.msra.mxu0 %v737
    %1425 = vmatprep.subr.mxu0 0.0
    %1426 = vmatpush1.msra.mxu0 %v736
    %1427 = vmatprep.subr.mxu0 0.0
    %1428 = vmatpush1.msra.mxu0 %v735
    %1429 = vmatprep.subr.mxu0 0.0
    %1430 = vmatpush1.msra.mxu0 %v734
    %1431 = vmatprep.subr.mxu0 0.0
    %1432 = vmatpush1.msra.mxu0 %v733
    %1433 = vmatprep.subr.mxu0 0.0
    %1434 = vmatpush1.msra.mxu0 %v732
    %1435 = vmatprep.subr.mxu0 0.0
    %1436 = vmatpush1.msra.mxu0 %v731
    %1437 = vmatprep.subr.mxu0 0.0
    %1438 = vmatpush1.msra.mxu0 %v730
    %1439 = vmatprep.subr.mxu0 0.0
    %1440 = vmatpush2.msra.mxu0 0.0
    %1441 = vmatprep.subr.mxu0 0.0
    %1442 = vmatpush2.msra.mxu0 0.0
    %1443 = vmatprep.subr.mxu0 0.0
    %1444 = vmatpush2.msra.mxu0 0.0
    %1445 = vmatprep.subr.mxu0 0.0
    %1446 = vmatpush2.msra.mxu0 0.0
    %1447 = vmatprep.subr.mxu0 0.0
    %1448 = vmatpush2.msra.mxu0 0.0
    %1449 = vmatprep.subr.mxu0 0.0
    %1450 = vmatpush2.msra.mxu0 0.0
    %1451 = vmatprep.subr.mxu0 0.0
    %1452 = vmatpush2.msra.mxu0 0.0
    %1453 = vmatprep.subr.mxu0 0.0
    %1454 = vmatpush2.msra.mxu0 0.0
    %1455 = vmatprep.subr.mxu0 0.0
    %1456 = vmatpush2.msra.mxu0 0.0
    %1457 = vmatprep.subr.mxu0 0.0
    %1458 = vmatpush2.msra.mxu0 0.0
    %1459 = vmatprep.subr.mxu0 0.0
    %1460 = vmatpush2.msra.mxu0 0.0
    %1461 = vmatprep.subr.mxu0 0.0
    %1462 = vmatpush2.msra.mxu0 0.0
    %1463 = vmatprep.subr.mxu0 0.0
    %1464 = vmatpush2.msra.mxu0 0.0
    %1465 = vmatprep.subr.mxu0 0.0
    %1466 = vmatpush2.msra.mxu0 0.0
    %1467 = vmatprep.subr.mxu0 0.0
    %1468 = vmatpush2.msra.mxu0 0.0
    %1469 = vmatprep.subr.mxu0 0.0
    %1470 = vmatpush2.msra.mxu0 0.0
    %1471 = vmatprep.mubr.f32.mxu0 0.0
    %1472 = vmatmul.mubr.f32.gmra.mxu0 %v1400
    %v1473 = vpop.f32.mrf.mxu0
    %v1474 = vadd.f32 %v1405, %v1473
    %v1475 = vpop.f32.mrf.mxu0
    %1476 = vdwg.mxu0
    %v1477 = vld [vmem:[%s51] sm:$0x1]
    %v1478 = vld [vmem:[%s49] sm:$0x1]
    %v1479 = vadd.f32 %v502, %v1474
    %v1480 = vmul.f32 %v1479, %v501
    %1481 = vadd.xlane.f32.xlu0 %v1480
    %v1482 = vpop.xlane.xlu0 %1481
    %v1483 = vmul.f32 %v1482, 0.03125
    %v1484 = vsub.f32 %v1479, %v1483
    %v1485 = vmul.f32 %v1484, %v501
    %v1486 = vmul.f32 %v1485, %v1485
    %1487 = vadd.xlane.f32.xlu0 %v1486
    %v1488 = vpop.xlane.xlu0 %1487
    %v1489 = vmul.f32 %v1488, 0.03125
    %v1490 = vadd.f32 %v1489, 1e-05
    %v1491 = vrsqrt.pop %v1490
    %v1492 = vmul.f32 %v1485, %v1491
    %v1494 = vlaneseq
    %v1495 = vshrl.u32 %v1494, 7
    %v1496 = vsub.s32 0, %v1495
    %v1497 = vrot.slane %v1477, %v1496
    %v1499 = vmul.f32 %v1492, %v1497
    %v1501 = vlaneseq
    %v1502 = vshrl.u32 %v1501, 7
    %v1503 = vsub.s32 0, %v1502
    %v1504 = vrot.slane %v1478, %v1503
    %v1506 = vadd.f32 %v1499, %v1504
    %v1507 = vld [vmem:[#allocation34] sm:$0xff]
    %v1508 = vld [vmem:[#allocation34 + $0x8] sm:$0xff]
    %v1509 = vld [vmem:[#allocation34 + $0x10] sm:$0xff]
    %v1510 = vld [vmem:[#allocation34 + $0x18] sm:$0xff]
    %v1511 = vld [vmem:[#allocation34 + $0x20] sm:$0xff]
    %v1512 = vld [vmem:[#allocation34 + $0x28] sm:$0xff]
    %v1513 = vld [vmem:[#allocation34 + $0x30] sm:$0xff]
    %v1514 = vld [vmem:[#allocation34 + $0x38] sm:$0xff]
    %v1515 = vld [vmem:[#allocation34 + $0x40] sm:$0xff]
    %v1516 = vld [vmem:[#allocation34 + $0x48] sm:$0xff]
    %v1517 = vld [vmem:[#allocation34 + $0x50] sm:$0xff]
    %v1518 = vld [vmem:[#allocation34 + $0x58] sm:$0xff]
    %v1519 = vld [vmem:[#allocation34 + $0x60] sm:$0xff]
    %v1520 = vld [vmem:[#allocation34 + $0x68] sm:$0xff]
    %v1521 = vld [vmem:[#allocation34 + $0x70] sm:$0xff]
    %v1522 = vld [vmem:[#allocation34 + $0x78] sm:$0xff]
    %v1523 = vld [vmem:[%s41] sm:$0x1]
    %v1524 = vld [vmem:[#allocation35] sm:$0xff]
    %v1525 = vld [vmem:[#allocation35 + $0x8] sm:$0xff]
    %v1526 = vld [vmem:[#allocation35 + $0x10] sm:$0xff]
    %v1527 = vld [vmem:[#allocation35 + $0x18] sm:$0xff]
    %v1528 = vld [vmem:[#allocation35 + $0x20] sm:$0xff]
    %v1529 = vld [vmem:[#allocation35 + $0x28] sm:$0xff]
    %v1530 = vld [vmem:[#allocation35 + $0x30] sm:$0xff]
    %v1531 = vld [vmem:[#allocation35 + $0x38] sm:$0xff]
    %v1532 = vld [vmem:[#allocation35 + $0x40] sm:$0xff]
    %v1533 = vld [vmem:[#allocation35 + $0x48] sm:$0xff]
    %v1534 = vld [vmem:[#allocation35 + $0x50] sm:$0xff]
    %v1535 = vld [vmem:[#allocation35 + $0x58] sm:$0xff]
    %v1536 = vld [vmem:[#allocation35 + $0x60] sm:$0xff]
    %v1537 = vld [vmem:[#allocation35 + $0x68] sm:$0xff]
    %v1538 = vld [vmem:[#allocation35 + $0x70] sm:$0xff]
    %v1539 = vld [vmem:[#allocation35 + $0x78] sm:$0xff]
    %v1540 = vld [vmem:[%s43] sm:$0x1]
    %v1542 = vlaneseq
    %v1543 = vshrl.u32 %v1542, 7
    %v1544 = vsub.s32 0, %v1543
    %v1545 = vrot.slane %v1523, %v1544
    %1547 = vmatprep.subr.mxu0 0.0
    %1548 = vmatpush1.msra.mxu0 %v1522
    %1549 = vmatprep.subr.mxu0 0.0
    %1550 = vmatpush1.msra.mxu0 %v1521
    %1551 = vmatprep.subr.mxu0 0.0
    %1552 = vmatpush1.msra.mxu0 %v1520
    %1553 = vmatprep.subr.mxu0 0.0
    %1554 = vmatpush1.msra.mxu0 %v1519
    %1555 = vmatprep.subr.mxu0 0.0
    %1556 = vmatpush1.msra.mxu0 %v1518
    %1557 = vmatprep.subr.mxu0 0.0
    %1558 = vmatpush1.msra.mxu0 %v1517
    %1559 = vmatprep.subr.mxu0 0.0
    %1560 = vmatpush1.msra.mxu0 %v1516
    %1561 = vmatprep.subr.mxu0 0.0
    %1562 = vmatpush1.msra.mxu0 %v1515
    %1563 = vmatprep.subr.mxu0 0.0
    %1564 = vmatpush1.msra.mxu0 %v1514
    %1565 = vmatprep.subr.mxu0 0.0
    %1566 = vmatpush1.msra.mxu0 %v1513
    %1567 = vmatprep.subr.mxu0 0.0
    %1568 = vmatpush1.msra.mxu0 %v1512
    %1569 = vmatprep.subr.mxu0 0.0
    %1570 = vmatpush1.msra.mxu0 %v1511
    %1571 = vmatprep.subr.mxu0 0.0
    %1572 = vmatpush1.msra.mxu0 %v1510
    %1573 = vmatprep.subr.mxu0 0.0
    %1574 = vmatpush1.msra.mxu0 %v1509
    %1575 = vmatprep.subr.mxu0 0.0
    %1576 = vmatpush1.msra.mxu0 %v1508
    %1577 = vmatprep.subr.mxu0 0.0
    %1578 = vmatpush1.msra.mxu0 %v1507
    %1579 = vmatprep.subr.mxu0 0.0
    %1580 = vmatpush2.msra.mxu0 0.0
    %1581 = vmatprep.subr.mxu0 0.0
    %1582 = vmatpush2.msra.mxu0 0.0
    %1583 = vmatprep.subr.mxu0 0.0
    %1584 = vmatpush2.msra.mxu0 0.0
    %1585 = vmatprep.subr.mxu0 0.0
    %1586 = vmatpush2.msra.mxu0 0.0
    %1587 = vmatprep.subr.mxu0 0.0
    %1588 = vmatpush2.msra.mxu0 0.0
    %1589 = vmatprep.subr.mxu0 0.0
    %1590 = vmatpush2.msra.mxu0 0.0
    %1591 = vmatprep.subr.mxu0 0.0
    %1592 = vmatpush2.msra.mxu0 0.0
    %1593 = vmatprep.subr.mxu0 0.0
    %1594 = vmatpush2.msra.mxu0 0.0
    %1595 = vmatprep.subr.mxu0 0.0
    %1596 = vmatpush2.msra.mxu0 0.0
    %1597 = vmatprep.subr.mxu0 0.0
    %1598 = vmatpush2.msra.mxu0 0.0
    %1599 = vmatprep.subr.mxu0 0.0
    %1600 = vmatpush2.msra.mxu0 0.0
    %1601 = vmatprep.subr.mxu0 0.0
    %1602 = vmatpush2.msra.mxu0 0.0
    %1603 = vmatprep.subr.mxu0 0.0
    %1604 = vmatpush2.msra.mxu0 0.0
    %1605 = vmatprep.subr.mxu0 0.0
    %1606 = vmatpush2.msra.mxu0 0.0
    %1607 = vmatprep.subr.mxu0 0.0
    %1608 = vmatpush2.msra.mxu0 0.0
    %1609 = vmatprep.subr.mxu0 0.0
    %1610 = vmatpush2.msra.mxu0 0.0
    %1611 = vmatprep.mubr.f32.mxu0 0.0
    %1612 = vmatmul.mubr.f32.gmra.mxu0 %v1506
    %v1613 = vpop.f32.mrf.mxu0
    %v1614 = vadd.f32 %v1545, %v1613
    %v1615 = vpop.f32.mrf.mxu0
    %1616 = vdwg.mxu0
    %v1617 = vmax.f32 %v1614, 0.0
    %v1619 = vlaneseq
    %v1620 = vshrl.u32 %v1619, 7
    %v1621 = vsub.s32 0, %v1620
    %v1622 = vrot.slane %v1540, %v1621
    %1624 = vmatprep.subr.mxu0 0.0
    %1625 = vmatpush1.msra.mxu0 %v1539
    %1626 = vmatprep.subr.mxu0 0.0
    %1627 = vmatpush1.msra.mxu0 %v1538
    %1628 = vmatprep.subr.mxu0 0.0
    %1629 = vmatpush1.msra.mxu0 %v1537
    %1630 = vmatprep.subr.mxu0 0.0
    %1631 = vmatpush1.msra.mxu0 %v1536
    %1632 = vmatprep.subr.mxu0 0.0
    %1633 = vmatpush1.msra.mxu0 %v1535
    %1634 = vmatprep.subr.mxu0 0.0
    %1635 = vmatpush1.msra.mxu0 %v1534
    %1636 = vmatprep.subr.mxu0 0.0
    %1637 = vmatpush1.msra.mxu0 %v1533
    %1638 = vmatprep.subr.mxu0 0.0
    %1639 = vmatpush1.msra.mxu0 %v1532
    %1640 = vmatprep.subr.mxu0 0.0
    %1641 = vmatpush1.msra.mxu0 %v1531
    %1642 = vmatprep.subr.mxu0 0.0
    %1643 = vmatpush1.msra.mxu0 %v1530
    %1644 = vmatprep.subr.mxu0 0.0
    %1645 = vmatpush1.msra.mxu0 %v1529
    %1646 = vmatprep.subr.mxu0 0.0
    %1647 = vmatpush1.msra.mxu0 %v1528
    %1648 = vmatprep.subr.mxu0 0.0
    %1649 = vmatpush1.msra.mxu0 %v1527
    %1650 = vmatprep.subr.mxu0 0.0
    %1651 = vmatpush1.msra.mxu0 %v1526
    %1652 = vmatprep.subr.mxu0 0.0
    %1653 = vmatpush1.msra.mxu0 %v1525
    %1654 = vmatprep.subr.mxu0 0.0
    %1655 = vmatpush1.msra.mxu0 %v1524
    %1656 = vmatprep.subr.mxu0 0.0
    %1657 = vmatpush2.msra.mxu0 0.0
    %1658 = vmatprep.subr.mxu0 0.0
    %1659 = vmatpush2.msra.mxu0 0.0
    %1660 = vmatprep.subr.mxu0 0.0
    %1661 = vmatpush2.msra.mxu0 0.0
    %1662 = vmatprep.subr.mxu0 0.0
    %1663 = vmatpush2.msra.mxu0 0.0
    %1664 = vmatprep.subr.mxu0 0.0
    %1665 = vmatpush2.msra.mxu0 0.0
    %1666 = vmatprep.subr.mxu0 0.0
    %1667 = vmatpush2.msra.mxu0 0.0
    %1668 = vmatprep.subr.mxu0 0.0
    %1669 = vmatpush2.msra.mxu0 0.0
    %1670 = vmatprep.subr.mxu0 0.0
    %1671 = vmatpush2.msra.mxu0 0.0
    %1672 = vmatprep.subr.mxu0 0.0
    %1673 = vmatpush2.msra.mxu0 0.0
    %1674 = vmatprep.subr.mxu0 0.0
    %1675 = vmatpush2.msra.mxu0 0.0
    %1676 = vmatprep.subr.mxu0 0.0
    %1677 = vmatpush2.msra.mxu0 0.0
    %1678 = vmatprep.subr.mxu0 0.0
    %1679 = vmatpush2.msra.mxu0 0.0
    %1680 = vmatprep.subr.mxu0 0.0
    %1681 = vmatpush2.msra.mxu0 0.0
    %1682 = vmatprep.subr.mxu0 0.0
    %1683 = vmatpush2.msra.mxu0 0.0
    %1684 = vmatprep.subr.mxu0 0.0
    %1685 = vmatpush2.msra.mxu0 0.0
    %1686 = vmatprep.subr.mxu0 0.0
    %1687 = vmatpush2.msra.mxu0 0.0
    %1688 = vmatprep.mubr.f32.mxu0 0.0
    %1689 = vmatmul.mubr.f32.gmra.mxu0 %v1617
    %v1690 = vpop.f32.mrf.mxu0
    %v1691 = vadd.f32 %v1622, %v1690
    %v1692 = vpop.f32.mrf.mxu0
    %1693 = vdwg.mxu0
    %v1694 = vld [vmem:[%s55] sm:$0x1]
    %v1695 = vld [vmem:[%s53] sm:$0x1]
    %v1696 = vadd.f32 %v1506, %v1691
    %v1697 = vmul.f32 %v1696, %v501
    %1698 = vadd.xlane.f32.xlu0 %v1697
    %v1699 = vpop.xlane.xlu0 %1698
    %v1700 = vmul.f32 %v1699, 0.03125
    %v1701 = vsub.f32 %v1696, %v1700
    %v1702 = vmul.f32 %v1701, %v501
    %v1703 = vmul.f32 %v1702, %v1702
    %1704 = vadd.xlane.f32.xlu0 %v1703
    %v1705 = vpop.xlane.xlu0 %1704
    %v1706 = vmul.f32 %v1705, 0.03125
    %v1707 = vadd.f32 %v1706, 1e-05
    %v1708 = vrsqrt.pop %v1707
    %v1709 = vmul.f32 %v1702, %v1708
    %v1711 = vlaneseq
    %v1712 = vshrl.u32 %v1711, 7
    %v1713 = vsub.s32 0, %v1712
    %v1714 = vrot.slane %v1694, %v1713
    %v1716 = vmul.f32 %v1709, %v1714
    %v1718 = vlaneseq
    %v1719 = vshrl.u32 %v1718, 7
    %v1720 = vsub.s32 0, %v1719
    %v1721 = vrot.slane %v1695, %v1720
    %v1723 = vadd.f32 %v1716, %v1721
    %s1724 = scalar_lea.vmem [#allocation37], 384
    %v1725 = vld [vmem:[%s1724] sm:$0xff]
    %v1726 = vld [vmem:[%s1724 + $0x8] sm:$0xff]
    %v1727 = vld [vmem:[%s1724 + $0x10] sm:$0xff]
    %v1728 = vld [vmem:[%s1724 + $0x18] sm:$0xff]
    %v1729 = vld [vmem:[%s1724 + $0x20] sm:$0xff]
    %v1730 = vld [vmem:[%s1724 + $0x28] sm:$0xff]
    %v1731 = vld [vmem:[%s1724 + $0x30] sm:$0xff]
    %v1732 = vld [vmem:[%s1724 + $0x38] sm:$0xff]
    %v1733 = vld [vmem:[%s1724 + $0x40] sm:$0xff]
    %v1734 = vld [vmem:[%s1724 + $0x48] sm:$0xff]
    %v1735 = vld [vmem:[%s1724 + $0x50] sm:$0xff]
    %v1736 = vld [vmem:[%s1724 + $0x58] sm:$0xff]
    %v1737 = vld [vmem:[%s1724 + $0x60] sm:$0xff]
    %v1738 = vld [vmem:[%s1724 + $0x68] sm:$0xff]
    %v1739 = vld [vmem:[%s1724 + $0x70] sm:$0xff]
    %v1740 = vld [vmem:[%s1724 + $0x78] sm:$0xff]
    %v1741 = vld [vmem:[%s1724 + $0x80] sm:$0xff]
    %v1742 = vld [vmem:[%s1724 + $0x88] sm:$0xff]
    %v1743 = vld [vmem:[%s1724 + $0x90] sm:$0xff]
    %v1744 = vld [vmem:[%s1724 + $0x98] sm:$0xff]
    %v1745 = vld [vmem:[%s1724 + $0xa0] sm:$0xff]
    %v1746 = vld [vmem:[%s1724 + $0xa8] sm:$0xff]
    %v1747 = vld [vmem:[%s1724 + $0xb0] sm:$0xff]
    %v1748 = vld [vmem:[%s1724 + $0xb8] sm:$0xff]
    %v1749 = vld [vmem:[%s1724 + $0xc0] sm:$0xff]
    %v1750 = vld [vmem:[%s1724 + $0xc8] sm:$0xff]
    %v1751 = vld [vmem:[%s1724 + $0xd0] sm:$0xff]
    %v1752 = vld [vmem:[%s1724 + $0xd8] sm:$0xff]
    %v1753 = vld [vmem:[%s1724 + $0xe0] sm:$0xff]
    %v1754 = vld [vmem:[%s1724 + $0xe8] sm:$0xff]
    %v1755 = vld [vmem:[%s1724 + $0xf0] sm:$0xff]
    %v1756 = vld [vmem:[%s1724 + $0xf8] sm:$0xff]
    %v1757 = vld [vmem:[%s1724 + $0x100] sm:$0xff]
    %v1758 = vld [vmem:[%s1724 + $0x108] sm:$0xff]
    %v1759 = vld [vmem:[%s1724 + $0x110] sm:$0xff]
    %v1760 = vld [vmem:[%s1724 + $0x118] sm:$0xff]
    %v1761 = vld [vmem:[%s1724 + $0x120] sm:$0xff]
    %v1762 = vld [vmem:[%s1724 + $0x128] sm:$0xff]
    %v1763 = vld [vmem:[%s1724 + $0x130] sm:$0xff]
    %v1764 = vld [vmem:[%s1724 + $0x138] sm:$0xff]
    %v1765 = vld [vmem:[%s1724 + $0x140] sm:$0xff]
    %v1766 = vld [vmem:[%s1724 + $0x148] sm:$0xff]
    %v1767 = vld [vmem:[%s1724 + $0x150] sm:$0xff]
    %v1768 = vld [vmem:[%s1724 + $0x158] sm:$0xff]
    %v1769 = vld [vmem:[%s1724 + $0x160] sm:$0xff]
    %v1770 = vld [vmem:[%s1724 + $0x168] sm:$0xff]
    %v1771 = vld [vmem:[%s1724 + $0x170] sm:$0xff]
    %v1772 = vld [vmem:[%s1724 + $0x178] sm:$0xff]
    %s1773 = scalar_lea.vmem %s45, 3
    %v1774 = vld [vmem:[%s1773] sm:$0x7]
    %v1776 = vlaneseq
    %v1777 = vshrl.u32 %v1776, 7
    %v1778 = vsub.s32 0, %v1777
    %v1779 = vrot.slane %v1774, %v1778
    %v1780 = vlaneseq
    %v1781 = vshrl.u32 %v1780, 7
    %v1782 = vsub.s32 1, %v1781
    %v1783 = vrot.slane %v1774, %v1782
    %v1784 = vlaneseq
    %v1785 = vshrl.u32 %v1784, 7
    %v1786 = vsub.s32 2, %v1785
    %v1787 = vrot.slane %v1774, %v1786
    %1791 = vmatprep.subr.mxu0 %v1771
    %1792 = vmatpush1.msra.mxu0 %v1770
    %1793 = vmatprep.subr.mxu0 %v1768
    %1794 = vmatpush1.msra.mxu0 %v1767
    %1795 = vmatprep.subr.mxu0 %v1765
    %1796 = vmatpush1.msra.mxu0 %v1764
    %1797 = vmatprep.subr.mxu0 %v1762
    %1798 = vmatpush1.msra.mxu0 %v1761
    %1799 = vmatprep.subr.mxu0 %v1759
    %1800 = vmatpush1.msra.mxu0 %v1758
    %1801 = vmatprep.subr.mxu0 %v1756
    %1802 = vmatpush1.msra.mxu0 %v1755
    %1803 = vmatprep.subr.mxu0 %v1753
    %1804 = vmatpush1.msra.mxu0 %v1752
    %1805 = vmatprep.subr.mxu0 %v1750
    %1806 = vmatpush1.msra.mxu0 %v1749
    %1807 = vmatprep.subr.mxu0 %v1747
    %1808 = vmatpush1.msra.mxu0 %v1746
    %1809 = vmatprep.subr.mxu0 %v1744
    %1810 = vmatpush1.msra.mxu0 %v1743
    %1811 = vmatprep.subr.mxu0 %v1741
    %1812 = vmatpush1.msra.mxu0 %v1740
    %1813 = vmatprep.subr.mxu0 %v1738
    %1814 = vmatpush1.msra.mxu0 %v1737
    %1815 = vmatprep.subr.mxu0 %v1735
    %1816 = vmatpush1.msra.mxu0 %v1734
    %1817 = vmatprep.subr.mxu0 %v1732
    %1818 = vmatpush1.msra.mxu0 %v1731
    %1819 = vmatprep.subr.mxu0 %v1729
    %1820 = vmatpush1.msra.mxu0 %v1728
    %1821 = vmatprep.subr.mxu0 %v1726
    %1822 = vmatpush1.msra.mxu0 %v1725
    %1823 = vmatprep.subr.mxu0 0.0
    %1824 = vmatpush2.msra.mxu0 0.0
    %1825 = vmatprep.subr.mxu0 0.0
    %1826 = vmatpush2.msra.mxu0 0.0
    %1827 = vmatprep.subr.mxu0 0.0
    %1828 = vmatpush2.msra.mxu0 0.0
    %1829 = vmatprep.subr.mxu0 0.0
    %1830 = vmatpush2.msra.mxu0 0.0
    %1831 = vmatprep.subr.mxu0 0.0
    %1832 = vmatpush2.msra.mxu0 0.0
    %1833 = vmatprep.subr.mxu0 0.0
    %1834 = vmatpush2.msra.mxu0 0.0
    %1835 = vmatprep.subr.mxu0 0.0
    %1836 = vmatpush2.msra.mxu0 0.0
    %1837 = vmatprep.subr.mxu0 0.0
    %1838 = vmatpush2.msra.mxu0 0.0
    %1839 = vmatprep.subr.mxu0 0.0
    %1840 = vmatpush2.msra.mxu0 0.0
    %1841 = vmatprep.subr.mxu0 0.0
    %1842 = vmatpush2.msra.mxu0 0.0
    %1843 = vmatprep.subr.mxu0 0.0
    %1844 = vmatpush2.msra.mxu0 0.0
    %1845 = vmatprep.subr.mxu0 0.0
    %1846 = vmatpush2.msra.mxu0 0.0
    %1847 = vmatprep.subr.mxu0 0.0
    %1848 = vmatpush2.msra.mxu0 0.0
    %1849 = vmatprep.subr.mxu0 0.0
    %1850 = vmatpush2.msra.mxu0 0.0
    %1851 = vmatprep.subr.mxu0 0.0
    %1852 = vmatpush2.msra.mxu0 0.0
    %1853 = vmatprep.subr.mxu0 0.0
    %1854 = vmatpush2.msra.mxu0 0.0
    %1855 = vmatprep.mubr.f32.mxu0 0.0
    %1856 = vmatmul.mubr.f32.gmra.mxu0 %v1723
    %v1857 = vpop.f32.mrf.mxu0
    %v1858 = vadd.f32 %v1779, %v1857
    %v1859 = vpop.f32.mrf.mxu0
    %v1860 = vadd.f32 %v1783, %v1859
    %1861 = vdwg.mxu0
    %1862 = vmatprep.subr.mxu0 0.0
    %1863 = vmatpush1.msra.mxu0 %v1772
    %1864 = vmatprep.subr.mxu0 0.0
    %1865 = vmatpush1.msra.mxu0 %v1769
    %1866 = vmatprep.subr.mxu0 0.0
    %1867 = vmatpush1.msra.mxu0 %v1766
    %1868 = vmatprep.subr.mxu0 0.0
    %1869 = vmatpush1.msra.mxu0 %v1763
    %1870 = vmatprep.subr.mxu0 0.0
    %1871 = vmatpush1.msra.mxu0 %v1760
    %1872 = vmatprep.subr.mxu0 0.0
    %1873 = vmatpush1.msra.mxu0 %v1757
    %1874 = vmatprep.subr.mxu0 0.0
    %1875 = vmatpush1.msra.mxu0 %v1754
    %1876 = vmatprep.subr.mxu0 0.0
    %1877 = vmatpush1.msra.mxu0 %v1751
    %1878 = vmatprep.subr.mxu0 0.0
    %1879 = vmatpush1.msra.mxu0 %v1748
    %1880 = vmatprep.subr.mxu0 0.0
    %1881 = vmatpush1.msra.mxu0 %v1745
    %1882 = vmatprep.subr.mxu0 0.0
    %1883 = vmatpush1.msra.mxu0 %v1742
    %1884 = vmatprep.subr.mxu0 0.0
    %1885 = vmatpush1.msra.mxu0 %v1739
    %1886 = vmatprep.subr.mxu0 0.0
    %1887 = vmatpush1.msra.mxu0 %v1736
    %1888 = vmatprep.subr.mxu0 0.0
    %1889 = vmatpush1.msra.mxu0 %v1733
    %1890 = vmatprep.subr.mxu0 0.0
    %1891 = vmatpush1.msra.mxu0 %v1730
    %1892 = vmatprep.subr.mxu0 0.0
    %1893 = vmatpush1.msra.mxu0 %v1727
    %1894 = vmatprep.subr.mxu0 0.0
    %1895 = vmatpush2.msra.mxu0 0.0
    %1896 = vmatprep.subr.mxu0 0.0
    %1897 = vmatpush2.msra.mxu0 0.0
    %1898 = vmatprep.subr.mxu0 0.0
    %1899 = vmatpush2.msra.mxu0 0.0
    %1900 = vmatprep.subr.mxu0 0.0
    %1901 = vmatpush2.msra.mxu0 0.0
    %1902 = vmatprep.subr.mxu0 0.0
    %1903 = vmatpush2.msra.mxu0 0.0
    %1904 = vmatprep.subr.mxu0 0.0
    %1905 = vmatpush2.msra.mxu0 0.0
    %1906 = vmatprep.subr.mxu0 0.0
    %1907 = vmatpush2.msra.mxu0 0.0
    %1908 = vmatprep.subr.mxu0 0.0
    %1909 = vmatpush2.msra.mxu0 0.0
    %1910 = vmatprep.subr.mxu0 0.0
    %1911 = vmatpush2.msra.mxu0 0.0
    %1912 = vmatprep.subr.mxu0 0.0
    %1913 = vmatpush2.msra.mxu0 0.0
    %1914 = vmatprep.subr.mxu0 0.0
    %1915 = vmatpush2.msra.mxu0 0.0
    %1916 = vmatprep.subr.mxu0 0.0
    %1917 = vmatpush2.msra.mxu0 0.0
    %1918 = vmatprep.subr.mxu0 0.0
    %1919 = vmatpush2.msra.mxu0 0.0
    %1920 = vmatprep.subr.mxu0 0.0
    %1921 = vmatpush2.msra.mxu0 0.0
    %1922 = vmatprep.subr.mxu0 0.0
    %1923 = vmatpush2.msra.mxu0 0.0
    %1924 = vmatprep.subr.mxu0 0.0
    %1925 = vmatpush2.msra.mxu0 0.0
    %1926 = vmatprep.mubr.f32.mxu0 0.0
    %1927 = vmatmul.mubr.f32.gmra.mxu0 %v1723
    %v1928 = vpop.f32.mrf.mxu0
    %v1929 = vadd.f32 %v1787, %v1928
    %v1930 = vpop.f32.mrf.mxu0
    %1931 = vdwg.mxu0
    %s1932 = scalar_lea.vmem [#allocation38], 128
    %v1933 = vld [vmem:[%s1932] sm:$0xff]
    %v1934 = vld [vmem:[%s1932 + $0x8] sm:$0xff]
    %v1935 = vld [vmem:[%s1932 + $0x10] sm:$0xff]
    %v1936 = vld [vmem:[%s1932 + $0x18] sm:$0xff]
    %v1937 = vld [vmem:[%s1932 + $0x20] sm:$0xff]
    %v1938 = vld [vmem:[%s1932 + $0x28] sm:$0xff]
    %v1939 = vld [vmem:[%s1932 + $0x30] sm:$0xff]
    %v1940 = vld [vmem:[%s1932 + $0x38] sm:$0xff]
    %v1941 = vld [vmem:[%s1932 + $0x40] sm:$0xff]
    %v1942 = vld [vmem:[%s1932 + $0x48] sm:$0xff]
    %v1943 = vld [vmem:[%s1932 + $0x50] sm:$0xff]
    %v1944 = vld [vmem:[%s1932 + $0x58] sm:$0xff]
    %v1945 = vld [vmem:[%s1932 + $0x60] sm:$0xff]
    %v1946 = vld [vmem:[%s1932 + $0x68] sm:$0xff]
    %v1947 = vld [vmem:[%s1932 + $0x70] sm:$0xff]
    %v1948 = vld [vmem:[%s1932 + $0x78] sm:$0xff]
    %s1949 = scalar_lea.vmem %s47, 1
    %v1950 = vld [vmem:[%s1949] sm:$0x1]
    %v1951 = vmul.f32 %v1858, %v751
    %1952 = vmatprep.subr.mxu0 0.0
    %1953 = vmatpush1.xpose.msra.mxu0 0.0
    %1954 = vmatprep.subr.mxu0 0.0
    %1955 = vmatpush1.xpose.msra.mxu0 0.0
    %1956 = vmatprep.subr.mxu0 0.0
    %1957 = vmatpush1.xpose.msra.mxu0 0.0
    %1958 = vmatprep.subr.mxu0 0.0
    %1959 = vmatpush1.xpose.msra.mxu0 0.0
    %1960 = vmatprep.subr.mxu0 0.0
    %1961 = vmatpush1.xpose.msra.mxu0 0.0
    %1962 = vmatprep.subr.mxu0 0.0
    %1963 = vmatpush1.xpose.msra.mxu0 0.0
    %1964 = vmatprep.subr.mxu0 0.0
    %1965 = vmatpush1.xpose.msra.mxu0 0.0
    %1966 = vmatprep.subr.mxu0 0.0
    %1967 = vmatpush1.xpose.msra.mxu0 0.0
    %1968 = vmatprep.subr.mxu0 0.0
    %1969 = vmatpush1.xpose.msra.mxu0 0.0
    %1970 = vmatprep.subr.mxu0 0.0
    %1971 = vmatpush1.xpose.msra.mxu0 0.0
    %1972 = vmatprep.subr.mxu0 0.0
    %1973 = vmatpush1.xpose.msra.mxu0 0.0
    %1974 = vmatprep.subr.mxu0 0.0
    %1975 = vmatpush1.xpose.msra.mxu0 0.0
    %1976 = vmatprep.subr.mxu0 0.0
    %1977 = vmatpush1.xpose.msra.mxu0 0.0
    %1978 = vmatprep.subr.mxu0 0.0
    %1979 = vmatpush1.xpose.msra.mxu0 0.0
    %1980 = vmatprep.subr.mxu0 0.0
    %1981 = vmatpush1.xpose.msra.mxu0 0.0
    %1982 = vmatprep.subr.mxu0 0.0
    %1983 = vmatpush1.xpose.msra.mxu0 %v1860
    %1984 = vmatprep.subr.mxu0 0.0
    %1985 = vmatpush2.xpose.msra.mxu0 0.0
    %1986 = vmatprep.subr.mxu0 0.0
    %1987 = vmatpush2.xpose.msra.mxu0 0.0
    %1988 = vmatprep.subr.mxu0 0.0
    %1989 = vmatpush2.xpose.msra.mxu0 0.0
    %1990 = vmatprep.subr.mxu0 0.0
    %1991 = vmatpush2.xpose.msra.mxu0 0.0
    %1992 = vmatprep.subr.mxu0 0.0
    %1993 = vmatpush2.xpose.msra.mxu0 0.0
    %1994 = vmatprep.subr.mxu0 0.0
    %1995 = vmatpush2.xpose.msra.mxu0 0.0
    %1996 = vmatprep.subr.mxu0 0.0
    %1997 = vmatpush2.xpose.msra.mxu0 0.0
    %1998 = vmatprep.subr.mxu0 0.0
    %1999 = vmatpush2.xpose.msra.mxu0 0.0
    %2000 = vmatprep.subr.mxu0 0.0
    %2001 = vmatpush2.xpose.msra.mxu0 0.0
    %2002 = vmatprep.subr.mxu0 0.0
    %2003 = vmatpush2.xpose.msra.mxu0 0.0
    %2004 = vmatprep.subr.mxu0 0.0
    %2005 = vmatpush2.xpose.msra.mxu0 0.0
    %2006 = vmatprep.subr.mxu0 0.0
    %2007 = vmatpush2.xpose.msra.mxu0 0.0
    %2008 = vmatprep.subr.mxu0 0.0
    %2009 = vmatpush2.xpose.msra.mxu0 0.0
    %2010 = vmatprep.subr.mxu0 0.0
    %2011 = vmatpush2.xpose.msra.mxu0 0.0
    %2012 = vmatprep.subr.mxu0 0.0
    %2013 = vmatpush2.xpose.msra.mxu0 0.0
    %2014 = vmatprep.subr.mxu0 0.0
    %2015 = vmatpush2.xpose.msra.mxu0 0.0
    %2016 = vmatprep.mubr.f32.mxu0 0.0
    %2017 = vmatmul.mubr.f32.gmra.mxu0 %v1951
    %v2018 = vpop.f32.mrf.mxu0
    %v2019 = vadd.f32 0.0, %v2018
    %v2020 = vpop.f32.mrf.mxu0
    %2021 = vdwg.mxu0
    %v2022 = vmul.f32 %v2019, 0.35355338
    %v2023 = vsel %vm513, %v2022, -1e+09
    %v2024 = vsel %vm825, %v2023, -inf
    %2025 = vmax.xlane.f32.xlu0 %v2024
    %v2026 = vpop.xlane.xlu0 %2025
    %v2027 = vsub.f32 %v2023, %v2026
    %v2028 = vmul.f32 %v2027, 1.442695
    %v2029 = vpow.pop %v2028
    %v2030 = vsel %vm825, %v2029, 0.0
    %2031 = vadd.xlane.f32.xlu0 %v2030
    %v2032 = vpop.xlane.xlu0 %2031
    %v2033 = vrcp.pop %v2032
    %v2034 = vmul.f32 %v2029, %v2033
    %v2035 = vmul.f32 %v1929, %v751
    %v2036 = vmul.f32 %v1858, %v842
    %2037 = vmatprep.subr.mxu0 0.0
    %2038 = vmatpush1.xpose.msra.mxu0 0.0
    %2039 = vmatprep.subr.mxu0 0.0
    %2040 = vmatpush1.xpose.msra.mxu0 0.0
    %2041 = vmatprep.subr.mxu0 0.0
    %2042 = vmatpush1.xpose.msra.mxu0 0.0
    %2043 = vmatprep.subr.mxu0 0.0
    %2044 = vmatpush1.xpose.msra.mxu0 0.0
    %2045 = vmatprep.subr.mxu0 0.0
    %2046 = vmatpush1.xpose.msra.mxu0 0.0
    %2047 = vmatprep.subr.mxu0 0.0
    %2048 = vmatpush1.xpose.msra.mxu0 0.0
    %2049 = vmatprep.subr.mxu0 0.0
    %2050 = vmatpush1.xpose.msra.mxu0 0.0
    %2051 = vmatprep.subr.mxu0 0.0
    %2052 = vmatpush1.xpose.msra.mxu0 0.0
    %2053 = vmatprep.subr.mxu0 0.0
    %2054 = vmatpush1.xpose.msra.mxu0 0.0
    %2055 = vmatprep.subr.mxu0 0.0
    %2056 = vmatpush1.xpose.msra.mxu0 0.0
    %2057 = vmatprep.subr.mxu0 0.0
    %2058 = vmatpush1.xpose.msra.mxu0 0.0
    %2059 = vmatprep.subr.mxu0 0.0
    %2060 = vmatpush1.xpose.msra.mxu0 0.0
    %2061 = vmatprep.subr.mxu0 0.0
    %2062 = vmatpush1.xpose.msra.mxu0 0.0
    %2063 = vmatprep.subr.mxu0 0.0
    %2064 = vmatpush1.xpose.msra.mxu0 0.0
    %2065 = vmatprep.subr.mxu0 0.0
    %2066 = vmatpush1.xpose.msra.mxu0 0.0
    %2067 = vmatprep.subr.mxu0 0.0
    %2068 = vmatpush1.xpose.msra.mxu0 %v1860
    %2069 = vmatprep.subr.mxu0 0.0
    %2070 = vmatpush2.xpose.msra.mxu0 0.0
    %2071 = vmatprep.subr.mxu0 0.0
    %2072 = vmatpush2.xpose.msra.mxu0 0.0
    %2073 = vmatprep.subr.mxu0 0.0
    %2074 = vmatpush2.xpose.msra.mxu0 0.0
    %2075 = vmatprep.subr.mxu0 0.0
    %2076 = vmatpush2.xpose.msra.mxu0 0.0
    %2077 = vmatprep.subr.mxu0 0.0
    %2078 = vmatpush2.xpose.msra.mxu0 0.0
    %2079 = vmatprep.subr.mxu0 0.0
    %2080 = vmatpush2.xpose.msra.mxu0 0.0
    %2081 = vmatprep.subr.mxu0 0.0
    %2082 = vmatpush2.xpose.msra.mxu0 0.0
    %2083 = vmatprep.subr.mxu0 0.0
    %2084 = vmatpush2.xpose.msra.mxu0 0.0
    %2085 = vmatprep.subr.mxu0 0.0
    %2086 = vmatpush2.xpose.msra.mxu0 0.0
    %2087 = vmatprep.subr.mxu0 0.0
    %2088 = vmatpush2.xpose.msra.mxu0 0.0
    %2089 = vmatprep.subr.mxu0 0.0
    %2090 = vmatpush2.xpose.msra.mxu0 0.0
    %2091 = vmatprep.subr.mxu0 0.0
    %2092 = vmatpush2.xpose.msra.mxu0 0.0
    %2093 = vmatprep.subr.mxu0 0.0
    %2094 = vmatpush2.xpose.msra.mxu0 0.0
    %2095 = vmatprep.subr.mxu0 0.0
    %2096 = vmatpush2.xpose.msra.mxu0 0.0
    %2097 = vmatprep.subr.mxu0 0.0
    %2098 = vmatpush2.xpose.msra.mxu0 0.0
    %2099 = vmatprep.subr.mxu0 0.0
    %2100 = vmatpush2.xpose.msra.mxu0 0.0
    %2101 = vmatprep.mubr.f32.mxu0 0.0
    %2102 = vmatmul.mubr.f32.gmra.mxu0 %v2036
    %v2103 = vpop.f32.mrf.mxu0
    %v2104 = vadd.f32 0.0, %v2103
    %v2105 = vpop.f32.mrf.mxu0
    %2106 = vdwg.mxu0
    %v2107 = vmul.f32 %v2104, 0.35355338
    %v2108 = vsel %vm513, %v2107, -1e+09
    %v2109 = vsel %vm825, %v2108, -inf
    %2110 = vmax.xlane.f32.xlu0 %v2109
    %v2111 = vpop.xlane.xlu0 %2110
    %v2112 = vsub.f32 %v2108, %v2111
    %v2113 = vmul.f32 %v2112, 1.442695
    %v2114 = vpow.pop %v2113
    %v2115 = vsel %vm825, %v2114, 0.0
    %2116 = vadd.xlane.f32.xlu0 %v2115
    %v2117 = vpop.xlane.xlu0 %2116
    %v2118 = vrcp.pop %v2117
    %v2119 = vmul.f32 %v2114, %v2118
    %v2120 = vmul.f32 %v1929, %v842
    %v2122 = vsel %vm825, %v2119, 0
    %2124 = vmatprep.subr.mxu0 0.0
    %2125 = vmatpush1.msra.mxu0 0.0
    %2126 = vmatprep.subr.mxu0 0.0
    %2127 = vmatpush1.msra.mxu0 0.0
    %2128 = vmatprep.subr.mxu0 0.0
    %2129 = vmatpush1.msra.mxu0 0.0
    %2130 = vmatprep.subr.mxu0 0.0
    %2131 = vmatpush1.msra.mxu0 0.0
    %2132 = vmatprep.subr.mxu0 0.0
    %2133 = vmatpush1.msra.mxu0 0.0
    %2134 = vmatprep.subr.mxu0 0.0
    %2135 = vmatpush1.msra.mxu0 0.0
    %2136 = vmatprep.subr.mxu0 0.0
    %2137 = vmatpush1.msra.mxu0 0.0
    %2138 = vmatprep.subr.mxu0 0.0
    %2139 = vmatpush1.msra.mxu0 0.0
    %2140 = vmatprep.subr.mxu0 0.0
    %2141 = vmatpush1.msra.mxu0 0.0
    %2142 = vmatprep.subr.mxu0 0.0
    %2143 = vmatpush1.msra.mxu0 0.0
    %2144 = vmatprep.subr.mxu0 0.0
    %2145 = vmatpush1.msra.mxu0 0.0
    %2146 = vmatprep.subr.mxu0 0.0
    %2147 = vmatpush1.msra.mxu0 0.0
    %2148 = vmatprep.subr.mxu0 0.0
    %2149 = vmatpush1.msra.mxu0 0.0
    %2150 = vmatprep.subr.mxu0 0.0
    %2151 = vmatpush1.msra.mxu0 0.0
    %2152 = vmatprep.subr.mxu0 0.0
    %2153 = vmatpush1.msra.mxu0 0.0
    %2154 = vmatprep.subr.mxu0 0.0
    %2155 = vmatpush1.msra.mxu0 %v2120
    %2156 = vmatprep.subr.mxu0 0.0
    %2157 = vmatpush2.msra.mxu0 0.0
    %2158 = vmatprep.subr.mxu0 0.0
    %2159 = vmatpush2.msra.mxu0 0.0
    %2160 = vmatprep.subr.mxu0 0.0
    %2161 = vmatpush2.msra.mxu0 0.0
    %2162 = vmatprep.subr.mxu0 0.0
    %2163 = vmatpush2.msra.mxu0 0.0
    %2164 = vmatprep.subr.mxu0 0.0
    %2165 = vmatpush2.msra.mxu0 0.0
    %2166 = vmatprep.subr.mxu0 0.0
    %2167 = vmatpush2.msra.mxu0 0.0
    %2168 = vmatprep.subr.mxu0 0.0
    %2169 = vmatpush2.msra.mxu0 0.0
    %2170 = vmatprep.subr.mxu0 0.0
    %2171 = vmatpush2.msra.mxu0 0.0
    %2172 = vmatprep.subr.mxu0 0.0
    %2173 = vmatpush2.msra.mxu0 0.0
    %2174 = vmatprep.subr.mxu0 0.0
    %2175 = vmatpush2.msra.mxu0 0.0
    %2176 = vmatprep.subr.mxu0 0.0
    %2177 = vmatpush2.msra.mxu0 0.0
    %2178 = vmatprep.subr.mxu0 0.0
    %2179 = vmatpush2.msra.mxu0 0.0
    %2180 = vmatprep.subr.mxu0 0.0
    %2181 = vmatpush2.msra.mxu0 0.0
    %2182 = vmatprep.subr.mxu0 0.0
    %2183 = vmatpush2.msra.mxu0 0.0
    %2184 = vmatprep.subr.mxu0 0.0
    %2185 = vmatpush2.msra.mxu0 0.0
    %2186 = vmatprep.subr.mxu0 0.0
    %2187 = vmatpush2.msra.mxu0 0.0
    %2188 = vmatprep.mubr.f32.mxu0 0.0
    %2189 = vmatmul.mubr.f32.gmra.mxu0 %v2122
    %v2190 = vpop.f32.mrf.mxu0
    %v2191 = vadd.f32 0.0, %v2190
    %v2192 = vpop.f32.mrf.mxu0
    %2193 = vdwg.mxu0
    %v2195 = vsel %vm825, %v2034, 0
    %2197 = vmatprep.subr.mxu0 0.0
    %2198 = vmatpush1.msra.mxu0 0.0
    %2199 = vmatprep.subr.mxu0 0.0
    %2200 = vmatpush1.msra.mxu0 0.0
    %2201 = vmatprep.subr.mxu0 0.0
    %2202 = vmatpush1.msra.mxu0 0.0
    %2203 = vmatprep.subr.mxu0 0.0
    %2204 = vmatpush1.msra.mxu0 0.0
    %2205 = vmatprep.subr.mxu0 0.0
    %2206 = vmatpush1.msra.mxu0 0.0
    %2207 = vmatprep.subr.mxu0 0.0
    %2208 = vmatpush1.msra.mxu0 0.0
    %2209 = vmatprep.subr.mxu0 0.0
    %2210 = vmatpush1.msra.mxu0 0.0
    %2211 = vmatprep.subr.mxu0 0.0
    %2212 = vmatpush1.msra.mxu0 0.0
    %2213 = vmatprep.subr.mxu0 0.0
    %2214 = vmatpush1.msra.mxu0 0.0
    %2215 = vmatprep.subr.mxu0 0.0
    %2216 = vmatpush1.msra.mxu0 0.0
    %2217 = vmatprep.subr.mxu0 0.0
    %2218 = vmatpush1.msra.mxu0 0.0
    %2219 = vmatprep.subr.mxu0 0.0
    %2220 = vmatpush1.msra.mxu0 0.0
    %2221 = vmatprep.subr.mxu0 0.0
    %2222 = vmatpush1.msra.mxu0 0.0
    %2223 = vmatprep.subr.mxu0 0.0
    %2224 = vmatpush1.msra.mxu0 0.0
    %2225 = vmatprep.subr.mxu0 0.0
    %2226 = vmatpush1.msra.mxu0 0.0
    %2227 = vmatprep.subr.mxu0 0.0
    %2228 = vmatpush1.msra.mxu0 %v2035
    %2229 = vmatprep.subr.mxu0 0.0
    %2230 = vmatpush2.msra.mxu0 0.0
    %2231 = vmatprep.subr.mxu0 0.0
    %2232 = vmatpush2.msra.mxu0 0.0
    %2233 = vmatprep.subr.mxu0 0.0
    %2234 = vmatpush2.msra.mxu0 0.0
    %2235 = vmatprep.subr.mxu0 0.0
    %2236 = vmatpush2.msra.mxu0 0.0
    %2237 = vmatprep.subr.mxu0 0.0
    %2238 = vmatpush2.msra.mxu0 0.0
    %2239 = vmatprep.subr.mxu0 0.0
    %2240 = vmatpush2.msra.mxu0 0.0
    %2241 = vmatprep.subr.mxu0 0.0
    %2242 = vmatpush2.msra.mxu0 0.0
    %2243 = vmatprep.subr.mxu0 0.0
    %2244 = vmatpush2.msra.mxu0 0.0
    %2245 = vmatprep.subr.mxu0 0.0
    %2246 = vmatpush2.msra.mxu0 0.0
    %2247 = vmatprep.subr.mxu0 0.0
    %2248 = vmatpush2.msra.mxu0 0.0
    %2249 = vmatprep.subr.mxu0 0.0
    %2250 = vmatpush2.msra.mxu0 0.0
    %2251 = vmatprep.subr.mxu0 0.0
    %2252 = vmatpush2.msra.mxu0 0.0
    %2253 = vmatprep.subr.mxu0 0.0
    %2254 = vmatpush2.msra.mxu0 0.0
    %2255 = vmatprep.subr.mxu0 0.0
    %2256 = vmatpush2.msra.mxu0 0.0
    %2257 = vmatprep.subr.mxu0 0.0
    %2258 = vmatpush2.msra.mxu0 0.0
    %2259 = vmatprep.subr.mxu0 0.0
    %2260 = vmatpush2.msra.mxu0 0.0
    %2261 = vmatprep.mubr.f32.mxu0 0.0
    %2262 = vmatmul.mubr.f32.gmra.mxu0 %v2195
    %v2263 = vpop.f32.mrf.mxu0
    %v2264 = vadd.f32 %v2191, %v2263
    %v2265 = vpop.f32.mrf.mxu0
    %2266 = vdwg.mxu0
    %v2267 = vmul.f32 %v1858, %v1078
    %2268 = vmatprep.subr.mxu0 0.0
    %2269 = vmatpush1.xpose.msra.mxu0 0.0
    %2270 = vmatprep.subr.mxu0 0.0
    %2271 = vmatpush1.xpose.msra.mxu0 0.0
    %2272 = vmatprep.subr.mxu0 0.0
    %2273 = vmatpush1.xpose.msra.mxu0 0.0
    %2274 = vmatprep.subr.mxu0 0.0
    %2275 = vmatpush1.xpose.msra.mxu0 0.0
    %2276 = vmatprep.subr.mxu0 0.0
    %2277 = vmatpush1.xpose.msra.mxu0 0.0
    %2278 = vmatprep.subr.mxu0 0.0
    %2279 = vmatpush1.xpose.msra.mxu0 0.0
    %2280 = vmatprep.subr.mxu0 0.0
    %2281 = vmatpush1.xpose.msra.mxu0 0.0
    %2282 = vmatprep.subr.mxu0 0.0
    %2283 = vmatpush1.xpose.msra.mxu0 0.0
    %2284 = vmatprep.subr.mxu0 0.0
    %2285 = vmatpush1.xpose.msra.mxu0 0.0
    %2286 = vmatprep.subr.mxu0 0.0
    %2287 = vmatpush1.xpose.msra.mxu0 0.0
    %2288 = vmatprep.subr.mxu0 0.0
    %2289 = vmatpush1.xpose.msra.mxu0 0.0
    %2290 = vmatprep.subr.mxu0 0.0
    %2291 = vmatpush1.xpose.msra.mxu0 0.0
    %2292 = vmatprep.subr.mxu0 0.0
    %2293 = vmatpush1.xpose.msra.mxu0 0.0
    %2294 = vmatprep.subr.mxu0 0.0
    %2295 = vmatpush1.xpose.msra.mxu0 0.0
    %2296 = vmatprep.subr.mxu0 0.0
    %2297 = vmatpush1.xpose.msra.mxu0 0.0
    %2298 = vmatprep.subr.mxu0 0.0
    %2299 = vmatpush1.xpose.msra.mxu0 %v1860
    %2300 = vmatprep.subr.mxu0 0.0
    %2301 = vmatpush2.xpose.msra.mxu0 0.0
    %2302 = vmatprep.subr.mxu0 0.0
    %2303 = vmatpush2.xpose.msra.mxu0 0.0
    %2304 = vmatprep.subr.mxu0 0.0
    %2305 = vmatpush2.xpose.msra.mxu0 0.0
    %2306 = vmatprep.subr.mxu0 0.0
    %2307 = vmatpush2.xpose.msra.mxu0 0.0
    %2308 = vmatprep.subr.mxu0 0.0
    %2309 = vmatpush2.xpose.msra.mxu0 0.0
    %2310 = vmatprep.subr.mxu0 0.0
    %2311 = vmatpush2.xpose.msra.mxu0 0.0
    %2312 = vmatprep.subr.mxu0 0.0
    %2313 = vmatpush2.xpose.msra.mxu0 0.0
    %2314 = vmatprep.subr.mxu0 0.0
    %2315 = vmatpush2.xpose.msra.mxu0 0.0
    %2316 = vmatprep.subr.mxu0 0.0
    %2317 = vmatpush2.xpose.msra.mxu0 0.0
    %2318 = vmatprep.subr.mxu0 0.0
    %2319 = vmatpush2.xpose.msra.mxu0 0.0
    %2320 = vmatprep.subr.mxu0 0.0
    %2321 = vmatpush2.xpose.msra.mxu0 0.0
    %2322 = vmatprep.subr.mxu0 0.0
    %2323 = vmatpush2.xpose.msra.mxu0 0.0
    %2324 = vmatprep.subr.mxu0 0.0
    %2325 = vmatpush2.xpose.msra.mxu0 0.0
    %2326 = vmatprep.subr.mxu0 0.0
    %2327 = vmatpush2.xpose.msra.mxu0 0.0
    %2328 = vmatprep.subr.mxu0 0.0
    %2329 = vmatpush2.xpose.msra.mxu0 0.0
    %2330 = vmatprep.subr.mxu0 0.0
    %2331 = vmatpush2.xpose.msra.mxu0 0.0
    %2332 = vmatprep.mubr.f32.mxu0 0.0
    %2333 = vmatmul.mubr.f32.gmra.mxu0 %v2267
    %v2334 = vpop.f32.mrf.mxu0
    %v2335 = vadd.f32 0.0, %v2334
    %v2336 = vpop.f32.mrf.mxu0
    %2337 = vdwg.mxu0
    %v2338 = vmul.f32 %v2335, 0.35355338
    %v2339 = vsel %vm513, %v2338, -1e+09
    %v2340 = vsel %vm825, %v2339, -inf
    %2341 = vmax.xlane.f32.xlu0 %v2340
    %v2342 = vpop.xlane.xlu0 %2341
    %v2343 = vsub.f32 %v2339, %v2342
    %v2344 = vmul.f32 %v2343, 1.442695
    %v2345 = vpow.pop %v2344
    %v2346 = vsel %vm825, %v2345, 0.0
    %2347 = vadd.xlane.f32.xlu0 %v2346
    %v2348 = vpop.xlane.xlu0 %2347
    %v2349 = vrcp.pop %v2348
    %v2350 = vmul.f32 %v2345, %v2349
    %v2351 = vmul.f32 %v1929, %v1078
    %v2353 = vsel %vm825, %v2350, 0
    %2355 = vmatprep.subr.mxu0 0.0
    %2356 = vmatpush1.msra.mxu0 0.0
    %2357 = vmatprep.subr.mxu0 0.0
    %2358 = vmatpush1.msra.mxu0 0.0
    %2359 = vmatprep.subr.mxu0 0.0
    %2360 = vmatpush1.msra.mxu0 0.0
    %2361 = vmatprep.subr.mxu0 0.0
    %2362 = vmatpush1.msra.mxu0 0.0
    %2363 = vmatprep.subr.mxu0 0.0
    %2364 = vmatpush1.msra.mxu0 0.0
    %2365 = vmatprep.subr.mxu0 0.0
    %2366 = vmatpush1.msra.mxu0 0.0
    %2367 = vmatprep.subr.mxu0 0.0
    %2368 = vmatpush1.msra.mxu0 0.0
    %2369 = vmatprep.subr.mxu0 0.0
    %2370 = vmatpush1.msra.mxu0 0.0
    %2371 = vmatprep.subr.mxu0 0.0
    %2372 = vmatpush1.msra.mxu0 0.0
    %2373 = vmatprep.subr.mxu0 0.0
    %2374 = vmatpush1.msra.mxu0 0.0
    %2375 = vmatprep.subr.mxu0 0.0
    %2376 = vmatpush1.msra.mxu0 0.0
    %2377 = vmatprep.subr.mxu0 0.0
    %2378 = vmatpush1.msra.mxu0 0.0
    %2379 = vmatprep.subr.mxu0 0.0
    %2380 = vmatpush1.msra.mxu0 0.0
    %2381 = vmatprep.subr.mxu0 0.0
    %2382 = vmatpush1.msra.mxu0 0.0
    %2383 = vmatprep.subr.mxu0 0.0
    %2384 = vmatpush1.msra.mxu0 0.0
    %2385 = vmatprep.subr.mxu0 0.0
    %2386 = vmatpush1.msra.mxu0 %v2351
    %2387 = vmatprep.subr.mxu0 0.0
    %2388 = vmatpush2.msra.mxu0 0.0
    %2389 = vmatprep.subr.mxu0 0.0
    %2390 = vmatpush2.msra.mxu0 0.0
    %2391 = vmatprep.subr.mxu0 0.0
    %2392 = vmatpush2.msra.mxu0 0.0
    %2393 = vmatprep.subr.mxu0 0.0
    %2394 = vmatpush2.msra.mxu0 0.0
    %2395 = vmatprep.subr.mxu0 0.0
    %2396 = vmatpush2.msra.mxu0 0.0
    %2397 = vmatprep.subr.mxu0 0.0
    %2398 = vmatpush2.msra.mxu0 0.0
    %2399 = vmatprep.subr.mxu0 0.0
    %2400 = vmatpush2.msra.mxu0 0.0
    %2401 = vmatprep.subr.mxu0 0.0
    %2402 = vmatpush2.msra.mxu0 0.0
    %2403 = vmatprep.subr.mxu0 0.0
    %2404 = vmatpush2.msra.mxu0 0.0
    %2405 = vmatprep.subr.mxu0 0.0
    %2406 = vmatpush2.msra.mxu0 0.0
    %2407 = vmatprep.subr.mxu0 0.0
    %2408 = vmatpush2.msra.mxu0 0.0
    %2409 = vmatprep.subr.mxu0 0.0
    %2410 = vmatpush2.msra.mxu0 0.0
    %2411 = vmatprep.subr.mxu0 0.0
    %2412 = vmatpush2.msra.mxu0 0.0
    %2413 = vmatprep.subr.mxu0 0.0
    %2414 = vmatpush2.msra.mxu0 0.0
    %2415 = vmatprep.subr.mxu0 0.0
    %2416 = vmatpush2.msra.mxu0 0.0
    %2417 = vmatprep.subr.mxu0 0.0
    %2418 = vmatpush2.msra.mxu0 0.0
    %2419 = vmatprep.mubr.f32.mxu0 0.0
    %2420 = vmatmul.mubr.f32.gmra.mxu0 %v2353
    %v2421 = vpop.f32.mrf.mxu0
    %v2422 = vadd.f32 0.0, %v2421
    %v2423 = vpop.f32.mrf.mxu0
    %2424 = vdwg.mxu0
    %v2425 = vadd.f32 %v2264, %v2422
    %v2426 = vmul.f32 %v1858, %v1241
    %2427 = vmatprep.subr.mxu0 0.0
    %2428 = vmatpush1.xpose.msra.mxu0 0.0
    %2429 = vmatprep.subr.mxu0 0.0
    %2430 = vmatpush1.xpose.msra.mxu0 0.0
    %2431 = vmatprep.subr.mxu0 0.0
    %2432 = vmatpush1.xpose.msra.mxu0 0.0
    %2433 = vmatprep.subr.mxu0 0.0
    %2434 = vmatpush1.xpose.msra.mxu0 0.0
    %2435 = vmatprep.subr.mxu0 0.0
    %2436 = vmatpush1.xpose.msra.mxu0 0.0
    %2437 = vmatprep.subr.mxu0 0.0
    %2438 = vmatpush1.xpose.msra.mxu0 0.0
    %2439 = vmatprep.subr.mxu0 0.0
    %2440 = vmatpush1.xpose.msra.mxu0 0.0
    %2441 = vmatprep.subr.mxu0 0.0
    %2442 = vmatpush1.xpose.msra.mxu0 0.0
    %2443 = vmatprep.subr.mxu0 0.0
    %2444 = vmatpush1.xpose.msra.mxu0 0.0
    %2445 = vmatprep.subr.mxu0 0.0
    %2446 = vmatpush1.xpose.msra.mxu0 0.0
    %2447 = vmatprep.subr.mxu0 0.0
    %2448 = vmatpush1.xpose.msra.mxu0 0.0
    %2449 = vmatprep.subr.mxu0 0.0
    %2450 = vmatpush1.xpose.msra.mxu0 0.0
    %2451 = vmatprep.subr.mxu0 0.0
    %2452 = vmatpush1.xpose.msra.mxu0 0.0
    %2453 = vmatprep.subr.mxu0 0.0
    %2454 = vmatpush1.xpose.msra.mxu0 0.0
    %2455 = vmatprep.subr.mxu0 0.0
    %2456 = vmatpush1.xpose.msra.mxu0 0.0
    %2457 = vmatprep.subr.mxu0 0.0
    %2458 = vmatpush1.xpose.msra.mxu0 %v1860
    %2459 = vmatprep.subr.mxu0 0.0
    %2460 = vmatpush2.xpose.msra.mxu0 0.0
    %2461 = vmatprep.subr.mxu0 0.0
    %2462 = vmatpush2.xpose.msra.mxu0 0.0
    %2463 = vmatprep.subr.mxu0 0.0
    %2464 = vmatpush2.xpose.msra.mxu0 0.0
    %2465 = vmatprep.subr.mxu0 0.0
    %2466 = vmatpush2.xpose.msra.mxu0 0.0
    %2467 = vmatprep.subr.mxu0 0.0
    %2468 = vmatpush2.xpose.msra.mxu0 0.0
    %2469 = vmatprep.subr.mxu0 0.0
    %2470 = vmatpush2.xpose.msra.mxu0 0.0
    %2471 = vmatprep.subr.mxu0 0.0
    %2472 = vmatpush2.xpose.msra.mxu0 0.0
    %2473 = vmatprep.subr.mxu0 0.0
    %2474 = vmatpush2.xpose.msra.mxu0 0.0
    %2475 = vmatprep.subr.mxu0 0.0
    %2476 = vmatpush2.xpose.msra.mxu0 0.0
    %2477 = vmatprep.subr.mxu0 0.0
    %2478 = vmatpush2.xpose.msra.mxu0 0.0
    %2479 = vmatprep.subr.mxu0 0.0
    %2480 = vmatpush2.xpose.msra.mxu0 0.0
    %2481 = vmatprep.subr.mxu0 0.0
    %2482 = vmatpush2.xpose.msra.mxu0 0.0
    %2483 = vmatprep.subr.mxu0 0.0
    %2484 = vmatpush2.xpose.msra.mxu0 0.0
    %2485 = vmatprep.subr.mxu0 0.0
    %2486 = vmatpush2.xpose.msra.mxu0 0.0
    %2487 = vmatprep.subr.mxu0 0.0
    %2488 = vmatpush2.xpose.msra.mxu0 0.0
    %2489 = vmatprep.subr.mxu0 0.0
    %2490 = vmatpush2.xpose.msra.mxu0 0.0
    %2491 = vmatprep.mubr.f32.mxu0 0.0
    %2492 = vmatmul.mubr.f32.gmra.mxu0 %v2426
    %v2493 = vpop.f32.mrf.mxu0
    %v2494 = vadd.f32 0.0, %v2493
    %v2495 = vpop.f32.mrf.mxu0
    %2496 = vdwg.mxu0
    %v2497 = vmul.f32 %v2494, 0.35355338
    %v2498 = vsel %vm513, %v2497, -1e+09
    %v2499 = vsel %vm825, %v2498, -inf
    %2500 = vmax.xlane.f32.xlu0 %v2499
    %v2501 = vpop.xlane.xlu0 %2500
    %v2502 = vsub.f32 %v2498, %v2501
    %v2503 = vmul.f32 %v2502, 1.442695
    %v2504 = vpow.pop %v2503
    %v2505 = vsel %vm825, %v2504, 0.0
    %2506 = vadd.xlane.f32.xlu0 %v2505
    %v2507 = vpop.xlane.xlu0 %2506
    %v2508 = vrcp.pop %v2507
    %v2509 = vmul.f32 %v2504, %v2508
    %v2510 = vmul.f32 %v1929, %v1241
    %v2512 = vsel %vm825, %v2509, 0
    %2514 = vmatprep.subr.mxu0 0.0
    %2515 = vmatpush1.msra.mxu0 0.0
    %2516 = vmatprep.subr.mxu0 0.0
    %2517 = vmatpush1.msra.mxu0 0.0
    %2518 = vmatprep.subr.mxu0 0.0
    %2519 = vmatpush1.msra.mxu0 0.0
    %2520 = vmatprep.subr.mxu0 0.0
    %2521 = vmatpush1.msra.mxu0 0.0
    %2522 = vmatprep.subr.mxu0 0.0
    %2523 = vmatpush1.msra.mxu0 0.0
    %2524 = vmatprep.subr.mxu0 0.0
    %2525 = vmatpush1.msra.mxu0 0.0
    %2526 = vmatprep.subr.mxu0 0.0
    %2527 = vmatpush1.msra.mxu0 0.0
    %2528 = vmatprep.subr.mxu0 0.0
    %2529 = vmatpush1.msra.mxu0 0.0
    %2530 = vmatprep.subr.mxu0 0.0
    %2531 = vmatpush1.msra.mxu0 0.0
    %2532 = vmatprep.subr.mxu0 0.0
    %2533 = vmatpush1.msra.mxu0 0.0
    %2534 = vmatprep.subr.mxu0 0.0
    %2535 = vmatpush1.msra.mxu0 0.0
    %2536 = vmatprep.subr.mxu0 0.0
    %2537 = vmatpush1.msra.mxu0 0.0
    %2538 = vmatprep.subr.mxu0 0.0
    %2539 = vmatpush1.msra.mxu0 0.0
    %2540 = vmatprep.subr.mxu0 0.0
    %2541 = vmatpush1.msra.mxu0 0.0
    %2542 = vmatprep.subr.mxu0 0.0
    %2543 = vmatpush1.msra.mxu0 0.0
    %2544 = vmatprep.subr.mxu0 0.0
    %2545 = vmatpush1.msra.mxu0 %v2510
    %2546 = vmatprep.subr.mxu0 0.0
    %2547 = vmatpush2.msra.mxu0 0.0
    %2548 = vmatprep.subr.mxu0 0.0
    %2549 = vmatpush2.msra.mxu0 0.0
    %2550 = vmatprep.subr.mxu0 0.0
    %2551 = vmatpush2.msra.mxu0 0.0
    %2552 = vmatprep.subr.mxu0 0.0
    %2553 = vmatpush2.msra.mxu0 0.0
    %2554 = vmatprep.subr.mxu0 0.0
    %2555 = vmatpush2.msra.mxu0 0.0
    %2556 = vmatprep.subr.mxu0 0.0
    %2557 = vmatpush2.msra.mxu0 0.0
    %2558 = vmatprep.subr.mxu0 0.0
    %2559 = vmatpush2.msra.mxu0 0.0
    %2560 = vmatprep.subr.mxu0 0.0
    %2561 = vmatpush2.msra.mxu0 0.0
    %2562 = vmatprep.subr.mxu0 0.0
    %2563 = vmatpush2.msra.mxu0 0.0
    %2564 = vmatprep.subr.mxu0 0.0
    %2565 = vmatpush2.msra.mxu0 0.0
    %2566 = vmatprep.subr.mxu0 0.0
    %2567 = vmatpush2.msra.mxu0 0.0
    %2568 = vmatprep.subr.mxu0 0.0
    %2569 = vmatpush2.msra.mxu0 0.0
    %2570 = vmatprep.subr.mxu0 0.0
    %2571 = vmatpush2.msra.mxu0 0.0
    %2572 = vmatprep.subr.mxu0 0.0
    %2573 = vmatpush2.msra.mxu0 0.0
    %2574 = vmatprep.subr.mxu0 0.0
    %2575 = vmatpush2.msra.mxu0 0.0
    %2576 = vmatprep.subr.mxu0 0.0
    %2577 = vmatpush2.msra.mxu0 0.0
    %2578 = vmatprep.mubr.f32.mxu0 0.0
    %2579 = vmatmul.mubr.f32.gmra.mxu0 %v2512
    %v2580 = vpop.f32.mrf.mxu0
    %v2581 = vadd.f32 0.0, %v2580
    %v2582 = vpop.f32.mrf.mxu0
    %2583 = vdwg.mxu0
    %v2584 = vadd.f32 %v2425, %v2581
    %v2586 = vlaneseq
    %v2587 = vshrl.u32 %v2586, 7
    %v2588 = vsub.s32 0, %v2587
    %v2589 = vrot.slane %v1950, %v2588
    %2591 = vmatprep.subr.mxu0 0.0
    %2592 = vmatpush1.msra.mxu0 %v1948
    %2593 = vmatprep.subr.mxu0 0.0
    %2594 = vmatpush1.msra.mxu0 %v1947
    %2595 = vmatprep.subr.mxu0 0.0
    %2596 = vmatpush1.msra.mxu0 %v1946
    %2597 = vmatprep.subr.mxu0 0.0
    %2598 = vmatpush1.msra.mxu0 %v1945
    %2599 = vmatprep.subr.mxu0 0.0
    %2600 = vmatpush1.msra.mxu0 %v1944
    %2601 = vmatprep.subr.mxu0 0.0
    %2602 = vmatpush1.msra.mxu0 %v1943
    %2603 = vmatprep.subr.mxu0 0.0
    %2604 = vmatpush1.msra.mxu0 %v1942
    %2605 = vmatprep.subr.mxu0 0.0
    %2606 = vmatpush1.msra.mxu0 %v1941
    %2607 = vmatprep.subr.mxu0 0.0
    %2608 = vmatpush1.msra.mxu0 %v1940
    %2609 = vmatprep.subr.mxu0 0.0
    %2610 = vmatpush1.msra.mxu0 %v1939
    %2611 = vmatprep.subr.mxu0 0.0
    %2612 = vmatpush1.msra.mxu0 %v1938
    %2613 = vmatprep.subr.mxu0 0.0
    %2614 = vmatpush1.msra.mxu0 %v1937
    %2615 = vmatprep.subr.mxu0 0.0
    %2616 = vmatpush1.msra.mxu0 %v1936
    %2617 = vmatprep.subr.mxu0 0.0
    %2618 = vmatpush1.msra.mxu0 %v1935
    %2619 = vmatprep.subr.mxu0 0.0
    %2620 = vmatpush1.msra.mxu0 %v1934
    %2621 = vmatprep.subr.mxu0 0.0
    %2622 = vmatpush1.msra.mxu0 %v1933
    %2623 = vmatprep.subr.mxu0 0.0
    %2624 = vmatpush2.msra.mxu0 0.0
    %2625 = vmatprep.subr.mxu0 0.0
    %2626 = vmatpush2.msra.mxu0 0.0
    %2627 = vmatprep.subr.mxu0 0.0
    %2628 = vmatpush2.msra.mxu0 0.0
    %2629 = vmatprep.subr.mxu0 0.0
    %2630 = vmatpush2.msra.mxu0 0.0
    %2631 = vmatprep.subr.mxu0 0.0
    %2632 = vmatpush2.msra.mxu0 0.0
    %2633 = vmatprep.subr.mxu0 0.0
    %2634 = vmatpush2.msra.mxu0 0.0
    %2635 = vmatprep.subr.mxu0 0.0
    %2636 = vmatpush2.msra.mxu0 0.0
    %2637 = vmatprep.subr.mxu0 0.0
    %2638 = vmatpush2.msra.mxu0 0.0
    %2639 = vmatprep.subr.mxu0 0.0
    %2640 = vmatpush2.msra.mxu0 0.0
    %2641 = vmatprep.subr.mxu0 0.0
    %2642 = vmatpush2.msra.mxu0 0.0
    %2643 = vmatprep.subr.mxu0 0.0
    %2644 = vmatpush2.msra.mxu0 0.0
    %2645 = vmatprep.subr.mxu0 0.0
    %2646 = vmatpush2.msra.mxu0 0.0
    %2647 = vmatprep.subr.mxu0 0.0
    %2648 = vmatpush2.msra.mxu0 0.0
    %2649 = vmatprep.subr.mxu0 0.0
    %2650 = vmatpush2.msra.mxu0 0.0
    %2651 = vmatprep.subr.mxu0 0.0
    %2652 = vmatpush2.msra.mxu0 0.0
    %2653 = vmatprep.subr.mxu0 0.0
    %2654 = vmatpush2.msra.mxu0 0.0
    %2655 = vmatprep.mubr.f32.mxu0 0.0
    %2656 = vmatmul.mubr.f32.gmra.mxu0 %v2584
    %v2657 = vpop.f32.mrf.mxu0
    %v2658 = vadd.f32 %v2589, %v2657
    %v2659 = vpop.f32.mrf.mxu0
    %2660 = vdwg.mxu0
    %s2661 = scalar_lea.vmem %s51, 1
    %v2662 = vld [vmem:[%s2661] sm:$0x1]
    %s2663 = scalar_lea.vmem %s49, 1
    %v2664 = vld [vmem:[%s2663] sm:$0x1]
    %v2665 = vadd.f32 %v1723, %v2658
    %v2666 = vmul.f32 %v2665, %v501
    %2667 = vadd.xlane.f32.xlu0 %v2666
    %v2668 = vpop.xlane.xlu0 %2667
    %v2669 = vmul.f32 %v2668, 0.03125
    %v2670 = vsub.f32 %v2665, %v2669
    %v2671 = vmul.f32 %v2670, %v501
    %v2672 = vmul.f32 %v2671, %v2671
    %2673 = vadd.xlane.f32.xlu0 %v2672
    %v2674 = vpop.xlane.xlu0 %2673
    %v2675 = vmul.f32 %v2674, 0.03125
    %v2676 = vadd.f32 %v2675, 1e-05
    %v2677 = vrsqrt.pop %v2676
    %v2678 = vmul.f32 %v2671, %v2677
    %v2680 = vlaneseq
    %v2681 = vshrl.u32 %v2680, 7
    %v2682 = vsub.s32 0, %v2681
    %v2683 = vrot.slane %v2662, %v2682
    %v2685 = vmul.f32 %v2678, %v2683
    %v2687 = vlaneseq
    %v2688 = vshrl.u32 %v2687, 7
    %v2689 = vsub.s32 0, %v2688
    %v2690 = vrot.slane %v2664, %v2689
    %v2692 = vadd.f32 %v2685, %v2690
    %s2693 = scalar_lea.vmem [#allocation34], 128
    %v2694 = vld [vmem:[%s2693] sm:$0xff]
    %v2695 = vld [vmem:[%s2693 + $0x8] sm:$0xff]
    %v2696 = vld [vmem:[%s2693 + $0x10] sm:$0xff]
    %v2697 = vld [vmem:[%s2693 + $0x18] sm:$0xff]
    %v2698 = vld [vmem:[%s2693 + $0x20] sm:$0xff]
    %v2699 = vld [vmem:[%s2693 + $0x28] sm:$0xff]
    %v2700 = vld [vmem:[%s2693 + $0x30] sm:$0xff]
    %v2701 = vld [vmem:[%s2693 + $0x38] sm:$0xff]
    %v2702 = vld [vmem:[%s2693 + $0x40] sm:$0xff]
    %v2703 = vld [vmem:[%s2693 + $0x48] sm:$0xff]
    %v2704 = vld [vmem:[%s2693 + $0x50] sm:$0xff]
    %v2705 = vld [vmem:[%s2693 + $0x58] sm:$0xff]
    %v2706 = vld [vmem:[%s2693 + $0x60] sm:$0xff]
    %v2707 = vld [vmem:[%s2693 + $0x68] sm:$0xff]
    %v2708 = vld [vmem:[%s2693 + $0x70] sm:$0xff]
    %v2709 = vld [vmem:[%s2693 + $0x78] sm:$0xff]
    %s2710 = scalar_lea.vmem %s41, 1
    %v2711 = vld [vmem:[%s2710] sm:$0x1]
    %s2712 = scalar_lea.vmem [#allocation35], 128
    %v2713 = vld [vmem:[%s2712] sm:$0xff]
    %v2714 = vld [vmem:[%s2712 + $0x8] sm:$0xff]
    %v2715 = vld [vmem:[%s2712 + $0x10] sm:$0xff]
    %v2716 = vld [vmem:[%s2712 + $0x18] sm:$0xff]
    %v2717 = vld [vmem:[%s2712 + $0x20] sm:$0xff]
    %v2718 = vld [vmem:[%s2712 + $0x28] sm:$0xff]
    %v2719 = vld [vmem:[%s2712 + $0x30] sm:$0xff]
    %v2720 = vld [vmem:[%s2712 + $0x38] sm:$0xff]
    %v2721 = vld [vmem:[%s2712 + $0x40] sm:$0xff]
    %v2722 = vld [vmem:[%s2712 + $0x48] sm:$0xff]
    %v2723 = vld [vmem:[%s2712 + $0x50] sm:$0xff]
    %v2724 = vld [vmem:[%s2712 + $0x58] sm:$0xff]
    %v2725 = vld [vmem:[%s2712 + $0x60] sm:$0xff]
    %v2726 = vld [vmem:[%s2712 + $0x68] sm:$0xff]
    %v2727 = vld [vmem:[%s2712 + $0x70] sm:$0xff]
    %v2728 = vld [vmem:[%s2712 + $0x78] sm:$0xff]
    %s2729 = scalar_lea.vmem %s43, 1
    %v2730 = vld [vmem:[%s2729] sm:$0x1]
    %v2732 = vlaneseq
    %v2733 = vshrl.u32 %v2732, 7
    %v2734 = vsub.s32 0, %v2733
    %v2735 = vrot.slane %v2711, %v2734
    %2737 = vmatprep.subr.mxu0 0.0
    %2738 = vmatpush1.msra.mxu0 %v2709
    %2739 = vmatprep.subr.mxu0 0.0
    %2740 = vmatpush1.msra.mxu0 %v2708
    %2741 = vmatprep.subr.mxu0 0.0
    %2742 = vmatpush1.msra.mxu0 %v2707
    %2743 = vmatprep.subr.mxu0 0.0
    %2744 = vmatpush1.msra.mxu0 %v2706
    %2745 = vmatprep.subr.mxu0 0.0
    %2746 = vmatpush1.msra.mxu0 %v2705
    %2747 = vmatprep.subr.mxu0 0.0
    %2748 = vmatpush1.msra.mxu0 %v2704
    %2749 = vmatprep.subr.mxu0 0.0
    %2750 = vmatpush1.msra.mxu0 %v2703
    %2751 = vmatprep.subr.mxu0 0.0
    %2752 = vmatpush1.msra.mxu0 %v2702
    %2753 = vmatprep.subr.mxu0 0.0
    %2754 = vmatpush1.msra.mxu0 %v2701
    %2755 = vmatprep.subr.mxu0 0.0
    %2756 = vmatpush1.msra.mxu0 %v2700
    %2757 = vmatprep.subr.mxu0 0.0
    %2758 = vmatpush1.msra.mxu0 %v2699
    %2759 = vmatprep.subr.mxu0 0.0
    %2760 = vmatpush1.msra.mxu0 %v2698
    %2761 = vmatprep.subr.mxu0 0.0
    %2762 = vmatpush1.msra.mxu0 %v2697
    %2763 = vmatprep.subr.mxu0 0.0
    %2764 = vmatpush1.msra.mxu0 %v2696
    %2765 = vmatprep.subr.mxu0 0.0
    %2766 = vmatpush1.msra.mxu0 %v2695
    %2767 = vmatprep.subr.mxu0 0.0
    %2768 = vmatpush1.msra.mxu0 %v2694
    %2769 = vmatprep.subr.mxu0 0.0
    %2770 = vmatpush2.msra.mxu0 0.0
    %2771 = vmatprep.subr.mxu0 0.0
    %2772 = vmatpush2.msra.mxu0 0.0
    %2773 = vmatprep.subr.mxu0 0.0
    %2774 = vmatpush2.msra.mxu0 0.0
    %2775 = vmatprep.subr.mxu0 0.0
    %2776 = vmatpush2.msra.mxu0 0.0
    %2777 = vmatprep.subr.mxu0 0.0
    %2778 = vmatpush2.msra.mxu0 0.0
    %2779 = vmatprep.subr.mxu0 0.0
    %2780 = vmatpush2.msra.mxu0 0.0
    %2781 = vmatprep.subr.mxu0 0.0
    %2782 = vmatpush2.msra.mxu0 0.0
    %2783 = vmatprep.subr.mxu0 0.0
    %2784 = vmatpush2.msra.mxu0 0.0
    %2785 = vmatprep.subr.mxu0 0.0
    %2786 = vmatpush2.msra.mxu0 0.0
    %2787 = vmatprep.subr.mxu0 0.0
    %2788 = vmatpush2.msra.mxu0 0.0
    %2789 = vmatprep.subr.mxu0 0.0
    %2790 = vmatpush2.msra.mxu0 0.0
    %2791 = vmatprep.subr.mxu0 0.0
    %2792 = vmatpush2.msra.mxu0 0.0
    %2793 = vmatprep.subr.mxu0 0.0
    %2794 = vmatpush2.msra.mxu0 0.0
    %2795 = vmatprep.subr.mxu0 0.0
    %2796 = vmatpush2.msra.mxu0 0.0
    %2797 = vmatprep.subr.mxu0 0.0
    %2798 = vmatpush2.msra.mxu0 0.0
    %2799 = vmatprep.subr.mxu0 0.0
    %2800 = vmatpush2.msra.mxu0 0.0
    %2801 = vmatprep.mubr.f32.mxu0 0.0
    %2802 = vmatmul.mubr.f32.gmra.mxu0 %v2692
    %v2803 = vpop.f32.mrf.mxu0
    %v2804 = vadd.f32 %v2735, %v2803
    %v2805 = vpop.f32.mrf.mxu0
    %2806 = vdwg.mxu0
    %v2807 = vmax.f32 %v2804, 0.0
    %v2809 = vlaneseq
    %v2810 = vshrl.u32 %v2809, 7
    %v2811 = vsub.s32 0, %v2810
    %v2812 = vrot.slane %v2730, %v2811
    %2814 = vmatprep.subr.mxu0 0.0
    %2815 = vmatpush1.msra.mxu0 %v2728
    %2816 = vmatprep.subr.mxu0 0.0
    %2817 = vmatpush1.msra.mxu0 %v2727
    %2818 = vmatprep.subr.mxu0 0.0
    %2819 = vmatpush1.msra.mxu0 %v2726
    %2820 = vmatprep.subr.mxu0 0.0
    %2821 = vmatpush1.msra.mxu0 %v2725
    %2822 = vmatprep.subr.mxu0 0.0
    %2823 = vmatpush1.msra.mxu0 %v2724
    %2824 = vmatprep.subr.mxu0 0.0
    %2825 = vmatpush1.msra.mxu0 %v2723
    %2826 = vmatprep.subr.mxu0 0.0
    %2827 = vmatpush1.msra.mxu0 %v2722
    %2828 = vmatprep.subr.mxu0 0.0
    %2829 = vmatpush1.msra.mxu0 %v2721
    %2830 = vmatprep.subr.mxu0 0.0
    %2831 = vmatpush1.msra.mxu0 %v2720
    %2832 = vmatprep.subr.mxu0 0.0
    %2833 = vmatpush1.msra.mxu0 %v2719
    %2834 = vmatprep.subr.mxu0 0.0
    %2835 = vmatpush1.msra.mxu0 %v2718
    %2836 = vmatprep.subr.mxu0 0.0
    %2837 = vmatpush1.msra.mxu0 %v2717
    %2838 = vmatprep.subr.mxu0 0.0
    %2839 = vmatpush1.msra.mxu0 %v2716
    %2840 = vmatprep.subr.mxu0 0.0
    %2841 = vmatpush1.msra.mxu0 %v2715
    %2842 = vmatprep.subr.mxu0 0.0
    %2843 = vmatpush1.msra.mxu0 %v2714
    %2844 = vmatprep.subr.mxu0 0.0
    %2845 = vmatpush1.msra.mxu0 %v2713
    %2846 = vmatprep.subr.mxu0 0.0
    %2847 = vmatpush2.msra.mxu0 0.0
    %2848 = vmatprep.subr.mxu0 0.0
    %2849 = vmatpush2.msra.mxu0 0.0
    %2850 = vmatprep.subr.mxu0 0.0
    %2851 = vmatpush2.msra.mxu0 0.0
    %2852 = vmatprep.subr.mxu0 0.0
    %2853 = vmatpush2.msra.mxu0 0.0
    %2854 = vmatprep.subr.mxu0 0.0
    %2855 = vmatpush2.msra.mxu0 0.0
    %2856 = vmatprep.subr.mxu0 0.0
    %2857 = vmatpush2.msra.mxu0 0.0
    %2858 = vmatprep.subr.mxu0 0.0
    %2859 = vmatpush2.msra.mxu0 0.0
    %2860 = vmatprep.subr.mxu0 0.0
    %2861 = vmatpush2.msra.mxu0 0.0
    %2862 = vmatprep.subr.mxu0 0.0
    %2863 = vmatpush2.msra.mxu0 0.0
    %2864 = vmatprep.subr.mxu0 0.0
    %2865 = vmatpush2.msra.mxu0 0.0
    %2866 = vmatprep.subr.mxu0 0.0
    %2867 = vmatpush2.msra.mxu0 0.0
    %2868 = vmatprep.subr.mxu0 0.0
    %2869 = vmatpush2.msra.mxu0 0.0
    %2870 = vmatprep.subr.mxu0 0.0
    %2871 = vmatpush2.msra.mxu0 0.0
    %2872 = vmatprep.subr.mxu0 0.0
    %2873 = vmatpush2.msra.mxu0 0.0
    %2874 = vmatprep.subr.mxu0 0.0
    %2875 = vmatpush2.msra.mxu0 0.0
    %2876 = vmatprep.subr.mxu0 0.0
    %2877 = vmatpush2.msra.mxu0 0.0
    %2878 = vmatprep.mubr.f32.mxu0 0.0
    %2879 = vmatmul.mubr.f32.gmra.mxu0 %v2807
    %v2880 = vpop.f32.mrf.mxu0
    %v2881 = vadd.f32 %v2812, %v2880
    %v2882 = vpop.f32.mrf.mxu0
    %2883 = vdwg.mxu0
    %s2884 = scalar_lea.vmem %s55, 1
    %v2885 = vld [vmem:[%s2884] sm:$0x1]
    %s2886 = scalar_lea.vmem %s53, 1
    %v2887 = vld [vmem:[%s2886] sm:$0x1]
    %v2888 = vadd.f32 %v2692, %v2881
    %v2889 = vmul.f32 %v2888, %v501
    %2890 = vadd.xlane.f32.xlu0 %v2889
    %v2891 = vpop.xlane.xlu0 %2890
    %v2892 = vmul.f32 %v2891, 0.03125
    %v2893 = vsub.f32 %v2888, %v2892
    %v2894 = vmul.f32 %v2893, %v501
    %v2895 = vmul.f32 %v2894, %v2894
    %2896 = vadd.xlane.f32.xlu0 %v2895
    %v2897 = vpop.xlane.xlu0 %2896
    %v2898 = vmul.f32 %v2897, 0.03125
    %v2899 = vadd.f32 %v2898, 1e-05
    %v2900 = vrsqrt.pop %v2899
    %v2901 = vmul.f32 %v2894, %v2900
    %v2903 = vlaneseq
    %v2904 = vshrl.u32 %v2903, 7
    %v2905 = vsub.s32 0, %v2904
    %v2906 = vrot.slane %v2885, %v2905
    %v2908 = vmul.f32 %v2901, %v2906
    %v2910 = vlaneseq
    %v2911 = vshrl.u32 %v2910, 7
    %v2912 = vsub.s32 0, %v2911
    %v2913 = vrot.slane %v2887, %v2912
    %v2915 = vadd.f32 %v2908, %v2913
    %v2916 = vld [vmem:[#allocation26] sm:$0xff]
    %v2917 = vld [vmem:[#allocation26 + $0x8] sm:$0xff]
    %v2918 = vld [vmem:[#allocation26 + $0x10] sm:$0xff]
    %v2919 = vld [vmem:[#allocation26 + $0x18] sm:$0xff]
    %v2920 = vld [vmem:[#allocation26 + $0x20] sm:$0xff]
    %v2921 = vld [vmem:[#allocation26 + $0x28] sm:$0xff]
    %v2922 = vld [vmem:[#allocation26 + $0x30] sm:$0xff]
    %v2923 = vld [vmem:[#allocation26 + $0x38] sm:$0xff]
    %v2924 = vld [vmem:[#allocation26 + $0x40] sm:$0xff]
    %v2925 = vld [vmem:[#allocation26 + $0x48] sm:$0xff]
    %v2926 = vld [vmem:[#allocation26 + $0x50] sm:$0xff]
    %v2927 = vld [vmem:[#allocation26 + $0x58] sm:$0xff]
    %v2928 = vld [vmem:[#allocation26 + $0x60] sm:$0xff]
    %v2929 = vld [vmem:[#allocation26 + $0x68] sm:$0xff]
    %v2930 = vld [vmem:[#allocation26 + $0x70] sm:$0xff]
    %v2931 = vld [vmem:[#allocation26 + $0x78] sm:$0xff]
    %v2932 = vld [vmem:[#allocation26 + $0x80] sm:$0xff]
    %v2933 = vld [vmem:[#allocation26 + $0x88] sm:$0xff]
    %v2934 = vld [vmem:[#allocation26 + $0x90] sm:$0xff]
    %v2935 = vld [vmem:[#allocation26 + $0x98] sm:$0xff]
    %v2936 = vld [vmem:[#allocation26 + $0xa0] sm:$0xff]
    %v2937 = vld [vmem:[#allocation26 + $0xa8] sm:$0xff]
    %v2938 = vld [vmem:[#allocation26 + $0xb0] sm:$0xff]
    %v2939 = vld [vmem:[#allocation26 + $0xb8] sm:$0xff]
    %v2940 = vld [vmem:[#allocation26 + $0xc0] sm:$0xff]
    %v2941 = vld [vmem:[#allocation26 + $0xc8] sm:$0xff]
    %v2942 = vld [vmem:[#allocation26 + $0xd0] sm:$0xff]
    %v2943 = vld [vmem:[#allocation26 + $0xd8] sm:$0xff]
    %v2944 = vld [vmem:[#allocation26 + $0xe0] sm:$0xff]
    %v2945 = vld [vmem:[#allocation26 + $0xe8] sm:$0xff]
    %v2946 = vld [vmem:[#allocation26 + $0xf0] sm:$0xff]
    %v2947 = vld [vmem:[#allocation26 + $0xf8] sm:$0xff]
    %v2948 = vld [vmem:[#allocation26 + $0x100] sm:$0xff]
    %v2949 = vld [vmem:[#allocation26 + $0x108] sm:$0xff]
    %v2950 = vld [vmem:[#allocation26 + $0x110] sm:$0xff]
    %v2951 = vld [vmem:[#allocation26 + $0x118] sm:$0xff]
    %v2952 = vld [vmem:[#allocation26 + $0x120] sm:$0xff]
    %v2953 = vld [vmem:[#allocation26 + $0x128] sm:$0xff]
    %v2954 = vld [vmem:[#allocation26 + $0x130] sm:$0xff]
    %v2955 = vld [vmem:[#allocation26 + $0x138] sm:$0xff]
    %v2956 = vld [vmem:[#allocation26 + $0x140] sm:$0xff]
    %v2957 = vld [vmem:[#allocation26 + $0x148] sm:$0xff]
    %v2958 = vld [vmem:[#allocation26 + $0x150] sm:$0xff]
    %v2959 = vld [vmem:[#allocation26 + $0x158] sm:$0xff]
    %v2960 = vld [vmem:[#allocation26 + $0x160] sm:$0xff]
    %v2961 = vld [vmem:[#allocation26 + $0x168] sm:$0xff]
    %v2962 = vld [vmem:[#allocation26 + $0x170] sm:$0xff]
    %v2963 = vld [vmem:[#allocation26 + $0x178] sm:$0xff]
    %v2964 = vld [vmem:[#allocation7] sm:$0x7]
    %v2966 = vlaneseq
    %v2967 = vshrl.u32 %v2966, 7
    %v2968 = vsub.s32 0, %v2967
    %v2969 = vrot.slane %v2964, %v2968
    %v2970 = vlaneseq
    %v2971 = vshrl.u32 %v2970, 7
    %v2972 = vsub.s32 1, %v2971
    %v2973 = vrot.slane %v2964, %v2972
    %v2974 = vlaneseq
    %v2975 = vshrl.u32 %v2974, 7
    %v2976 = vsub.s32 2, %v2975
    %v2977 = vrot.slane %v2964, %v2976
    %2981 = vmatprep.subr.mxu0 %v2962
    %2982 = vmatpush1.msra.mxu0 %v2961
    %2983 = vmatprep.subr.mxu0 %v2959
    %2984 = vmatpush1.msra.mxu0 %v2958
    %2985 = vmatprep.subr.mxu0 %v2956
    %2986 = vmatpush1.msra.mxu0 %v2955
    %2987 = vmatprep.subr.mxu0 %v2953
    %2988 = vmatpush1.msra.mxu0 %v2952
    %2989 = vmatprep.subr.mxu0 %v2950
    %2990 = vmatpush1.msra.mxu0 %v2949
    %2991 = vmatprep.subr.mxu0 %v2947
    %2992 = vmatpush1.msra.mxu0 %v2946
    %2993 = vmatprep.subr.mxu0 %v2944
    %2994 = vmatpush1.msra.mxu0 %v2943
    %2995 = vmatprep.subr.mxu0 %v2941
    %2996 = vmatpush1.msra.mxu0 %v2940
    %2997 = vmatprep.subr.mxu0 %v2938
    %2998 = vmatpush1.msra.mxu0 %v2937
    %2999 = vmatprep.subr.mxu0 %v2935
    %3000 = vmatpush1.msra.mxu0 %v2934
    %3001 = vmatprep.subr.mxu0 %v2932
    %3002 = vmatpush1.msra.mxu0 %v2931
    %3003 = vmatprep.subr.mxu0 %v2929
    %3004 = vmatpush1.msra.mxu0 %v2928
    %3005 = vmatprep.subr.mxu0 %v2926
    %3006 = vmatpush1.msra.mxu0 %v2925
    %3007 = vmatprep.subr.mxu0 %v2923
    %3008 = vmatpush1.msra.mxu0 %v2922
    %3009 = vmatprep.subr.mxu0 %v2920
    %3010 = vmatpush1.msra.mxu0 %v2919
    %3011 = vmatprep.subr.mxu0 %v2917
    %3012 = vmatpush1.msra.mxu0 %v2916
    %3013 = vmatprep.subr.mxu0 0.0
    %3014 = vmatpush2.msra.mxu0 0.0
    %3015 = vmatprep.subr.mxu0 0.0
    %3016 = vmatpush2.msra.mxu0 0.0
    %3017 = vmatprep.subr.mxu0 0.0
    %3018 = vmatpush2.msra.mxu0 0.0
    %3019 = vmatprep.subr.mxu0 0.0
    %3020 = vmatpush2.msra.mxu0 0.0
    %3021 = vmatprep.subr.mxu0 0.0
    %3022 = vmatpush2.msra.mxu0 0.0
    %3023 = vmatprep.subr.mxu0 0.0
    %3024 = vmatpush2.msra.mxu0 0.0
    %3025 = vmatprep.subr.mxu0 0.0
    %3026 = vmatpush2.msra.mxu0 0.0
    %3027 = vmatprep.subr.mxu0 0.0
    %3028 = vmatpush2.msra.mxu0 0.0
    %3029 = vmatprep.subr.mxu0 0.0
    %3030 = vmatpush2.msra.mxu0 0.0
    %3031 = vmatprep.subr.mxu0 0.0
    %3032 = vmatpush2.msra.mxu0 0.0
    %3033 = vmatprep.subr.mxu0 0.0
    %3034 = vmatpush2.msra.mxu0 0.0
    %3035 = vmatprep.subr.mxu0 0.0
    %3036 = vmatpush2.msra.mxu0 0.0
    %3037 = vmatprep.subr.mxu0 0.0
    %3038 = vmatpush2.msra.mxu0 0.0
    %3039 = vmatprep.subr.mxu0 0.0
    %3040 = vmatpush2.msra.mxu0 0.0
    %3041 = vmatprep.subr.mxu0 0.0
    %3042 = vmatpush2.msra.mxu0 0.0
    %3043 = vmatprep.subr.mxu0 0.0
    %3044 = vmatpush2.msra.mxu0 0.0
    %3045 = vmatprep.mubr.f32.mxu0 0.0
    %3046 = vmatmul.mubr.f32.gmra.mxu0 %v503
    %v3047 = vpop.f32.mrf.mxu0
    %v3048 = vadd.f32 %v2969, %v3047
    %v3049 = vpop.f32.mrf.mxu0
    %v3050 = vadd.f32 %v2973, %v3049
    %3051 = vdwg.mxu0
    %3052 = vmatprep.subr.mxu0 0.0
    %3053 = vmatpush1.msra.mxu0 %v2963
    %3054 = vmatprep.subr.mxu0 0.0
    %3055 = vmatpush1.msra.mxu0 %v2960
    %3056 = vmatprep.subr.mxu0 0.0
    %3057 = vmatpush1.msra.mxu0 %v2957
    %3058 = vmatprep.subr.mxu0 0.0
    %3059 = vmatpush1.msra.mxu0 %v2954
    %3060 = vmatprep.subr.mxu0 0.0
    %3061 = vmatpush1.msra.mxu0 %v2951
    %3062 = vmatprep.subr.mxu0 0.0
    %3063 = vmatpush1.msra.mxu0 %v2948
    %3064 = vmatprep.subr.mxu0 0.0
    %3065 = vmatpush1.msra.mxu0 %v2945
    %3066 = vmatprep.subr.mxu0 0.0
    %3067 = vmatpush1.msra.mxu0 %v2942
    %3068 = vmatprep.subr.mxu0 0.0
    %3069 = vmatpush1.msra.mxu0 %v2939
    %3070 = vmatprep.subr.mxu0 0.0
    %3071 = vmatpush1.msra.mxu0 %v2936
    %3072 = vmatprep.subr.mxu0 0.0
    %3073 = vmatpush1.msra.mxu0 %v2933
    %3074 = vmatprep.subr.mxu0 0.0
    %3075 = vmatpush1.msra.mxu0 %v2930
    %3076 = vmatprep.subr.mxu0 0.0
    %3077 = vmatpush1.msra.mxu0 %v2927
    %3078 = vmatprep.subr.mxu0 0.0
    %3079 = vmatpush1.msra.mxu0 %v2924
    %3080 = vmatprep.subr.mxu0 0.0
    %3081 = vmatpush1.msra.mxu0 %v2921
    %3082 = vmatprep.subr.mxu0 0.0
    %3083 = vmatpush1.msra.mxu0 %v2918
    %3084 = vmatprep.subr.mxu0 0.0
    %3085 = vmatpush2.msra.mxu0 0.0
    %3086 = vmatprep.subr.mxu0 0.0
    %3087 = vmatpush2.msra.mxu0 0.0
    %3088 = vmatprep.subr.mxu0 0.0
    %3089 = vmatpush2.msra.mxu0 0.0
    %3090 = vmatprep.subr.mxu0 0.0
    %3091 = vmatpush2.msra.mxu0 0.0
    %3092 = vmatprep.subr.mxu0 0.0
    %3093 = vmatpush2.msra.mxu0 0.0
    %3094 = vmatprep.subr.mxu0 0.0
    %3095 = vmatpush2.msra.mxu0 0.0
    %3096 = vmatprep.subr.mxu0 0.0
    %3097 = vmatpush2.msra.mxu0 0.0
    %3098 = vmatprep.subr.mxu0 0.0
    %3099 = vmatpush2.msra.mxu0 0.0
    %3100 = vmatprep.subr.mxu0 0.0
    %3101 = vmatpush2.msra.mxu0 0.0
    %3102 = vmatprep.subr.mxu0 0.0
    %3103 = vmatpush2.msra.mxu0 0.0
    %3104 = vmatprep.subr.mxu0 0.0
    %3105 = vmatpush2.msra.mxu0 0.0
    %3106 = vmatprep.subr.mxu0 0.0
    %3107 = vmatpush2.msra.mxu0 0.0
    %3108 = vmatprep.subr.mxu0 0.0
    %3109 = vmatpush2.msra.mxu0 0.0
    %3110 = vmatprep.subr.mxu0 0.0
    %3111 = vmatpush2.msra.mxu0 0.0
    %3112 = vmatprep.subr.mxu0 0.0
    %3113 = vmatpush2.msra.mxu0 0.0
    %3114 = vmatprep.subr.mxu0 0.0
    %3115 = vmatpush2.msra.mxu0 0.0
    %3116 = vmatprep.mubr.f32.mxu0 0.0
    %3117 = vmatmul.mubr.f32.gmra.mxu0 %v503
    %v3118 = vpop.f32.mrf.mxu0
    %v3119 = vadd.f32 %v2977, %v3118
    %v3120 = vpop.f32.mrf.mxu0
    %3121 = vdwg.mxu0
    %v3122 = vld [vmem:[#allocation29] sm:$0xff]
    %v3123 = vld [vmem:[#allocation29 + $0x8] sm:$0xff]
    %v3124 = vld [vmem:[#allocation29 + $0x10] sm:$0xff]
    %v3125 = vld [vmem:[#allocation29 + $0x18] sm:$0xff]
    %v3126 = vld [vmem:[#allocation29 + $0x20] sm:$0xff]
    %v3127 = vld [vmem:[#allocation29 + $0x28] sm:$0xff]
    %v3128 = vld [vmem:[#allocation29 + $0x30] sm:$0xff]
    %v3129 = vld [vmem:[#allocation29 + $0x38] sm:$0xff]
    %v3130 = vld [vmem:[#allocation29 + $0x40] sm:$0xff]
    %v3131 = vld [vmem:[#allocation29 + $0x48] sm:$0xff]
    %v3132 = vld [vmem:[#allocation29 + $0x50] sm:$0xff]
    %v3133 = vld [vmem:[#allocation29 + $0x58] sm:$0xff]
    %v3134 = vld [vmem:[#allocation29 + $0x60] sm:$0xff]
    %v3135 = vld [vmem:[#allocation29 + $0x68] sm:$0xff]
    %v3136 = vld [vmem:[#allocation29 + $0x70] sm:$0xff]
    %v3137 = vld [vmem:[#allocation29 + $0x78] sm:$0xff]
    %v3138 = vld [vmem:[#allocation10] sm:$0x1]
    %v3139 = vmul.f32 %v3048, %v751
    %3140 = vmatprep.subr.mxu0 0.0
    %3141 = vmatpush1.xpose.msra.mxu0 0.0
    %3142 = vmatprep.subr.mxu0 0.0
    %3143 = vmatpush1.xpose.msra.mxu0 0.0
    %3144 = vmatprep.subr.mxu0 0.0
    %3145 = vmatpush1.xpose.msra.mxu0 0.0
    %3146 = vmatprep.subr.mxu0 0.0
    %3147 = vmatpush1.xpose.msra.mxu0 0.0
    %3148 = vmatprep.subr.mxu0 0.0
    %3149 = vmatpush1.xpose.msra.mxu0 0.0
    %3150 = vmatprep.subr.mxu0 0.0
    %3151 = vmatpush1.xpose.msra.mxu0 0.0
    %3152 = vmatprep.subr.mxu0 0.0
    %3153 = vmatpush1.xpose.msra.mxu0 0.0
    %3154 = vmatprep.subr.mxu0 0.0
    %3155 = vmatpush1.xpose.msra.mxu0 0.0
    %3156 = vmatprep.subr.mxu0 0.0
    %3157 = vmatpush1.xpose.msra.mxu0 0.0
    %3158 = vmatprep.subr.mxu0 0.0
    %3159 = vmatpush1.xpose.msra.mxu0 0.0
    %3160 = vmatprep.subr.mxu0 0.0
    %3161 = vmatpush1.xpose.msra.mxu0 0.0
    %3162 = vmatprep.subr.mxu0 0.0
    %3163 = vmatpush1.xpose.msra.mxu0 0.0
    %3164 = vmatprep.subr.mxu0 0.0
    %3165 = vmatpush1.xpose.msra.mxu0 0.0
    %3166 = vmatprep.subr.mxu0 0.0
    %3167 = vmatpush1.xpose.msra.mxu0 0.0
    %3168 = vmatprep.subr.mxu0 0.0
    %3169 = vmatpush1.xpose.msra.mxu0 0.0
    %3170 = vmatprep.subr.mxu0 0.0
    %3171 = vmatpush1.xpose.msra.mxu0 %v3050
    %3172 = vmatprep.subr.mxu0 0.0
    %3173 = vmatpush2.xpose.msra.mxu0 0.0
    %3174 = vmatprep.subr.mxu0 0.0
    %3175 = vmatpush2.xpose.msra.mxu0 0.0
    %3176 = vmatprep.subr.mxu0 0.0
    %3177 = vmatpush2.xpose.msra.mxu0 0.0
    %3178 = vmatprep.subr.mxu0 0.0
    %3179 = vmatpush2.xpose.msra.mxu0 0.0
    %3180 = vmatprep.subr.mxu0 0.0
    %3181 = vmatpush2.xpose.msra.mxu0 0.0
    %3182 = vmatprep.subr.mxu0 0.0
    %3183 = vmatpush2.xpose.msra.mxu0 0.0
    %3184 = vmatprep.subr.mxu0 0.0
    %3185 = vmatpush2.xpose.msra.mxu0 0.0
    %3186 = vmatprep.subr.mxu0 0.0
    %3187 = vmatpush2.xpose.msra.mxu0 0.0
    %3188 = vmatprep.subr.mxu0 0.0
    %3189 = vmatpush2.xpose.msra.mxu0 0.0
    %3190 = vmatprep.subr.mxu0 0.0
    %3191 = vmatpush2.xpose.msra.mxu0 0.0
    %3192 = vmatprep.subr.mxu0 0.0
    %3193 = vmatpush2.xpose.msra.mxu0 0.0
    %3194 = vmatprep.subr.mxu0 0.0
    %3195 = vmatpush2.xpose.msra.mxu0 0.0
    %3196 = vmatprep.subr.mxu0 0.0
    %3197 = vmatpush2.xpose.msra.mxu0 0.0
    %3198 = vmatprep.subr.mxu0 0.0
    %3199 = vmatpush2.xpose.msra.mxu0 0.0
    %3200 = vmatprep.subr.mxu0 0.0
    %3201 = vmatpush2.xpose.msra.mxu0 0.0
    %3202 = vmatprep.subr.mxu0 0.0
    %3203 = vmatpush2.xpose.msra.mxu0 0.0
    %3204 = vmatprep.mubr.f32.mxu0 0.0
    %3205 = vmatmul.mubr.f32.gmra.mxu0 %v3139
    %v3206 = vpop.f32.mrf.mxu0
    %v3207 = vadd.f32 0.0, %v3206
    %v3208 = vpop.f32.mrf.mxu0
    %3209 = vdwg.mxu0
    %v3210 = vmul.f32 %v3207, 0.35355338
    %v3211 = vsel %vm523, %v3210, -1e+09
    %v3212 = vsel %vm825, %v3211, -inf
    %3213 = vmax.xlane.f32.xlu0 %v3212
    %v3214 = vpop.xlane.xlu0 %3213
    %v3215 = vsub.f32 %v3211, %v3214
    %v3216 = vmul.f32 %v3215, 1.442695
    %v3217 = vpow.pop %v3216
    %v3218 = vsel %vm825, %v3217, 0.0
    %3219 = vadd.xlane.f32.xlu0 %v3218
    %v3220 = vpop.xlane.xlu0 %3219
    %v3221 = vrcp.pop %v3220
    %v3222 = vmul.f32 %v3217, %v3221
    %v3223 = vmul.f32 %v3119, %v751
    %v3224 = vmul.f32 %v3048, %v842
    %3225 = vmatprep.subr.mxu0 0.0
    %3226 = vmatpush1.xpose.msra.mxu0 0.0
    %3227 = vmatprep.subr.mxu0 0.0
    %3228 = vmatpush1.xpose.msra.mxu0 0.0
    %3229 = vmatprep.subr.mxu0 0.0
    %3230 = vmatpush1.xpose.msra.mxu0 0.0
    %3231 = vmatprep.subr.mxu0 0.0
    %3232 = vmatpush1.xpose.msra.mxu0 0.0
    %3233 = vmatprep.subr.mxu0 0.0
    %3234 = vmatpush1.xpose.msra.mxu0 0.0
    %3235 = vmatprep.subr.mxu0 0.0
    %3236 = vmatpush1.xpose.msra.mxu0 0.0
    %3237 = vmatprep.subr.mxu0 0.0
    %3238 = vmatpush1.xpose.msra.mxu0 0.0
    %3239 = vmatprep.subr.mxu0 0.0
    %3240 = vmatpush1.xpose.msra.mxu0 0.0
    %3241 = vmatprep.subr.mxu0 0.0
    %3242 = vmatpush1.xpose.msra.mxu0 0.0
    %3243 = vmatprep.subr.mxu0 0.0
    %3244 = vmatpush1.xpose.msra.mxu0 0.0
    %3245 = vmatprep.subr.mxu0 0.0
    %3246 = vmatpush1.xpose.msra.mxu0 0.0
    %3247 = vmatprep.subr.mxu0 0.0
    %3248 = vmatpush1.xpose.msra.mxu0 0.0
    %3249 = vmatprep.subr.mxu0 0.0
    %3250 = vmatpush1.xpose.msra.mxu0 0.0
    %3251 = vmatprep.subr.mxu0 0.0
    %3252 = vmatpush1.xpose.msra.mxu0 0.0
    %3253 = vmatprep.subr.mxu0 0.0
    %3254 = vmatpush1.xpose.msra.mxu0 0.0
    %3255 = vmatprep.subr.mxu0 0.0
    %3256 = vmatpush1.xpose.msra.mxu0 %v3050
    %3257 = vmatprep.subr.mxu0 0.0
    %3258 = vmatpush2.xpose.msra.mxu0 0.0
    %3259 = vmatprep.subr.mxu0 0.0
    %3260 = vmatpush2.xpose.msra.mxu0 0.0
    %3261 = vmatprep.subr.mxu0 0.0
    %3262 = vmatpush2.xpose.msra.mxu0 0.0
    %3263 = vmatprep.subr.mxu0 0.0
    %3264 = vmatpush2.xpose.msra.mxu0 0.0
    %3265 = vmatprep.subr.mxu0 0.0
    %3266 = vmatpush2.xpose.msra.mxu0 0.0
    %3267 = vmatprep.subr.mxu0 0.0
    %3268 = vmatpush2.xpose.msra.mxu0 0.0
    %3269 = vmatprep.subr.mxu0 0.0
    %3270 = vmatpush2.xpose.msra.mxu0 0.0
    %3271 = vmatprep.subr.mxu0 0.0
    %3272 = vmatpush2.xpose.msra.mxu0 0.0
    %3273 = vmatprep.subr.mxu0 0.0
    %3274 = vmatpush2.xpose.msra.mxu0 0.0
    %3275 = vmatprep.subr.mxu0 0.0
    %3276 = vmatpush2.xpose.msra.mxu0 0.0
    %3277 = vmatprep.subr.mxu0 0.0
    %3278 = vmatpush2.xpose.msra.mxu0 0.0
    %3279 = vmatprep.subr.mxu0 0.0
    %3280 = vmatpush2.xpose.msra.mxu0 0.0
    %3281 = vmatprep.subr.mxu0 0.0
    %3282 = vmatpush2.xpose.msra.mxu0 0.0
    %3283 = vmatprep.subr.mxu0 0.0
    %3284 = vmatpush2.xpose.msra.mxu0 0.0
    %3285 = vmatprep.subr.mxu0 0.0
    %3286 = vmatpush2.xpose.msra.mxu0 0.0
    %3287 = vmatprep.subr.mxu0 0.0
    %3288 = vmatpush2.xpose.msra.mxu0 0.0
    %3289 = vmatprep.mubr.f32.mxu0 0.0
    %3290 = vmatmul.mubr.f32.gmra.mxu0 %v3224
    %v3291 = vpop.f32.mrf.mxu0
    %v3292 = vadd.f32 0.0, %v3291
    %v3293 = vpop.f32.mrf.mxu0
    %3294 = vdwg.mxu0
    %v3295 = vmul.f32 %v3292, 0.35355338
    %v3296 = vsel %vm523, %v3295, -1e+09
    %v3297 = vsel %vm825, %v3296, -inf
    %3298 = vmax.xlane.f32.xlu0 %v3297
    %v3299 = vpop.xlane.xlu0 %3298
    %v3300 = vsub.f32 %v3296, %v3299
    %v3301 = vmul.f32 %v3300, 1.442695
    %v3302 = vpow.pop %v3301
    %v3303 = vsel %vm825, %v3302, 0.0
    %3304 = vadd.xlane.f32.xlu0 %v3303
    %v3305 = vpop.xlane.xlu0 %3304
    %v3306 = vrcp.pop %v3305
    %v3307 = vmul.f32 %v3302, %v3306
    %v3308 = vmul.f32 %v3119, %v842
    %v3310 = vsel %vm825, %v3307, 0
    %3312 = vmatprep.subr.mxu0 0.0
    %3313 = vmatpush1.msra.mxu0 0.0
    %3314 = vmatprep.subr.mxu0 0.0
    %3315 = vmatpush1.msra.mxu0 0.0
    %3316 = vmatprep.subr.mxu0 0.0
    %3317 = vmatpush1.msra.mxu0 0.0
    %3318 = vmatprep.subr.mxu0 0.0
    %3319 = vmatpush1.msra.mxu0 0.0
    %3320 = vmatprep.subr.mxu0 0.0
    %3321 = vmatpush1.msra.mxu0 0.0
    %3322 = vmatprep.subr.mxu0 0.0
    %3323 = vmatpush1.msra.mxu0 0.0
    %3324 = vmatprep.subr.mxu0 0.0
    %3325 = vmatpush1.msra.mxu0 0.0
    %3326 = vmatprep.subr.mxu0 0.0
    %3327 = vmatpush1.msra.mxu0 0.0
    %3328 = vmatprep.subr.mxu0 0.0
    %3329 = vmatpush1.msra.mxu0 0.0
    %3330 = vmatprep.subr.mxu0 0.0
    %3331 = vmatpush1.msra.mxu0 0.0
    %3332 = vmatprep.subr.mxu0 0.0
    %3333 = vmatpush1.msra.mxu0 0.0
    %3334 = vmatprep.subr.mxu0 0.0
    %3335 = vmatpush1.msra.mxu0 0.0
    %3336 = vmatprep.subr.mxu0 0.0
    %3337 = vmatpush1.msra.mxu0 0.0
    %3338 = vmatprep.subr.mxu0 0.0
    %3339 = vmatpush1.msra.mxu0 0.0
    %3340 = vmatprep.subr.mxu0 0.0
    %3341 = vmatpush1.msra.mxu0 0.0
    %3342 = vmatprep.subr.mxu0 0.0
    %3343 = vmatpush1.msra.mxu0 %v3308
    %3344 = vmatprep.subr.mxu0 0.0
    %3345 = vmatpush2.msra.mxu0 0.0
    %3346 = vmatprep.subr.mxu0 0.0
    %3347 = vmatpush2.msra.mxu0 0.0
    %3348 = vmatprep.subr.mxu0 0.0
    %3349 = vmatpush2.msra.mxu0 0.0
    %3350 = vmatprep.subr.mxu0 0.0
    %3351 = vmatpush2.msra.mxu0 0.0
    %3352 = vmatprep.subr.mxu0 0.0
    %3353 = vmatpush2.msra.mxu0 0.0
    %3354 = vmatprep.subr.mxu0 0.0
    %3355 = vmatpush2.msra.mxu0 0.0
    %3356 = vmatprep.subr.mxu0 0.0
    %3357 = vmatpush2.msra.mxu0 0.0
    %3358 = vmatprep.subr.mxu0 0.0
    %3359 = vmatpush2.msra.mxu0 0.0
    %3360 = vmatprep.subr.mxu0 0.0
    %3361 = vmatpush2.msra.mxu0 0.0
    %3362 = vmatprep.subr.mxu0 0.0
    %3363 = vmatpush2.msra.mxu0 0.0
    %3364 = vmatprep.subr.mxu0 0.0
    %3365 = vmatpush2.msra.mxu0 0.0
    %3366 = vmatprep.subr.mxu0 0.0
    %3367 = vmatpush2.msra.mxu0 0.0
    %3368 = vmatprep.subr.mxu0 0.0
    %3369 = vmatpush2.msra.mxu0 0.0
    %3370 = vmatprep.subr.mxu0 0.0
    %3371 = vmatpush2.msra.mxu0 0.0
    %3372 = vmatprep.subr.mxu0 0.0
    %3373 = vmatpush2.msra.mxu0 0.0
    %3374 = vmatprep.subr.mxu0 0.0
    %3375 = vmatpush2.msra.mxu0 0.0
    %3376 = vmatprep.mubr.f32.mxu0 0.0
    %3377 = vmatmul.mubr.f32.gmra.mxu0 %v3310
    %v3378 = vpop.f32.mrf.mxu0
    %v3379 = vadd.f32 0.0, %v3378
    %v3380 = vpop.f32.mrf.mxu0
    %3381 = vdwg.mxu0
    %v3383 = vsel %vm825, %v3222, 0
    %3385 = vmatprep.subr.mxu0 0.0
    %3386 = vmatpush1.msra.mxu0 0.0
    %3387 = vmatprep.subr.mxu0 0.0
    %3388 = vmatpush1.msra.mxu0 0.0
    %3389 = vmatprep.subr.mxu0 0.0
    %3390 = vmatpush1.msra.mxu0 0.0
    %3391 = vmatprep.subr.mxu0 0.0
    %3392 = vmatpush1.msra.mxu0 0.0
    %3393 = vmatprep.subr.mxu0 0.0
    %3394 = vmatpush1.msra.mxu0 0.0
    %3395 = vmatprep.subr.mxu0 0.0
    %3396 = vmatpush1.msra.mxu0 0.0
    %3397 = vmatprep.subr.mxu0 0.0
    %3398 = vmatpush1.msra.mxu0 0.0
    %3399 = vmatprep.subr.mxu0 0.0
    %3400 = vmatpush1.msra.mxu0 0.0
    %3401 = vmatprep.subr.mxu0 0.0
    %3402 = vmatpush1.msra.mxu0 0.0
    %3403 = vmatprep.subr.mxu0 0.0
    %3404 = vmatpush1.msra.mxu0 0.0
    %3405 = vmatprep.subr.mxu0 0.0
    %3406 = vmatpush1.msra.mxu0 0.0
    %3407 = vmatprep.subr.mxu0 0.0
    %3408 = vmatpush1.msra.mxu0 0.0
    %3409 = vmatprep.subr.mxu0 0.0
    %3410 = vmatpush1.msra.mxu0 0.0
    %3411 = vmatprep.subr.mxu0 0.0
    %3412 = vmatpush1.msra.mxu0 0.0
    %3413 = vmatprep.subr.mxu0 0.0
    %3414 = vmatpush1.msra.mxu0 0.0
    %3415 = vmatprep.subr.mxu0 0.0
    %3416 = vmatpush1.msra.mxu0 %v3223
    %3417 = vmatprep.subr.mxu0 0.0
    %3418 = vmatpush2.msra.mxu0 0.0
    %3419 = vmatprep.subr.mxu0 0.0
    %3420 = vmatpush2.msra.mxu0 0.0
    %3421 = vmatprep.subr.mxu0 0.0
    %3422 = vmatpush2.msra.mxu0 0.0
    %3423 = vmatprep.subr.mxu0 0.0
    %3424 = vmatpush2.msra.mxu0 0.0
    %3425 = vmatprep.subr.mxu0 0.0
    %3426 = vmatpush2.msra.mxu0 0.0
    %3427 = vmatprep.subr.mxu0 0.0
    %3428 = vmatpush2.msra.mxu0 0.0
    %3429 = vmatprep.subr.mxu0 0.0
    %3430 = vmatpush2.msra.mxu0 0.0
    %3431 = vmatprep.subr.mxu0 0.0
    %3432 = vmatpush2.msra.mxu0 0.0
    %3433 = vmatprep.subr.mxu0 0.0
    %3434 = vmatpush2.msra.mxu0 0.0
    %3435 = vmatprep.subr.mxu0 0.0
    %3436 = vmatpush2.msra.mxu0 0.0
    %3437 = vmatprep.subr.mxu0 0.0
    %3438 = vmatpush2.msra.mxu0 0.0
    %3439 = vmatprep.subr.mxu0 0.0
    %3440 = vmatpush2.msra.mxu0 0.0
    %3441 = vmatprep.subr.mxu0 0.0
    %3442 = vmatpush2.msra.mxu0 0.0
    %3443 = vmatprep.subr.mxu0 0.0
    %3444 = vmatpush2.msra.mxu0 0.0
    %3445 = vmatprep.subr.mxu0 0.0
    %3446 = vmatpush2.msra.mxu0 0.0
    %3447 = vmatprep.subr.mxu0 0.0
    %3448 = vmatpush2.msra.mxu0 0.0
    %3449 = vmatprep.mubr.f32.mxu0 0.0
    %3450 = vmatmul.mubr.f32.gmra.mxu0 %v3383
    %v3451 = vpop.f32.mrf.mxu0
    %v3452 = vadd.f32 %v3379, %v3451
    %v3453 = vpop.f32.mrf.mxu0
    %3454 = vdwg.mxu0
    %v3455 = vmul.f32 %v3048, %v1078
    %3456 = vmatprep.subr.mxu0 0.0
    %3457 = vmatpush1.xpose.msra.mxu0 0.0
    %3458 = vmatprep.subr.mxu0 0.0
    %3459 = vmatpush1.xpose.msra.mxu0 0.0
    %3460 = vmatprep.subr.mxu0 0.0
    %3461 = vmatpush1.xpose.msra.mxu0 0.0
    %3462 = vmatprep.subr.mxu0 0.0
    %3463 = vmatpush1.xpose.msra.mxu0 0.0
    %3464 = vmatprep.subr.mxu0 0.0
    %3465 = vmatpush1.xpose.msra.mxu0 0.0
    %3466 = vmatprep.subr.mxu0 0.0
    %3467 = vmatpush1.xpose.msra.mxu0 0.0
    %3468 = vmatprep.subr.mxu0 0.0
    %3469 = vmatpush1.xpose.msra.mxu0 0.0
    %3470 = vmatprep.subr.mxu0 0.0
    %3471 = vmatpush1.xpose.msra.mxu0 0.0
    %3472 = vmatprep.subr.mxu0 0.0
    %3473 = vmatpush1.xpose.msra.mxu0 0.0
    %3474 = vmatprep.subr.mxu0 0.0
    %3475 = vmatpush1.xpose.msra.mxu0 0.0
    %3476 = vmatprep.subr.mxu0 0.0
    %3477 = vmatpush1.xpose.msra.mxu0 0.0
    %3478 = vmatprep.subr.mxu0 0.0
    %3479 = vmatpush1.xpose.msra.mxu0 0.0
    %3480 = vmatprep.subr.mxu0 0.0
    %3481 = vmatpush1.xpose.msra.mxu0 0.0
    %3482 = vmatprep.subr.mxu0 0.0
    %3483 = vmatpush1.xpose.msra.mxu0 0.0
    %3484 = vmatprep.subr.mxu0 0.0
    %3485 = vmatpush1.xpose.msra.mxu0 0.0
    %3486 = vmatprep.subr.mxu0 0.0
    %3487 = vmatpush1.xpose.msra.mxu0 %v3050
    %3488 = vmatprep.subr.mxu0 0.0
    %3489 = vmatpush2.xpose.msra.mxu0 0.0
    %3490 = vmatprep.subr.mxu0 0.0
    %3491 = vmatpush2.xpose.msra.mxu0 0.0
    %3492 = vmatprep.subr.mxu0 0.0
    %3493 = vmatpush2.xpose.msra.mxu0 0.0
    %3494 = vmatprep.subr.mxu0 0.0
    %3495 = vmatpush2.xpose.msra.mxu0 0.0
    %3496 = vmatprep.subr.mxu0 0.0
    %3497 = vmatpush2.xpose.msra.mxu0 0.0
    %3498 = vmatprep.subr.mxu0 0.0
    %3499 = vmatpush2.xpose.msra.mxu0 0.0
    %3500 = vmatprep.subr.mxu0 0.0
    %3501 = vmatpush2.xpose.msra.mxu0 0.0
    %3502 = vmatprep.subr.mxu0 0.0
    %3503 = vmatpush2.xpose.msra.mxu0 0.0
    %3504 = vmatprep.subr.mxu0 0.0
    %3505 = vmatpush2.xpose.msra.mxu0 0.0
    %3506 = vmatprep.subr.mxu0 0.0
    %3507 = vmatpush2.xpose.msra.mxu0 0.0
    %3508 = vmatprep.subr.mxu0 0.0
    %3509 = vmatpush2.xpose.msra.mxu0 0.0
    %3510 = vmatprep.subr.mxu0 0.0
    %3511 = vmatpush2.xpose.msra.mxu0 0.0
    %3512 = vmatprep.subr.mxu0 0.0
    %3513 = vmatpush2.xpose.msra.mxu0 0.0
    %3514 = vmatprep.subr.mxu0 0.0
    %3515 = vmatpush2.xpose.msra.mxu0 0.0
    %3516 = vmatprep.subr.mxu0 0.0
    %3517 = vmatpush2.xpose.msra.mxu0 0.0
    %3518 = vmatprep.subr.mxu0 0.0
    %3519 = vmatpush2.xpose.msra.mxu0 0.0
    %3520 = vmatprep.mubr.f32.mxu0 0.0
    %3521 = vmatmul.mubr.f32.gmra.mxu0 %v3455
    %v3522 = vpop.f32.mrf.mxu0
    %v3523 = vadd.f32 0.0, %v3522
    %v3524 = vpop.f32.mrf.mxu0
    %3525 = vdwg.mxu0
    %v3526 = vmul.f32 %v3523, 0.35355338
    %v3527 = vsel %vm523, %v3526, -1e+09
    %v3528 = vsel %vm825, %v3527, -inf
    %3529 = vmax.xlane.f32.xlu0 %v3528
    %v3530 = vpop.xlane.xlu0 %3529
    %v3531 = vsub.f32 %v3527, %v3530
    %v3532 = vmul.f32 %v3531, 1.442695
    %v3533 = vpow.pop %v3532
    %v3534 = vsel %vm825, %v3533, 0.0
    %3535 = vadd.xlane.f32.xlu0 %v3534
    %v3536 = vpop.xlane.xlu0 %3535
    %v3537 = vrcp.pop %v3536
    %v3538 = vmul.f32 %v3533, %v3537
    %v3539 = vmul.f32 %v3119, %v1078
    %v3541 = vsel %vm825, %v3538, 0
    %3543 = vmatprep.subr.mxu0 0.0
    %3544 = vmatpush1.msra.mxu0 0.0
    %3545 = vmatprep.subr.mxu0 0.0
    %3546 = vmatpush1.msra.mxu0 0.0
    %3547 = vmatprep.subr.mxu0 0.0
    %3548 = vmatpush1.msra.mxu0 0.0
    %3549 = vmatprep.subr.mxu0 0.0
    %3550 = vmatpush1.msra.mxu0 0.0
    %3551 = vmatprep.subr.mxu0 0.0
    %3552 = vmatpush1.msra.mxu0 0.0
    %3553 = vmatprep.subr.mxu0 0.0
    %3554 = vmatpush1.msra.mxu0 0.0
    %3555 = vmatprep.subr.mxu0 0.0
    %3556 = vmatpush1.msra.mxu0 0.0
    %3557 = vmatprep.subr.mxu0 0.0
    %3558 = vmatpush1.msra.mxu0 0.0
    %3559 = vmatprep.subr.mxu0 0.0
    %3560 = vmatpush1.msra.mxu0 0.0
    %3561 = vmatprep.subr.mxu0 0.0
    %3562 = vmatpush1.msra.mxu0 0.0
    %3563 = vmatprep.subr.mxu0 0.0
    %3564 = vmatpush1.msra.mxu0 0.0
    %3565 = vmatprep.subr.mxu0 0.0
    %3566 = vmatpush1.msra.mxu0 0.0
    %3567 = vmatprep.subr.mxu0 0.0
    %3568 = vmatpush1.msra.mxu0 0.0
    %3569 = vmatprep.subr.mxu0 0.0
    %3570 = vmatpush1.msra.mxu0 0.0
    %3571 = vmatprep.subr.mxu0 0.0
    %3572 = vmatpush1.msra.mxu0 0.0
    %3573 = vmatprep.subr.mxu0 0.0
    %3574 = vmatpush1.msra.mxu0 %v3539
    %3575 = vmatprep.subr.mxu0 0.0
    %3576 = vmatpush2.msra.mxu0 0.0
    %3577 = vmatprep.subr.mxu0 0.0
    %3578 = vmatpush2.msra.mxu0 0.0
    %3579 = vmatprep.subr.mxu0 0.0
    %3580 = vmatpush2.msra.mxu0 0.0
    %3581 = vmatprep.subr.mxu0 0.0
    %3582 = vmatpush2.msra.mxu0 0.0
    %3583 = vmatprep.subr.mxu0 0.0
    %3584 = vmatpush2.msra.mxu0 0.0
    %3585 = vmatprep.subr.mxu0 0.0
    %3586 = vmatpush2.msra.mxu0 0.0
    %3587 = vmatprep.subr.mxu0 0.0
    %3588 = vmatpush2.msra.mxu0 0.0
    %3589 = vmatprep.subr.mxu0 0.0
    %3590 = vmatpush2.msra.mxu0 0.0
    %3591 = vmatprep.subr.mxu0 0.0
    %3592 = vmatpush2.msra.mxu0 0.0
    %3593 = vmatprep.subr.mxu0 0.0
    %3594 = vmatpush2.msra.mxu0 0.0
    %3595 = vmatprep.subr.mxu0 0.0
    %3596 = vmatpush2.msra.mxu0 0.0
    %3597 = vmatprep.subr.mxu0 0.0
    %3598 = vmatpush2.msra.mxu0 0.0
    %3599 = vmatprep.subr.mxu0 0.0
    %3600 = vmatpush2.msra.mxu0 0.0
    %3601 = vmatprep.subr.mxu0 0.0
    %3602 = vmatpush2.msra.mxu0 0.0
    %3603 = vmatprep.subr.mxu0 0.0
    %3604 = vmatpush2.msra.mxu0 0.0
    %3605 = vmatprep.subr.mxu0 0.0
    %3606 = vmatpush2.msra.mxu0 0.0
    %3607 = vmatprep.mubr.f32.mxu0 0.0
    %3608 = vmatmul.mubr.f32.gmra.mxu0 %v3541
    %v3609 = vpop.f32.mrf.mxu0
    %v3610 = vadd.f32 0.0, %v3609
    %v3611 = vpop.f32.mrf.mxu0
    %3612 = vdwg.mxu0
    %v3613 = vadd.f32 %v3452, %v3610
    %v3614 = vmul.f32 %v3048, %v1241
    %3615 = vmatprep.subr.mxu0 0.0
    %3616 = vmatpush1.xpose.msra.mxu0 0.0
    %3617 = vmatprep.subr.mxu0 0.0
    %3618 = vmatpush1.xpose.msra.mxu0 0.0
    %3619 = vmatprep.subr.mxu0 0.0
    %3620 = vmatpush1.xpose.msra.mxu0 0.0
    %3621 = vmatprep.subr.mxu0 0.0
    %3622 = vmatpush1.xpose.msra.mxu0 0.0
    %3623 = vmatprep.subr.mxu0 0.0
    %3624 = vmatpush1.xpose.msra.mxu0 0.0
    %3625 = vmatprep.subr.mxu0 0.0
    %3626 = vmatpush1.xpose.msra.mxu0 0.0
    %3627 = vmatprep.subr.mxu0 0.0
    %3628 = vmatpush1.xpose.msra.mxu0 0.0
    %3629 = vmatprep.subr.mxu0 0.0
    %3630 = vmatpush1.xpose.msra.mxu0 0.0
    %3631 = vmatprep.subr.mxu0 0.0
    %3632 = vmatpush1.xpose.msra.mxu0 0.0
    %3633 = vmatprep.subr.mxu0 0.0
    %3634 = vmatpush1.xpose.msra.mxu0 0.0
    %3635 = vmatprep.subr.mxu0 0.0
    %3636 = vmatpush1.xpose.msra.mxu0 0.0
    %3637 = vmatprep.subr.mxu0 0.0
    %3638 = vmatpush1.xpose.msra.mxu0 0.0
    %3639 = vmatprep.subr.mxu0 0.0
    %3640 = vmatpush1.xpose.msra.mxu0 0.0
    %3641 = vmatprep.subr.mxu0 0.0
    %3642 = vmatpush1.xpose.msra.mxu0 0.0
    %3643 = vmatprep.subr.mxu0 0.0
    %3644 = vmatpush1.xpose.msra.mxu0 0.0
    %3645 = vmatprep.subr.mxu0 0.0
    %3646 = vmatpush1.xpose.msra.mxu0 %v3050
    %3647 = vmatprep.subr.mxu0 0.0
    %3648 = vmatpush2.xpose.msra.mxu0 0.0
    %3649 = vmatprep.subr.mxu0 0.0
    %3650 = vmatpush2.xpose.msra.mxu0 0.0
    %3651 = vmatprep.subr.mxu0 0.0
    %3652 = vmatpush2.xpose.msra.mxu0 0.0
    %3653 = vmatprep.subr.mxu0 0.0
    %3654 = vmatpush2.xpose.msra.mxu0 0.0
    %3655 = vmatprep.subr.mxu0 0.0
    %3656 = vmatpush2.xpose.msra.mxu0 0.0
    %3657 = vmatprep.subr.mxu0 0.0
    %3658 = vmatpush2.xpose.msra.mxu0 0.0
    %3659 = vmatprep.subr.mxu0 0.0
    %3660 = vmatpush2.xpose.msra.mxu0 0.0
    %3661 = vmatprep.subr.mxu0 0.0
    %3662 = vmatpush2.xpose.msra.mxu0 0.0
    %3663 = vmatprep.subr.mxu0 0.0
    %3664 = vmatpush2.xpose.msra.mxu0 0.0
    %3665 = vmatprep.subr.mxu0 0.0
    %3666 = vmatpush2.xpose.msra.mxu0 0.0
    %3667 = vmatprep.subr.mxu0 0.0
    %3668 = vmatpush2.xpose.msra.mxu0 0.0
    %3669 = vmatprep.subr.mxu0 0.0
    %3670 = vmatpush2.xpose.msra.mxu0 0.0
    %3671 = vmatprep.subr.mxu0 0.0
    %3672 = vmatpush2.xpose.msra.mxu0 0.0
    %3673 = vmatprep.subr.mxu0 0.0
    %3674 = vmatpush2.xpose.msra.mxu0 0.0
    %3675 = vmatprep.subr.mxu0 0.0
    %3676 = vmatpush2.xpose.msra.mxu0 0.0
    %3677 = vmatprep.subr.mxu0 0.0
    %3678 = vmatpush2.xpose.msra.mxu0 0.0
    %3679 = vmatprep.mubr.f32.mxu0 0.0
    %3680 = vmatmul.mubr.f32.gmra.mxu0 %v3614
    %v3681 = vpop.f32.mrf.mxu0
    %v3682 = vadd.f32 0.0, %v3681
    %v3683 = vpop.f32.mrf.mxu0
    %3684 = vdwg.mxu0
    %v3685 = vmul.f32 %v3682, 0.35355338
    %v3686 = vsel %vm523, %v3685, -1e+09
    %v3687 = vsel %vm825, %v3686, -inf
    %3688 = vmax.xlane.f32.xlu0 %v3687
    %v3689 = vpop.xlane.xlu0 %3688
    %v3690 = vsub.f32 %v3686, %v3689
    %v3691 = vmul.f32 %v3690, 1.442695
    %v3692 = vpow.pop %v3691
    %v3693 = vsel %vm825, %v3692, 0.0
    %3694 = vadd.xlane.f32.xlu0 %v3693
    %v3695 = vpop.xlane.xlu0 %3694
    %v3696 = vrcp.pop %v3695
    %v3697 = vmul.f32 %v3692, %v3696
    %v3698 = vmul.f32 %v3119, %v1241
    %v3700 = vsel %vm825, %v3697, 0
    %3702 = vmatprep.subr.mxu0 0.0
    %3703 = vmatpush1.msra.mxu0 0.0
    %3704 = vmatprep.subr.mxu0 0.0
    %3705 = vmatpush1.msra.mxu0 0.0
    %3706 = vmatprep.subr.mxu0 0.0
    %3707 = vmatpush1.msra.mxu0 0.0
    %3708 = vmatprep.subr.mxu0 0.0
    %3709 = vmatpush1.msra.mxu0 0.0
    %3710 = vmatprep.subr.mxu0 0.0
    %3711 = vmatpush1.msra.mxu0 0.0
    %3712 = vmatprep.subr.mxu0 0.0
    %3713 = vmatpush1.msra.mxu0 0.0
    %3714 = vmatprep.subr.mxu0 0.0
    %3715 = vmatpush1.msra.mxu0 0.0
    %3716 = vmatprep.subr.mxu0 0.0
    %3717 = vmatpush1.msra.mxu0 0.0
    %3718 = vmatprep.subr.mxu0 0.0
    %3719 = vmatpush1.msra.mxu0 0.0
    %3720 = vmatprep.subr.mxu0 0.0
    %3721 = vmatpush1.msra.mxu0 0.0
    %3722 = vmatprep.subr.mxu0 0.0
    %3723 = vmatpush1.msra.mxu0 0.0
    %3724 = vmatprep.subr.mxu0 0.0
    %3725 = vmatpush1.msra.mxu0 0.0
    %3726 = vmatprep.subr.mxu0 0.0
    %3727 = vmatpush1.msra.mxu0 0.0
    %3728 = vmatprep.subr.mxu0 0.0
    %3729 = vmatpush1.msra.mxu0 0.0
    %3730 = vmatprep.subr.mxu0 0.0
    %3731 = vmatpush1.msra.mxu0 0.0
    %3732 = vmatprep.subr.mxu0 0.0
    %3733 = vmatpush1.msra.mxu0 %v3698
    %3734 = vmatprep.subr.mxu0 0.0
    %3735 = vmatpush2.msra.mxu0 0.0
    %3736 = vmatprep.subr.mxu0 0.0
    %3737 = vmatpush2.msra.mxu0 0.0
    %3738 = vmatprep.subr.mxu0 0.0
    %3739 = vmatpush2.msra.mxu0 0.0
    %3740 = vmatprep.subr.mxu0 0.0
    %3741 = vmatpush2.msra.mxu0 0.0
    %3742 = vmatprep.subr.mxu0 0.0
    %3743 = vmatpush2.msra.mxu0 0.0
    %3744 = vmatprep.subr.mxu0 0.0
    %3745 = vmatpush2.msra.mxu0 0.0
    %3746 = vmatprep.subr.mxu0 0.0
    %3747 = vmatpush2.msra.mxu0 0.0
    %3748 = vmatprep.subr.mxu0 0.0
    %3749 = vmatpush2.msra.mxu0 0.0
    %3750 = vmatprep.subr.mxu0 0.0
    %3751 = vmatpush2.msra.mxu0 0.0
    %3752 = vmatprep.subr.mxu0 0.0
    %3753 = vmatpush2.msra.mxu0 0.0
    %3754 = vmatprep.subr.mxu0 0.0
    %3755 = vmatpush2.msra.mxu0 0.0
    %3756 = vmatprep.subr.mxu0 0.0
    %3757 = vmatpush2.msra.mxu0 0.0
    %3758 = vmatprep.subr.mxu0 0.0
    %3759 = vmatpush2.msra.mxu0 0.0
    %3760 = vmatprep.subr.mxu0 0.0
    %3761 = vmatpush2.msra.mxu0 0.0
    %3762 = vmatprep.subr.mxu0 0.0
    %3763 = vmatpush2.msra.mxu0 0.0
    %3764 = vmatprep.subr.mxu0 0.0
    %3765 = vmatpush2.msra.mxu0 0.0
    %3766 = vmatprep.mubr.f32.mxu0 0.0
    %3767 = vmatmul.mubr.f32.gmra.mxu0 %v3700
    %v3768 = vpop.f32.mrf.mxu0
    %v3769 = vadd.f32 0.0, %v3768
    %v3770 = vpop.f32.mrf.mxu0
    %3771 = vdwg.mxu0
    %v3772 = vadd.f32 %v3613, %v3769
    %v3774 = vlaneseq
    %v3775 = vshrl.u32 %v3774, 7
    %v3776 = vsub.s32 0, %v3775
    %v3777 = vrot.slane %v3138, %v3776
    %3779 = vmatprep.subr.mxu0 0.0
    %3780 = vmatpush1.msra.mxu0 %v3137
    %3781 = vmatprep.subr.mxu0 0.0
    %3782 = vmatpush1.msra.mxu0 %v3136
    %3783 = vmatprep.subr.mxu0 0.0
    %3784 = vmatpush1.msra.mxu0 %v3135
    %3785 = vmatprep.subr.mxu0 0.0
    %3786 = vmatpush1.msra.mxu0 %v3134
    %3787 = vmatprep.subr.mxu0 0.0
    %3788 = vmatpush1.msra.mxu0 %v3133
    %3789 = vmatprep.subr.mxu0 0.0
    %3790 = vmatpush1.msra.mxu0 %v3132
    %3791 = vmatprep.subr.mxu0 0.0
    %3792 = vmatpush1.msra.mxu0 %v3131
    %3793 = vmatprep.subr.mxu0 0.0
    %3794 = vmatpush1.msra.mxu0 %v3130
    %3795 = vmatprep.subr.mxu0 0.0
    %3796 = vmatpush1.msra.mxu0 %v3129
    %3797 = vmatprep.subr.mxu0 0.0
    %3798 = vmatpush1.msra.mxu0 %v3128
    %3799 = vmatprep.subr.mxu0 0.0
    %3800 = vmatpush1.msra.mxu0 %v3127
    %3801 = vmatprep.subr.mxu0 0.0
    %3802 = vmatpush1.msra.mxu0 %v3126
    %3803 = vmatprep.subr.mxu0 0.0
    %3804 = vmatpush1.msra.mxu0 %v3125
    %3805 = vmatprep.subr.mxu0 0.0
    %3806 = vmatpush1.msra.mxu0 %v3124
    %3807 = vmatprep.subr.mxu0 0.0
    %3808 = vmatpush1.msra.mxu0 %v3123
    %3809 = vmatprep.subr.mxu0 0.0
    %3810 = vmatpush1.msra.mxu0 %v3122
    %3811 = vmatprep.subr.mxu0 0.0
    %3812 = vmatpush2.msra.mxu0 0.0
    %3813 = vmatprep.subr.mxu0 0.0
    %3814 = vmatpush2.msra.mxu0 0.0
    %3815 = vmatprep.subr.mxu0 0.0
    %3816 = vmatpush2.msra.mxu0 0.0
    %3817 = vmatprep.subr.mxu0 0.0
    %3818 = vmatpush2.msra.mxu0 0.0
    %3819 = vmatprep.subr.mxu0 0.0
    %3820 = vmatpush2.msra.mxu0 0.0
    %3821 = vmatprep.subr.mxu0 0.0
    %3822 = vmatpush2.msra.mxu0 0.0
    %3823 = vmatprep.subr.mxu0 0.0
    %3824 = vmatpush2.msra.mxu0 0.0
    %3825 = vmatprep.subr.mxu0 0.0
    %3826 = vmatpush2.msra.mxu0 0.0
    %3827 = vmatprep.subr.mxu0 0.0
    %3828 = vmatpush2.msra.mxu0 0.0
    %3829 = vmatprep.subr.mxu0 0.0
    %3830 = vmatpush2.msra.mxu0 0.0
    %3831 = vmatprep.subr.mxu0 0.0
    %3832 = vmatpush2.msra.mxu0 0.0
    %3833 = vmatprep.subr.mxu0 0.0
    %3834 = vmatpush2.msra.mxu0 0.0
    %3835 = vmatprep.subr.mxu0 0.0
    %3836 = vmatpush2.msra.mxu0 0.0
    %3837 = vmatprep.subr.mxu0 0.0
    %3838 = vmatpush2.msra.mxu0 0.0
    %3839 = vmatprep.subr.mxu0 0.0
    %3840 = vmatpush2.msra.mxu0 0.0
    %3841 = vmatprep.subr.mxu0 0.0
    %3842 = vmatpush2.msra.mxu0 0.0
    %3843 = vmatprep.mubr.f32.mxu0 0.0
    %3844 = vmatmul.mubr.f32.gmra.mxu0 %v3772
    %v3845 = vpop.f32.mrf.mxu0
    %v3846 = vadd.f32 %v3777, %v3845
    %v3847 = vpop.f32.mrf.mxu0
    %3848 = vdwg.mxu0
    %v3849 = vld [vmem:[#allocation16] sm:$0x1]
    %v3850 = vld [vmem:[#allocation14] sm:$0x1]
    %v3851 = vadd.f32 %v503, %v3846
    %v3852 = vmul.f32 %v3851, %v501
    %3853 = vadd.xlane.f32.xlu0 %v3852
    %v3854 = vpop.xlane.xlu0 %3853
    %v3855 = vmul.f32 %v3854, 0.03125
    %v3856 = vsub.f32 %v3851, %v3855
    %v3857 = vmul.f32 %v3856, %v501
    %v3858 = vmul.f32 %v3857, %v3857
    %3859 = vadd.xlane.f32.xlu0 %v3858
    %v3860 = vpop.xlane.xlu0 %3859
    %v3861 = vmul.f32 %v3860, 0.03125
    %v3862 = vadd.f32 %v3861, 1e-05
    %v3863 = vrsqrt.pop %v3862
    %v3864 = vmul.f32 %v3857, %v3863
    %v3866 = vlaneseq
    %v3867 = vshrl.u32 %v3866, 7
    %v3868 = vsub.s32 0, %v3867
    %v3869 = vrot.slane %v3849, %v3868
    %v3871 = vmul.f32 %v3864, %v3869
    %v3873 = vlaneseq
    %v3874 = vshrl.u32 %v3873, 7
    %v3875 = vsub.s32 0, %v3874
    %v3876 = vrot.slane %v3850, %v3875
    %v3878 = vadd.f32 %v3871, %v3876
    %v3879 = vld [vmem:[#allocation32] sm:$0xff]
    %v3880 = vld [vmem:[#allocation32 + $0x8] sm:$0xff]
    %v3881 = vld [vmem:[#allocation32 + $0x10] sm:$0xff]
    %v3882 = vld [vmem:[#allocation32 + $0x18] sm:$0xff]
    %v3883 = vld [vmem:[#allocation32 + $0x20] sm:$0xff]
    %v3884 = vld [vmem:[#allocation32 + $0x28] sm:$0xff]
    %v3885 = vld [vmem:[#allocation32 + $0x30] sm:$0xff]
    %v3886 = vld [vmem:[#allocation32 + $0x38] sm:$0xff]
    %v3887 = vld [vmem:[#allocation32 + $0x40] sm:$0xff]
    %v3888 = vld [vmem:[#allocation32 + $0x48] sm:$0xff]
    %v3889 = vld [vmem:[#allocation32 + $0x50] sm:$0xff]
    %v3890 = vld [vmem:[#allocation32 + $0x58] sm:$0xff]
    %v3891 = vld [vmem:[#allocation32 + $0x60] sm:$0xff]
    %v3892 = vld [vmem:[#allocation32 + $0x68] sm:$0xff]
    %v3893 = vld [vmem:[#allocation32 + $0x70] sm:$0xff]
    %v3894 = vld [vmem:[#allocation32 + $0x78] sm:$0xff]
    %v3895 = vld [vmem:[#allocation13] sm:$0x1]
    %v3897 = vlaneseq
    %v3898 = vshrl.u32 %v3897, 7
    %v3899 = vsub.s32 0, %v3898
    %v3900 = vrot.slane %v3895, %v3899
    %3902 = vmatprep.subr.mxu0 0.0
    %3903 = vmatpush1.msra.mxu0 %v3894
    %3904 = vmatprep.subr.mxu0 0.0
    %3905 = vmatpush1.msra.mxu0 %v3893
    %3906 = vmatprep.subr.mxu0 0.0
    %3907 = vmatpush1.msra.mxu0 %v3892
    %3908 = vmatprep.subr.mxu0 0.0
    %3909 = vmatpush1.msra.mxu0 %v3891
    %3910 = vmatprep.subr.mxu0 0.0
    %3911 = vmatpush1.msra.mxu0 %v3890
    %3912 = vmatprep.subr.mxu0 0.0
    %3913 = vmatpush1.msra.mxu0 %v3889
    %3914 = vmatprep.subr.mxu0 0.0
    %3915 = vmatpush1.msra.mxu0 %v3888
    %3916 = vmatprep.subr.mxu0 0.0
    %3917 = vmatpush1.msra.mxu0 %v3887
    %3918 = vmatprep.subr.mxu0 0.0
    %3919 = vmatpush1.msra.mxu0 %v3886
    %3920 = vmatprep.subr.mxu0 0.0
    %3921 = vmatpush1.msra.mxu0 %v3885
    %3922 = vmatprep.subr.mxu0 0.0
    %3923 = vmatpush1.msra.mxu0 %v3884
    %3924 = vmatprep.subr.mxu0 0.0
    %3925 = vmatpush1.msra.mxu0 %v3883
    %3926 = vmatprep.subr.mxu0 0.0
    %3927 = vmatpush1.msra.mxu0 %v3882
    %3928 = vmatprep.subr.mxu0 0.0
    %3929 = vmatpush1.msra.mxu0 %v3881
    %3930 = vmatprep.subr.mxu0 0.0
    %3931 = vmatpush1.msra.mxu0 %v3880
    %3932 = vmatprep.subr.mxu0 0.0
    %3933 = vmatpush1.msra.mxu0 %v3879
    %3934 = vmatprep.subr.mxu0 0.0
    %3935 = vmatpush2.msra.mxu0 0.0
    %3936 = vmatprep.subr.mxu0 0.0
    %3937 = vmatpush2.msra.mxu0 0.0
    %3938 = vmatprep.subr.mxu0 0.0
    %3939 = vmatpush2.msra.mxu0 0.0
    %3940 = vmatprep.subr.mxu0 0.0
    %3941 = vmatpush2.msra.mxu0 0.0
    %3942 = vmatprep.subr.mxu0 0.0
    %3943 = vmatpush2.msra.mxu0 0.0
    %3944 = vmatprep.subr.mxu0 0.0
    %3945 = vmatpush2.msra.mxu0 0.0
    %3946 = vmatprep.subr.mxu0 0.0
    %3947 = vmatpush2.msra.mxu0 0.0
    %3948 = vmatprep.subr.mxu0 0.0
    %3949 = vmatpush2.msra.mxu0 0.0
    %3950 = vmatprep.subr.mxu0 0.0
    %3951 = vmatpush2.msra.mxu0 0.0
    %3952 = vmatprep.subr.mxu0 0.0
    %3953 = vmatpush2.msra.mxu0 0.0
    %3954 = vmatprep.subr.mxu0 0.0
    %3955 = vmatpush2.msra.mxu0 0.0
    %3956 = vmatprep.subr.mxu0 0.0
    %3957 = vmatpush2.msra.mxu0 0.0
    %3958 = vmatprep.subr.mxu0 0.0
    %3959 = vmatpush2.msra.mxu0 0.0
    %3960 = vmatprep.subr.mxu0 0.0
    %3961 = vmatpush2.msra.mxu0 0.0
    %3962 = vmatprep.subr.mxu0 0.0
    %3963 = vmatpush2.msra.mxu0 0.0
    %3964 = vmatprep.subr.mxu0 0.0
    %3965 = vmatpush2.msra.mxu0 0.0
    %3966 = vmatprep.mubr.f32.mxu0 0.0
    %3967 = vmatmul.mubr.f32.gmra.mxu0 %v3878
    %v3968 = vpop.f32.mrf.mxu0
    %v3969 = vadd.f32 %v3900, %v3968
    %v3970 = vpop.f32.mrf.mxu0
    %3971 = vdwg.mxu0
    %v3972 = vld [vmem:[#allocation28] sm:$0xff]
    %v3973 = vld [vmem:[#allocation28 + $0x8] sm:$0xff]
    %v3974 = vld [vmem:[#allocation28 + $0x10] sm:$0xff]
    %v3975 = vld [vmem:[#allocation28 + $0x18] sm:$0xff]
    %v3976 = vld [vmem:[#allocation28 + $0x20] sm:$0xff]
    %v3977 = vld [vmem:[#allocation28 + $0x28] sm:$0xff]
    %v3978 = vld [vmem:[#allocation28 + $0x30] sm:$0xff]
    %v3979 = vld [vmem:[#allocation28 + $0x38] sm:$0xff]
    %v3980 = vld [vmem:[#allocation28 + $0x40] sm:$0xff]
    %v3981 = vld [vmem:[#allocation28 + $0x48] sm:$0xff]
    %v3982 = vld [vmem:[#allocation28 + $0x50] sm:$0xff]
    %v3983 = vld [vmem:[#allocation28 + $0x58] sm:$0xff]
    %v3984 = vld [vmem:[#allocation28 + $0x60] sm:$0xff]
    %v3985 = vld [vmem:[#allocation28 + $0x68] sm:$0xff]
    %v3986 = vld [vmem:[#allocation28 + $0x70] sm:$0xff]
    %v3987 = vld [vmem:[#allocation28 + $0x78] sm:$0xff]
    %v3988 = vld [vmem:[#allocation28 + $0x80] sm:$0xff]
    %v3989 = vld [vmem:[#allocation28 + $0x88] sm:$0xff]
    %v3990 = vld [vmem:[#allocation28 + $0x90] sm:$0xff]
    %v3991 = vld [vmem:[#allocation28 + $0x98] sm:$0xff]
    %v3992 = vld [vmem:[#allocation28 + $0xa0] sm:$0xff]
    %v3993 = vld [vmem:[#allocation28 + $0xa8] sm:$0xff]
    %v3994 = vld [vmem:[#allocation28 + $0xb0] sm:$0xff]
    %v3995 = vld [vmem:[#allocation28 + $0xb8] sm:$0xff]
    %v3996 = vld [vmem:[#allocation28 + $0xc0] sm:$0xff]
    %v3997 = vld [vmem:[#allocation28 + $0xc8] sm:$0xff]
    %v3998 = vld [vmem:[#allocation28 + $0xd0] sm:$0xff]
    %v3999 = vld [vmem:[#allocation28 + $0xd8] sm:$0xff]
    %v4000 = vld [vmem:[#allocation28 + $0xe0] sm:$0xff]
    %v4001 = vld [vmem:[#allocation28 + $0xe8] sm:$0xff]
    %v4002 = vld [vmem:[#allocation28 + $0xf0] sm:$0xff]
    %v4003 = vld [vmem:[#allocation28 + $0xf8] sm:$0xff]
    %v4004 = vld [vmem:[#allocation8] sm:$0x3]
    %v4006 = vlaneseq
    %v4007 = vshrl.u32 %v4006, 7
    %v4008 = vsub.s32 0, %v4007
    %v4009 = vrot.slane %v4004, %v4008
    %v4010 = vlaneseq
    %v4011 = vshrl.u32 %v4010, 7
    %v4012 = vsub.s32 1, %v4011
    %v4013 = vrot.slane %v4004, %v4012
    %4016 = vmatprep.subr.mxu0 %v4003
    %4017 = vmatpush1.msra.mxu0 %v4002
    %4018 = vmatprep.subr.mxu0 %v4001
    %4019 = vmatpush1.msra.mxu0 %v4000
    %4020 = vmatprep.subr.mxu0 %v3999
    %4021 = vmatpush1.msra.mxu0 %v3998
    %4022 = vmatprep.subr.mxu0 %v3997
    %4023 = vmatpush1.msra.mxu0 %v3996
    %4024 = vmatprep.subr.mxu0 %v3995
    %4025 = vmatpush1.msra.mxu0 %v3994
    %4026 = vmatprep.subr.mxu0 %v3993
    %4027 = vmatpush1.msra.mxu0 %v3992
    %4028 = vmatprep.subr.mxu0 %v3991
    %4029 = vmatpush1.msra.mxu0 %v3990
    %4030 = vmatprep.subr.mxu0 %v3989
    %4031 = vmatpush1.msra.mxu0 %v3988
    %4032 = vmatprep.subr.mxu0 %v3987
    %4033 = vmatpush1.msra.mxu0 %v3986
    %4034 = vmatprep.subr.mxu0 %v3985
    %4035 = vmatpush1.msra.mxu0 %v3984
    %4036 = vmatprep.subr.mxu0 %v3983
    %4037 = vmatpush1.msra.mxu0 %v3982
    %4038 = vmatprep.subr.mxu0 %v3981
    %4039 = vmatpush1.msra.mxu0 %v3980
    %4040 = vmatprep.subr.mxu0 %v3979
    %4041 = vmatpush1.msra.mxu0 %v3978
    %4042 = vmatprep.subr.mxu0 %v3977
    %4043 = vmatpush1.msra.mxu0 %v3976
    %4044 = vmatprep.subr.mxu0 %v3975
    %4045 = vmatpush1.msra.mxu0 %v3974
    %4046 = vmatprep.subr.mxu0 %v3973
    %4047 = vmatpush1.msra.mxu0 %v3972
    %4048 = vmatprep.subr.mxu0 0.0
    %4049 = vmatpush2.msra.mxu0 0.0
    %4050 = vmatprep.subr.mxu0 0.0
    %4051 = vmatpush2.msra.mxu0 0.0
    %4052 = vmatprep.subr.mxu0 0.0
    %4053 = vmatpush2.msra.mxu0 0.0
    %4054 = vmatprep.subr.mxu0 0.0
    %4055 = vmatpush2.msra.mxu0 0.0
    %4056 = vmatprep.subr.mxu0 0.0
    %4057 = vmatpush2.msra.mxu0 0.0
    %4058 = vmatprep.subr.mxu0 0.0
    %4059 = vmatpush2.msra.mxu0 0.0
    %4060 = vmatprep.subr.mxu0 0.0
    %4061 = vmatpush2.msra.mxu0 0.0
    %4062 = vmatprep.subr.mxu0 0.0
    %4063 = vmatpush2.msra.mxu0 0.0
    %4064 = vmatprep.subr.mxu0 0.0
    %4065 = vmatpush2.msra.mxu0 0.0
    %4066 = vmatprep.subr.mxu0 0.0
    %4067 = vmatpush2.msra.mxu0 0.0
    %4068 = vmatprep.subr.mxu0 0.0
    %4069 = vmatpush2.msra.mxu0 0.0
    %4070 = vmatprep.subr.mxu0 0.0
    %4071 = vmatpush2.msra.mxu0 0.0
    %4072 = vmatprep.subr.mxu0 0.0
    %4073 = vmatpush2.msra.mxu0 0.0
    %4074 = vmatprep.subr.mxu0 0.0
    %4075 = vmatpush2.msra.mxu0 0.0
    %4076 = vmatprep.subr.mxu0 0.0
    %4077 = vmatpush2.msra.mxu0 0.0
    %4078 = vmatprep.subr.mxu0 0.0
    %4079 = vmatpush2.msra.mxu0 0.0
    %4080 = vmatprep.mubr.f32.mxu0 0.0
    %4081 = vmatmul.mubr.f32.gmra.mxu0 %v2915
    %v4082 = vpop.f32.mrf.mxu0
    %v4083 = vadd.f32 %v4009, %v4082
    %v4084 = vpop.f32.mrf.mxu0
    %v4085 = vadd.f32 %v4013, %v4084
    %4086 = vdwg.mxu0
    %v4087 = vld [vmem:[#allocation31] sm:$0xff]
    %v4088 = vld [vmem:[#allocation31 + $0x8] sm:$0xff]
    %v4089 = vld [vmem:[#allocation31 + $0x10] sm:$0xff]
    %v4090 = vld [vmem:[#allocation31 + $0x18] sm:$0xff]
    %v4091 = vld [vmem:[#allocation31 + $0x20] sm:$0xff]
    %v4092 = vld [vmem:[#allocation31 + $0x28] sm:$0xff]
    %v4093 = vld [vmem:[#allocation31 + $0x30] sm:$0xff]
    %v4094 = vld [vmem:[#allocation31 + $0x38] sm:$0xff]
    %v4095 = vld [vmem:[#allocation31 + $0x40] sm:$0xff]
    %v4096 = vld [vmem:[#allocation31 + $0x48] sm:$0xff]
    %v4097 = vld [vmem:[#allocation31 + $0x50] sm:$0xff]
    %v4098 = vld [vmem:[#allocation31 + $0x58] sm:$0xff]
    %v4099 = vld [vmem:[#allocation31 + $0x60] sm:$0xff]
    %v4100 = vld [vmem:[#allocation31 + $0x68] sm:$0xff]
    %v4101 = vld [vmem:[#allocation31 + $0x70] sm:$0xff]
    %v4102 = vld [vmem:[#allocation31 + $0x78] sm:$0xff]
    %v4103 = vld [vmem:[#allocation11] sm:$0x1]
    %v4104 = vmul.f32 %v3969, %v751
    %4105 = vmatprep.subr.mxu0 0.0
    %4106 = vmatpush1.xpose.msra.mxu0 0.0
    %4107 = vmatprep.subr.mxu0 0.0
    %4108 = vmatpush1.xpose.msra.mxu0 0.0
    %4109 = vmatprep.subr.mxu0 0.0
    %4110 = vmatpush1.xpose.msra.mxu0 0.0
    %4111 = vmatprep.subr.mxu0 0.0
    %4112 = vmatpush1.xpose.msra.mxu0 0.0
    %4113 = vmatprep.subr.mxu0 0.0
    %4114 = vmatpush1.xpose.msra.mxu0 0.0
    %4115 = vmatprep.subr.mxu0 0.0
    %4116 = vmatpush1.xpose.msra.mxu0 0.0
    %4117 = vmatprep.subr.mxu0 0.0
    %4118 = vmatpush1.xpose.msra.mxu0 0.0
    %4119 = vmatprep.subr.mxu0 0.0
    %4120 = vmatpush1.xpose.msra.mxu0 0.0
    %4121 = vmatprep.subr.mxu0 0.0
    %4122 = vmatpush1.xpose.msra.mxu0 0.0
    %4123 = vmatprep.subr.mxu0 0.0
    %4124 = vmatpush1.xpose.msra.mxu0 0.0
    %4125 = vmatprep.subr.mxu0 0.0
    %4126 = vmatpush1.xpose.msra.mxu0 0.0
    %4127 = vmatprep.subr.mxu0 0.0
    %4128 = vmatpush1.xpose.msra.mxu0 0.0
    %4129 = vmatprep.subr.mxu0 0.0
    %4130 = vmatpush1.xpose.msra.mxu0 0.0
    %4131 = vmatprep.subr.mxu0 0.0
    %4132 = vmatpush1.xpose.msra.mxu0 0.0
    %4133 = vmatprep.subr.mxu0 0.0
    %4134 = vmatpush1.xpose.msra.mxu0 0.0
    %4135 = vmatprep.subr.mxu0 0.0
    %4136 = vmatpush1.xpose.msra.mxu0 %v4083
    %4137 = vmatprep.subr.mxu0 0.0
    %4138 = vmatpush2.xpose.msra.mxu0 0.0
    %4139 = vmatprep.subr.mxu0 0.0
    %4140 = vmatpush2.xpose.msra.mxu0 0.0
    %4141 = vmatprep.subr.mxu0 0.0
    %4142 = vmatpush2.xpose.msra.mxu0 0.0
    %4143 = vmatprep.subr.mxu0 0.0
    %4144 = vmatpush2.xpose.msra.mxu0 0.0
    %4145 = vmatprep.subr.mxu0 0.0
    %4146 = vmatpush2.xpose.msra.mxu0 0.0
    %4147 = vmatprep.subr.mxu0 0.0
    %4148 = vmatpush2.xpose.msra.mxu0 0.0
    %4149 = vmatprep.subr.mxu0 0.0
    %4150 = vmatpush2.xpose.msra.mxu0 0.0
    %4151 = vmatprep.subr.mxu0 0.0
    %4152 = vmatpush2.xpose.msra.mxu0 0.0
    %4153 = vmatprep.subr.mxu0 0.0
    %4154 = vmatpush2.xpose.msra.mxu0 0.0
    %4155 = vmatprep.subr.mxu0 0.0
    %4156 = vmatpush2.xpose.msra.mxu0 0.0
    %4157 = vmatprep.subr.mxu0 0.0
    %4158 = vmatpush2.xpose.msra.mxu0 0.0
    %4159 = vmatprep.subr.mxu0 0.0
    %4160 = vmatpush2.xpose.msra.mxu0 0.0
    %4161 = vmatprep.subr.mxu0 0.0
    %4162 = vmatpush2.xpose.msra.mxu0 0.0
    %4163 = vmatprep.subr.mxu0 0.0
    %4164 = vmatpush2.xpose.msra.mxu0 0.0
    %4165 = vmatprep.subr.mxu0 0.0
    %4166 = vmatpush2.xpose.msra.mxu0 0.0
    %4167 = vmatprep.subr.mxu0 0.0
    %4168 = vmatpush2.xpose.msra.mxu0 0.0
    %4169 = vmatprep.mubr.f32.mxu0 0.0
    %4170 = vmatmul.mubr.f32.gmra.mxu0 %v4104
    %v4171 = vpop.f32.mrf.mxu0
    %v4172 = vadd.f32 0.0, %v4171
    %v4173 = vpop.f32.mrf.mxu0
    %4174 = vdwg.mxu0
    %v4175 = vmul.f32 %v4172, 0.35355338
    %v4176 = vsel %vm513, %v4175, -1e+09
    %v4177 = vsel %vm825, %v4176, -inf
    %4178 = vmax.xlane.f32.xlu0 %v4177
    %v4179 = vpop.xlane.xlu0 %4178
    %v4180 = vsub.f32 %v4176, %v4179
    %v4181 = vmul.f32 %v4180, 1.442695
    %v4182 = vpow.pop %v4181
    %v4183 = vsel %vm825, %v4182, 0.0
    %4184 = vadd.xlane.f32.xlu0 %v4183
    %v4185 = vpop.xlane.xlu0 %4184
    %v4186 = vrcp.pop %v4185
    %v4187 = vmul.f32 %v4182, %v4186
    %v4188 = vmul.f32 %v4085, %v751
    %v4189 = vmul.f32 %v3969, %v842
    %4190 = vmatprep.subr.mxu0 0.0
    %4191 = vmatpush1.xpose.msra.mxu0 0.0
    %4192 = vmatprep.subr.mxu0 0.0
    %4193 = vmatpush1.xpose.msra.mxu0 0.0
    %4194 = vmatprep.subr.mxu0 0.0
    %4195 = vmatpush1.xpose.msra.mxu0 0.0
    %4196 = vmatprep.subr.mxu0 0.0
    %4197 = vmatpush1.xpose.msra.mxu0 0.0
    %4198 = vmatprep.subr.mxu0 0.0
    %4199 = vmatpush1.xpose.msra.mxu0 0.0
    %4200 = vmatprep.subr.mxu0 0.0
    %4201 = vmatpush1.xpose.msra.mxu0 0.0
    %4202 = vmatprep.subr.mxu0 0.0
    %4203 = vmatpush1.xpose.msra.mxu0 0.0
    %4204 = vmatprep.subr.mxu0 0.0
    %4205 = vmatpush1.xpose.msra.mxu0 0.0
    %4206 = vmatprep.subr.mxu0 0.0
    %4207 = vmatpush1.xpose.msra.mxu0 0.0
    %4208 = vmatprep.subr.mxu0 0.0
    %4209 = vmatpush1.xpose.msra.mxu0 0.0
    %4210 = vmatprep.subr.mxu0 0.0
    %4211 = vmatpush1.xpose.msra.mxu0 0.0
    %4212 = vmatprep.subr.mxu0 0.0
    %4213 = vmatpush1.xpose.msra.mxu0 0.0
    %4214 = vmatprep.subr.mxu0 0.0
    %4215 = vmatpush1.xpose.msra.mxu0 0.0
    %4216 = vmatprep.subr.mxu0 0.0
    %4217 = vmatpush1.xpose.msra.mxu0 0.0
    %4218 = vmatprep.subr.mxu0 0.0
    %4219 = vmatpush1.xpose.msra.mxu0 0.0
    %4220 = vmatprep.subr.mxu0 0.0
    %4221 = vmatpush1.xpose.msra.mxu0 %v4083
    %4222 = vmatprep.subr.mxu0 0.0
    %4223 = vmatpush2.xpose.msra.mxu0 0.0
    %4224 = vmatprep.subr.mxu0 0.0
    %4225 = vmatpush2.xpose.msra.mxu0 0.0
    %4226 = vmatprep.subr.mxu0 0.0
    %4227 = vmatpush2.xpose.msra.mxu0 0.0
    %4228 = vmatprep.subr.mxu0 0.0
    %4229 = vmatpush2.xpose.msra.mxu0 0.0
    %4230 = vmatprep.subr.mxu0 0.0
    %4231 = vmatpush2.xpose.msra.mxu0 0.0
    %4232 = vmatprep.subr.mxu0 0.0
    %4233 = vmatpush2.xpose.msra.mxu0 0.0
    %4234 = vmatprep.subr.mxu0 0.0
    %4235 = vmatpush2.xpose.msra.mxu0 0.0
    %4236 = vmatprep.subr.mxu0 0.0
    %4237 = vmatpush2.xpose.msra.mxu0 0.0
    %4238 = vmatprep.subr.mxu0 0.0
    %4239 = vmatpush2.xpose.msra.mxu0 0.0
    %4240 = vmatprep.subr.mxu0 0.0
    %4241 = vmatpush2.xpose.msra.mxu0 0.0
    %4242 = vmatprep.subr.mxu0 0.0
    %4243 = vmatpush2.xpose.msra.mxu0 0.0
    %4244 = vmatprep.subr.mxu0 0.0
    %4245 = vmatpush2.xpose.msra.mxu0 0.0
    %4246 = vmatprep.subr.mxu0 0.0
    %4247 = vmatpush2.xpose.msra.mxu0 0.0
    %4248 = vmatprep.subr.mxu0 0.0
    %4249 = vmatpush2.xpose.msra.mxu0 0.0
    %4250 = vmatprep.subr.mxu0 0.0
    %4251 = vmatpush2.xpose.msra.mxu0 0.0
    %4252 = vmatprep.subr.mxu0 0.0
    %4253 = vmatpush2.xpose.msra.mxu0 0.0
    %4254 = vmatprep.mubr.f32.mxu0 0.0
    %4255 = vmatmul.mubr.f32.gmra.mxu0 %v4189
    %v4256 = vpop.f32.mrf.mxu0
    %v4257 = vadd.f32 0.0, %v4256
    %v4258 = vpop.f32.mrf.mxu0
    %4259 = vdwg.mxu0
    %v4260 = vmul.f32 %v4257, 0.35355338
    %v4261 = vsel %vm513, %v4260, -1e+09
    %v4262 = vsel %vm825, %v4261, -inf
    %4263 = vmax.xlane.f32.xlu0 %v4262
    %v4264 = vpop.xlane.xlu0 %4263
    %v4265 = vsub.f32 %v4261, %v4264
    %v4266 = vmul.f32 %v4265, 1.442695
    %v4267 = vpow.pop %v4266
    %v4268 = vsel %vm825, %v4267, 0.0
    %4269 = vadd.xlane.f32.xlu0 %v4268
    %v4270 = vpop.xlane.xlu0 %4269
    %v4271 = vrcp.pop %v4270
    %v4272 = vmul.f32 %v4267, %v4271
    %v4273 = vmul.f32 %v4085, %v842
    %v4275 = vsel %vm825, %v4272, 0
    %4277 = vmatprep.subr.mxu0 0.0
    %4278 = vmatpush1.msra.mxu0 0.0
    %4279 = vmatprep.subr.mxu0 0.0
    %4280 = vmatpush1.msra.mxu0 0.0
    %4281 = vmatprep.subr.mxu0 0.0
    %4282 = vmatpush1.msra.mxu0 0.0
    %4283 = vmatprep.subr.mxu0 0.0
    %4284 = vmatpush1.msra.mxu0 0.0
    %4285 = vmatprep.subr.mxu0 0.0
    %4286 = vmatpush1.msra.mxu0 0.0
    %4287 = vmatprep.subr.mxu0 0.0
    %4288 = vmatpush1.msra.mxu0 0.0
    %4289 = vmatprep.subr.mxu0 0.0
    %4290 = vmatpush1.msra.mxu0 0.0
    %4291 = vmatprep.subr.mxu0 0.0
    %4292 = vmatpush1.msra.mxu0 0.0
    %4293 = vmatprep.subr.mxu0 0.0
    %4294 = vmatpush1.msra.mxu0 0.0
    %4295 = vmatprep.subr.mxu0 0.0
    %4296 = vmatpush1.msra.mxu0 0.0
    %4297 = vmatprep.subr.mxu0 0.0
    %4298 = vmatpush1.msra.mxu0 0.0
    %4299 = vmatprep.subr.mxu0 0.0
    %4300 = vmatpush1.msra.mxu0 0.0
    %4301 = vmatprep.subr.mxu0 0.0
    %4302 = vmatpush1.msra.mxu0 0.0
    %4303 = vmatprep.subr.mxu0 0.0
    %4304 = vmatpush1.msra.mxu0 0.0
    %4305 = vmatprep.subr.mxu0 0.0
    %4306 = vmatpush1.msra.mxu0 0.0
    %4307 = vmatprep.subr.mxu0 0.0
    %4308 = vmatpush1.msra.mxu0 %v4273
    %4309 = vmatprep.subr.mxu0 0.0
    %4310 = vmatpush2.msra.mxu0 0.0
    %4311 = vmatprep.subr.mxu0 0.0
    %4312 = vmatpush2.msra.mxu0 0.0
    %4313 = vmatprep.subr.mxu0 0.0
    %4314 = vmatpush2.msra.mxu0 0.0
    %4315 = vmatprep.subr.mxu0 0.0
    %4316 = vmatpush2.msra.mxu0 0.0
    %4317 = vmatprep.subr.mxu0 0.0
    %4318 = vmatpush2.msra.mxu0 0.0
    %4319 = vmatprep.subr.mxu0 0.0
    %4320 = vmatpush2.msra.mxu0 0.0
    %4321 = vmatprep.subr.mxu0 0.0
    %4322 = vmatpush2.msra.mxu0 0.0
    %4323 = vmatprep.subr.mxu0 0.0
    %4324 = vmatpush2.msra.mxu0 0.0
    %4325 = vmatprep.subr.mxu0 0.0
    %4326 = vmatpush2.msra.mxu0 0.0
    %4327 = vmatprep.subr.mxu0 0.0
    %4328 = vmatpush2.msra.mxu0 0.0
    %4329 = vmatprep.subr.mxu0 0.0
    %4330 = vmatpush2.msra.mxu0 0.0
    %4331 = vmatprep.subr.mxu0 0.0
    %4332 = vmatpush2.msra.mxu0 0.0
    %4333 = vmatprep.subr.mxu0 0.0
    %4334 = vmatpush2.msra.mxu0 0.0
    %4335 = vmatprep.subr.mxu0 0.0
    %4336 = vmatpush2.msra.mxu0 0.0
    %4337 = vmatprep.subr.mxu0 0.0
    %4338 = vmatpush2.msra.mxu0 0.0
    %4339 = vmatprep.subr.mxu0 0.0
    %4340 = vmatpush2.msra.mxu0 0.0
    %4341 = vmatprep.mubr.f32.mxu0 0.0
    %4342 = vmatmul.mubr.f32.gmra.mxu0 %v4275
    %v4343 = vpop.f32.mrf.mxu0
    %v4344 = vadd.f32 0.0, %v4343
    %v4345 = vpop.f32.mrf.mxu0
    %4346 = vdwg.mxu0
    %v4348 = vsel %vm825, %v4187, 0
    %4350 = vmatprep.subr.mxu0 0.0
    %4351 = vmatpush1.msra.mxu0 0.0
    %4352 = vmatprep.subr.mxu0 0.0
    %4353 = vmatpush1.msra.mxu0 0.0
    %4354 = vmatprep.subr.mxu0 0.0
    %4355 = vmatpush1.msra.mxu0 0.0
    %4356 = vmatprep.subr.mxu0 0.0
    %4357 = vmatpush1.msra.mxu0 0.0
    %4358 = vmatprep.subr.mxu0 0.0
    %4359 = vmatpush1.msra.mxu0 0.0
    %4360 = vmatprep.subr.mxu0 0.0
    %4361 = vmatpush1.msra.mxu0 0.0
    %4362 = vmatprep.subr.mxu0 0.0
    %4363 = vmatpush1.msra.mxu0 0.0
    %4364 = vmatprep.subr.mxu0 0.0
    %4365 = vmatpush1.msra.mxu0 0.0
    %4366 = vmatprep.subr.mxu0 0.0
    %4367 = vmatpush1.msra.mxu0 0.0
    %4368 = vmatprep.subr.mxu0 0.0
    %4369 = vmatpush1.msra.mxu0 0.0
    %4370 = vmatprep.subr.mxu0 0.0
    %4371 = vmatpush1.msra.mxu0 0.0
    %4372 = vmatprep.subr.mxu0 0.0
    %4373 = vmatpush1.msra.mxu0 0.0
    %4374 = vmatprep.subr.mxu0 0.0
    %4375 = vmatpush1.msra.mxu0 0.0
    %4376 = vmatprep.subr.mxu0 0.0
    %4377 = vmatpush1.msra.mxu0 0.0
    %4378 = vmatprep.subr.mxu0 0.0
    %4379 = vmatpush1.msra.mxu0 0.0
    %4380 = vmatprep.subr.mxu0 0.0
    %4381 = vmatpush1.msra.mxu0 %v4188
    %4382 = vmatprep.subr.mxu0 0.0
    %4383 = vmatpush2.msra.mxu0 0.0
    %4384 = vmatprep.subr.mxu0 0.0
    %4385 = vmatpush2.msra.mxu0 0.0
    %4386 = vmatprep.subr.mxu0 0.0
    %4387 = vmatpush2.msra.mxu0 0.0
    %4388 = vmatprep.subr.mxu0 0.0
    %4389 = vmatpush2.msra.mxu0 0.0
    %4390 = vmatprep.subr.mxu0 0.0
    %4391 = vmatpush2.msra.mxu0 0.0
    %4392 = vmatprep.subr.mxu0 0.0
    %4393 = vmatpush2.msra.mxu0 0.0
    %4394 = vmatprep.subr.mxu0 0.0
    %4395 = vmatpush2.msra.mxu0 0.0
    %4396 = vmatprep.subr.mxu0 0.0
    %4397 = vmatpush2.msra.mxu0 0.0
    %4398 = vmatprep.subr.mxu0 0.0
    %4399 = vmatpush2.msra.mxu0 0.0
    %4400 = vmatprep.subr.mxu0 0.0
    %4401 = vmatpush2.msra.mxu0 0.0
    %4402 = vmatprep.subr.mxu0 0.0
    %4403 = vmatpush2.msra.mxu0 0.0
    %4404 = vmatprep.subr.mxu0 0.0
    %4405 = vmatpush2.msra.mxu0 0.0
    %4406 = vmatprep.subr.mxu0 0.0
    %4407 = vmatpush2.msra.mxu0 0.0
    %4408 = vmatprep.subr.mxu0 0.0
    %4409 = vmatpush2.msra.mxu0 0.0
    %4410 = vmatprep.subr.mxu0 0.0
    %4411 = vmatpush2.msra.mxu0 0.0
    %4412 = vmatprep.subr.mxu0 0.0
    %4413 = vmatpush2.msra.mxu0 0.0
    %4414 = vmatprep.mubr.f32.mxu0 0.0
    %4415 = vmatmul.mubr.f32.gmra.mxu0 %v4348
    %v4416 = vpop.f32.mrf.mxu0
    %v4417 = vadd.f32 %v4344, %v4416
    %v4418 = vpop.f32.mrf.mxu0
    %4419 = vdwg.mxu0
    %v4420 = vmul.f32 %v3969, %v1078
    %4421 = vmatprep.subr.mxu0 0.0
    %4422 = vmatpush1.xpose.msra.mxu0 0.0
    %4423 = vmatprep.subr.mxu0 0.0
    %4424 = vmatpush1.xpose.msra.mxu0 0.0
    %4425 = vmatprep.subr.mxu0 0.0
    %4426 = vmatpush1.xpose.msra.mxu0 0.0
    %4427 = vmatprep.subr.mxu0 0.0
    %4428 = vmatpush1.xpose.msra.mxu0 0.0
    %4429 = vmatprep.subr.mxu0 0.0
    %4430 = vmatpush1.xpose.msra.mxu0 0.0
    %4431 = vmatprep.subr.mxu0 0.0
    %4432 = vmatpush1.xpose.msra.mxu0 0.0
    %4433 = vmatprep.subr.mxu0 0.0
    %4434 = vmatpush1.xpose.msra.mxu0 0.0
    %4435 = vmatprep.subr.mxu0 0.0
    %4436 = vmatpush1.xpose.msra.mxu0 0.0
    %4437 = vmatprep.subr.mxu0 0.0
    %4438 = vmatpush1.xpose.msra.mxu0 0.0
    %4439 = vmatprep.subr.mxu0 0.0
    %4440 = vmatpush1.xpose.msra.mxu0 0.0
    %4441 = vmatprep.subr.mxu0 0.0
    %4442 = vmatpush1.xpose.msra.mxu0 0.0
    %4443 = vmatprep.subr.mxu0 0.0
    %4444 = vmatpush1.xpose.msra.mxu0 0.0
    %4445 = vmatprep.subr.mxu0 0.0
    %4446 = vmatpush1.xpose.msra.mxu0 0.0
    %4447 = vmatprep.subr.mxu0 0.0
    %4448 = vmatpush1.xpose.msra.mxu0 0.0
    %4449 = vmatprep.subr.mxu0 0.0
    %4450 = vmatpush1.xpose.msra.mxu0 0.0
    %4451 = vmatprep.subr.mxu0 0.0
    %4452 = vmatpush1.xpose.msra.mxu0 %v4083
    %4453 = vmatprep.subr.mxu0 0.0
    %4454 = vmatpush2.xpose.msra.mxu0 0.0
    %4455 = vmatprep.subr.mxu0 0.0
    %4456 = vmatpush2.xpose.msra.mxu0 0.0
    %4457 = vmatprep.subr.mxu0 0.0
    %4458 = vmatpush2.xpose.msra.mxu0 0.0
    %4459 = vmatprep.subr.mxu0 0.0
    %4460 = vmatpush2.xpose.msra.mxu0 0.0
    %4461 = vmatprep.subr.mxu0 0.0
    %4462 = vmatpush2.xpose.msra.mxu0 0.0
    %4463 = vmatprep.subr.mxu0 0.0
    %4464 = vmatpush2.xpose.msra.mxu0 0.0
    %4465 = vmatprep.subr.mxu0 0.0
    %4466 = vmatpush2.xpose.msra.mxu0 0.0
    %4467 = vmatprep.subr.mxu0 0.0
    %4468 = vmatpush2.xpose.msra.mxu0 0.0
    %4469 = vmatprep.subr.mxu0 0.0
    %4470 = vmatpush2.xpose.msra.mxu0 0.0
    %4471 = vmatprep.subr.mxu0 0.0
    %4472 = vmatpush2.xpose.msra.mxu0 0.0
    %4473 = vmatprep.subr.mxu0 0.0
    %4474 = vmatpush2.xpose.msra.mxu0 0.0
    %4475 = vmatprep.subr.mxu0 0.0
    %4476 = vmatpush2.xpose.msra.mxu0 0.0
    %4477 = vmatprep.subr.mxu0 0.0
    %4478 = vmatpush2.xpose.msra.mxu0 0.0
    %4479 = vmatprep.subr.mxu0 0.0
    %4480 = vmatpush2.xpose.msra.mxu0 0.0
    %4481 = vmatprep.subr.mxu0 0.0
    %4482 = vmatpush2.xpose.msra.mxu0 0.0
    %4483 = vmatprep.subr.mxu0 0.0
    %4484 = vmatpush2.xpose.msra.mxu0 0.0
    %4485 = vmatprep.mubr.f32.mxu0 0.0
    %4486 = vmatmul.mubr.f32.gmra.mxu0 %v4420
    %v4487 = vpop.f32.mrf.mxu0
    %v4488 = vadd.f32 0.0, %v4487
    %v4489 = vpop.f32.mrf.mxu0
    %4490 = vdwg.mxu0
    %v4491 = vmul.f32 %v4488, 0.35355338
    %v4492 = vsel %vm513, %v4491, -1e+09
    %v4493 = vsel %vm825, %v4492, -inf
    %4494 = vmax.xlane.f32.xlu0 %v4493
    %v4495 = vpop.xlane.xlu0 %4494
    %v4496 = vsub.f32 %v4492, %v4495
    %v4497 = vmul.f32 %v4496, 1.442695
    %v4498 = vpow.pop %v4497
    %v4499 = vsel %vm825, %v4498, 0.0
    %4500 = vadd.xlane.f32.xlu0 %v4499
    %v4501 = vpop.xlane.xlu0 %4500
    %v4502 = vrcp.pop %v4501
    %v4503 = vmul.f32 %v4498, %v4502
    %v4504 = vmul.f32 %v4085, %v1078
    %v4506 = vsel %vm825, %v4503, 0
    %4508 = vmatprep.subr.mxu0 0.0
    %4509 = vmatpush1.msra.mxu0 0.0
    %4510 = vmatprep.subr.mxu0 0.0
    %4511 = vmatpush1.msra.mxu0 0.0
    %4512 = vmatprep.subr.mxu0 0.0
    %4513 = vmatpush1.msra.mxu0 0.0
    %4514 = vmatprep.subr.mxu0 0.0
    %4515 = vmatpush1.msra.mxu0 0.0
    %4516 = vmatprep.subr.mxu0 0.0
    %4517 = vmatpush1.msra.mxu0 0.0
    %4518 = vmatprep.subr.mxu0 0.0
    %4519 = vmatpush1.msra.mxu0 0.0
    %4520 = vmatprep.subr.mxu0 0.0
    %4521 = vmatpush1.msra.mxu0 0.0
    %4522 = vmatprep.subr.mxu0 0.0
    %4523 = vmatpush1.msra.mxu0 0.0
    %4524 = vmatprep.subr.mxu0 0.0
    %4525 = vmatpush1.msra.mxu0 0.0
    %4526 = vmatprep.subr.mxu0 0.0
    %4527 = vmatpush1.msra.mxu0 0.0
    %4528 = vmatprep.subr.mxu0 0.0
    %4529 = vmatpush1.msra.mxu0 0.0
    %4530 = vmatprep.subr.mxu0 0.0
    %4531 = vmatpush1.msra.mxu0 0.0
    %4532 = vmatprep.subr.mxu0 0.0
    %4533 = vmatpush1.msra.mxu0 0.0
    %4534 = vmatprep.subr.mxu0 0.0
    %4535 = vmatpush1.msra.mxu0 0.0
    %4536 = vmatprep.subr.mxu0 0.0
    %4537 = vmatpush1.msra.mxu0 0.0
    %4538 = vmatprep.subr.mxu0 0.0
    %4539 = vmatpush1.msra.mxu0 %v4504
    %4540 = vmatprep.subr.mxu0 0.0
    %4541 = vmatpush2.msra.mxu0 0.0
    %4542 = vmatprep.subr.mxu0 0.0
    %4543 = vmatpush2.msra.mxu0 0.0
    %4544 = vmatprep.subr.mxu0 0.0
    %4545 = vmatpush2.msra.mxu0 0.0
    %4546 = vmatprep.subr.mxu0 0.0
    %4547 = vmatpush2.msra.mxu0 0.0
    %4548 = vmatprep.subr.mxu0 0.0
    %4549 = vmatpush2.msra.mxu0 0.0
    %4550 = vmatprep.subr.mxu0 0.0
    %4551 = vmatpush2.msra.mxu0 0.0
    %4552 = vmatprep.subr.mxu0 0.0
    %4553 = vmatpush2.msra.mxu0 0.0
    %4554 = vmatprep.subr.mxu0 0.0
    %4555 = vmatpush2.msra.mxu0 0.0
    %4556 = vmatprep.subr.mxu0 0.0
    %4557 = vmatpush2.msra.mxu0 0.0
    %4558 = vmatprep.subr.mxu0 0.0
    %4559 = vmatpush2.msra.mxu0 0.0
    %4560 = vmatprep.subr.mxu0 0.0
    %4561 = vmatpush2.msra.mxu0 0.0
    %4562 = vmatprep.subr.mxu0 0.0
    %4563 = vmatpush2.msra.mxu0 0.0
    %4564 = vmatprep.subr.mxu0 0.0
    %4565 = vmatpush2.msra.mxu0 0.0
    %4566 = vmatprep.subr.mxu0 0.0
    %4567 = vmatpush2.msra.mxu0 0.0
    %4568 = vmatprep.subr.mxu0 0.0
    %4569 = vmatpush2.msra.mxu0 0.0
    %4570 = vmatprep.subr.mxu0 0.0
    %4571 = vmatpush2.msra.mxu0 0.0
    %4572 = vmatprep.mubr.f32.mxu0 0.0
    %4573 = vmatmul.mubr.f32.gmra.mxu0 %v4506
    %v4574 = vpop.f32.mrf.mxu0
    %v4575 = vadd.f32 0.0, %v4574
    %v4576 = vpop.f32.mrf.mxu0
    %4577 = vdwg.mxu0
    %v4578 = vadd.f32 %v4417, %v4575
    %v4579 = vmul.f32 %v3969, %v1241
    %4580 = vmatprep.subr.mxu0 0.0
    %4581 = vmatpush1.xpose.msra.mxu0 0.0
    %4582 = vmatprep.subr.mxu0 0.0
    %4583 = vmatpush1.xpose.msra.mxu0 0.0
    %4584 = vmatprep.subr.mxu0 0.0
    %4585 = vmatpush1.xpose.msra.mxu0 0.0
    %4586 = vmatprep.subr.mxu0 0.0
    %4587 = vmatpush1.xpose.msra.mxu0 0.0
    %4588 = vmatprep.subr.mxu0 0.0
    %4589 = vmatpush1.xpose.msra.mxu0 0.0
    %4590 = vmatprep.subr.mxu0 0.0
    %4591 = vmatpush1.xpose.msra.mxu0 0.0
    %4592 = vmatprep.subr.mxu0 0.0
    %4593 = vmatpush1.xpose.msra.mxu0 0.0
    %4594 = vmatprep.subr.mxu0 0.0
    %4595 = vmatpush1.xpose.msra.mxu0 0.0
    %4596 = vmatprep.subr.mxu0 0.0
    %4597 = vmatpush1.xpose.msra.mxu0 0.0
    %4598 = vmatprep.subr.mxu0 0.0
    %4599 = vmatpush1.xpose.msra.mxu0 0.0
    %4600 = vmatprep.subr.mxu0 0.0
    %4601 = vmatpush1.xpose.msra.mxu0 0.0
    %4602 = vmatprep.subr.mxu0 0.0
    %4603 = vmatpush1.xpose.msra.mxu0 0.0
    %4604 = vmatprep.subr.mxu0 0.0
    %4605 = vmatpush1.xpose.msra.mxu0 0.0
    %4606 = vmatprep.subr.mxu0 0.0
    %4607 = vmatpush1.xpose.msra.mxu0 0.0
    %4608 = vmatprep.subr.mxu0 0.0
    %4609 = vmatpush1.xpose.msra.mxu0 0.0
    %4610 = vmatprep.subr.mxu0 0.0
    %4611 = vmatpush1.xpose.msra.mxu0 %v4083
    %4612 = vmatprep.subr.mxu0 0.0
    %4613 = vmatpush2.xpose.msra.mxu0 0.0
    %4614 = vmatprep.subr.mxu0 0.0
    %4615 = vmatpush2.xpose.msra.mxu0 0.0
    %4616 = vmatprep.subr.mxu0 0.0
    %4617 = vmatpush2.xpose.msra.mxu0 0.0
    %4618 = vmatprep.subr.mxu0 0.0
    %4619 = vmatpush2.xpose.msra.mxu0 0.0
    %4620 = vmatprep.subr.mxu0 0.0
    %4621 = vmatpush2.xpose.msra.mxu0 0.0
    %4622 = vmatprep.subr.mxu0 0.0
    %4623 = vmatpush2.xpose.msra.mxu0 0.0
    %4624 = vmatprep.subr.mxu0 0.0
    %4625 = vmatpush2.xpose.msra.mxu0 0.0
    %4626 = vmatprep.subr.mxu0 0.0
    %4627 = vmatpush2.xpose.msra.mxu0 0.0
    %4628 = vmatprep.subr.mxu0 0.0
    %4629 = vmatpush2.xpose.msra.mxu0 0.0
    %4630 = vmatprep.subr.mxu0 0.0
    %4631 = vmatpush2.xpose.msra.mxu0 0.0
    %4632 = vmatprep.subr.mxu0 0.0
    %4633 = vmatpush2.xpose.msra.mxu0 0.0
    %4634 = vmatprep.subr.mxu0 0.0
    %4635 = vmatpush2.xpose.msra.mxu0 0.0
    %4636 = vmatprep.subr.mxu0 0.0
    %4637 = vmatpush2.xpose.msra.mxu0 0.0
    %4638 = vmatprep.subr.mxu0 0.0
    %4639 = vmatpush2.xpose.msra.mxu0 0.0
    %4640 = vmatprep.subr.mxu0 0.0
    %4641 = vmatpush2.xpose.msra.mxu0 0.0
    %4642 = vmatprep.subr.mxu0 0.0
    %4643 = vmatpush2.xpose.msra.mxu0 0.0
    %4644 = vmatprep.mubr.f32.mxu0 0.0
    %4645 = vmatmul.mubr.f32.gmra.mxu0 %v4579
    %v4646 = vpop.f32.mrf.mxu0
    %v4647 = vadd.f32 0.0, %v4646
    %v4648 = vpop.f32.mrf.mxu0
    %4649 = vdwg.mxu0
    %v4650 = vmul.f32 %v4647, 0.35355338
    %v4651 = vsel %vm513, %v4650, -1e+09
    %v4652 = vsel %vm825, %v4651, -inf
    %4653 = vmax.xlane.f32.xlu0 %v4652
    %v4654 = vpop.xlane.xlu0 %4653
    %v4655 = vsub.f32 %v4651, %v4654
    %v4656 = vmul.f32 %v4655, 1.442695
    %v4657 = vpow.pop %v4656
    %v4658 = vsel %vm825, %v4657, 0.0
    %4659 = vadd.xlane.f32.xlu0 %v4658
    %v4660 = vpop.xlane.xlu0 %4659
    %v4661 = vrcp.pop %v4660
    %v4662 = vmul.f32 %v4657, %v4661
    %v4663 = vmul.f32 %v4085, %v1241
    %v4665 = vsel %vm825, %v4662, 0
    %4667 = vmatprep.subr.mxu0 0.0
    %4668 = vmatpush1.msra.mxu0 0.0
    %4669 = vmatprep.subr.mxu0 0.0
    %4670 = vmatpush1.msra.mxu0 0.0
    %4671 = vmatprep.subr.mxu0 0.0
    %4672 = vmatpush1.msra.mxu0 0.0
    %4673 = vmatprep.subr.mxu0 0.0
    %4674 = vmatpush1.msra.mxu0 0.0
    %4675 = vmatprep.subr.mxu0 0.0
    %4676 = vmatpush1.msra.mxu0 0.0
    %4677 = vmatprep.subr.mxu0 0.0
    %4678 = vmatpush1.msra.mxu0 0.0
    %4679 = vmatprep.subr.mxu0 0.0
    %4680 = vmatpush1.msra.mxu0 0.0
    %4681 = vmatprep.subr.mxu0 0.0
    %4682 = vmatpush1.msra.mxu0 0.0
    %4683 = vmatprep.subr.mxu0 0.0
    %4684 = vmatpush1.msra.mxu0 0.0
    %4685 = vmatprep.subr.mxu0 0.0
    %4686 = vmatpush1.msra.mxu0 0.0
    %4687 = vmatprep.subr.mxu0 0.0
    %4688 = vmatpush1.msra.mxu0 0.0
    %4689 = vmatprep.subr.mxu0 0.0
    %4690 = vmatpush1.msra.mxu0 0.0
    %4691 = vmatprep.subr.mxu0 0.0
    %4692 = vmatpush1.msra.mxu0 0.0
    %4693 = vmatprep.subr.mxu0 0.0
    %4694 = vmatpush1.msra.mxu0 0.0
    %4695 = vmatprep.subr.mxu0 0.0
    %4696 = vmatpush1.msra.mxu0 0.0
    %4697 = vmatprep.subr.mxu0 0.0
    %4698 = vmatpush1.msra.mxu0 %v4663
    %4699 = vmatprep.subr.mxu0 0.0
    %4700 = vmatpush2.msra.mxu0 0.0
    %4701 = vmatprep.subr.mxu0 0.0
    %4702 = vmatpush2.msra.mxu0 0.0
    %4703 = vmatprep.subr.mxu0 0.0
    %4704 = vmatpush2.msra.mxu0 0.0
    %4705 = vmatprep.subr.mxu0 0.0
    %4706 = vmatpush2.msra.mxu0 0.0
    %4707 = vmatprep.subr.mxu0 0.0
    %4708 = vmatpush2.msra.mxu0 0.0
    %4709 = vmatprep.subr.mxu0 0.0
    %4710 = vmatpush2.msra.mxu0 0.0
    %4711 = vmatprep.subr.mxu0 0.0
    %4712 = vmatpush2.msra.mxu0 0.0
    %4713 = vmatprep.subr.mxu0 0.0
    %4714 = vmatpush2.msra.mxu0 0.0
    %4715 = vmatprep.subr.mxu0 0.0
    %4716 = vmatpush2.msra.mxu0 0.0
    %4717 = vmatprep.subr.mxu0 0.0
    %4718 = vmatpush2.msra.mxu0 0.0
    %4719 = vmatprep.subr.mxu0 0.0
    %4720 = vmatpush2.msra.mxu0 0.0
    %4721 = vmatprep.subr.mxu0 0.0
    %4722 = vmatpush2.msra.mxu0 0.0
    %4723 = vmatprep.subr.mxu0 0.0
    %4724 = vmatpush2.msra.mxu0 0.0
    %4725 = vmatprep.subr.mxu0 0.0
    %4726 = vmatpush2.msra.mxu0 0.0
    %4727 = vmatprep.subr.mxu0 0.0
    %4728 = vmatpush2.msra.mxu0 0.0
    %4729 = vmatprep.subr.mxu0 0.0
    %4730 = vmatpush2.msra.mxu0 0.0
    %4731 = vmatprep.mubr.f32.mxu0 0.0
    %4732 = vmatmul.mubr.f32.gmra.mxu0 %v4665
    %v4733 = vpop.f32.mrf.mxu0
    %v4734 = vadd.f32 0.0, %v4733
    %v4735 = vpop.f32.mrf.mxu0
    %4736 = vdwg.mxu0
    %v4737 = vadd.f32 %v4578, %v4734
    %v4739 = vlaneseq
    %v4740 = vshrl.u32 %v4739, 7
    %v4741 = vsub.s32 0, %v4740
    %v4742 = vrot.slane %v4103, %v4741
    %4744 = vmatprep.subr.mxu0 0.0
    %4745 = vmatpush1.msra.mxu0 %v4102
    %4746 = vmatprep.subr.mxu0 0.0
    %4747 = vmatpush1.msra.mxu0 %v4101
    %4748 = vmatprep.subr.mxu0 0.0
    %4749 = vmatpush1.msra.mxu0 %v4100
    %4750 = vmatprep.subr.mxu0 0.0
    %4751 = vmatpush1.msra.mxu0 %v4099
    %4752 = vmatprep.subr.mxu0 0.0
    %4753 = vmatpush1.msra.mxu0 %v4098
    %4754 = vmatprep.subr.mxu0 0.0
    %4755 = vmatpush1.msra.mxu0 %v4097
    %4756 = vmatprep.subr.mxu0 0.0
    %4757 = vmatpush1.msra.mxu0 %v4096
    %4758 = vmatprep.subr.mxu0 0.0
    %4759 = vmatpush1.msra.mxu0 %v4095
    %4760 = vmatprep.subr.mxu0 0.0
    %4761 = vmatpush1.msra.mxu0 %v4094
    %4762 = vmatprep.subr.mxu0 0.0
    %4763 = vmatpush1.msra.mxu0 %v4093
    %4764 = vmatprep.subr.mxu0 0.0
    %4765 = vmatpush1.msra.mxu0 %v4092
    %4766 = vmatprep.subr.mxu0 0.0
    %4767 = vmatpush1.msra.mxu0 %v4091
    %4768 = vmatprep.subr.mxu0 0.0
    %4769 = vmatpush1.msra.mxu0 %v4090
    %4770 = vmatprep.subr.mxu0 0.0
    %4771 = vmatpush1.msra.mxu0 %v4089
    %4772 = vmatprep.subr.mxu0 0.0
    %4773 = vmatpush1.msra.mxu0 %v4088
    %4774 = vmatprep.subr.mxu0 0.0
    %4775 = vmatpush1.msra.mxu0 %v4087
    %4776 = vmatprep.subr.mxu0 0.0
    %4777 = vmatpush2.msra.mxu0 0.0
    %4778 = vmatprep.subr.mxu0 0.0
    %4779 = vmatpush2.msra.mxu0 0.0
    %4780 = vmatprep.subr.mxu0 0.0
    %4781 = vmatpush2.msra.mxu0 0.0
    %4782 = vmatprep.subr.mxu0 0.0
    %4783 = vmatpush2.msra.mxu0 0.0
    %4784 = vmatprep.subr.mxu0 0.0
    %4785 = vmatpush2.msra.mxu0 0.0
    %4786 = vmatprep.subr.mxu0 0.0
    %4787 = vmatpush2.msra.mxu0 0.0
    %4788 = vmatprep.subr.mxu0 0.0
    %4789 = vmatpush2.msra.mxu0 0.0
    %4790 = vmatprep.subr.mxu0 0.0
    %4791 = vmatpush2.msra.mxu0 0.0
    %4792 = vmatprep.subr.mxu0 0.0
    %4793 = vmatpush2.msra.mxu0 0.0
    %4794 = vmatprep.subr.mxu0 0.0
    %4795 = vmatpush2.msra.mxu0 0.0
    %4796 = vmatprep.subr.mxu0 0.0
    %4797 = vmatpush2.msra.mxu0 0.0
    %4798 = vmatprep.subr.mxu0 0.0
    %4799 = vmatpush2.msra.mxu0 0.0
    %4800 = vmatprep.subr.mxu0 0.0
    %4801 = vmatpush2.msra.mxu0 0.0
    %4802 = vmatprep.subr.mxu0 0.0
    %4803 = vmatpush2.msra.mxu0 0.0
    %4804 = vmatprep.subr.mxu0 0.0
    %4805 = vmatpush2.msra.mxu0 0.0
    %4806 = vmatprep.subr.mxu0 0.0
    %4807 = vmatpush2.msra.mxu0 0.0
    %4808 = vmatprep.mubr.f32.mxu0 0.0
    %4809 = vmatmul.mubr.f32.gmra.mxu0 %v4737
    %v4810 = vpop.f32.mrf.mxu0
    %v4811 = vadd.f32 %v4742, %v4810
    %v4812 = vpop.f32.mrf.mxu0
    %4813 = vdwg.mxu0
    %v4814 = vld [vmem:[#allocation19] sm:$0x1]
    %v4815 = vld [vmem:[#allocation17] sm:$0x1]
    %v4816 = vadd.f32 %v3878, %v4811
    %v4817 = vmul.f32 %v4816, %v501
    %4818 = vadd.xlane.f32.xlu0 %v4817
    %v4819 = vpop.xlane.xlu0 %4818
    %v4820 = vmul.f32 %v4819, 0.03125
    %v4821 = vsub.f32 %v4816, %v4820
    %v4822 = vmul.f32 %v4821, %v501
    %v4823 = vmul.f32 %v4822, %v4822
    %4824 = vadd.xlane.f32.xlu0 %v4823
    %v4825 = vpop.xlane.xlu0 %4824
    %v4826 = vmul.f32 %v4825, 0.03125
    %v4827 = vadd.f32 %v4826, 1e-05
    %v4828 = vrsqrt.pop %v4827
    %v4829 = vmul.f32 %v4822, %v4828
    %v4831 = vlaneseq
    %v4832 = vshrl.u32 %v4831, 7
    %v4833 = vsub.s32 0, %v4832
    %v4834 = vrot.slane %v4814, %v4833
    %v4836 = vmul.f32 %v4829, %v4834
    %v4838 = vlaneseq
    %v4839 = vshrl.u32 %v4838, 7
    %v4840 = vsub.s32 0, %v4839
    %v4841 = vrot.slane %v4815, %v4840
    %v4843 = vadd.f32 %v4836, %v4841
    %v4844 = vld [vmem:[#allocation23] sm:$0xff]
    %v4845 = vld [vmem:[#allocation23 + $0x8] sm:$0xff]
    %v4846 = vld [vmem:[#allocation23 + $0x10] sm:$0xff]
    %v4847 = vld [vmem:[#allocation23 + $0x18] sm:$0xff]
    %v4848 = vld [vmem:[#allocation23 + $0x20] sm:$0xff]
    %v4849 = vld [vmem:[#allocation23 + $0x28] sm:$0xff]
    %v4850 = vld [vmem:[#allocation23 + $0x30] sm:$0xff]
    %v4851 = vld [vmem:[#allocation23 + $0x38] sm:$0xff]
    %v4852 = vld [vmem:[#allocation23 + $0x40] sm:$0xff]
    %v4853 = vld [vmem:[#allocation23 + $0x48] sm:$0xff]
    %v4854 = vld [vmem:[#allocation23 + $0x50] sm:$0xff]
    %v4855 = vld [vmem:[#allocation23 + $0x58] sm:$0xff]
    %v4856 = vld [vmem:[#allocation23 + $0x60] sm:$0xff]
    %v4857 = vld [vmem:[#allocation23 + $0x68] sm:$0xff]
    %v4858 = vld [vmem:[#allocation23 + $0x70] sm:$0xff]
    %v4859 = vld [vmem:[#allocation23 + $0x78] sm:$0xff]
    %v4860 = vld [vmem:[#allocation2] sm:$0x1]
    %v4861 = vld [vmem:[#allocation25] sm:$0xff]
    %v4862 = vld [vmem:[#allocation25 + $0x8] sm:$0xff]
    %v4863 = vld [vmem:[#allocation25 + $0x10] sm:$0xff]
    %v4864 = vld [vmem:[#allocation25 + $0x18] sm:$0xff]
    %v4865 = vld [vmem:[#allocation25 + $0x20] sm:$0xff]
    %v4866 = vld [vmem:[#allocation25 + $0x28] sm:$0xff]
    %v4867 = vld [vmem:[#allocation25 + $0x30] sm:$0xff]
    %v4868 = vld [vmem:[#allocation25 + $0x38] sm:$0xff]
    %v4869 = vld [vmem:[#allocation25 + $0x40] sm:$0xff]
    %v4870 = vld [vmem:[#allocation25 + $0x48] sm:$0xff]
    %v4871 = vld [vmem:[#allocation25 + $0x50] sm:$0xff]
    %v4872 = vld [vmem:[#allocation25 + $0x58] sm:$0xff]
    %v4873 = vld [vmem:[#allocation25 + $0x60] sm:$0xff]
    %v4874 = vld [vmem:[#allocation25 + $0x68] sm:$0xff]
    %v4875 = vld [vmem:[#allocation25 + $0x70] sm:$0xff]
    %v4876 = vld [vmem:[#allocation25 + $0x78] sm:$0xff]
    %v4877 = vld [vmem:[#allocation5] sm:$0x1]
    %v4879 = vlaneseq
    %v4880 = vshrl.u32 %v4879, 7
    %v4881 = vsub.s32 0, %v4880
    %v4882 = vrot.slane %v4860, %v4881
    %4884 = vmatprep.subr.mxu0 0.0
    %4885 = vmatpush1.msra.mxu0 %v4859
    %4886 = vmatprep.subr.mxu0 0.0
    %4887 = vmatpush1.msra.mxu0 %v4858
    %4888 = vmatprep.subr.mxu0 0.0
    %4889 = vmatpush1.msra.mxu0 %v4857
    %4890 = vmatprep.subr.mxu0 0.0
    %4891 = vmatpush1.msra.mxu0 %v4856
    %4892 = vmatprep.subr.mxu0 0.0
    %4893 = vmatpush1.msra.mxu0 %v4855
    %4894 = vmatprep.subr.mxu0 0.0
    %4895 = vmatpush1.msra.mxu0 %v4854
    %4896 = vmatprep.subr.mxu0 0.0
    %4897 = vmatpush1.msra.mxu0 %v4853
    %4898 = vmatprep.subr.mxu0 0.0
    %4899 = vmatpush1.msra.mxu0 %v4852
    %4900 = vmatprep.subr.mxu0 0.0
    %4901 = vmatpush1.msra.mxu0 %v4851
    %4902 = vmatprep.subr.mxu0 0.0
    %4903 = vmatpush1.msra.mxu0 %v4850
    %4904 = vmatprep.subr.mxu0 0.0
    %4905 = vmatpush1.msra.mxu0 %v4849
    %4906 = vmatprep.subr.mxu0 0.0
    %4907 = vmatpush1.msra.mxu0 %v4848
    %4908 = vmatprep.subr.mxu0 0.0
    %4909 = vmatpush1.msra.mxu0 %v4847
    %4910 = vmatprep.subr.mxu0 0.0
    %4911 = vmatpush1.msra.mxu0 %v4846
    %4912 = vmatprep.subr.mxu0 0.0
    %4913 = vmatpush1.msra.mxu0 %v4845
    %4914 = vmatprep.subr.mxu0 0.0
    %4915 = vmatpush1.msra.mxu0 %v4844
    %4916 = vmatprep.subr.mxu0 0.0
    %4917 = vmatpush2.msra.mxu0 0.0
    %4918 = vmatprep.subr.mxu0 0.0
    %4919 = vmatpush2.msra.mxu0 0.0
    %4920 = vmatprep.subr.mxu0 0.0
    %4921 = vmatpush2.msra.mxu0 0.0
    %4922 = vmatprep.subr.mxu0 0.0
    %4923 = vmatpush2.msra.mxu0 0.0
    %4924 = vmatprep.subr.mxu0 0.0
    %4925 = vmatpush2.msra.mxu0 0.0
    %4926 = vmatprep.subr.mxu0 0.0
    %4927 = vmatpush2.msra.mxu0 0.0
    %4928 = vmatprep.subr.mxu0 0.0
    %4929 = vmatpush2.msra.mxu0 0.0
    %4930 = vmatprep.subr.mxu0 0.0
    %4931 = vmatpush2.msra.mxu0 0.0
    %4932 = vmatprep.subr.mxu0 0.0
    %4933 = vmatpush2.msra.mxu0 0.0
    %4934 = vmatprep.subr.mxu0 0.0
    %4935 = vmatpush2.msra.mxu0 0.0
    %4936 = vmatprep.subr.mxu0 0.0
    %4937 = vmatpush2.msra.mxu0 0.0
    %4938 = vmatprep.subr.mxu0 0.0
    %4939 = vmatpush2.msra.mxu0 0.0
    %4940 = vmatprep.subr.mxu0 0.0
    %4941 = vmatpush2.msra.mxu0 0.0
    %4942 = vmatprep.subr.mxu0 0.0
    %4943 = vmatpush2.msra.mxu0 0.0
    %4944 = vmatprep.subr.mxu0 0.0
    %4945 = vmatpush2.msra.mxu0 0.0
    %4946 = vmatprep.subr.mxu0 0.0
    %4947 = vmatpush2.msra.mxu0 0.0
    %4948 = vmatprep.mubr.f32.mxu0 0.0
    %4949 = vmatmul.mubr.f32.gmra.mxu0 %v4843
    %v4950 = vpop.f32.mrf.mxu0
    %v4951 = vadd.f32 %v4882, %v4950
    %v4952 = vpop.f32.mrf.mxu0
    %4953 = vdwg.mxu0
    %v4954 = vmax.f32 %v4951, 0.0
    %v4956 = vlaneseq
    %v4957 = vshrl.u32 %v4956, 7
    %v4958 = vsub.s32 0, %v4957
    %v4959 = vrot.slane %v4877, %v4958
    %4961 = vmatprep.subr.mxu0 0.0
    %4962 = vmatpush1.msra.mxu0 %v4876
    %4963 = vmatprep.subr.mxu0 0.0
    %4964 = vmatpush1.msra.mxu0 %v4875
    %4965 = vmatprep.subr.mxu0 0.0
    %4966 = vmatpush1.msra.mxu0 %v4874
    %4967 = vmatprep.subr.mxu0 0.0
    %4968 = vmatpush1.msra.mxu0 %v4873
    %4969 = vmatprep.subr.mxu0 0.0
    %4970 = vmatpush1.msra.mxu0 %v4872
    %4971 = vmatprep.subr.mxu0 0.0
    %4972 = vmatpush1.msra.mxu0 %v4871
    %4973 = vmatprep.subr.mxu0 0.0
    %4974 = vmatpush1.msra.mxu0 %v4870
    %4975 = vmatprep.subr.mxu0 0.0
    %4976 = vmatpush1.msra.mxu0 %v4869
    %4977 = vmatprep.subr.mxu0 0.0
    %4978 = vmatpush1.msra.mxu0 %v4868
    %4979 = vmatprep.subr.mxu0 0.0
    %4980 = vmatpush1.msra.mxu0 %v4867
    %4981 = vmatprep.subr.mxu0 0.0
    %4982 = vmatpush1.msra.mxu0 %v4866
    %4983 = vmatprep.subr.mxu0 0.0
    %4984 = vmatpush1.msra.mxu0 %v4865
    %4985 = vmatprep.subr.mxu0 0.0
    %4986 = vmatpush1.msra.mxu0 %v4864
    %4987 = vmatprep.subr.mxu0 0.0
    %4988 = vmatpush1.msra.mxu0 %v4863
    %4989 = vmatprep.subr.mxu0 0.0
    %4990 = vmatpush1.msra.mxu0 %v4862
    %4991 = vmatprep.subr.mxu0 0.0
    %4992 = vmatpush1.msra.mxu0 %v4861
    %4993 = vmatprep.subr.mxu0 0.0
    %4994 = vmatpush2.msra.mxu0 0.0
    %4995 = vmatprep.subr.mxu0 0.0
    %4996 = vmatpush2.msra.mxu0 0.0
    %4997 = vmatprep.subr.mxu0 0.0
    %4998 = vmatpush2.msra.mxu0 0.0
    %4999 = vmatprep.subr.mxu0 0.0
    %5000 = vmatpush2.msra.mxu0 0.0
    %5001 = vmatprep.subr.mxu0 0.0
    %5002 = vmatpush2.msra.mxu0 0.0
    %5003 = vmatprep.subr.mxu0 0.0
    %5004 = vmatpush2.msra.mxu0 0.0
    %5005 = vmatprep.subr.mxu0 0.0
    %5006 = vmatpush2.msra.mxu0 0.0
    %5007 = vmatprep.subr.mxu0 0.0
    %5008 = vmatpush2.msra.mxu0 0.0
    %5009 = vmatprep.subr.mxu0 0.0
    %5010 = vmatpush2.msra.mxu0 0.0
    %5011 = vmatprep.subr.mxu0 0.0
    %5012 = vmatpush2.msra.mxu0 0.0
    %5013 = vmatprep.subr.mxu0 0.0
    %5014 = vmatpush2.msra.mxu0 0.0
    %5015 = vmatprep.subr.mxu0 0.0
    %5016 = vmatpush2.msra.mxu0 0.0
    %5017 = vmatprep.subr.mxu0 0.0
    %5018 = vmatpush2.msra.mxu0 0.0
    %5019 = vmatprep.subr.mxu0 0.0
    %5020 = vmatpush2.msra.mxu0 0.0
    %5021 = vmatprep.subr.mxu0 0.0
    %5022 = vmatpush2.msra.mxu0 0.0
    %5023 = vmatprep.subr.mxu0 0.0
    %5024 = vmatpush2.msra.mxu0 0.0
    %5025 = vmatprep.mubr.f32.mxu0 0.0
    %5026 = vmatmul.mubr.f32.gmra.mxu0 %v4954
    %v5027 = vpop.f32.mrf.mxu0
    %v5028 = vadd.f32 %v4959, %v5027
    %v5029 = vpop.f32.mrf.mxu0
    %5030 = vdwg.mxu0
    %v5031 = vld [vmem:[#allocation22] sm:$0x1]
    %v5032 = vld [vmem:[#allocation20] sm:$0x1]
    %v5033 = vadd.f32 %v4843, %v5028
    %v5034 = vmul.f32 %v5033, %v501
    %5035 = vadd.xlane.f32.xlu0 %v5034
    %v5036 = vpop.xlane.xlu0 %5035
    %v5037 = vmul.f32 %v5036, 0.03125
    %v5038 = vsub.f32 %v5033, %v5037
    %v5039 = vmul.f32 %v5038, %v501
    %v5040 = vmul.f32 %v5039, %v5039
    %5041 = vadd.xlane.f32.xlu0 %v5040
    %v5042 = vpop.xlane.xlu0 %5041
    %v5043 = vmul.f32 %v5042, 0.03125
    %v5044 = vadd.f32 %v5043, 1e-05
    %v5045 = vrsqrt.pop %v5044
    %v5046 = vmul.f32 %v5039, %v5045
    %v5048 = vlaneseq
    %v5049 = vshrl.u32 %v5048, 7
    %v5050 = vsub.s32 0, %v5049
    %v5051 = vrot.slane %v5031, %v5050
    %v5053 = vmul.f32 %v5046, %v5051
    %v5055 = vlaneseq
    %v5056 = vshrl.u32 %v5055, 7
    %v5057 = vsub.s32 0, %v5056
    %v5058 = vrot.slane %v5032, %v5057
    %v5060 = vadd.f32 %v5053, %v5058
    %s5061 = scalar_lea.vmem [#allocation26], 384
    %v5062 = vld [vmem:[%s5061] sm:$0xff]
    %v5063 = vld [vmem:[%s5061 + $0x8] sm:$0xff]
    %v5064 = vld [vmem:[%s5061 + $0x10] sm:$0xff]
    %v5065 = vld [vmem:[%s5061 + $0x18] sm:$0xff]
    %v5066 = vld [vmem:[%s5061 + $0x20] sm:$0xff]
    %v5067 = vld [vmem:[%s5061 + $0x28] sm:$0xff]
    %v5068 = vld [vmem:[%s5061 + $0x30] sm:$0xff]
    %v5069 = vld [vmem:[%s5061 + $0x38] sm:$0xff]
    %v5070 = vld [vmem:[%s5061 + $0x40] sm:$0xff]
    %v5071 = vld [vmem:[%s5061 + $0x48] sm:$0xff]
    %v5072 = vld [vmem:[%s5061 + $0x50] sm:$0xff]
    %v5073 = vld [vmem:[%s5061 + $0x58] sm:$0xff]
    %v5074 = vld [vmem:[%s5061 + $0x60] sm:$0xff]
    %v5075 = vld [vmem:[%s5061 + $0x68] sm:$0xff]
    %v5076 = vld [vmem:[%s5061 + $0x70] sm:$0xff]
    %v5077 = vld [vmem:[%s5061 + $0x78] sm:$0xff]
    %v5078 = vld [vmem:[%s5061 + $0x80] sm:$0xff]
    %v5079 = vld [vmem:[%s5061 + $0x88] sm:$0xff]
    %v5080 = vld [vmem:[%s5061 + $0x90] sm:$0xff]
    %v5081 = vld [vmem:[%s5061 + $0x98] sm:$0xff]
    %v5082 = vld [vmem:[%s5061 + $0xa0] sm:$0xff]
    %v5083 = vld [vmem:[%s5061 + $0xa8] sm:$0xff]
    %v5084 = vld [vmem:[%s5061 + $0xb0] sm:$0xff]
    %v5085 = vld [vmem:[%s5061 + $0xb8] sm:$0xff]
    %v5086 = vld [vmem:[%s5061 + $0xc0] sm:$0xff]
    %v5087 = vld [vmem:[%s5061 + $0xc8] sm:$0xff]
    %v5088 = vld [vmem:[%s5061 + $0xd0] sm:$0xff]
    %v5089 = vld [vmem:[%s5061 + $0xd8] sm:$0xff]
    %v5090 = vld [vmem:[%s5061 + $0xe0] sm:$0xff]
    %v5091 = vld [vmem:[%s5061 + $0xe8] sm:$0xff]
    %v5092 = vld [vmem:[%s5061 + $0xf0] sm:$0xff]
    %v5093 = vld [vmem:[%s5061 + $0xf8] sm:$0xff]
    %v5094 = vld [vmem:[%s5061 + $0x100] sm:$0xff]
    %v5095 = vld [vmem:[%s5061 + $0x108] sm:$0xff]
    %v5096 = vld [vmem:[%s5061 + $0x110] sm:$0xff]
    %v5097 = vld [vmem:[%s5061 + $0x118] sm:$0xff]
    %v5098 = vld [vmem:[%s5061 + $0x120] sm:$0xff]
    %v5099 = vld [vmem:[%s5061 + $0x128] sm:$0xff]
    %v5100 = vld [vmem:[%s5061 + $0x130] sm:$0xff]
    %v5101 = vld [vmem:[%s5061 + $0x138] sm:$0xff]
    %v5102 = vld [vmem:[%s5061 + $0x140] sm:$0xff]
    %v5103 = vld [vmem:[%s5061 + $0x148] sm:$0xff]
    %v5104 = vld [vmem:[%s5061 + $0x150] sm:$0xff]
    %v5105 = vld [vmem:[%s5061 + $0x158] sm:$0xff]
    %v5106 = vld [vmem:[%s5061 + $0x160] sm:$0xff]
    %v5107 = vld [vmem:[%s5061 + $0x168] sm:$0xff]
    %v5108 = vld [vmem:[%s5061 + $0x170] sm:$0xff]
    %v5109 = vld [vmem:[%s5061 + $0x178] sm:$0xff]
    %s5110 = scalar_lea.vmem [#allocation7], 3
    %v5111 = vld [vmem:[%s5110] sm:$0x7]
    %v5113 = vlaneseq
    %v5114 = vshrl.u32 %v5113, 7
    %v5115 = vsub.s32 0, %v5114
    %v5116 = vrot.slane %v5111, %v5115
    %v5117 = vlaneseq
    %v5118 = vshrl.u32 %v5117, 7
    %v5119 = vsub.s32 1, %v5118
    %v5120 = vrot.slane %v5111, %v5119
    %v5121 = vlaneseq
    %v5122 = vshrl.u32 %v5121, 7
    %v5123 = vsub.s32 2, %v5122
    %v5124 = vrot.slane %v5111, %v5123
    %5128 = vmatprep.subr.mxu0 %v5108
    %5129 = vmatpush1.msra.mxu0 %v5107
    %5130 = vmatprep.subr.mxu0 %v5105
    %5131 = vmatpush1.msra.mxu0 %v5104
    %5132 = vmatprep.subr.mxu0 %v5102
    %5133 = vmatpush1.msra.mxu0 %v5101
    %5134 = vmatprep.subr.mxu0 %v5099
    %5135 = vmatpush1.msra.mxu0 %v5098
    %5136 = vmatprep.subr.mxu0 %v5096
    %5137 = vmatpush1.msra.mxu0 %v5095
    %5138 = vmatprep.subr.mxu0 %v5093
    %5139 = vmatpush1.msra.mxu0 %v5092
    %5140 = vmatprep.subr.mxu0 %v5090
    %5141 = vmatpush1.msra.mxu0 %v5089
    %5142 = vmatprep.subr.mxu0 %v5087
    %5143 = vmatpush1.msra.mxu0 %v5086
    %5144 = vmatprep.subr.mxu0 %v5084
    %5145 = vmatpush1.msra.mxu0 %v5083
    %5146 = vmatprep.subr.mxu0 %v5081
    %5147 = vmatpush1.msra.mxu0 %v5080
    %5148 = vmatprep.subr.mxu0 %v5078
    %5149 = vmatpush1.msra.mxu0 %v5077
    %5150 = vmatprep.subr.mxu0 %v5075
    %5151 = vmatpush1.msra.mxu0 %v5074
    %5152 = vmatprep.subr.mxu0 %v5072
    %5153 = vmatpush1.msra.mxu0 %v5071
    %5154 = vmatprep.subr.mxu0 %v5069
    %5155 = vmatpush1.msra.mxu0 %v5068
    %5156 = vmatprep.subr.mxu0 %v5066
    %5157 = vmatpush1.msra.mxu0 %v5065
    %5158 = vmatprep.subr.mxu0 %v5063
    %5159 = vmatpush1.msra.mxu0 %v5062
    %5160 = vmatprep.subr.mxu0 0.0
    %5161 = vmatpush2.msra.mxu0 0.0
    %5162 = vmatprep.subr.mxu0 0.0
    %5163 = vmatpush2.msra.mxu0 0.0
    %5164 = vmatprep.subr.mxu0 0.0
    %5165 = vmatpush2.msra.mxu0 0.0
    %5166 = vmatprep.subr.mxu0 0.0
    %5167 = vmatpush2.msra.mxu0 0.0
    %5168 = vmatprep.subr.mxu0 0.0
    %5169 = vmatpush2.msra.mxu0 0.0
    %5170 = vmatprep.subr.mxu0 0.0
    %5171 = vmatpush2.msra.mxu0 0.0
    %5172 = vmatprep.subr.mxu0 0.0
    %5173 = vmatpush2.msra.mxu0 0.0
    %5174 = vmatprep.subr.mxu0 0.0
    %5175 = vmatpush2.msra.mxu0 0.0
    %5176 = vmatprep.subr.mxu0 0.0
    %5177 = vmatpush2.msra.mxu0 0.0
    %5178 = vmatprep.subr.mxu0 0.0
    %5179 = vmatpush2.msra.mxu0 0.0
    %5180 = vmatprep.subr.mxu0 0.0
    %5181 = vmatpush2.msra.mxu0 0.0
    %5182 = vmatprep.subr.mxu0 0.0
    %5183 = vmatpush2.msra.mxu0 0.0
    %5184 = vmatprep.subr.mxu0 0.0
    %5185 = vmatpush2.msra.mxu0 0.0
    %5186 = vmatprep.subr.mxu0 0.0
    %5187 = vmatpush2.msra.mxu0 0.0
    %5188 = vmatprep.subr.mxu0 0.0
    %5189 = vmatpush2.msra.mxu0 0.0
    %5190 = vmatprep.subr.mxu0 0.0
    %5191 = vmatpush2.msra.mxu0 0.0
    %5192 = vmatprep.mubr.f32.mxu0 0.0
    %5193 = vmatmul.mubr.f32.gmra.mxu0 %v5060
    %v5194 = vpop.f32.mrf.mxu0
    %v5195 = vadd.f32 %v5116, %v5194
    %v5196 = vpop.f32.mrf.mxu0
    %v5197 = vadd.f32 %v5120, %v5196
    %5198 = vdwg.mxu0
    %5199 = vmatprep.subr.mxu0 0.0
    %5200 = vmatpush1.msra.mxu0 %v5109
    %5201 = vmatprep.subr.mxu0 0.0
    %5202 = vmatpush1.msra.mxu0 %v5106
    %5203 = vmatprep.subr.mxu0 0.0
    %5204 = vmatpush1.msra.mxu0 %v5103
    %5205 = vmatprep.subr.mxu0 0.0
    %5206 = vmatpush1.msra.mxu0 %v5100
    %5207 = vmatprep.subr.mxu0 0.0
    %5208 = vmatpush1.msra.mxu0 %v5097
    %5209 = vmatprep.subr.mxu0 0.0
    %5210 = vmatpush1.msra.mxu0 %v5094
    %5211 = vmatprep.subr.mxu0 0.0
    %5212 = vmatpush1.msra.mxu0 %v5091
    %5213 = vmatprep.subr.mxu0 0.0
    %5214 = vmatpush1.msra.mxu0 %v5088
    %5215 = vmatprep.subr.mxu0 0.0
    %5216 = vmatpush1.msra.mxu0 %v5085
    %5217 = vmatprep.subr.mxu0 0.0
    %5218 = vmatpush1.msra.mxu0 %v5082
    %5219 = vmatprep.subr.mxu0 0.0
    %5220 = vmatpush1.msra.mxu0 %v5079
    %5221 = vmatprep.subr.mxu0 0.0
    %5222 = vmatpush1.msra.mxu0 %v5076
    %5223 = vmatprep.subr.mxu0 0.0
    %5224 = vmatpush1.msra.mxu0 %v5073
    %5225 = vmatprep.subr.mxu0 0.0
    %5226 = vmatpush1.msra.mxu0 %v5070
    %5227 = vmatprep.subr.mxu0 0.0
    %5228 = vmatpush1.msra.mxu0 %v5067
    %5229 = vmatprep.subr.mxu0 0.0
    %5230 = vmatpush1.msra.mxu0 %v5064
    %5231 = vmatprep.subr.mxu0 0.0
    %5232 = vmatpush2.msra.mxu0 0.0
    %5233 = vmatprep.subr.mxu0 0.0
    %5234 = vmatpush2.msra.mxu0 0.0
    %5235 = vmatprep.subr.mxu0 0.0
    %5236 = vmatpush2.msra.mxu0 0.0
    %5237 = vmatprep.subr.mxu0 0.0
    %5238 = vmatpush2.msra.mxu0 0.0
    %5239 = vmatprep.subr.mxu0 0.0
    %5240 = vmatpush2.msra.mxu0 0.0
    %5241 = vmatprep.subr.mxu0 0.0
    %5242 = vmatpush2.msra.mxu0 0.0
    %5243 = vmatprep.subr.mxu0 0.0
    %5244 = vmatpush2.msra.mxu0 0.0
    %5245 = vmatprep.subr.mxu0 0.0
    %5246 = vmatpush2.msra.mxu0 0.0
    %5247 = vmatprep.subr.mxu0 0.0
    %5248 = vmatpush2.msra.mxu0 0.0
    %5249 = vmatprep.subr.mxu0 0.0
    %5250 = vmatpush2.msra.mxu0 0.0
    %5251 = vmatprep.subr.mxu0 0.0
    %5252 = vmatpush2.msra.mxu0 0.0
    %5253 = vmatprep.subr.mxu0 0.0
    %5254 = vmatpush2.msra.mxu0 0.0
    %5255 = vmatprep.subr.mxu0 0.0
    %5256 = vmatpush2.msra.mxu0 0.0
    %5257 = vmatprep.subr.mxu0 0.0
    %5258 = vmatpush2.msra.mxu0 0.0
    %5259 = vmatprep.subr.mxu0 0.0
    %5260 = vmatpush2.msra.mxu0 0.0
    %5261 = vmatprep.subr.mxu0 0.0
    %5262 = vmatpush2.msra.mxu0 0.0
    %5263 = vmatprep.mubr.f32.mxu0 0.0
    %5264 = vmatmul.mubr.f32.gmra.mxu0 %v5060
    %v5265 = vpop.f32.mrf.mxu0
    %v5266 = vadd.f32 %v5124, %v5265
    %v5267 = vpop.f32.mrf.mxu0
    %5268 = vdwg.mxu0
    %s5269 = scalar_lea.vmem [#allocation29], 128
    %v5270 = vld [vmem:[%s5269] sm:$0xff]
    %v5271 = vld [vmem:[%s5269 + $0x8] sm:$0xff]
    %v5272 = vld [vmem:[%s5269 + $0x10] sm:$0xff]
    %v5273 = vld [vmem:[%s5269 + $0x18] sm:$0xff]
    %v5274 = vld [vmem:[%s5269 + $0x20] sm:$0xff]
    %v5275 = vld [vmem:[%s5269 + $0x28] sm:$0xff]
    %v5276 = vld [vmem:[%s5269 + $0x30] sm:$0xff]
    %v5277 = vld [vmem:[%s5269 + $0x38] sm:$0xff]
    %v5278 = vld [vmem:[%s5269 + $0x40] sm:$0xff]
    %v5279 = vld [vmem:[%s5269 + $0x48] sm:$0xff]
    %v5280 = vld [vmem:[%s5269 + $0x50] sm:$0xff]
    %v5281 = vld [vmem:[%s5269 + $0x58] sm:$0xff]
    %v5282 = vld [vmem:[%s5269 + $0x60] sm:$0xff]
    %v5283 = vld [vmem:[%s5269 + $0x68] sm:$0xff]
    %v5284 = vld [vmem:[%s5269 + $0x70] sm:$0xff]
    %v5285 = vld [vmem:[%s5269 + $0x78] sm:$0xff]
    %s5286 = scalar_lea.vmem [#allocation10], 1
    %v5287 = vld [vmem:[%s5286] sm:$0x1]
    %v5288 = vmul.f32 %v5195, %v751
    %5289 = vmatprep.subr.mxu0 0.0
    %5290 = vmatpush1.xpose.msra.mxu0 0.0
    %5291 = vmatprep.subr.mxu0 0.0
    %5292 = vmatpush1.xpose.msra.mxu0 0.0
    %5293 = vmatprep.subr.mxu0 0.0
    %5294 = vmatpush1.xpose.msra.mxu0 0.0
    %5295 = vmatprep.subr.mxu0 0.0
    %5296 = vmatpush1.xpose.msra.mxu0 0.0
    %5297 = vmatprep.subr.mxu0 0.0
    %5298 = vmatpush1.xpose.msra.mxu0 0.0
    %5299 = vmatprep.subr.mxu0 0.0
    %5300 = vmatpush1.xpose.msra.mxu0 0.0
    %5301 = vmatprep.subr.mxu0 0.0
    %5302 = vmatpush1.xpose.msra.mxu0 0.0
    %5303 = vmatprep.subr.mxu0 0.0
    %5304 = vmatpush1.xpose.msra.mxu0 0.0
    %5305 = vmatprep.subr.mxu0 0.0
    %5306 = vmatpush1.xpose.msra.mxu0 0.0
    %5307 = vmatprep.subr.mxu0 0.0
    %5308 = vmatpush1.xpose.msra.mxu0 0.0
    %5309 = vmatprep.subr.mxu0 0.0
    %5310 = vmatpush1.xpose.msra.mxu0 0.0
    %5311 = vmatprep.subr.mxu0 0.0
    %5312 = vmatpush1.xpose.msra.mxu0 0.0
    %5313 = vmatprep.subr.mxu0 0.0
    %5314 = vmatpush1.xpose.msra.mxu0 0.0
    %5315 = vmatprep.subr.mxu0 0.0
    %5316 = vmatpush1.xpose.msra.mxu0 0.0
    %5317 = vmatprep.subr.mxu0 0.0
    %5318 = vmatpush1.xpose.msra.mxu0 0.0
    %5319 = vmatprep.subr.mxu0 0.0
    %5320 = vmatpush1.xpose.msra.mxu0 %v5197
    %5321 = vmatprep.subr.mxu0 0.0
    %5322 = vmatpush2.xpose.msra.mxu0 0.0
    %5323 = vmatprep.subr.mxu0 0.0
    %5324 = vmatpush2.xpose.msra.mxu0 0.0
    %5325 = vmatprep.subr.mxu0 0.0
    %5326 = vmatpush2.xpose.msra.mxu0 0.0
    %5327 = vmatprep.subr.mxu0 0.0
    %5328 = vmatpush2.xpose.msra.mxu0 0.0
    %5329 = vmatprep.subr.mxu0 0.0
    %5330 = vmatpush2.xpose.msra.mxu0 0.0
    %5331 = vmatprep.subr.mxu0 0.0
    %5332 = vmatpush2.xpose.msra.mxu0 0.0
    %5333 = vmatprep.subr.mxu0 0.0
    %5334 = vmatpush2.xpose.msra.mxu0 0.0
    %5335 = vmatprep.subr.mxu0 0.0
    %5336 = vmatpush2.xpose.msra.mxu0 0.0
    %5337 = vmatprep.subr.mxu0 0.0
    %5338 = vmatpush2.xpose.msra.mxu0 0.0
    %5339 = vmatprep.subr.mxu0 0.0
    %5340 = vmatpush2.xpose.msra.mxu0 0.0
    %5341 = vmatprep.subr.mxu0 0.0
    %5342 = vmatpush2.xpose.msra.mxu0 0.0
    %5343 = vmatprep.subr.mxu0 0.0
    %5344 = vmatpush2.xpose.msra.mxu0 0.0
    %5345 = vmatprep.subr.mxu0 0.0
    %5346 = vmatpush2.xpose.msra.mxu0 0.0
    %5347 = vmatprep.subr.mxu0 0.0
    %5348 = vmatpush2.xpose.msra.mxu0 0.0
    %5349 = vmatprep.subr.mxu0 0.0
    %5350 = vmatpush2.xpose.msra.mxu0 0.0
    %5351 = vmatprep.subr.mxu0 0.0
    %5352 = vmatpush2.xpose.msra.mxu0 0.0
    %5353 = vmatprep.mubr.f32.mxu0 0.0
    %5354 = vmatmul.mubr.f32.gmra.mxu0 %v5288
    %v5355 = vpop.f32.mrf.mxu0
    %v5356 = vadd.f32 0.0, %v5355
    %v5357 = vpop.f32.mrf.mxu0
    %5358 = vdwg.mxu0
    %v5359 = vmul.f32 %v5356, 0.35355338
    %v5360 = vsel %vm523, %v5359, -1e+09
    %v5361 = vsel %vm825, %v5360, -inf
    %5362 = vmax.xlane.f32.xlu0 %v5361
    %v5363 = vpop.xlane.xlu0 %5362
    %v5364 = vsub.f32 %v5360, %v5363
    %v5365 = vmul.f32 %v5364, 1.442695
    %v5366 = vpow.pop %v5365
    %v5367 = vsel %vm825, %v5366, 0.0
    %5368 = vadd.xlane.f32.xlu0 %v5367
    %v5369 = vpop.xlane.xlu0 %5368
    %v5370 = vrcp.pop %v5369
    %v5371 = vmul.f32 %v5366, %v5370
    %v5372 = vmul.f32 %v5266, %v751
    %v5373 = vmul.f32 %v5195, %v842
    %5374 = vmatprep.subr.mxu0 0.0
    %5375 = vmatpush1.xpose.msra.mxu0 0.0
    %5376 = vmatprep.subr.mxu0 0.0
    %5377 = vmatpush1.xpose.msra.mxu0 0.0
    %5378 = vmatprep.subr.mxu0 0.0
    %5379 = vmatpush1.xpose.msra.mxu0 0.0
    %5380 = vmatprep.subr.mxu0 0.0
    %5381 = vmatpush1.xpose.msra.mxu0 0.0
    %5382 = vmatprep.subr.mxu0 0.0
    %5383 = vmatpush1.xpose.msra.mxu0 0.0
    %5384 = vmatprep.subr.mxu0 0.0
    %5385 = vmatpush1.xpose.msra.mxu0 0.0
    %5386 = vmatprep.subr.mxu0 0.0
    %5387 = vmatpush1.xpose.msra.mxu0 0.0
    %5388 = vmatprep.subr.mxu0 0.0
    %5389 = vmatpush1.xpose.msra.mxu0 0.0
    %5390 = vmatprep.subr.mxu0 0.0
    %5391 = vmatpush1.xpose.msra.mxu0 0.0
    %5392 = vmatprep.subr.mxu0 0.0
    %5393 = vmatpush1.xpose.msra.mxu0 0.0
    %5394 = vmatprep.subr.mxu0 0.0
    %5395 = vmatpush1.xpose.msra.mxu0 0.0
    %5396 = vmatprep.subr.mxu0 0.0
    %5397 = vmatpush1.xpose.msra.mxu0 0.0
    %5398 = vmatprep.subr.mxu0 0.0
    %5399 = vmatpush1.xpose.msra.mxu0 0.0
    %5400 = vmatprep.subr.mxu0 0.0
    %5401 = vmatpush1.xpose.msra.mxu0 0.0
    %5402 = vmatprep.subr.mxu0 0.0
    %5403 = vmatpush1.xpose.msra.mxu0 0.0
    %5404 = vmatprep.subr.mxu0 0.0
    %5405 = vmatpush1.xpose.msra.mxu0 %v5197
    %5406 = vmatprep.subr.mxu0 0.0
    %5407 = vmatpush2.xpose.msra.mxu0 0.0
    %5408 = vmatprep.subr.mxu0 0.0
    %5409 = vmatpush2.xpose.msra.mxu0 0.0
    %5410 = vmatprep.subr.mxu0 0.0
    %5411 = vmatpush2.xpose.msra.mxu0 0.0
    %5412 = vmatprep.subr.mxu0 0.0
    %5413 = vmatpush2.xpose.msra.mxu0 0.0
    %5414 = vmatprep.subr.mxu0 0.0
    %5415 = vmatpush2.xpose.msra.mxu0 0.0
    %5416 = vmatprep.subr.mxu0 0.0
    %5417 = vmatpush2.xpose.msra.mxu0 0.0
    %5418 = vmatprep.subr.mxu0 0.0
    %5419 = vmatpush2.xpose.msra.mxu0 0.0
    %5420 = vmatprep.subr.mxu0 0.0
    %5421 = vmatpush2.xpose.msra.mxu0 0.0
    %5422 = vmatprep.subr.mxu0 0.0
    %5423 = vmatpush2.xpose.msra.mxu0 0.0
    %5424 = vmatprep.subr.mxu0 0.0
    %5425 = vmatpush2.xpose.msra.mxu0 0.0
    %5426 = vmatprep.subr.mxu0 0.0
    %5427 = vmatpush2.xpose.msra.mxu0 0.0
    %5428 = vmatprep.subr.mxu0 0.0
    %5429 = vmatpush2.xpose.msra.mxu0 0.0
    %5430 = vmatprep.subr.mxu0 0.0
    %5431 = vmatpush2.xpose.msra.mxu0 0.0
    %5432 = vmatprep.subr.mxu0 0.0
    %5433 = vmatpush2.xpose.msra.mxu0 0.0
    %5434 = vmatprep.subr.mxu0 0.0
    %5435 = vmatpush2.xpose.msra.mxu0 0.0
    %5436 = vmatprep.subr.mxu0 0.0
    %5437 = vmatpush2.xpose.msra.mxu0 0.0
    %5438 = vmatprep.mubr.f32.mxu0 0.0
    %5439 = vmatmul.mubr.f32.gmra.mxu0 %v5373
    %v5440 = vpop.f32.mrf.mxu0
    %v5441 = vadd.f32 0.0, %v5440
    %v5442 = vpop.f32.mrf.mxu0
    %5443 = vdwg.mxu0
    %v5444 = vmul.f32 %v5441, 0.35355338
    %v5445 = vsel %vm523, %v5444, -1e+09
    %v5446 = vsel %vm825, %v5445, -inf
    %5447 = vmax.xlane.f32.xlu0 %v5446
    %v5448 = vpop.xlane.xlu0 %5447
    %v5449 = vsub.f32 %v5445, %v5448
    %v5450 = vmul.f32 %v5449, 1.442695
    %v5451 = vpow.pop %v5450
    %v5452 = vsel %vm825, %v5451, 0.0
    %5453 = vadd.xlane.f32.xlu0 %v5452
    %v5454 = vpop.xlane.xlu0 %5453
    %v5455 = vrcp.pop %v5454
    %v5456 = vmul.f32 %v5451, %v5455
    %v5457 = vmul.f32 %v5266, %v842
    %v5459 = vsel %vm825, %v5456, 0
    %5461 = vmatprep.subr.mxu0 0.0
    %5462 = vmatpush1.msra.mxu0 0.0
    %5463 = vmatprep.subr.mxu0 0.0
    %5464 = vmatpush1.msra.mxu0 0.0
    %5465 = vmatprep.subr.mxu0 0.0
    %5466 = vmatpush1.msra.mxu0 0.0
    %5467 = vmatprep.subr.mxu0 0.0
    %5468 = vmatpush1.msra.mxu0 0.0
    %5469 = vmatprep.subr.mxu0 0.0
    %5470 = vmatpush1.msra.mxu0 0.0
    %5471 = vmatprep.subr.mxu0 0.0
    %5472 = vmatpush1.msra.mxu0 0.0
    %5473 = vmatprep.subr.mxu0 0.0
    %5474 = vmatpush1.msra.mxu0 0.0
    %5475 = vmatprep.subr.mxu0 0.0
    %5476 = vmatpush1.msra.mxu0 0.0
    %5477 = vmatprep.subr.mxu0 0.0
    %5478 = vmatpush1.msra.mxu0 0.0
    %5479 = vmatprep.subr.mxu0 0.0
    %5480 = vmatpush1.msra.mxu0 0.0
    %5481 = vmatprep.subr.mxu0 0.0
    %5482 = vmatpush1.msra.mxu0 0.0
    %5483 = vmatprep.subr.mxu0 0.0
    %5484 = vmatpush1.msra.mxu0 0.0
    %5485 = vmatprep.subr.mxu0 0.0
    %5486 = vmatpush1.msra.mxu0 0.0
    %5487 = vmatprep.subr.mxu0 0.0
    %5488 = vmatpush1.msra.mxu0 0.0
    %5489 = vmatprep.subr.mxu0 0.0
    %5490 = vmatpush1.msra.mxu0 0.0
    %5491 = vmatprep.subr.mxu0 0.0
    %5492 = vmatpush1.msra.mxu0 %v5457
    %5493 = vmatprep.subr.mxu0 0.0
    %5494 = vmatpush2.msra.mxu0 0.0
    %5495 = vmatprep.subr.mxu0 0.0
    %5496 = vmatpush2.msra.mxu0 0.0
    %5497 = vmatprep.subr.mxu0 0.0
    %5498 = vmatpush2.msra.mxu0 0.0
    %5499 = vmatprep.subr.mxu0 0.0
    %5500 = vmatpush2.msra.mxu0 0.0
    %5501 = vmatprep.subr.mxu0 0.0
    %5502 = vmatpush2.msra.mxu0 0.0
    %5503 = vmatprep.subr.mxu0 0.0
    %5504 = vmatpush2.msra.mxu0 0.0
    %5505 = vmatprep.subr.mxu0 0.0
    %5506 = vmatpush2.msra.mxu0 0.0
    %5507 = vmatprep.subr.mxu0 0.0
    %5508 = vmatpush2.msra.mxu0 0.0
    %5509 = vmatprep.subr.mxu0 0.0
    %5510 = vmatpush2.msra.mxu0 0.0
    %5511 = vmatprep.subr.mxu0 0.0
    %5512 = vmatpush2.msra.mxu0 0.0
    %5513 = vmatprep.subr.mxu0 0.0
    %5514 = vmatpush2.msra.mxu0 0.0
    %5515 = vmatprep.subr.mxu0 0.0
    %5516 = vmatpush2.msra.mxu0 0.0
    %5517 = vmatprep.subr.mxu0 0.0
    %5518 = vmatpush2.msra.mxu0 0.0
    %5519 = vmatprep.subr.mxu0 0.0
    %5520 = vmatpush2.msra.mxu0 0.0
    %5521 = vmatprep.subr.mxu0 0.0
    %5522 = vmatpush2.msra.mxu0 0.0
    %5523 = vmatprep.subr.mxu0 0.0
    %5524 = vmatpush2.msra.mxu0 0.0
    %5525 = vmatprep.mubr.f32.mxu0 0.0
    %5526 = vmatmul.mubr.f32.gmra.mxu0 %v5459
    %v5527 = vpop.f32.mrf.mxu0
    %v5528 = vadd.f32 0.0, %v5527
    %v5529 = vpop.f32.mrf.mxu0
    %5530 = vdwg.mxu0
    %v5532 = vsel %vm825, %v5371, 0
    %5534 = vmatprep.subr.mxu0 0.0
    %5535 = vmatpush1.msra.mxu0 0.0
    %5536 = vmatprep.subr.mxu0 0.0
    %5537 = vmatpush1.msra.mxu0 0.0
    %5538 = vmatprep.subr.mxu0 0.0
    %5539 = vmatpush1.msra.mxu0 0.0
    %5540 = vmatprep.subr.mxu0 0.0
    %5541 = vmatpush1.msra.mxu0 0.0
    %5542 = vmatprep.subr.mxu0 0.0
    %5543 = vmatpush1.msra.mxu0 0.0
    %5544 = vmatprep.subr.mxu0 0.0
    %5545 = vmatpush1.msra.mxu0 0.0
    %5546 = vmatprep.subr.mxu0 0.0
    %5547 = vmatpush1.msra.mxu0 0.0
    %5548 = vmatprep.subr.mxu0 0.0
    %5549 = vmatpush1.msra.mxu0 0.0
    %5550 = vmatprep.subr.mxu0 0.0
    %5551 = vmatpush1.msra.mxu0 0.0
    %5552 = vmatprep.subr.mxu0 0.0
    %5553 = vmatpush1.msra.mxu0 0.0
    %5554 = vmatprep.subr.mxu0 0.0
    %5555 = vmatpush1.msra.mxu0 0.0
    %5556 = vmatprep.subr.mxu0 0.0
    %5557 = vmatpush1.msra.mxu0 0.0
    %5558 = vmatprep.subr.mxu0 0.0
    %5559 = vmatpush1.msra.mxu0 0.0
    %5560 = vmatprep.subr.mxu0 0.0
    %5561 = vmatpush1.msra.mxu0 0.0
    %5562 = vmatprep.subr.mxu0 0.0
    %5563 = vmatpush1.msra.mxu0 0.0
    %5564 = vmatprep.subr.mxu0 0.0
    %5565 = vmatpush1.msra.mxu0 %v5372
    %5566 = vmatprep.subr.mxu0 0.0
    %5567 = vmatpush2.msra.mxu0 0.0
    %5568 = vmatprep.subr.mxu0 0.0
    %5569 = vmatpush2.msra.mxu0 0.0
    %5570 = vmatprep.subr.mxu0 0.0
    %5571 = vmatpush2.msra.mxu0 0.0
    %5572 = vmatprep.subr.mxu0 0.0
    %5573 = vmatpush2.msra.mxu0 0.0
    %5574 = vmatprep.subr.mxu0 0.0
    %5575 = vmatpush2.msra.mxu0 0.0
    %5576 = vmatprep.subr.mxu0 0.0
    %5577 = vmatpush2.msra.mxu0 0.0
    %5578 = vmatprep.subr.mxu0 0.0
    %5579 = vmatpush2.msra.mxu0 0.0
    %5580 = vmatprep.subr.mxu0 0.0
    %5581 = vmatpush2.msra.mxu0 0.0
    %5582 = vmatprep.subr.mxu0 0.0
    %5583 = vmatpush2.msra.mxu0 0.0
    %5584 = vmatprep.subr.mxu0 0.0
    %5585 = vmatpush2.msra.mxu0 0.0
    %5586 = vmatprep.subr.mxu0 0.0
    %5587 = vmatpush2.msra.mxu0 0.0
    %5588 = vmatprep.subr.mxu0 0.0
    %5589 = vmatpush2.msra.mxu0 0.0
    %5590 = vmatprep.subr.mxu0 0.0
    %5591 = vmatpush2.msra.mxu0 0.0
    %5592 = vmatprep.subr.mxu0 0.0
    %5593 = vmatpush2.msra.mxu0 0.0
    %5594 = vmatprep.subr.mxu0 0.0
    %5595 = vmatpush2.msra.mxu0 0.0
    %5596 = vmatprep.subr.mxu0 0.0
    %5597 = vmatpush2.msra.mxu0 0.0
    %5598 = vmatprep.mubr.f32.mxu0 0.0
    %5599 = vmatmul.mubr.f32.gmra.mxu0 %v5532
    %v5600 = vpop.f32.mrf.mxu0
    %v5601 = vadd.f32 %v5528, %v5600
    %v5602 = vpop.f32.mrf.mxu0
    %5603 = vdwg.mxu0
    %v5604 = vmul.f32 %v5195, %v1078
    %5605 = vmatprep.subr.mxu0 0.0
    %5606 = vmatpush1.xpose.msra.mxu0 0.0
    %5607 = vmatprep.subr.mxu0 0.0
    %5608 = vmatpush1.xpose.msra.mxu0 0.0
    %5609 = vmatprep.subr.mxu0 0.0
    %5610 = vmatpush1.xpose.msra.mxu0 0.0
    %5611 = vmatprep.subr.mxu0 0.0
    %5612 = vmatpush1.xpose.msra.mxu0 0.0
    %5613 = vmatprep.subr.mxu0 0.0
    %5614 = vmatpush1.xpose.msra.mxu0 0.0
    %5615 = vmatprep.subr.mxu0 0.0
    %5616 = vmatpush1.xpose.msra.mxu0 0.0
    %5617 = vmatprep.subr.mxu0 0.0
    %5618 = vmatpush1.xpose.msra.mxu0 0.0
    %5619 = vmatprep.subr.mxu0 0.0
    %5620 = vmatpush1.xpose.msra.mxu0 0.0
    %5621 = vmatprep.subr.mxu0 0.0
    %5622 = vmatpush1.xpose.msra.mxu0 0.0
    %5623 = vmatprep.subr.mxu0 0.0
    %5624 = vmatpush1.xpose.msra.mxu0 0.0
    %5625 = vmatprep.subr.mxu0 0.0
    %5626 = vmatpush1.xpose.msra.mxu0 0.0
    %5627 = vmatprep.subr.mxu0 0.0
    %5628 = vmatpush1.xpose.msra.mxu0 0.0
    %5629 = vmatprep.subr.mxu0 0.0
    %5630 = vmatpush1.xpose.msra.mxu0 0.0
    %5631 = vmatprep.subr.mxu0 0.0
    %5632 = vmatpush1.xpose.msra.mxu0 0.0
    %5633 = vmatprep.subr.mxu0 0.0
    %5634 = vmatpush1.xpose.msra.mxu0 0.0
    %5635 = vmatprep.subr.mxu0 0.0
    %5636 = vmatpush1.xpose.msra.mxu0 %v5197
    %5637 = vmatprep.subr.mxu0 0.0
    %5638 = vmatpush2.xpose.msra.mxu0 0.0
    %5639 = vmatprep.subr.mxu0 0.0
    %5640 = vmatpush2.xpose.msra.mxu0 0.0
    %5641 = vmatprep.subr.mxu0 0.0
    %5642 = vmatpush2.xpose.msra.mxu0 0.0
    %5643 = vmatprep.subr.mxu0 0.0
    %5644 = vmatpush2.xpose.msra.mxu0 0.0
    %5645 = vmatprep.subr.mxu0 0.0
    %5646 = vmatpush2.xpose.msra.mxu0 0.0
    %5647 = vmatprep.subr.mxu0 0.0
    %5648 = vmatpush2.xpose.msra.mxu0 0.0
    %5649 = vmatprep.subr.mxu0 0.0
    %5650 = vmatpush2.xpose.msra.mxu0 0.0
    %5651 = vmatprep.subr.mxu0 0.0
    %5652 = vmatpush2.xpose.msra.mxu0 0.0
    %5653 = vmatprep.subr.mxu0 0.0
    %5654 = vmatpush2.xpose.msra.mxu0 0.0
    %5655 = vmatprep.subr.mxu0 0.0
    %5656 = vmatpush2.xpose.msra.mxu0 0.0
    %5657 = vmatprep.subr.mxu0 0.0
    %5658 = vmatpush2.xpose.msra.mxu0 0.0
    %5659 = vmatprep.subr.mxu0 0.0
    %5660 = vmatpush2.xpose.msra.mxu0 0.0
    %5661 = vmatprep.subr.mxu0 0.0
    %5662 = vmatpush2.xpose.msra.mxu0 0.0
    %5663 = vmatprep.subr.mxu0 0.0
    %5664 = vmatpush2.xpose.msra.mxu0 0.0
    %5665 = vmatprep.subr.mxu0 0.0
    %5666 = vmatpush2.xpose.msra.mxu0 0.0
    %5667 = vmatprep.subr.mxu0 0.0
    %5668 = vmatpush2.xpose.msra.mxu0 0.0
    %5669 = vmatprep.mubr.f32.mxu0 0.0
    %5670 = vmatmul.mubr.f32.gmra.mxu0 %v5604
    %v5671 = vpop.f32.mrf.mxu0
    %v5672 = vadd.f32 0.0, %v5671
    %v5673 = vpop.f32.mrf.mxu0
    %5674 = vdwg.mxu0
    %v5675 = vmul.f32 %v5672, 0.35355338
    %v5676 = vsel %vm523, %v5675, -1e+09
    %v5677 = vsel %vm825, %v5676, -inf
    %5678 = vmax.xlane.f32.xlu0 %v5677
    %v5679 = vpop.xlane.xlu0 %5678
    %v5680 = vsub.f32 %v5676, %v5679
    %v5681 = vmul.f32 %v5680, 1.442695
    %v5682 = vpow.pop %v5681
    %v5683 = vsel %vm825, %v5682, 0.0
    %5684 = vadd.xlane.f32.xlu0 %v5683
    %v5685 = vpop.xlane.xlu0 %5684
    %v5686 = vrcp.pop %v5685
    %v5687 = vmul.f32 %v5682, %v5686
    %v5688 = vmul.f32 %v5266, %v1078
    %v5690 = vsel %vm825, %v5687, 0
    %5692 = vmatprep.subr.mxu0 0.0
    %5693 = vmatpush1.msra.mxu0 0.0
    %5694 = vmatprep.subr.mxu0 0.0
    %5695 = vmatpush1.msra.mxu0 0.0
    %5696 = vmatprep.subr.mxu0 0.0
    %5697 = vmatpush1.msra.mxu0 0.0
    %5698 = vmatprep.subr.mxu0 0.0
    %5699 = vmatpush1.msra.mxu0 0.0
    %5700 = vmatprep.subr.mxu0 0.0
    %5701 = vmatpush1.msra.mxu0 0.0
    %5702 = vmatprep.subr.mxu0 0.0
    %5703 = vmatpush1.msra.mxu0 0.0
    %5704 = vmatprep.subr.mxu0 0.0
    %5705 = vmatpush1.msra.mxu0 0.0
    %5706 = vmatprep.subr.mxu0 0.0
    %5707 = vmatpush1.msra.mxu0 0.0
    %5708 = vmatprep.subr.mxu0 0.0
    %5709 = vmatpush1.msra.mxu0 0.0
    %5710 = vmatprep.subr.mxu0 0.0
    %5711 = vmatpush1.msra.mxu0 0.0
    %5712 = vmatprep.subr.mxu0 0.0
    %5713 = vmatpush1.msra.mxu0 0.0
    %5714 = vmatprep.subr.mxu0 0.0
    %5715 = vmatpush1.msra.mxu0 0.0
    %5716 = vmatprep.subr.mxu0 0.0
    %5717 = vmatpush1.msra.mxu0 0.0
    %5718 = vmatprep.subr.mxu0 0.0
    %5719 = vmatpush1.msra.mxu0 0.0
    %5720 = vmatprep.subr.mxu0 0.0
    %5721 = vmatpush1.msra.mxu0 0.0
    %5722 = vmatprep.subr.mxu0 0.0
    %5723 = vmatpush1.msra.mxu0 %v5688
    %5724 = vmatprep.subr.mxu0 0.0
    %5725 = vmatpush2.msra.mxu0 0.0
    %5726 = vmatprep.subr.mxu0 0.0
    %5727 = vmatpush2.msra.mxu0 0.0
    %5728 = vmatprep.subr.mxu0 0.0
    %5729 = vmatpush2.msra.mxu0 0.0
    %5730 = vmatprep.subr.mxu0 0.0
    %5731 = vmatpush2.msra.mxu0 0.0
    %5732 = vmatprep.subr.mxu0 0.0
    %5733 = vmatpush2.msra.mxu0 0.0
    %5734 = vmatprep.subr.mxu0 0.0
    %5735 = vmatpush2.msra.mxu0 0.0
    %5736 = vmatprep.subr.mxu0 0.0
    %5737 = vmatpush2.msra.mxu0 0.0
    %5738 = vmatprep.subr.mxu0 0.0
    %5739 = vmatpush2.msra.mxu0 0.0
    %5740 = vmatprep.subr.mxu0 0.0
    %5741 = vmatpush2.msra.mxu0 0.0
    %5742 = vmatprep.subr.mxu0 0.0
    %5743 = vmatpush2.msra.mxu0 0.0
    %5744 = vmatprep.subr.mxu0 0.0
    %5745 = vmatpush2.msra.mxu0 0.0
    %5746 = vmatprep.subr.mxu0 0.0
    %5747 = vmatpush2.msra.mxu0 0.0
    %5748 = vmatprep.subr.mxu0 0.0
    %5749 = vmatpush2.msra.mxu0 0.0
    %5750 = vmatprep.subr.mxu0 0.0
    %5751 = vmatpush2.msra.mxu0 0.0
    %5752 = vmatprep.subr.mxu0 0.0
    %5753 = vmatpush2.msra.mxu0 0.0
    %5754 = vmatprep.subr.mxu0 0.0
    %5755 = vmatpush2.msra.mxu0 0.0
    %5756 = vmatprep.mubr.f32.mxu0 0.0
    %5757 = vmatmul.mubr.f32.gmra.mxu0 %v5690
    %v5758 = vpop.f32.mrf.mxu0
    %v5759 = vadd.f32 0.0, %v5758
    %v5760 = vpop.f32.mrf.mxu0
    %5761 = vdwg.mxu0
    %v5762 = vadd.f32 %v5601, %v5759
    %v5763 = vmul.f32 %v5195, %v1241
    %5764 = vmatprep.subr.mxu0 0.0
    %5765 = vmatpush1.xpose.msra.mxu0 0.0
    %5766 = vmatprep.subr.mxu0 0.0
    %5767 = vmatpush1.xpose.msra.mxu0 0.0
    %5768 = vmatprep.subr.mxu0 0.0
    %5769 = vmatpush1.xpose.msra.mxu0 0.0
    %5770 = vmatprep.subr.mxu0 0.0
    %5771 = vmatpush1.xpose.msra.mxu0 0.0
    %5772 = vmatprep.subr.mxu0 0.0
    %5773 = vmatpush1.xpose.msra.mxu0 0.0
    %5774 = vmatprep.subr.mxu0 0.0
    %5775 = vmatpush1.xpose.msra.mxu0 0.0
    %5776 = vmatprep.subr.mxu0 0.0
    %5777 = vmatpush1.xpose.msra.mxu0 0.0
    %5778 = vmatprep.subr.mxu0 0.0
    %5779 = vmatpush1.xpose.msra.mxu0 0.0
    %5780 = vmatprep.subr.mxu0 0.0
    %5781 = vmatpush1.xpose.msra.mxu0 0.0
    %5782 = vmatprep.subr.mxu0 0.0
    %5783 = vmatpush1.xpose.msra.mxu0 0.0
    %5784 = vmatprep.subr.mxu0 0.0
    %5785 = vmatpush1.xpose.msra.mxu0 0.0
    %5786 = vmatprep.subr.mxu0 0.0
    %5787 = vmatpush1.xpose.msra.mxu0 0.0
    %5788 = vmatprep.subr.mxu0 0.0
    %5789 = vmatpush1.xpose.msra.mxu0 0.0
    %5790 = vmatprep.subr.mxu0 0.0
    %5791 = vmatpush1.xpose.msra.mxu0 0.0
    %5792 = vmatprep.subr.mxu0 0.0
    %5793 = vmatpush1.xpose.msra.mxu0 0.0
    %5794 = vmatprep.subr.mxu0 0.0
    %5795 = vmatpush1.xpose.msra.mxu0 %v5197
    %5796 = vmatprep.subr.mxu0 0.0
    %5797 = vmatpush2.xpose.msra.mxu0 0.0
    %5798 = vmatprep.subr.mxu0 0.0
    %5799 = vmatpush2.xpose.msra.mxu0 0.0
    %5800 = vmatprep.subr.mxu0 0.0
    %5801 = vmatpush2.xpose.msra.mxu0 0.0
    %5802 = vmatprep.subr.mxu0 0.0
    %5803 = vmatpush2.xpose.msra.mxu0 0.0
    %5804 = vmatprep.subr.mxu0 0.0
    %5805 = vmatpush2.xpose.msra.mxu0 0.0
    %5806 = vmatprep.subr.mxu0 0.0
    %5807 = vmatpush2.xpose.msra.mxu0 0.0
    %5808 = vmatprep.subr.mxu0 0.0
    %5809 = vmatpush2.xpose.msra.mxu0 0.0
    %5810 = vmatprep.subr.mxu0 0.0
    %5811 = vmatpush2.xpose.msra.mxu0 0.0
    %5812 = vmatprep.subr.mxu0 0.0
    %5813 = vmatpush2.xpose.msra.mxu0 0.0
    %5814 = vmatprep.subr.mxu0 0.0
    %5815 = vmatpush2.xpose.msra.mxu0 0.0
    %5816 = vmatprep.subr.mxu0 0.0
    %5817 = vmatpush2.xpose.msra.mxu0 0.0
    %5818 = vmatprep.subr.mxu0 0.0
    %5819 = vmatpush2.xpose.msra.mxu0 0.0
    %5820 = vmatprep.subr.mxu0 0.0
    %5821 = vmatpush2.xpose.msra.mxu0 0.0
    %5822 = vmatprep.subr.mxu0 0.0
    %5823 = vmatpush2.xpose.msra.mxu0 0.0
    %5824 = vmatprep.subr.mxu0 0.0
    %5825 = vmatpush2.xpose.msra.mxu0 0.0
    %5826 = vmatprep.subr.mxu0 0.0
    %5827 = vmatpush2.xpose.msra.mxu0 0.0
    %5828 = vmatprep.mubr.f32.mxu0 0.0
    %5829 = vmatmul.mubr.f32.gmra.mxu0 %v5763
    %v5830 = vpop.f32.mrf.mxu0
    %v5831 = vadd.f32 0.0, %v5830
    %v5832 = vpop.f32.mrf.mxu0
    %5833 = vdwg.mxu0
    %v5834 = vmul.f32 %v5831, 0.35355338
    %v5835 = vsel %vm523, %v5834, -1e+09
    %v5836 = vsel %vm825, %v5835, -inf
    %5837 = vmax.xlane.f32.xlu0 %v5836
    %v5838 = vpop.xlane.xlu0 %5837
    %v5839 = vsub.f32 %v5835, %v5838
    %v5840 = vmul.f32 %v5839, 1.442695
    %v5841 = vpow.pop %v5840
    %v5842 = vsel %vm825, %v5841, 0.0
    %5843 = vadd.xlane.f32.xlu0 %v5842
    %v5844 = vpop.xlane.xlu0 %5843
    %v5845 = vrcp.pop %v5844
    %v5846 = vmul.f32 %v5841, %v5845
    %v5847 = vmul.f32 %v5266, %v1241
    %v5849 = vsel %vm825, %v5846, 0
    %5851 = vmatprep.subr.mxu0 0.0
    %5852 = vmatpush1.msra.mxu0 0.0
    %5853 = vmatprep.subr.mxu0 0.0
    %5854 = vmatpush1.msra.mxu0 0.0
    %5855 = vmatprep.subr.mxu0 0.0
    %5856 = vmatpush1.msra.mxu0 0.0
    %5857 = vmatprep.subr.mxu0 0.0
    %5858 = vmatpush1.msra.mxu0 0.0
    %5859 = vmatprep.subr.mxu0 0.0
    %5860 = vmatpush1.msra.mxu0 0.0
    %5861 = vmatprep.subr.mxu0 0.0
    %5862 = vmatpush1.msra.mxu0 0.0
    %5863 = vmatprep.subr.mxu0 0.0
    %5864 = vmatpush1.msra.mxu0 0.0
    %5865 = vmatprep.subr.mxu0 0.0
    %5866 = vmatpush1.msra.mxu0 0.0
    %5867 = vmatprep.subr.mxu0 0.0
    %5868 = vmatpush1.msra.mxu0 0.0
    %5869 = vmatprep.subr.mxu0 0.0
    %5870 = vmatpush1.msra.mxu0 0.0
    %5871 = vmatprep.subr.mxu0 0.0
    %5872 = vmatpush1.msra.mxu0 0.0
    %5873 = vmatprep.subr.mxu0 0.0
    %5874 = vmatpush1.msra.mxu0 0.0
    %5875 = vmatprep.subr.mxu0 0.0
    %5876 = vmatpush1.msra.mxu0 0.0
    %5877 = vmatprep.subr.mxu0 0.0
    %5878 = vmatpush1.msra.mxu0 0.0
    %5879 = vmatprep.subr.mxu0 0.0
    %5880 = vmatpush1.msra.mxu0 0.0
    %5881 = vmatprep.subr.mxu0 0.0
    %5882 = vmatpush1.msra.mxu0 %v5847
    %5883 = vmatprep.subr.mxu0 0.0
    %5884 = vmatpush2.msra.mxu0 0.0
    %5885 = vmatprep.subr.mxu0 0.0
    %5886 = vmatpush2.msra.mxu0 0.0
    %5887 = vmatprep.subr.mxu0 0.0
    %5888 = vmatpush2.msra.mxu0 0.0
    %5889 = vmatprep.subr.mxu0 0.0
    %5890 = vmatpush2.msra.mxu0 0.0
    %5891 = vmatprep.subr.mxu0 0.0
    %5892 = vmatpush2.msra.mxu0 0.0
    %5893 = vmatprep.subr.mxu0 0.0
    %5894 = vmatpush2.msra.mxu0 0.0
    %5895 = vmatprep.subr.mxu0 0.0
    %5896 = vmatpush2.msra.mxu0 0.0
    %5897 = vmatprep.subr.mxu0 0.0
    %5898 = vmatpush2.msra.mxu0 0.0
    %5899 = vmatprep.subr.mxu0 0.0
    %5900 = vmatpush2.msra.mxu0 0.0
    %5901 = vmatprep.subr.mxu0 0.0
    %5902 = vmatpush2.msra.mxu0 0.0
    %5903 = vmatprep.subr.mxu0 0.0
    %5904 = vmatpush2.msra.mxu0 0.0
    %5905 = vmatprep.subr.mxu0 0.0
    %5906 = vmatpush2.msra.mxu0 0.0
    %5907 = vmatprep.subr.mxu0 0.0
    %5908 = vmatpush2.msra.mxu0 0.0
    %5909 = vmatprep.subr.mxu0 0.0
    %5910 = vmatpush2.msra.mxu0 0.0
    %5911 = vmatprep.subr.mxu0 0.0
    %5912 = vmatpush2.msra.mxu0 0.0
    %5913 = vmatprep.subr.mxu0 0.0
    %5914 = vmatpush2.msra.mxu0 0.0
    %5915 = vmatprep.mubr.f32.mxu0 0.0
    %5916 = vmatmul.mubr.f32.gmra.mxu0 %v5849
    %v5917 = vpop.f32.mrf.mxu0
    %v5918 = vadd.f32 0.0, %v5917
    %v5919 = vpop.f32.mrf.mxu0
    %5920 = vdwg.mxu0
    %v5921 = vadd.f32 %v5762, %v5918
    %v5923 = vlaneseq
    %v5924 = vshrl.u32 %v5923, 7
    %v5925 = vsub.s32 0, %v5924
    %v5926 = vrot.slane %v5287, %v5925
    %5928 = vmatprep.subr.mxu0 0.0
    %5929 = vmatpush1.msra.mxu0 %v5285
    %5930 = vmatprep.subr.mxu0 0.0
    %5931 = vmatpush1.msra.mxu0 %v5284
    %5932 = vmatprep.subr.mxu0 0.0
    %5933 = vmatpush1.msra.mxu0 %v5283
    %5934 = vmatprep.subr.mxu0 0.0
    %5935 = vmatpush1.msra.mxu0 %v5282
    %5936 = vmatprep.subr.mxu0 0.0
    %5937 = vmatpush1.msra.mxu0 %v5281
    %5938 = vmatprep.subr.mxu0 0.0
    %5939 = vmatpush1.msra.mxu0 %v5280
    %5940 = vmatprep.subr.mxu0 0.0
    %5941 = vmatpush1.msra.mxu0 %v5279
    %5942 = vmatprep.subr.mxu0 0.0
    %5943 = vmatpush1.msra.mxu0 %v5278
    %5944 = vmatprep.subr.mxu0 0.0
    %5945 = vmatpush1.msra.mxu0 %v5277
    %5946 = vmatprep.subr.mxu0 0.0
    %5947 = vmatpush1.msra.mxu0 %v5276
    %5948 = vmatprep.subr.mxu0 0.0
    %5949 = vmatpush1.msra.mxu0 %v5275
    %5950 = vmatprep.subr.mxu0 0.0
    %5951 = vmatpush1.msra.mxu0 %v5274
    %5952 = vmatprep.subr.mxu0 0.0
    %5953 = vmatpush1.msra.mxu0 %v5273
    %5954 = vmatprep.subr.mxu0 0.0
    %5955 = vmatpush1.msra.mxu0 %v5272
    %5956 = vmatprep.subr.mxu0 0.0
    %5957 = vmatpush1.msra.mxu0 %v5271
    %5958 = vmatprep.subr.mxu0 0.0
    %5959 = vmatpush1.msra.mxu0 %v5270
    %5960 = vmatprep.subr.mxu0 0.0
    %5961 = vmatpush2.msra.mxu0 0.0
    %5962 = vmatprep.subr.mxu0 0.0
    %5963 = vmatpush2.msra.mxu0 0.0
    %5964 = vmatprep.subr.mxu0 0.0
    %5965 = vmatpush2.msra.mxu0 0.0
    %5966 = vmatprep.subr.mxu0 0.0
    %5967 = vmatpush2.msra.mxu0 0.0
    %5968 = vmatprep.subr.mxu0 0.0
    %5969 = vmatpush2.msra.mxu0 0.0
    %5970 = vmatprep.subr.mxu0 0.0
    %5971 = vmatpush2.msra.mxu0 0.0
    %5972 = vmatprep.subr.mxu0 0.0
    %5973 = vmatpush2.msra.mxu0 0.0
    %5974 = vmatprep.subr.mxu0 0.0
    %5975 = vmatpush2.msra.mxu0 0.0
    %5976 = vmatprep.subr.mxu0 0.0
    %5977 = vmatpush2.msra.mxu0 0.0
    %5978 = vmatprep.subr.mxu0 0.0
    %5979 = vmatpush2.msra.mxu0 0.0
    %5980 = vmatprep.subr.mxu0 0.0
    %5981 = vmatpush2.msra.mxu0 0.0
    %5982 = vmatprep.subr.mxu0 0.0
    %5983 = vmatpush2.msra.mxu0 0.0
    %5984 = vmatprep.subr.mxu0 0.0
    %5985 = vmatpush2.msra.mxu0 0.0
    %5986 = vmatprep.subr.mxu0 0.0
    %5987 = vmatpush2.msra.mxu0 0.0
    %5988 = vmatprep.subr.mxu0 0.0
    %5989 = vmatpush2.msra.mxu0 0.0
    %5990 = vmatprep.subr.mxu0 0.0
    %5991 = vmatpush2.msra.mxu0 0.0
    %5992 = vmatprep.mubr.f32.mxu0 0.0
    %5993 = vmatmul.mubr.f32.gmra.mxu0 %v5921
    %v5994 = vpop.f32.mrf.mxu0
    %v5995 = vadd.f32 %v5926, %v5994
    %v5996 = vpop.f32.mrf.mxu0
    %5997 = vdwg.mxu0
    %s5998 = scalar_lea.vmem [#allocation16], 1
    %v5999 = vld [vmem:[%s5998] sm:$0x1]
    %s6000 = scalar_lea.vmem [#allocation14], 1
    %v6001 = vld [vmem:[%s6000] sm:$0x1]
    %v6002 = vadd.f32 %v5060, %v5995
    %v6003 = vmul.f32 %v6002, %v501
    %6004 = vadd.xlane.f32.xlu0 %v6003
    %v6005 = vpop.xlane.xlu0 %6004
    %v6006 = vmul.f32 %v6005, 0.03125
    %v6007 = vsub.f32 %v6002, %v6006
    %v6008 = vmul.f32 %v6007, %v501
    %v6009 = vmul.f32 %v6008, %v6008
    %6010 = vadd.xlane.f32.xlu0 %v6009
    %v6011 = vpop.xlane.xlu0 %6010
    %v6012 = vmul.f32 %v6011, 0.03125
    %v6013 = vadd.f32 %v6012, 1e-05
    %v6014 = vrsqrt.pop %v6013
    %v6015 = vmul.f32 %v6008, %v6014
    %v6017 = vlaneseq
    %v6018 = vshrl.u32 %v6017, 7
    %v6019 = vsub.s32 0, %v6018
    %v6020 = vrot.slane %v5999, %v6019
    %v6022 = vmul.f32 %v6015, %v6020
    %v6024 = vlaneseq
    %v6025 = vshrl.u32 %v6024, 7
    %v6026 = vsub.s32 0, %v6025
    %v6027 = vrot.slane %v6001, %v6026
    %v6029 = vadd.f32 %v6022, %v6027
    %s6030 = scalar_lea.vmem [#allocation32], 128
    %v6031 = vld [vmem:[%s6030] sm:$0xff]
    %v6032 = vld [vmem:[%s6030 + $0x8] sm:$0xff]
    %v6033 = vld [vmem:[%s6030 + $0x10] sm:$0xff]
    %v6034 = vld [vmem:[%s6030 + $0x18] sm:$0xff]
    %v6035 = vld [vmem:[%s6030 + $0x20] sm:$0xff]
    %v6036 = vld [vmem:[%s6030 + $0x28] sm:$0xff]
    %v6037 = vld [vmem:[%s6030 + $0x30] sm:$0xff]
    %v6038 = vld [vmem:[%s6030 + $0x38] sm:$0xff]
    %v6039 = vld [vmem:[%s6030 + $0x40] sm:$0xff]
    %v6040 = vld [vmem:[%s6030 + $0x48] sm:$0xff]
    %v6041 = vld [vmem:[%s6030 + $0x50] sm:$0xff]
    %v6042 = vld [vmem:[%s6030 + $0x58] sm:$0xff]
    %v6043 = vld [vmem:[%s6030 + $0x60] sm:$0xff]
    %v6044 = vld [vmem:[%s6030 + $0x68] sm:$0xff]
    %v6045 = vld [vmem:[%s6030 + $0x70] sm:$0xff]
    %v6046 = vld [vmem:[%s6030 + $0x78] sm:$0xff]
    %s6047 = scalar_lea.vmem [#allocation13], 1
    %v6048 = vld [vmem:[%s6047] sm:$0x1]
    %v6050 = vlaneseq
    %v6051 = vshrl.u32 %v6050, 7
    %v6052 = vsub.s32 0, %v6051
    %v6053 = vrot.slane %v6048, %v6052
    %6055 = vmatprep.subr.mxu0 0.0
    %6056 = vmatpush1.msra.mxu0 %v6046
    %6057 = vmatprep.subr.mxu0 0.0
    %6058 = vmatpush1.msra.mxu0 %v6045
    %6059 = vmatprep.subr.mxu0 0.0
    %6060 = vmatpush1.msra.mxu0 %v6044
    %6061 = vmatprep.subr.mxu0 0.0
    %6062 = vmatpush1.msra.mxu0 %v6043
    %6063 = vmatprep.subr.mxu0 0.0
    %6064 = vmatpush1.msra.mxu0 %v6042
    %6065 = vmatprep.subr.mxu0 0.0
    %6066 = vmatpush1.msra.mxu0 %v6041
    %6067 = vmatprep.subr.mxu0 0.0
    %6068 = vmatpush1.msra.mxu0 %v6040
    %6069 = vmatprep.subr.mxu0 0.0
    %6070 = vmatpush1.msra.mxu0 %v6039
    %6071 = vmatprep.subr.mxu0 0.0
    %6072 = vmatpush1.msra.mxu0 %v6038
    %6073 = vmatprep.subr.mxu0 0.0
    %6074 = vmatpush1.msra.mxu0 %v6037
    %6075 = vmatprep.subr.mxu0 0.0
    %6076 = vmatpush1.msra.mxu0 %v6036
    %6077 = vmatprep.subr.mxu0 0.0
    %6078 = vmatpush1.msra.mxu0 %v6035
    %6079 = vmatprep.subr.mxu0 0.0
    %6080 = vmatpush1.msra.mxu0 %v6034
    %6081 = vmatprep.subr.mxu0 0.0
    %6082 = vmatpush1.msra.mxu0 %v6033
    %6083 = vmatprep.subr.mxu0 0.0
    %6084 = vmatpush1.msra.mxu0 %v6032
    %6085 = vmatprep.subr.mxu0 0.0
    %6086 = vmatpush1.msra.mxu0 %v6031
    %6087 = vmatprep.subr.mxu0 0.0
    %6088 = vmatpush2.msra.mxu0 0.0
    %6089 = vmatprep.subr.mxu0 0.0
    %6090 = vmatpush2.msra.mxu0 0.0
    %6091 = vmatprep.subr.mxu0 0.0
    %6092 = vmatpush2.msra.mxu0 0.0
    %6093 = vmatprep.subr.mxu0 0.0
    %6094 = vmatpush2.msra.mxu0 0.0
    %6095 = vmatprep.subr.mxu0 0.0
    %6096 = vmatpush2.msra.mxu0 0.0
    %6097 = vmatprep.subr.mxu0 0.0
    %6098 = vmatpush2.msra.mxu0 0.0
    %6099 = vmatprep.subr.mxu0 0.0
    %6100 = vmatpush2.msra.mxu0 0.0
    %6101 = vmatprep.subr.mxu0 0.0
    %6102 = vmatpush2.msra.mxu0 0.0
    %6103 = vmatprep.subr.mxu0 0.0
    %6104 = vmatpush2.msra.mxu0 0.0
    %6105 = vmatprep.subr.mxu0 0.0
    %6106 = vmatpush2.msra.mxu0 0.0
    %6107 = vmatprep.subr.mxu0 0.0
    %6108 = vmatpush2.msra.mxu0 0.0
    %6109 = vmatprep.subr.mxu0 0.0
    %6110 = vmatpush2.msra.mxu0 0.0
    %6111 = vmatprep.subr.mxu0 0.0
    %6112 = vmatpush2.msra.mxu0 0.0
    %6113 = vmatprep.subr.mxu0 0.0
    %6114 = vmatpush2.msra.mxu0 0.0
    %6115 = vmatprep.subr.mxu0 0.0
    %6116 = vmatpush2.msra.mxu0 0.0
    %6117 = vmatprep.subr.mxu0 0.0
    %6118 = vmatpush2.msra.mxu0 0.0
    %6119 = vmatprep.mubr.f32.mxu0 0.0
    %6120 = vmatmul.mubr.f32.gmra.mxu0 %v6029
    %v6121 = vpop.f32.mrf.mxu0
    %v6122 = vadd.f32 %v6053, %v6121
    %v6123 = vpop.f32.mrf.mxu0
    %6124 = vdwg.mxu0
    %s6125 = scalar_lea.vmem [#allocation28], 256
    %v6126 = vld [vmem:[%s6125] sm:$0xff]
    %v6127 = vld [vmem:[%s6125 + $0x8] sm:$0xff]
    %v6128 = vld [vmem:[%s6125 + $0x10] sm:$0xff]
    %v6129 = vld [vmem:[%s6125 + $0x18] sm:$0xff]
    %v6130 = vld [vmem:[%s6125 + $0x20] sm:$0xff]
    %v6131 = vld [vmem:[%s6125 + $0x28] sm:$0xff]
    %v6132 = vld [vmem:[%s6125 + $0x30] sm:$0xff]
    %v6133 = vld [vmem:[%s6125 + $0x38] sm:$0xff]
    %v6134 = vld [vmem:[%s6125 + $0x40] sm:$0xff]
    %v6135 = vld [vmem:[%s6125 + $0x48] sm:$0xff]
    %v6136 = vld [vmem:[%s6125 + $0x50] sm:$0xff]
    %v6137 = vld [vmem:[%s6125 + $0x58] sm:$0xff]
    %v6138 = vld [vmem:[%s6125 + $0x60] sm:$0xff]
    %v6139 = vld [vmem:[%s6125 + $0x68] sm:$0xff]
    %v6140 = vld [vmem:[%s6125 + $0x70] sm:$0xff]
    %v6141 = vld [vmem:[%s6125 + $0x78] sm:$0xff]
    %v6142 = vld [vmem:[%s6125 + $0x80] sm:$0xff]
    %v6143 = vld [vmem:[%s6125 + $0x88] sm:$0xff]
    %v6144 = vld [vmem:[%s6125 + $0x90] sm:$0xff]
    %v6145 = vld [vmem:[%s6125 + $0x98] sm:$0xff]
    %v6146 = vld [vmem:[%s6125 + $0xa0] sm:$0xff]
    %v6147 = vld [vmem:[%s6125 + $0xa8] sm:$0xff]
    %v6148 = vld [vmem:[%s6125 + $0xb0] sm:$0xff]
    %v6149 = vld [vmem:[%s6125 + $0xb8] sm:$0xff]
    %v6150 = vld [vmem:[%s6125 + $0xc0] sm:$0xff]
    %v6151 = vld [vmem:[%s6125 + $0xc8] sm:$0xff]
    %v6152 = vld [vmem:[%s6125 + $0xd0] sm:$0xff]
    %v6153 = vld [vmem:[%s6125 + $0xd8] sm:$0xff]
    %v6154 = vld [vmem:[%s6125 + $0xe0] sm:$0xff]
    %v6155 = vld [vmem:[%s6125 + $0xe8] sm:$0xff]
    %v6156 = vld [vmem:[%s6125 + $0xf0] sm:$0xff]
    %v6157 = vld [vmem:[%s6125 + $0xf8] sm:$0xff]
    %s6158 = scalar_lea.vmem [#allocation8], 2
    %v6159 = vld [vmem:[%s6158] sm:$0x3]
    %v6161 = vlaneseq
    %v6162 = vshrl.u32 %v6161, 7
    %v6163 = vsub.s32 0, %v6162
    %v6164 = vrot.slane %v6159, %v6163
    %v6165 = vlaneseq
    %v6166 = vshrl.u32 %v6165, 7
    %v6167 = vsub.s32 1, %v6166
    %v6168 = vrot.slane %v6159, %v6167
    %6171 = vmatprep.subr.mxu0 %v6157
    %6172 = vmatpush1.msra.mxu0 %v6156
    %6173 = vmatprep.subr.mxu0 %v6155
    %6174 = vmatpush1.msra.mxu0 %v6154
    %6175 = vmatprep.subr.mxu0 %v6153
    %6176 = vmatpush1.msra.mxu0 %v6152
    %6177 = vmatprep.subr.mxu0 %v6151
    %6178 = vmatpush1.msra.mxu0 %v6150
    %6179 = vmatprep.subr.mxu0 %v6149
    %6180 = vmatpush1.msra.mxu0 %v6148
    %6181 = vmatprep.subr.mxu0 %v6147
    %6182 = vmatpush1.msra.mxu0 %v6146
    %6183 = vmatprep.subr.mxu0 %v6145
    %6184 = vmatpush1.msra.mxu0 %v6144
    %6185 = vmatprep.subr.mxu0 %v6143
    %6186 = vmatpush1.msra.mxu0 %v6142
    %6187 = vmatprep.subr.mxu0 %v6141
    %6188 = vmatpush1.msra.mxu0 %v6140
    %6189 = vmatprep.subr.mxu0 %v6139
    %6190 = vmatpush1.msra.mxu0 %v6138
    %6191 = vmatprep.subr.mxu0 %v6137
    %6192 = vmatpush1.msra.mxu0 %v6136
    %6193 = vmatprep.subr.mxu0 %v6135
    %6194 = vmatpush1.msra.mxu0 %v6134
    %6195 = vmatprep.subr.mxu0 %v6133
    %6196 = vmatpush1.msra.mxu0 %v6132
    %6197 = vmatprep.subr.mxu0 %v6131
    %6198 = vmatpush1.msra.mxu0 %v6130
    %6199 = vmatprep.subr.mxu0 %v6129
    %6200 = vmatpush1.msra.mxu0 %v6128
    %6201 = vmatprep.subr.mxu0 %v6127
    %6202 = vmatpush1.msra.mxu0 %v6126
    %6203 = vmatprep.subr.mxu0 0.0
    %6204 = vmatpush2.msra.mxu0 0.0
    %6205 = vmatprep.subr.mxu0 0.0
    %6206 = vmatpush2.msra.mxu0 0.0
    %6207 = vmatprep.subr.mxu0 0.0
    %6208 = vmatpush2.msra.mxu0 0.0
    %6209 = vmatprep.subr.mxu0 0.0
    %6210 = vmatpush2.msra.mxu0 0.0
    %6211 = vmatprep.subr.mxu0 0.0
    %6212 = vmatpush2.msra.mxu0 0.0
    %6213 = vmatprep.subr.mxu0 0.0
    %6214 = vmatpush2.msra.mxu0 0.0
    %6215 = vmatprep.subr.mxu0 0.0
    %6216 = vmatpush2.msra.mxu0 0.0
    %6217 = vmatprep.subr.mxu0 0.0
    %6218 = vmatpush2.msra.mxu0 0.0
    %6219 = vmatprep.subr.mxu0 0.0
    %6220 = vmatpush2.msra.mxu0 0.0
    %6221 = vmatprep.subr.mxu0 0.0
    %6222 = vmatpush2.msra.mxu0 0.0
    %6223 = vmatprep.subr.mxu0 0.0
    %6224 = vmatpush2.msra.mxu0 0.0
    %6225 = vmatprep.subr.mxu0 0.0
    %6226 = vmatpush2.msra.mxu0 0.0
    %6227 = vmatprep.subr.mxu0 0.0
    %6228 = vmatpush2.msra.mxu0 0.0
    %6229 = vmatprep.subr.mxu0 0.0
    %6230 = vmatpush2.msra.mxu0 0.0
    %6231 = vmatprep.subr.mxu0 0.0
    %6232 = vmatpush2.msra.mxu0 0.0
    %6233 = vmatprep.subr.mxu0 0.0
    %6234 = vmatpush2.msra.mxu0 0.0
    %6235 = vmatprep.mubr.f32.mxu0 0.0
    %6236 = vmatmul.mubr.f32.gmra.mxu0 %v2915
    %v6237 = vpop.f32.mrf.mxu0
    %v6238 = vadd.f32 %v6164, %v6237
    %v6239 = vpop.f32.mrf.mxu0
    %v6240 = vadd.f32 %v6168, %v6239
    %6241 = vdwg.mxu0
    %s6242 = scalar_lea.vmem [#allocation31], 128
    %v6243 = vld [vmem:[%s6242] sm:$0xff]
    %v6244 = vld [vmem:[%s6242 + $0x8] sm:$0xff]
    %v6245 = vld [vmem:[%s6242 + $0x10] sm:$0xff]
    %v6246 = vld [vmem:[%s6242 + $0x18] sm:$0xff]
    %v6247 = vld [vmem:[%s6242 + $0x20] sm:$0xff]
    %v6248 = vld [vmem:[%s6242 + $0x28] sm:$0xff]
    %v6249 = vld [vmem:[%s6242 + $0x30] sm:$0xff]
    %v6250 = vld [vmem:[%s6242 + $0x38] sm:$0xff]
    %v6251 = vld [vmem:[%s6242 + $0x40] sm:$0xff]
    %v6252 = vld [vmem:[%s6242 + $0x48] sm:$0xff]
    %v6253 = vld [vmem:[%s6242 + $0x50] sm:$0xff]
    %v6254 = vld [vmem:[%s6242 + $0x58] sm:$0xff]
    %v6255 = vld [vmem:[%s6242 + $0x60] sm:$0xff]
    %v6256 = vld [vmem:[%s6242 + $0x68] sm:$0xff]
    %v6257 = vld [vmem:[%s6242 + $0x70] sm:$0xff]
    %v6258 = vld [vmem:[%s6242 + $0x78] sm:$0xff]
    %s6259 = scalar_lea.vmem [#allocation11], 1
    %v6260 = vld [vmem:[%s6259] sm:$0x1]
    %v6261 = vmul.f32 %v6122, %v751
    %6262 = vmatprep.subr.mxu0 0.0
    %6263 = vmatpush1.xpose.msra.mxu0 0.0
    %6264 = vmatprep.subr.mxu0 0.0
    %6265 = vmatpush1.xpose.msra.mxu0 0.0
    %6266 = vmatprep.subr.mxu0 0.0
    %6267 = vmatpush1.xpose.msra.mxu0 0.0
    %6268 = vmatprep.subr.mxu0 0.0
    %6269 = vmatpush1.xpose.msra.mxu0 0.0
    %6270 = vmatprep.subr.mxu0 0.0
    %6271 = vmatpush1.xpose.msra.mxu0 0.0
    %6272 = vmatprep.subr.mxu0 0.0
    %6273 = vmatpush1.xpose.msra.mxu0 0.0
    %6274 = vmatprep.subr.mxu0 0.0
    %6275 = vmatpush1.xpose.msra.mxu0 0.0
    %6276 = vmatprep.subr.mxu0 0.0
    %6277 = vmatpush1.xpose.msra.mxu0 0.0
    %6278 = vmatprep.subr.mxu0 0.0
    %6279 = vmatpush1.xpose.msra.mxu0 0.0
    %6280 = vmatprep.subr.mxu0 0.0
    %6281 = vmatpush1.xpose.msra.mxu0 0.0
    %6282 = vmatprep.subr.mxu0 0.0
    %6283 = vmatpush1.xpose.msra.mxu0 0.0
    %6284 = vmatprep.subr.mxu0 0.0
    %6285 = vmatpush1.xpose.msra.mxu0 0.0
    %6286 = vmatprep.subr.mxu0 0.0
    %6287 = vmatpush1.xpose.msra.mxu0 0.0
    %6288 = vmatprep.subr.mxu0 0.0
    %6289 = vmatpush1.xpose.msra.mxu0 0.0
    %6290 = vmatprep.subr.mxu0 0.0
    %6291 = vmatpush1.xpose.msra.mxu0 0.0
    %6292 = vmatprep.subr.mxu0 0.0
    %6293 = vmatpush1.xpose.msra.mxu0 %v6238
    %6294 = vmatprep.subr.mxu0 0.0
    %6295 = vmatpush2.xpose.msra.mxu0 0.0
    %6296 = vmatprep.subr.mxu0 0.0
    %6297 = vmatpush2.xpose.msra.mxu0 0.0
    %6298 = vmatprep.subr.mxu0 0.0
    %6299 = vmatpush2.xpose.msra.mxu0 0.0
    %6300 = vmatprep.subr.mxu0 0.0
    %6301 = vmatpush2.xpose.msra.mxu0 0.0
    %6302 = vmatprep.subr.mxu0 0.0
    %6303 = vmatpush2.xpose.msra.mxu0 0.0
    %6304 = vmatprep.subr.mxu0 0.0
    %6305 = vmatpush2.xpose.msra.mxu0 0.0
    %6306 = vmatprep.subr.mxu0 0.0
    %6307 = vmatpush2.xpose.msra.mxu0 0.0
    %6308 = vmatprep.subr.mxu0 0.0
    %6309 = vmatpush2.xpose.msra.mxu0 0.0
    %6310 = vmatprep.subr.mxu0 0.0
    %6311 = vmatpush2.xpose.msra.mxu0 0.0
    %6312 = vmatprep.subr.mxu0 0.0
    %6313 = vmatpush2.xpose.msra.mxu0 0.0
    %6314 = vmatprep.subr.mxu0 0.0
    %6315 = vmatpush2.xpose.msra.mxu0 0.0
    %6316 = vmatprep.subr.mxu0 0.0
    %6317 = vmatpush2.xpose.msra.mxu0 0.0
    %6318 = vmatprep.subr.mxu0 0.0
    %6319 = vmatpush2.xpose.msra.mxu0 0.0
    %6320 = vmatprep.subr.mxu0 0.0
    %6321 = vmatpush2.xpose.msra.mxu0 0.0
    %6322 = vmatprep.subr.mxu0 0.0
    %6323 = vmatpush2.xpose.msra.mxu0 0.0
    %6324 = vmatprep.subr.mxu0 0.0
    %6325 = vmatpush2.xpose.msra.mxu0 0.0
    %6326 = vmatprep.mubr.f32.mxu0 0.0
    %6327 = vmatmul.mubr.f32.gmra.mxu0 %v6261
    %v6328 = vpop.f32.mrf.mxu0
    %v6329 = vadd.f32 0.0, %v6328
    %v6330 = vpop.f32.mrf.mxu0
    %6331 = vdwg.mxu0
    %v6332 = vmul.f32 %v6329, 0.35355338
    %v6333 = vsel %vm513, %v6332, -1e+09
    %v6334 = vsel %vm825, %v6333, -inf
    %6335 = vmax.xlane.f32.xlu0 %v6334
    %v6336 = vpop.xlane.xlu0 %6335
    %v6337 = vsub.f32 %v6333, %v6336
    %v6338 = vmul.f32 %v6337, 1.442695
    %v6339 = vpow.pop %v6338
    %v6340 = vsel %vm825, %v6339, 0.0
    %6341 = vadd.xlane.f32.xlu0 %v6340
    %v6342 = vpop.xlane.xlu0 %6341
    %v6343 = vrcp.pop %v6342
    %v6344 = vmul.f32 %v6339, %v6343
    %v6345 = vmul.f32 %v6240, %v751
    %v6346 = vmul.f32 %v6122, %v842
    %6347 = vmatprep.subr.mxu0 0.0
    %6348 = vmatpush1.xpose.msra.mxu0 0.0
    %6349 = vmatprep.subr.mxu0 0.0
    %6350 = vmatpush1.xpose.msra.mxu0 0.0
    %6351 = vmatprep.subr.mxu0 0.0
    %6352 = vmatpush1.xpose.msra.mxu0 0.0
    %6353 = vmatprep.subr.mxu0 0.0
    %6354 = vmatpush1.xpose.msra.mxu0 0.0
    %6355 = vmatprep.subr.mxu0 0.0
    %6356 = vmatpush1.xpose.msra.mxu0 0.0
    %6357 = vmatprep.subr.mxu0 0.0
    %6358 = vmatpush1.xpose.msra.mxu0 0.0
    %6359 = vmatprep.subr.mxu0 0.0
    %6360 = vmatpush1.xpose.msra.mxu0 0.0
    %6361 = vmatprep.subr.mxu0 0.0
    %6362 = vmatpush1.xpose.msra.mxu0 0.0
    %6363 = vmatprep.subr.mxu0 0.0
    %6364 = vmatpush1.xpose.msra.mxu0 0.0
    %6365 = vmatprep.subr.mxu0 0.0
    %6366 = vmatpush1.xpose.msra.mxu0 0.0
    %6367 = vmatprep.subr.mxu0 0.0
    %6368 = vmatpush1.xpose.msra.mxu0 0.0
    %6369 = vmatprep.subr.mxu0 0.0
    %6370 = vmatpush1.xpose.msra.mxu0 0.0
    %6371 = vmatprep.subr.mxu0 0.0
    %6372 = vmatpush1.xpose.msra.mxu0 0.0
    %6373 = vmatprep.subr.mxu0 0.0
    %6374 = vmatpush1.xpose.msra.mxu0 0.0
    %6375 = vmatprep.subr.mxu0 0.0
    %6376 = vmatpush1.xpose.msra.mxu0 0.0
    %6377 = vmatprep.subr.mxu0 0.0
    %6378 = vmatpush1.xpose.msra.mxu0 %v6238
    %6379 = vmatprep.subr.mxu0 0.0
    %6380 = vmatpush2.xpose.msra.mxu0 0.0
    %6381 = vmatprep.subr.mxu0 0.0
    %6382 = vmatpush2.xpose.msra.mxu0 0.0
    %6383 = vmatprep.subr.mxu0 0.0
    %6384 = vmatpush2.xpose.msra.mxu0 0.0
    %6385 = vmatprep.subr.mxu0 0.0
    %6386 = vmatpush2.xpose.msra.mxu0 0.0
    %6387 = vmatprep.subr.mxu0 0.0
    %6388 = vmatpush2.xpose.msra.mxu0 0.0
    %6389 = vmatprep.subr.mxu0 0.0
    %6390 = vmatpush2.xpose.msra.mxu0 0.0
    %6391 = vmatprep.subr.mxu0 0.0
    %6392 = vmatpush2.xpose.msra.mxu0 0.0
    %6393 = vmatprep.subr.mxu0 0.0
    %6394 = vmatpush2.xpose.msra.mxu0 0.0
    %6395 = vmatprep.subr.mxu0 0.0
    %6396 = vmatpush2.xpose.msra.mxu0 0.0
    %6397 = vmatprep.subr.mxu0 0.0
    %6398 = vmatpush2.xpose.msra.mxu0 0.0
    %6399 = vmatprep.subr.mxu0 0.0
    %6400 = vmatpush2.xpose.msra.mxu0 0.0
    %6401 = vmatprep.subr.mxu0 0.0
    %6402 = vmatpush2.xpose.msra.mxu0 0.0
    %6403 = vmatprep.subr.mxu0 0.0
    %6404 = vmatpush2.xpose.msra.mxu0 0.0
    %6405 = vmatprep.subr.mxu0 0.0
    %6406 = vmatpush2.xpose.msra.mxu0 0.0
    %6407 = vmatprep.subr.mxu0 0.0
    %6408 = vmatpush2.xpose.msra.mxu0 0.0
    %6409 = vmatprep.subr.mxu0 0.0
    %6410 = vmatpush2.xpose.msra.mxu0 0.0
    %6411 = vmatprep.mubr.f32.mxu0 0.0
    %6412 = vmatmul.mubr.f32.gmra.mxu0 %v6346
    %v6413 = vpop.f32.mrf.mxu0
    %v6414 = vadd.f32 0.0, %v6413
    %v6415 = vpop.f32.mrf.mxu0
    %6416 = vdwg.mxu0
    %v6417 = vmul.f32 %v6414, 0.35355338
    %v6418 = vsel %vm513, %v6417, -1e+09
    %v6419 = vsel %vm825, %v6418, -inf
    %6420 = vmax.xlane.f32.xlu0 %v6419
    %v6421 = vpop.xlane.xlu0 %6420
    %v6422 = vsub.f32 %v6418, %v6421
    %v6423 = vmul.f32 %v6422, 1.442695
    %v6424 = vpow.pop %v6423
    %v6425 = vsel %vm825, %v6424, 0.0
    %6426 = vadd.xlane.f32.xlu0 %v6425
    %v6427 = vpop.xlane.xlu0 %6426
    %v6428 = vrcp.pop %v6427
    %v6429 = vmul.f32 %v6424, %v6428
    %v6430 = vmul.f32 %v6240, %v842
    %v6432 = vsel %vm825, %v6429, 0
    %6434 = vmatprep.subr.mxu0 0.0
    %6435 = vmatpush1.msra.mxu0 0.0
    %6436 = vmatprep.subr.mxu0 0.0
    %6437 = vmatpush1.msra.mxu0 0.0
    %6438 = vmatprep.subr.mxu0 0.0
    %6439 = vmatpush1.msra.mxu0 0.0
    %6440 = vmatprep.subr.mxu0 0.0
    %6441 = vmatpush1.msra.mxu0 0.0
    %6442 = vmatprep.subr.mxu0 0.0
    %6443 = vmatpush1.msra.mxu0 0.0
    %6444 = vmatprep.subr.mxu0 0.0
    %6445 = vmatpush1.msra.mxu0 0.0
    %6446 = vmatprep.subr.mxu0 0.0
    %6447 = vmatpush1.msra.mxu0 0.0
    %6448 = vmatprep.subr.mxu0 0.0
    %6449 = vmatpush1.msra.mxu0 0.0
    %6450 = vmatprep.subr.mxu0 0.0
    %6451 = vmatpush1.msra.mxu0 0.0
    %6452 = vmatprep.subr.mxu0 0.0
    %6453 = vmatpush1.msra.mxu0 0.0
    %6454 = vmatprep.subr.mxu0 0.0
    %6455 = vmatpush1.msra.mxu0 0.0
    %6456 = vmatprep.subr.mxu0 0.0
    %6457 = vmatpush1.msra.mxu0 0.0
    %6458 = vmatprep.subr.mxu0 0.0
    %6459 = vmatpush1.msra.mxu0 0.0
    %6460 = vmatprep.subr.mxu0 0.0
    %6461 = vmatpush1.msra.mxu0 0.0
    %6462 = vmatprep.subr.mxu0 0.0
    %6463 = vmatpush1.msra.mxu0 0.0
    %6464 = vmatprep.subr.mxu0 0.0
    %6465 = vmatpush1.msra.mxu0 %v6430
    %6466 = vmatprep.subr.mxu0 0.0
    %6467 = vmatpush2.msra.mxu0 0.0
    %6468 = vmatprep.subr.mxu0 0.0
    %6469 = vmatpush2.msra.mxu0 0.0
    %6470 = vmatprep.subr.mxu0 0.0
    %6471 = vmatpush2.msra.mxu0 0.0
    %6472 = vmatprep.subr.mxu0 0.0
    %6473 = vmatpush2.msra.mxu0 0.0
    %6474 = vmatprep.subr.mxu0 0.0
    %6475 = vmatpush2.msra.mxu0 0.0
    %6476 = vmatprep.subr.mxu0 0.0
    %6477 = vmatpush2.msra.mxu0 0.0
    %6478 = vmatprep.subr.mxu0 0.0
    %6479 = vmatpush2.msra.mxu0 0.0
    %6480 = vmatprep.subr.mxu0 0.0
    %6481 = vmatpush2.msra.mxu0 0.0
    %6482 = vmatprep.subr.mxu0 0.0
    %6483 = vmatpush2.msra.mxu0 0.0
    %6484 = vmatprep.subr.mxu0 0.0
    %6485 = vmatpush2.msra.mxu0 0.0
    %6486 = vmatprep.subr.mxu0 0.0
    %6487 = vmatpush2.msra.mxu0 0.0
    %6488 = vmatprep.subr.mxu0 0.0
    %6489 = vmatpush2.msra.mxu0 0.0
    %6490 = vmatprep.subr.mxu0 0.0
    %6491 = vmatpush2.msra.mxu0 0.0
    %6492 = vmatprep.subr.mxu0 0.0
    %6493 = vmatpush2.msra.mxu0 0.0
    %6494 = vmatprep.subr.mxu0 0.0
    %6495 = vmatpush2.msra.mxu0 0.0
    %6496 = vmatprep.subr.mxu0 0.0
    %6497 = vmatpush2.msra.mxu0 0.0
    %6498 = vmatprep.mubr.f32.mxu0 0.0
    %6499 = vmatmul.mubr.f32.gmra.mxu0 %v6432
    %v6500 = vpop.f32.mrf.mxu0
    %v6501 = vadd.f32 0.0, %v6500
    %v6502 = vpop.f32.mrf.mxu0
    %6503 = vdwg.mxu0
    %v6505 = vsel %vm825, %v6344, 0
    %6507 = vmatprep.subr.mxu0 0.0
    %6508 = vmatpush1.msra.mxu0 0.0
    %6509 = vmatprep.subr.mxu0 0.0
    %6510 = vmatpush1.msra.mxu0 0.0
    %6511 = vmatprep.subr.mxu0 0.0
    %6512 = vmatpush1.msra.mxu0 0.0
    %6513 = vmatprep.subr.mxu0 0.0
    %6514 = vmatpush1.msra.mxu0 0.0
    %6515 = vmatprep.subr.mxu0 0.0
    %6516 = vmatpush1.msra.mxu0 0.0
    %6517 = vmatprep.subr.mxu0 0.0
    %6518 = vmatpush1.msra.mxu0 0.0
    %6519 = vmatprep.subr.mxu0 0.0
    %6520 = vmatpush1.msra.mxu0 0.0
    %6521 = vmatprep.subr.mxu0 0.0
    %6522 = vmatpush1.msra.mxu0 0.0
    %6523 = vmatprep.subr.mxu0 0.0
    %6524 = vmatpush1.msra.mxu0 0.0
    %6525 = vmatprep.subr.mxu0 0.0
    %6526 = vmatpush1.msra.mxu0 0.0
    %6527 = vmatprep.subr.mxu0 0.0
    %6528 = vmatpush1.msra.mxu0 0.0
    %6529 = vmatprep.subr.mxu0 0.0
    %6530 = vmatpush1.msra.mxu0 0.0
    %6531 = vmatprep.subr.mxu0 0.0
    %6532 = vmatpush1.msra.mxu0 0.0
    %6533 = vmatprep.subr.mxu0 0.0
    %6534 = vmatpush1.msra.mxu0 0.0
    %6535 = vmatprep.subr.mxu0 0.0
    %6536 = vmatpush1.msra.mxu0 0.0
    %6537 = vmatprep.subr.mxu0 0.0
    %6538 = vmatpush1.msra.mxu0 %v6345
    %6539 = vmatprep.subr.mxu0 0.0
    %6540 = vmatpush2.msra.mxu0 0.0
    %6541 = vmatprep.subr.mxu0 0.0
    %6542 = vmatpush2.msra.mxu0 0.0
    %6543 = vmatprep.subr.mxu0 0.0
    %6544 = vmatpush2.msra.mxu0 0.0
    %6545 = vmatprep.subr.mxu0 0.0
    %6546 = vmatpush2.msra.mxu0 0.0
    %6547 = vmatprep.subr.mxu0 0.0
    %6548 = vmatpush2.msra.mxu0 0.0
    %6549 = vmatprep.subr.mxu0 0.0
    %6550 = vmatpush2.msra.mxu0 0.0
    %6551 = vmatprep.subr.mxu0 0.0
    %6552 = vmatpush2.msra.mxu0 0.0
    %6553 = vmatprep.subr.mxu0 0.0
    %6554 = vmatpush2.msra.mxu0 0.0
    %6555 = vmatprep.subr.mxu0 0.0
    %6556 = vmatpush2.msra.mxu0 0.0
    %6557 = vmatprep.subr.mxu0 0.0
    %6558 = vmatpush2.msra.mxu0 0.0
    %6559 = vmatprep.subr.mxu0 0.0
    %6560 = vmatpush2.msra.mxu0 0.0
    %6561 = vmatprep.subr.mxu0 0.0
    %6562 = vmatpush2.msra.mxu0 0.0
    %6563 = vmatprep.subr.mxu0 0.0
    %6564 = vmatpush2.msra.mxu0 0.0
    %6565 = vmatprep.subr.mxu0 0.0
    %6566 = vmatpush2.msra.mxu0 0.0
    %6567 = vmatprep.subr.mxu0 0.0
    %6568 = vmatpush2.msra.mxu0 0.0
    %6569 = vmatprep.subr.mxu0 0.0
    %6570 = vmatpush2.msra.mxu0 0.0
    %6571 = vmatprep.mubr.f32.mxu0 0.0
    %6572 = vmatmul.mubr.f32.gmra.mxu0 %v6505
    %v6573 = vpop.f32.mrf.mxu0
    %v6574 = vadd.f32 %v6501, %v6573
    %v6575 = vpop.f32.mrf.mxu0
    %6576 = vdwg.mxu0
    %v6577 = vmul.f32 %v6122, %v1078
    %6578 = vmatprep.subr.mxu0 0.0
    %6579 = vmatpush1.xpose.msra.mxu0 0.0
    %6580 = vmatprep.subr.mxu0 0.0
    %6581 = vmatpush1.xpose.msra.mxu0 0.0
    %6582 = vmatprep.subr.mxu0 0.0
    %6583 = vmatpush1.xpose.msra.mxu0 0.0
    %6584 = vmatprep.subr.mxu0 0.0
    %6585 = vmatpush1.xpose.msra.mxu0 0.0
    %6586 = vmatprep.subr.mxu0 0.0
    %6587 = vmatpush1.xpose.msra.mxu0 0.0
    %6588 = vmatprep.subr.mxu0 0.0
    %6589 = vmatpush1.xpose.msra.mxu0 0.0
    %6590 = vmatprep.subr.mxu0 0.0
    %6591 = vmatpush1.xpose.msra.mxu0 0.0
    %6592 = vmatprep.subr.mxu0 0.0
    %6593 = vmatpush1.xpose.msra.mxu0 0.0
    %6594 = vmatprep.subr.mxu0 0.0
    %6595 = vmatpush1.xpose.msra.mxu0 0.0
    %6596 = vmatprep.subr.mxu0 0.0
    %6597 = vmatpush1.xpose.msra.mxu0 0.0
    %6598 = vmatprep.subr.mxu0 0.0
    %6599 = vmatpush1.xpose.msra.mxu0 0.0
    %6600 = vmatprep.subr.mxu0 0.0
    %6601 = vmatpush1.xpose.msra.mxu0 0.0
    %6602 = vmatprep.subr.mxu0 0.0
    %6603 = vmatpush1.xpose.msra.mxu0 0.0
    %6604 = vmatprep.subr.mxu0 0.0
    %6605 = vmatpush1.xpose.msra.mxu0 0.0
    %6606 = vmatprep.subr.mxu0 0.0
    %6607 = vmatpush1.xpose.msra.mxu0 0.0
    %6608 = vmatprep.subr.mxu0 0.0
    %6609 = vmatpush1.xpose.msra.mxu0 %v6238
    %6610 = vmatprep.subr.mxu0 0.0
    %6611 = vmatpush2.xpose.msra.mxu0 0.0
    %6612 = vmatprep.subr.mxu0 0.0
    %6613 = vmatpush2.xpose.msra.mxu0 0.0
    %6614 = vmatprep.subr.mxu0 0.0
    %6615 = vmatpush2.xpose.msra.mxu0 0.0
    %6616 = vmatprep.subr.mxu0 0.0
    %6617 = vmatpush2.xpose.msra.mxu0 0.0
    %6618 = vmatprep.subr.mxu0 0.0
    %6619 = vmatpush2.xpose.msra.mxu0 0.0
    %6620 = vmatprep.subr.mxu0 0.0
    %6621 = vmatpush2.xpose.msra.mxu0 0.0
    %6622 = vmatprep.subr.mxu0 0.0
    %6623 = vmatpush2.xpose.msra.mxu0 0.0
    %6624 = vmatprep.subr.mxu0 0.0
    %6625 = vmatpush2.xpose.msra.mxu0 0.0
    %6626 = vmatprep.subr.mxu0 0.0
    %6627 = vmatpush2.xpose.msra.mxu0 0.0
    %6628 = vmatprep.subr.mxu0 0.0
    %6629 = vmatpush2.xpose.msra.mxu0 0.0
    %6630 = vmatprep.subr.mxu0 0.0
    %6631 = vmatpush2.xpose.msra.mxu0 0.0
    %6632 = vmatprep.subr.mxu0 0.0
    %6633 = vmatpush2.xpose.msra.mxu0 0.0
    %6634 = vmatprep.subr.mxu0 0.0
    %6635 = vmatpush2.xpose.msra.mxu0 0.0
    %6636 = vmatprep.subr.mxu0 0.0
    %6637 = vmatpush2.xpose.msra.mxu0 0.0
    %6638 = vmatprep.subr.mxu0 0.0
    %6639 = vmatpush2.xpose.msra.mxu0 0.0
    %6640 = vmatprep.subr.mxu0 0.0
    %6641 = vmatpush2.xpose.msra.mxu0 0.0
    %6642 = vmatprep.mubr.f32.mxu0 0.0
    %6643 = vmatmul.mubr.f32.gmra.mxu0 %v6577
    %v6644 = vpop.f32.mrf.mxu0
    %v6645 = vadd.f32 0.0, %v6644
    %v6646 = vpop.f32.mrf.mxu0
    %6647 = vdwg.mxu0
    %v6648 = vmul.f32 %v6645, 0.35355338
    %v6649 = vsel %vm513, %v6648, -1e+09
    %v6650 = vsel %vm825, %v6649, -inf
    %6651 = vmax.xlane.f32.xlu0 %v6650
    %v6652 = vpop.xlane.xlu0 %6651
    %v6653 = vsub.f32 %v6649, %v6652
    %v6654 = vmul.f32 %v6653, 1.442695
    %v6655 = vpow.pop %v6654
    %v6656 = vsel %vm825, %v6655, 0.0
    %6657 = vadd.xlane.f32.xlu0 %v6656
    %v6658 = vpop.xlane.xlu0 %6657
    %v6659 = vrcp.pop %v6658
    %v6660 = vmul.f32 %v6655, %v6659
    %v6661 = vmul.f32 %v6240, %v1078
    %v6663 = vsel %vm825, %v6660, 0
    %6665 = vmatprep.subr.mxu0 0.0
    %6666 = vmatpush1.msra.mxu0 0.0
    %6667 = vmatprep.subr.mxu0 0.0
    %6668 = vmatpush1.msra.mxu0 0.0
    %6669 = vmatprep.subr.mxu0 0.0
    %6670 = vmatpush1.msra.mxu0 0.0
    %6671 = vmatprep.subr.mxu0 0.0
    %6672 = vmatpush1.msra.mxu0 0.0
    %6673 = vmatprep.subr.mxu0 0.0
    %6674 = vmatpush1.msra.mxu0 0.0
    %6675 = vmatprep.subr.mxu0 0.0
    %6676 = vmatpush1.msra.mxu0 0.0
    %6677 = vmatprep.subr.mxu0 0.0
    %6678 = vmatpush1.msra.mxu0 0.0
    %6679 = vmatprep.subr.mxu0 0.0
    %6680 = vmatpush1.msra.mxu0 0.0
    %6681 = vmatprep.subr.mxu0 0.0
    %6682 = vmatpush1.msra.mxu0 0.0
    %6683 = vmatprep.subr.mxu0 0.0
    %6684 = vmatpush1.msra.mxu0 0.0
    %6685 = vmatprep.subr.mxu0 0.0
    %6686 = vmatpush1.msra.mxu0 0.0
    %6687 = vmatprep.subr.mxu0 0.0
    %6688 = vmatpush1.msra.mxu0 0.0
    %6689 = vmatprep.subr.mxu0 0.0
    %6690 = vmatpush1.msra.mxu0 0.0
    %6691 = vmatprep.subr.mxu0 0.0
    %6692 = vmatpush1.msra.mxu0 0.0
    %6693 = vmatprep.subr.mxu0 0.0
    %6694 = vmatpush1.msra.mxu0 0.0
    %6695 = vmatprep.subr.mxu0 0.0
    %6696 = vmatpush1.msra.mxu0 %v6661
    %6697 = vmatprep.subr.mxu0 0.0
    %6698 = vmatpush2.msra.mxu0 0.0
    %6699 = vmatprep.subr.mxu0 0.0
    %6700 = vmatpush2.msra.mxu0 0.0
    %6701 = vmatprep.subr.mxu0 0.0
    %6702 = vmatpush2.msra.mxu0 0.0
    %6703 = vmatprep.subr.mxu0 0.0
    %6704 = vmatpush2.msra.mxu0 0.0
    %6705 = vmatprep.subr.mxu0 0.0
    %6706 = vmatpush2.msra.mxu0 0.0
    %6707 = vmatprep.subr.mxu0 0.0
    %6708 = vmatpush2.msra.mxu0 0.0
    %6709 = vmatprep.subr.mxu0 0.0
    %6710 = vmatpush2.msra.mxu0 0.0
    %6711 = vmatprep.subr.mxu0 0.0
    %6712 = vmatpush2.msra.mxu0 0.0
    %6713 = vmatprep.subr.mxu0 0.0
    %6714 = vmatpush2.msra.mxu0 0.0
    %6715 = vmatprep.subr.mxu0 0.0
    %6716 = vmatpush2.msra.mxu0 0.0
    %6717 = vmatprep.subr.mxu0 0.0
    %6718 = vmatpush2.msra.mxu0 0.0
    %6719 = vmatprep.subr.mxu0 0.0
    %6720 = vmatpush2.msra.mxu0 0.0
    %6721 = vmatprep.subr.mxu0 0.0
    %6722 = vmatpush2.msra.mxu0 0.0
    %6723 = vmatprep.subr.mxu0 0.0
    %6724 = vmatpush2.msra.mxu0 0.0
    %6725 = vmatprep.subr.mxu0 0.0
    %6726 = vmatpush2.msra.mxu0 0.0
    %6727 = vmatprep.subr.mxu0 0.0
    %6728 = vmatpush2.msra.mxu0 0.0
    %6729 = vmatprep.mubr.f32.mxu0 0.0
    %6730 = vmatmul.mubr.f32.gmra.mxu0 %v6663
    %v6731 = vpop.f32.mrf.mxu0
    %v6732 = vadd.f32 0.0, %v6731
    %v6733 = vpop.f32.mrf.mxu0
    %6734 = vdwg.mxu0
    %v6735 = vadd.f32 %v6574, %v6732
    %v6736 = vmul.f32 %v6122, %v1241
    %6737 = vmatprep.subr.mxu0 0.0
    %6738 = vmatpush1.xpose.msra.mxu0 0.0
    %6739 = vmatprep.subr.mxu0 0.0
    %6740 = vmatpush1.xpose.msra.mxu0 0.0
    %6741 = vmatprep.subr.mxu0 0.0
    %6742 = vmatpush1.xpose.msra.mxu0 0.0
    %6743 = vmatprep.subr.mxu0 0.0
    %6744 = vmatpush1.xpose.msra.mxu0 0.0
    %6745 = vmatprep.subr.mxu0 0.0
    %6746 = vmatpush1.xpose.msra.mxu0 0.0
    %6747 = vmatprep.subr.mxu0 0.0
    %6748 = vmatpush1.xpose.msra.mxu0 0.0
    %6749 = vmatprep.subr.mxu0 0.0
    %6750 = vmatpush1.xpose.msra.mxu0 0.0
    %6751 = vmatprep.subr.mxu0 0.0
    %6752 = vmatpush1.xpose.msra.mxu0 0.0
    %6753 = vmatprep.subr.mxu0 0.0
    %6754 = vmatpush1.xpose.msra.mxu0 0.0
    %6755 = vmatprep.subr.mxu0 0.0
    %6756 = vmatpush1.xpose.msra.mxu0 0.0
    %6757 = vmatprep.subr.mxu0 0.0
    %6758 = vmatpush1.xpose.msra.mxu0 0.0
    %6759 = vmatprep.subr.mxu0 0.0
    %6760 = vmatpush1.xpose.msra.mxu0 0.0
    %6761 = vmatprep.subr.mxu0 0.0
    %6762 = vmatpush1.xpose.msra.mxu0 0.0
    %6763 = vmatprep.subr.mxu0 0.0
    %6764 = vmatpush1.xpose.msra.mxu0 0.0
    %6765 = vmatprep.subr.mxu0 0.0
    %6766 = vmatpush1.xpose.msra.mxu0 0.0
    %6767 = vmatprep.subr.mxu0 0.0
    %6768 = vmatpush1.xpose.msra.mxu0 %v6238
    %6769 = vmatprep.subr.mxu0 0.0
    %6770 = vmatpush2.xpose.msra.mxu0 0.0
    %6771 = vmatprep.subr.mxu0 0.0
    %6772 = vmatpush2.xpose.msra.mxu0 0.0
    %6773 = vmatprep.subr.mxu0 0.0
    %6774 = vmatpush2.xpose.msra.mxu0 0.0
    %6775 = vmatprep.subr.mxu0 0.0
    %6776 = vmatpush2.xpose.msra.mxu0 0.0
    %6777 = vmatprep.subr.mxu0 0.0
    %6778 = vmatpush2.xpose.msra.mxu0 0.0
    %6779 = vmatprep.subr.mxu0 0.0
    %6780 = vmatpush2.xpose.msra.mxu0 0.0
    %6781 = vmatprep.subr.mxu0 0.0
    %6782 = vmatpush2.xpose.msra.mxu0 0.0
    %6783 = vmatprep.subr.mxu0 0.0
    %6784 = vmatpush2.xpose.msra.mxu0 0.0
    %6785 = vmatprep.subr.mxu0 0.0
    %6786 = vmatpush2.xpose.msra.mxu0 0.0
    %6787 = vmatprep.subr.mxu0 0.0
    %6788 = vmatpush2.xpose.msra.mxu0 0.0
    %6789 = vmatprep.subr.mxu0 0.0
    %6790 = vmatpush2.xpose.msra.mxu0 0.0
    %6791 = vmatprep.subr.mxu0 0.0
    %6792 = vmatpush2.xpose.msra.mxu0 0.0
    %6793 = vmatprep.subr.mxu0 0.0
    %6794 = vmatpush2.xpose.msra.mxu0 0.0
    %6795 = vmatprep.subr.mxu0 0.0
    %6796 = vmatpush2.xpose.msra.mxu0 0.0
    %6797 = vmatprep.subr.mxu0 0.0
    %6798 = vmatpush2.xpose.msra.mxu0 0.0
    %6799 = vmatprep.subr.mxu0 0.0
    %6800 = vmatpush2.xpose.msra.mxu0 0.0
    %6801 = vmatprep.mubr.f32.mxu0 0.0
    %6802 = vmatmul.mubr.f32.gmra.mxu0 %v6736
    %v6803 = vpop.f32.mrf.mxu0
    %v6804 = vadd.f32 0.0, %v6803
    %v6805 = vpop.f32.mrf.mxu0
    %6806 = vdwg.mxu0
    %v6807 = vmul.f32 %v6804, 0.35355338
    %v6808 = vsel %vm513, %v6807, -1e+09
    %v6809 = vsel %vm825, %v6808, -inf
    %6810 = vmax.xlane.f32.xlu0 %v6809
    %v6811 = vpop.xlane.xlu0 %6810
    %v6812 = vsub.f32 %v6808, %v6811
    %v6813 = vmul.f32 %v6812, 1.442695
    %v6814 = vpow.pop %v6813
    %v6815 = vsel %vm825, %v6814, 0.0
    %6816 = vadd.xlane.f32.xlu0 %v6815
    %v6817 = vpop.xlane.xlu0 %6816
    %v6818 = vrcp.pop %v6817
    %v6819 = vmul.f32 %v6814, %v6818
    %v6820 = vmul.f32 %v6240, %v1241
    %v6822 = vsel %vm825, %v6819, 0
    %6824 = vmatprep.subr.mxu0 0.0
    %6825 = vmatpush1.msra.mxu0 0.0
    %6826 = vmatprep.subr.mxu0 0.0
    %6827 = vmatpush1.msra.mxu0 0.0
    %6828 = vmatprep.subr.mxu0 0.0
    %6829 = vmatpush1.msra.mxu0 0.0
    %6830 = vmatprep.subr.mxu0 0.0
    %6831 = vmatpush1.msra.mxu0 0.0
    %6832 = vmatprep.subr.mxu0 0.0
    %6833 = vmatpush1.msra.mxu0 0.0
    %6834 = vmatprep.subr.mxu0 0.0
    %6835 = vmatpush1.msra.mxu0 0.0
    %6836 = vmatprep.subr.mxu0 0.0
    %6837 = vmatpush1.msra.mxu0 0.0
    %6838 = vmatprep.subr.mxu0 0.0
    %6839 = vmatpush1.msra.mxu0 0.0
    %6840 = vmatprep.subr.mxu0 0.0
    %6841 = vmatpush1.msra.mxu0 0.0
    %6842 = vmatprep.subr.mxu0 0.0
    %6843 = vmatpush1.msra.mxu0 0.0
    %6844 = vmatprep.subr.mxu0 0.0
    %6845 = vmatpush1.msra.mxu0 0.0
    %6846 = vmatprep.subr.mxu0 0.0
    %6847 = vmatpush1.msra.mxu0 0.0
    %6848 = vmatprep.subr.mxu0 0.0
    %6849 = vmatpush1.msra.mxu0 0.0
    %6850 = vmatprep.subr.mxu0 0.0
    %6851 = vmatpush1.msra.mxu0 0.0
    %6852 = vmatprep.subr.mxu0 0.0
    %6853 = vmatpush1.msra.mxu0 0.0
    %6854 = vmatprep.subr.mxu0 0.0
    %6855 = vmatpush1.msra.mxu0 %v6820
    %6856 = vmatprep.subr.mxu0 0.0
    %6857 = vmatpush2.msra.mxu0 0.0
    %6858 = vmatprep.subr.mxu0 0.0
    %6859 = vmatpush2.msra.mxu0 0.0
    %6860 = vmatprep.subr.mxu0 0.0
    %6861 = vmatpush2.msra.mxu0 0.0
    %6862 = vmatprep.subr.mxu0 0.0
    %6863 = vmatpush2.msra.mxu0 0.0
    %6864 = vmatprep.subr.mxu0 0.0
    %6865 = vmatpush2.msra.mxu0 0.0
    %6866 = vmatprep.subr.mxu0 0.0
    %6867 = vmatpush2.msra.mxu0 0.0
    %6868 = vmatprep.subr.mxu0 0.0
    %6869 = vmatpush2.msra.mxu0 0.0
    %6870 = vmatprep.subr.mxu0 0.0
    %6871 = vmatpush2.msra.mxu0 0.0
    %6872 = vmatprep.subr.mxu0 0.0
    %6873 = vmatpush2.msra.mxu0 0.0
    %6874 = vmatprep.subr.mxu0 0.0
    %6875 = vmatpush2.msra.mxu0 0.0
    %6876 = vmatprep.subr.mxu0 0.0
    %6877 = vmatpush2.msra.mxu0 0.0
    %6878 = vmatprep.subr.mxu0 0.0
    %6879 = vmatpush2.msra.mxu0 0.0
    %6880 = vmatprep.subr.mxu0 0.0
    %6881 = vmatpush2.msra.mxu0 0.0
    %6882 = vmatprep.subr.mxu0 0.0
    %6883 = vmatpush2.msra.mxu0 0.0
    %6884 = vmatprep.subr.mxu0 0.0
    %6885 = vmatpush2.msra.mxu0 0.0
    %6886 = vmatprep.subr.mxu0 0.0
    %6887 = vmatpush2.msra.mxu0 0.0
    %6888 = vmatprep.mubr.f32.mxu0 0.0
    %6889 = vmatmul.mubr.f32.gmra.mxu0 %v6822
    %v6890 = vpop.f32.mrf.mxu0
    %v6891 = vadd.f32 0.0, %v6890
    %v6892 = vpop.f32.mrf.mxu0
    %6893 = vdwg.mxu0
    %v6894 = vadd.f32 %v6735, %v6891
    %v6896 = vlaneseq
    %v6897 = vshrl.u32 %v6896, 7
    %v6898 = vsub.s32 0, %v6897
    %v6899 = vrot.slane %v6260, %v6898
    %6901 = vmatprep.subr.mxu0 0.0
    %6902 = vmatpush1.msra.mxu0 %v6258
    %6903 = vmatprep.subr.mxu0 0.0
    %6904 = vmatpush1.msra.mxu0 %v6257
    %6905 = vmatprep.subr.mxu0 0.0
    %6906 = vmatpush1.msra.mxu0 %v6256
    %6907 = vmatprep.subr.mxu0 0.0
    %6908 = vmatpush1.msra.mxu0 %v6255
    %6909 = vmatprep.subr.mxu0 0.0
    %6910 = vmatpush1.msra.mxu0 %v6254
    %6911 = vmatprep.subr.mxu0 0.0
    %6912 = vmatpush1.msra.mxu0 %v6253
    %6913 = vmatprep.subr.mxu0 0.0
    %6914 = vmatpush1.msra.mxu0 %v6252
    %6915 = vmatprep.subr.mxu0 0.0
    %6916 = vmatpush1.msra.mxu0 %v6251
    %6917 = vmatprep.subr.mxu0 0.0
    %6918 = vmatpush1.msra.mxu0 %v6250
    %6919 = vmatprep.subr.mxu0 0.0
    %6920 = vmatpush1.msra.mxu0 %v6249
    %6921 = vmatprep.subr.mxu0 0.0
    %6922 = vmatpush1.msra.mxu0 %v6248
    %6923 = vmatprep.subr.mxu0 0.0
    %6924 = vmatpush1.msra.mxu0 %v6247
    %6925 = vmatprep.subr.mxu0 0.0
    %6926 = vmatpush1.msra.mxu0 %v6246
    %6927 = vmatprep.subr.mxu0 0.0
    %6928 = vmatpush1.msra.mxu0 %v6245
    %6929 = vmatprep.subr.mxu0 0.0
    %6930 = vmatpush1.msra.mxu0 %v6244
    %6931 = vmatprep.subr.mxu0 0.0
    %6932 = vmatpush1.msra.mxu0 %v6243
    %6933 = vmatprep.subr.mxu0 0.0
    %6934 = vmatpush2.msra.mxu0 0.0
    %6935 = vmatprep.subr.mxu0 0.0
    %6936 = vmatpush2.msra.mxu0 0.0
    %6937 = vmatprep.subr.mxu0 0.0
    %6938 = vmatpush2.msra.mxu0 0.0
    %6939 = vmatprep.subr.mxu0 0.0
    %6940 = vmatpush2.msra.mxu0 0.0
    %6941 = vmatprep.subr.mxu0 0.0
    %6942 = vmatpush2.msra.mxu0 0.0
    %6943 = vmatprep.subr.mxu0 0.0
    %6944 = vmatpush2.msra.mxu0 0.0
    %6945 = vmatprep.subr.mxu0 0.0
    %6946 = vmatpush2.msra.mxu0 0.0
    %6947 = vmatprep.subr.mxu0 0.0
    %6948 = vmatpush2.msra.mxu0 0.0
    %6949 = vmatprep.subr.mxu0 0.0
    %6950 = vmatpush2.msra.mxu0 0.0
    %6951 = vmatprep.subr.mxu0 0.0
    %6952 = vmatpush2.msra.mxu0 0.0
    %6953 = vmatprep.subr.mxu0 0.0
    %6954 = vmatpush2.msra.mxu0 0.0
    %6955 = vmatprep.subr.mxu0 0.0
    %6956 = vmatpush2.msra.mxu0 0.0
    %6957 = vmatprep.subr.mxu0 0.0
    %6958 = vmatpush2.msra.mxu0 0.0
    %6959 = vmatprep.subr.mxu0 0.0
    %6960 = vmatpush2.msra.mxu0 0.0
    %6961 = vmatprep.subr.mxu0 0.0
    %6962 = vmatpush2.msra.mxu0 0.0
    %6963 = vmatprep.subr.mxu0 0.0
    %6964 = vmatpush2.msra.mxu0 0.0
    %6965 = vmatprep.mubr.f32.mxu0 0.0
    %6966 = vmatmul.mubr.f32.gmra.mxu0 %v6894
    %v6967 = vpop.f32.mrf.mxu0
    %v6968 = vadd.f32 %v6899, %v6967
    %v6969 = vpop.f32.mrf.mxu0
    %6970 = vdwg.mxu0
    %s6971 = scalar_lea.vmem [#allocation19], 1
    %v6972 = vld [vmem:[%s6971] sm:$0x1]
    %s6973 = scalar_lea.vmem [#allocation17], 1
    %v6974 = vld [vmem:[%s6973] sm:$0x1]
    %v6975 = vadd.f32 %v6029, %v6968
    %v6976 = vmul.f32 %v6975, %v501
    %6977 = vadd.xlane.f32.xlu0 %v6976
    %v6978 = vpop.xlane.xlu0 %6977
    %v6979 = vmul.f32 %v6978, 0.03125
    %v6980 = vsub.f32 %v6975, %v6979
    %v6981 = vmul.f32 %v6980, %v501
    %v6982 = vmul.f32 %v6981, %v6981
    %6983 = vadd.xlane.f32.xlu0 %v6982
    %v6984 = vpop.xlane.xlu0 %6983
    %v6985 = vmul.f32 %v6984, 0.03125
    %v6986 = vadd.f32 %v6985, 1e-05
    %v6987 = vrsqrt.pop %v6986
    %v6988 = vmul.f32 %v6981, %v6987
    %v6990 = vlaneseq
    %v6991 = vshrl.u32 %v6990, 7
    %v6992 = vsub.s32 0, %v6991
    %v6993 = vrot.slane %v6972, %v6992
    %v6995 = vmul.f32 %v6988, %v6993
    %v6997 = vlaneseq
    %v6998 = vshrl.u32 %v6997, 7
    %v6999 = vsub.s32 0, %v6998
    %v7000 = vrot.slane %v6974, %v6999
    %v7002 = vadd.f32 %v6995, %v7000
    %s7003 = scalar_lea.vmem [#allocation23], 128
    %v7004 = vld [vmem:[%s7003] sm:$0xff]
    %v7005 = vld [vmem:[%s7003 + $0x8] sm:$0xff]
    %v7006 = vld [vmem:[%s7003 + $0x10] sm:$0xff]
    %v7007 = vld [vmem:[%s7003 + $0x18] sm:$0xff]
    %v7008 = vld [vmem:[%s7003 + $0x20] sm:$0xff]
    %v7009 = vld [vmem:[%s7003 + $0x28] sm:$0xff]
    %v7010 = vld [vmem:[%s7003 + $0x30] sm:$0xff]
    %v7011 = vld [vmem:[%s7003 + $0x38] sm:$0xff]
    %v7012 = vld [vmem:[%s7003 + $0x40] sm:$0xff]
    %v7013 = vld [vmem:[%s7003 + $0x48] sm:$0xff]
    %v7014 = vld [vmem:[%s7003 + $0x50] sm:$0xff]
    %v7015 = vld [vmem:[%s7003 + $0x58] sm:$0xff]
    %v7016 = vld [vmem:[%s7003 + $0x60] sm:$0xff]
    %v7017 = vld [vmem:[%s7003 + $0x68] sm:$0xff]
    %v7018 = vld [vmem:[%s7003 + $0x70] sm:$0xff]
    %v7019 = vld [vmem:[%s7003 + $0x78] sm:$0xff]
    %s7020 = scalar_lea.vmem [#allocation2], 1
    %v7021 = vld [vmem:[%s7020] sm:$0x1]
    %s7022 = scalar_lea.vmem [#allocation25], 128
    %v7023 = vld [vmem:[%s7022] sm:$0xff]
    %v7024 = vld [vmem:[%s7022 + $0x8] sm:$0xff]
    %v7025 = vld [vmem:[%s7022 + $0x10] sm:$0xff]
    %v7026 = vld [vmem:[%s7022 + $0x18] sm:$0xff]
    %v7027 = vld [vmem:[%s7022 + $0x20] sm:$0xff]
    %v7028 = vld [vmem:[%s7022 + $0x28] sm:$0xff]
    %v7029 = vld [vmem:[%s7022 + $0x30] sm:$0xff]
    %v7030 = vld [vmem:[%s7022 + $0x38] sm:$0xff]
    %v7031 = vld [vmem:[%s7022 + $0x40] sm:$0xff]
    %v7032 = vld [vmem:[%s7022 + $0x48] sm:$0xff]
    %v7033 = vld [vmem:[%s7022 + $0x50] sm:$0xff]
    %v7034 = vld [vmem:[%s7022 + $0x58] sm:$0xff]
    %v7035 = vld [vmem:[%s7022 + $0x60] sm:$0xff]
    %v7036 = vld [vmem:[%s7022 + $0x68] sm:$0xff]
    %v7037 = vld [vmem:[%s7022 + $0x70] sm:$0xff]
    %v7038 = vld [vmem:[%s7022 + $0x78] sm:$0xff]
    %s7039 = scalar_lea.vmem [#allocation5], 1
    %v7040 = vld [vmem:[%s7039] sm:$0x1]
    %v7042 = vlaneseq
    %v7043 = vshrl.u32 %v7042, 7
    %v7044 = vsub.s32 0, %v7043
    %v7045 = vrot.slane %v7021, %v7044
    %7047 = vmatprep.subr.mxu0 0.0
    %7048 = vmatpush1.msra.mxu0 %v7019
    %7049 = vmatprep.subr.mxu0 0.0
    %7050 = vmatpush1.msra.mxu0 %v7018
    %7051 = vmatprep.subr.mxu0 0.0
    %7052 = vmatpush1.msra.mxu0 %v7017
    %7053 = vmatprep.subr.mxu0 0.0
    %7054 = vmatpush1.msra.mxu0 %v7016
    %7055 = vmatprep.subr.mxu0 0.0
    %7056 = vmatpush1.msra.mxu0 %v7015
    %7057 = vmatprep.subr.mxu0 0.0
    %7058 = vmatpush1.msra.mxu0 %v7014
    %7059 = vmatprep.subr.mxu0 0.0
    %7060 = vmatpush1.msra.mxu0 %v7013
    %7061 = vmatprep.subr.mxu0 0.0
    %7062 = vmatpush1.msra.mxu0 %v7012
    %7063 = vmatprep.subr.mxu0 0.0
    %7064 = vmatpush1.msra.mxu0 %v7011
    %7065 = vmatprep.subr.mxu0 0.0
    %7066 = vmatpush1.msra.mxu0 %v7010
    %7067 = vmatprep.subr.mxu0 0.0
    %7068 = vmatpush1.msra.mxu0 %v7009
    %7069 = vmatprep.subr.mxu0 0.0
    %7070 = vmatpush1.msra.mxu0 %v7008
    %7071 = vmatprep.subr.mxu0 0.0
    %7072 = vmatpush1.msra.mxu0 %v7007
    %7073 = vmatprep.subr.mxu0 0.0
    %7074 = vmatpush1.msra.mxu0 %v7006
    %7075 = vmatprep.subr.mxu0 0.0
    %7076 = vmatpush1.msra.mxu0 %v7005
    %7077 = vmatprep.subr.mxu0 0.0
    %7078 = vmatpush1.msra.mxu0 %v7004
    %7079 = vmatprep.subr.mxu0 0.0
    %7080 = vmatpush2.msra.mxu0 0.0
    %7081 = vmatprep.subr.mxu0 0.0
    %7082 = vmatpush2.msra.mxu0 0.0
    %7083 = vmatprep.subr.mxu0 0.0
    %7084 = vmatpush2.msra.mxu0 0.0
    %7085 = vmatprep.subr.mxu0 0.0
    %7086 = vmatpush2.msra.mxu0 0.0
    %7087 = vmatprep.subr.mxu0 0.0
    %7088 = vmatpush2.msra.mxu0 0.0
    %7089 = vmatprep.subr.mxu0 0.0
    %7090 = vmatpush2.msra.mxu0 0.0
    %7091 = vmatprep.subr.mxu0 0.0
    %7092 = vmatpush2.msra.mxu0 0.0
    %7093 = vmatprep.subr.mxu0 0.0
    %7094 = vmatpush2.msra.mxu0 0.0
    %7095 = vmatprep.subr.mxu0 0.0
    %7096 = vmatpush2.msra.mxu0 0.0
    %7097 = vmatprep.subr.mxu0 0.0
    %7098 = vmatpush2.msra.mxu0 0.0
    %7099 = vmatprep.subr.mxu0 0.0
    %7100 = vmatpush2.msra.mxu0 0.0
    %7101 = vmatprep.subr.mxu0 0.0
    %7102 = vmatpush2.msra.mxu0 0.0
    %7103 = vmatprep.subr.mxu0 0.0
    %7104 = vmatpush2.msra.mxu0 0.0
    %7105 = vmatprep.subr.mxu0 0.0
    %7106 = vmatpush2.msra.mxu0 0.0
    %7107 = vmatprep.subr.mxu0 0.0
    %7108 = vmatpush2.msra.mxu0 0.0
    %7109 = vmatprep.subr.mxu0 0.0
    %7110 = vmatpush2.msra.mxu0 0.0
    %7111 = vmatprep.mubr.f32.mxu0 0.0
    %7112 = vmatmul.mubr.f32.gmra.mxu0 %v7002
    %v7113 = vpop.f32.mrf.mxu0
    %v7114 = vadd.f32 %v7045, %v7113
    %v7115 = vpop.f32.mrf.mxu0
    %7116 = vdwg.mxu0
    %v7117 = vmax.f32 %v7114, 0.0
    %v7119 = vlaneseq
    %v7120 = vshrl.u32 %v7119, 7
    %v7121 = vsub.s32 0, %v7120
    %v7122 = vrot.slane %v7040, %v7121
    %7124 = vmatprep.subr.mxu0 0.0
    %7125 = vmatpush1.msra.mxu0 %v7038
    %7126 = vmatprep.subr.mxu0 0.0
    %7127 = vmatpush1.msra.mxu0 %v7037
    %7128 = vmatprep.subr.mxu0 0.0
    %7129 = vmatpush1.msra.mxu0 %v7036
    %7130 = vmatprep.subr.mxu0 0.0
    %7131 = vmatpush1.msra.mxu0 %v7035
    %7132 = vmatprep.subr.mxu0 0.0
    %7133 = vmatpush1.msra.mxu0 %v7034
    %7134 = vmatprep.subr.mxu0 0.0
    %7135 = vmatpush1.msra.mxu0 %v7033
    %7136 = vmatprep.subr.mxu0 0.0
    %7137 = vmatpush1.msra.mxu0 %v7032
    %7138 = vmatprep.subr.mxu0 0.0
    %7139 = vmatpush1.msra.mxu0 %v7031
    %7140 = vmatprep.subr.mxu0 0.0
    %7141 = vmatpush1.msra.mxu0 %v7030
    %7142 = vmatprep.subr.mxu0 0.0
    %7143 = vmatpush1.msra.mxu0 %v7029
    %7144 = vmatprep.subr.mxu0 0.0
    %7145 = vmatpush1.msra.mxu0 %v7028
    %7146 = vmatprep.subr.mxu0 0.0
    %7147 = vmatpush1.msra.mxu0 %v7027
    %7148 = vmatprep.subr.mxu0 0.0
    %7149 = vmatpush1.msra.mxu0 %v7026
    %7150 = vmatprep.subr.mxu0 0.0
    %7151 = vmatpush1.msra.mxu0 %v7025
    %7152 = vmatprep.subr.mxu0 0.0
    %7153 = vmatpush1.msra.mxu0 %v7024
    %7154 = vmatprep.subr.mxu0 0.0
    %7155 = vmatpush1.msra.mxu0 %v7023
    %7156 = vmatprep.subr.mxu0 0.0
    %7157 = vmatpush2.msra.mxu0 0.0
    %7158 = vmatprep.subr.mxu0 0.0
    %7159 = vmatpush2.msra.mxu0 0.0
    %7160 = vmatprep.subr.mxu0 0.0
    %7161 = vmatpush2.msra.mxu0 0.0
    %7162 = vmatprep.subr.mxu0 0.0
    %7163 = vmatpush2.msra.mxu0 0.0
    %7164 = vmatprep.subr.mxu0 0.0
    %7165 = vmatpush2.msra.mxu0 0.0
    %7166 = vmatprep.subr.mxu0 0.0
    %7167 = vmatpush2.msra.mxu0 0.0
    %7168 = vmatprep.subr.mxu0 0.0
    %7169 = vmatpush2.msra.mxu0 0.0
    %7170 = vmatprep.subr.mxu0 0.0
    %7171 = vmatpush2.msra.mxu0 0.0
    %7172 = vmatprep.subr.mxu0 0.0
    %7173 = vmatpush2.msra.mxu0 0.0
    %7174 = vmatprep.subr.mxu0 0.0
    %7175 = vmatpush2.msra.mxu0 0.0
    %7176 = vmatprep.subr.mxu0 0.0
    %7177 = vmatpush2.msra.mxu0 0.0
    %7178 = vmatprep.subr.mxu0 0.0
    %7179 = vmatpush2.msra.mxu0 0.0
    %7180 = vmatprep.subr.mxu0 0.0
    %7181 = vmatpush2.msra.mxu0 0.0
    %7182 = vmatprep.subr.mxu0 0.0
    %7183 = vmatpush2.msra.mxu0 0.0
    %7184 = vmatprep.subr.mxu0 0.0
    %7185 = vmatpush2.msra.mxu0 0.0
    %7186 = vmatprep.subr.mxu0 0.0
    %7187 = vmatpush2.msra.mxu0 0.0
    %7188 = vmatprep.mubr.f32.mxu0 0.0
    %7189 = vmatmul.mubr.f32.gmra.mxu0 %v7117
    %v7190 = vpop.f32.mrf.mxu0
    %v7191 = vadd.f32 %v7122, %v7190
    %v7192 = vpop.f32.mrf.mxu0
    %7193 = vdwg.mxu0
    %s7194 = scalar_lea.vmem [#allocation22], 1
    %v7195 = vld [vmem:[%s7194] sm:$0x1]
    %s7196 = scalar_lea.vmem [#allocation20], 1
    %v7197 = vld [vmem:[%s7196] sm:$0x1]
    %v7198 = vadd.f32 %v7002, %v7191
    %v7199 = vmul.f32 %v7198, %v501
    %7200 = vadd.xlane.f32.xlu0 %v7199
    %v7201 = vpop.xlane.xlu0 %7200
    %v7202 = vmul.f32 %v7201, 0.03125
    %v7203 = vsub.f32 %v7198, %v7202
    %v7204 = vmul.f32 %v7203, %v501
    %v7205 = vmul.f32 %v7204, %v7204
    %7206 = vadd.xlane.f32.xlu0 %v7205
    %v7207 = vpop.xlane.xlu0 %7206
    %v7208 = vmul.f32 %v7207, 0.03125
    %v7209 = vadd.f32 %v7208, 1e-05
    %v7210 = vrsqrt.pop %v7209
    %v7211 = vmul.f32 %v7204, %v7210
    %v7213 = vlaneseq
    %v7214 = vshrl.u32 %v7213, 7
    %v7215 = vsub.s32 0, %v7214
    %v7216 = vrot.slane %v7195, %v7215
    %v7218 = vmul.f32 %v7211, %v7216
    %v7220 = vlaneseq
    %v7221 = vshrl.u32 %v7220, 7
    %v7222 = vsub.s32 0, %v7221
    %v7223 = vrot.slane %v7197, %v7222
    %v7225 = vadd.f32 %v7218, %v7223
    %v7226 = vld [vmem:[#allocation40] sm:$0xff]
    %v7227 = vld [vmem:[#allocation40 + $0x8] sm:$0xff]
    %v7228 = vld [vmem:[#allocation40 + $0x10] sm:$0xff]
    %v7229 = vld [vmem:[#allocation40 + $0x18] sm:$0xff]
    %v7230 = vld [vmem:[#allocation40 + $0x20] sm:$0xff]
    %v7231 = vld [vmem:[#allocation40 + $0x28] sm:$0xff]
    %v7232 = vld [vmem:[#allocation40 + $0x30] sm:$0xff]
    %v7233 = vld [vmem:[#allocation40 + $0x38] sm:$0xff]
    %v7234 = vld [vmem:[#allocation40 + $0x40] sm:$0xff]
    %v7235 = vld [vmem:[#allocation40 + $0x48] sm:$0xff]
    %v7236 = vld [vmem:[#allocation40 + $0x50] sm:$0xff]
    %v7237 = vld [vmem:[#allocation40 + $0x58] sm:$0xff]
    %v7238 = vld [vmem:[#allocation40 + $0x60] sm:$0xff]
    %v7239 = vld [vmem:[#allocation40 + $0x68] sm:$0xff]
    %v7240 = vld [vmem:[#allocation40 + $0x70] sm:$0xff]
    %v7241 = vld [vmem:[#allocation40 + $0x78] sm:$0xff]
    %v7242 = vld [vmem:[%s65] sm:$0x1]
    %v7244 = vlaneseq
    %v7245 = vshrl.u32 %v7244, 7
    %v7246 = vsub.s32 0, %v7245
    %v7247 = vrot.slane %v7242, %v7246
    %7249 = vmatprep.subr.mxu0 0.0
    %7250 = vmatpush1.msra.mxu0 %v7241
    %7251 = vmatprep.subr.mxu0 0.0
    %7252 = vmatpush1.msra.mxu0 %v7240
    %7253 = vmatprep.subr.mxu0 0.0
    %7254 = vmatpush1.msra.mxu0 %v7239
    %7255 = vmatprep.subr.mxu0 0.0
    %7256 = vmatpush1.msra.mxu0 %v7238
    %7257 = vmatprep.subr.mxu0 0.0
    %7258 = vmatpush1.msra.mxu0 %v7237
    %7259 = vmatprep.subr.mxu0 0.0
    %7260 = vmatpush1.msra.mxu0 %v7236
    %7261 = vmatprep.subr.mxu0 0.0
    %7262 = vmatpush1.msra.mxu0 %v7235
    %7263 = vmatprep.subr.mxu0 0.0
    %7264 = vmatpush1.msra.mxu0 %v7234
    %7265 = vmatprep.subr.mxu0 0.0
    %7266 = vmatpush1.msra.mxu0 %v7233
    %7267 = vmatprep.subr.mxu0 0.0
    %7268 = vmatpush1.msra.mxu0 %v7232
    %7269 = vmatprep.subr.mxu0 0.0
    %7270 = vmatpush1.msra.mxu0 %v7231
    %7271 = vmatprep.subr.mxu0 0.0
    %7272 = vmatpush1.msra.mxu0 %v7230
    %7273 = vmatprep.subr.mxu0 0.0
    %7274 = vmatpush1.msra.mxu0 %v7229
    %7275 = vmatprep.subr.mxu0 0.0
    %7276 = vmatpush1.msra.mxu0 %v7228
    %7277 = vmatprep.subr.mxu0 0.0
    %7278 = vmatpush1.msra.mxu0 %v7227
    %7279 = vmatprep.subr.mxu0 0.0
    %7280 = vmatpush1.msra.mxu0 %v7226
    %7281 = vmatprep.subr.mxu0 0.0
    %7282 = vmatpush2.msra.mxu0 0.0
    %7283 = vmatprep.subr.mxu0 0.0
    %7284 = vmatpush2.msra.mxu0 0.0
    %7285 = vmatprep.subr.mxu0 0.0
    %7286 = vmatpush2.msra.mxu0 0.0
    %7287 = vmatprep.subr.mxu0 0.0
    %7288 = vmatpush2.msra.mxu0 0.0
    %7289 = vmatprep.subr.mxu0 0.0
    %7290 = vmatpush2.msra.mxu0 0.0
    %7291 = vmatprep.subr.mxu0 0.0
    %7292 = vmatpush2.msra.mxu0 0.0
    %7293 = vmatprep.subr.mxu0 0.0
    %7294 = vmatpush2.msra.mxu0 0.0
    %7295 = vmatprep.subr.mxu0 0.0
    %7296 = vmatpush2.msra.mxu0 0.0
    %7297 = vmatprep.subr.mxu0 0.0
    %7298 = vmatpush2.msra.mxu0 0.0
    %7299 = vmatprep.subr.mxu0 0.0
    %7300 = vmatpush2.msra.mxu0 0.0
    %7301 = vmatprep.subr.mxu0 0.0
    %7302 = vmatpush2.msra.mxu0 0.0
    %7303 = vmatprep.subr.mxu0 0.0
    %7304 = vmatpush2.msra.mxu0 0.0
    %7305 = vmatprep.subr.mxu0 0.0
    %7306 = vmatpush2.msra.mxu0 0.0
    %7307 = vmatprep.subr.mxu0 0.0
    %7308 = vmatpush2.msra.mxu0 0.0
    %7309 = vmatprep.subr.mxu0 0.0
    %7310 = vmatpush2.msra.mxu0 0.0
    %7311 = vmatprep.subr.mxu0 0.0
    %7312 = vmatpush2.msra.mxu0 0.0
    %7313 = vmatprep.mubr.f32.mxu0 0.0
    %7314 = vmatmul.mubr.f32.gmra.mxu0 %v7225
    %v7315 = vpop.f32.mrf.mxu0
    %v7316 = vadd.f32 %v7247, %v7315
    %v7317 = vpop.f32.mrf.mxu0
    %7318 = vdwg.mxu0
    %v7319 = vrot.slane %v7316, 4
    %v7320 = vmax.f32 %v7316, %v7319
    %v7321 = vrot.slane %v7320, 2
    %v7322 = vmax.f32 %v7320, %v7321
    %v7323 = vrot.slane %v7322, 1
    %v7324 = vmax.f32 %v7322, %v7323
    %v7325 = vsub.f32 %v7316, %v7324
    %v7326 = vmul.f32 %v7325, 1.442695
    %v7327 = vpow.pop %v7326
    %v7328 = vrot.slane %v7327, 4
    %v7329 = vadd.f32 %v7327, %v7328
    %v7330 = vrot.slane %v7329, 2
    %v7331 = vadd.f32 %v7329, %v7330
    %v7332 = vrot.slane %v7331, 1
    %v7333 = vadd.f32 %v7331, %v7332
    %v7334 = vrcp.pop %v7333
    %v7335 = vmul.f32 %v7327, %v7334
    %7336 = vst [vmem:[#allocation41] sm:$0xff] %v7335
    // Predicated region
    $region254: #{transformer_forward.1} parent=1 // pred_check
      _
    $region255: #{transformer_forward.1} parent=1 // pred_check_branch
      %7338 = sbr.rel (0) target = $region257
    $region256: #{transformer_forward.1} parent=1 // pred_region
      %s7340 = ssub.s32 128, 128
      %7341 = vsyncadd [#allocation4], %s7340
      %s7343 = sshll.u32 [#allocation41], 4
      %s7344 = int_to_ptr.vmem [resolvable:$true] %s7343
      %7346 = dma.vmem_to_hbm [thread:$0]  %s7344, 128, %s77, [#allocation4]
    $region257: #{transformer_forward.1} parent=1 // pred_fallthru
      _
    // Predicated region
    $region258: #{transformer_forward.1} parent=1 // pred_check
      _
    $region259: #{transformer_forward.1} parent=1 // pred_check_branch
      %7348 = sbr.rel (0) target = $region261
    $region260: #{transformer_forward.1} parent=1 // pred_region
      %7349 = dma.done [#allocation4], 128
    $region261: #{transformer_forward.1} parent=1 // pred_fallthru
      _
    %7350 = vsyncpa [#allocation3], 1
    %7351 = vsyncpa [#allocation6], 1
    %7352 = vsyncpa [#allocation9], 1
    %7353 = vsyncpa [#allocation12], 1
    %7354 = vsyncpa [#allocation15], 1
    %7355 = vsyncpa [#allocation18], 1
    %7356 = vsyncpa [#allocation21], 1
    %7357 = vsyncpa [#allocation24], 1
    %7358 = vsyncpa [#allocation27], 1
    %7359 = vsyncpa [#allocation30], 1
    %7360 = vsyncpa [#allocation33], 1
    %7361 = vsyncpa [#allocation36], 1
    %7362 = vsyncpa [#allocation39], 1
    %7363 = vsyncpa [#allocation4], 1

</llo_original>
